<compile_context>
chip_gen: v7x
topology: tpu7x:2x2x1
jax: 0.10.0
libtpu: 0.0.40
codegen_flags: <defaults>
</compile_context>

<pallas_src>
import functools

import jax
import jax.numpy as jnp
import numpy as np
from jax import lax
from jax.experimental import pallas as pl
from jax.experimental.pallas import tpu as pltpu

EPS = 1e-5
LANE = 128
# bfloat16 MXU operands (f32 accumulation): ~2-3x MXU throughput on
# v5e/v6e/v7x.  Flip to jnp.float32 for exact parity with the f32 reference.
MXU_INPUT_DTYPE = jnp.bfloat16
VMEM_LIMIT = 48 * 1024 * 1024


def _round_up(v, m):
    return (v + m - 1) // m * m


def _conv_bn_stats_kernel(*refs, H, W, TILE_H, C, pre_act):
    """[bn-fold + relu] -> 3x3 conv (stride 1, pad 1) -> per-band BN partials.

    pre_act=False: refs = (x, w, y, stats, pad_scratch)
    pre_act=True:  refs = (x, w, scale, shift, y, stats, pad_scratch)

    x:     (1, H*W, C)   resident full image (block index depends only on n)
    w:     (9, C, C)     resident conv taps, already in MXU dtype
    y:     (1, TILE_H*W, C) output band
    stats: (1, 1, 2, C)  per-(image, band) [sum, sum_sq] BN partials
    pad_scratch: (H+2, W, C) f32, H-padded activation filled at band == 0.
    """
    if pre_act:
        x_ref, w_ref, scale_ref, shift_ref, y_ref, stats_ref, pad_ref = refs
    else:
        x_ref, w_ref, y_ref, stats_ref, pad_ref = refs

    b = pl.program_id(1)

    @pl.when(b == 0)
    def _fill_padded_image():
        a = x_ref[0].astype(jnp.float32)                      # (H*W, C)
        if pre_act:
            # Previous BN folded into one FMA, then ReLU (conv2's input).
            a = jnp.maximum(a * scale_ref[...] + shift_ref[...], 0.0)
        pad_ref[0] = jnp.zeros((W, C), jnp.float32)
        pad_ref[H + 1] = jnp.zeros((W, C), jnp.float32)
        pad_ref[pl.ds(1, H)] = a.reshape(H, W, C)

    M = TILE_H * W
    r0 = pl.multiple_of(b * TILE_H, TILE_H)
    col = lax.broadcasted_iota(jnp.int32, (M, 1), 0) % W       # output column
    acc = jnp.zeros((M, C), jnp.float32)
    for dy in range(3):
        # Outer-axis slab slice from the resident padded image: tile-aligned.
        rows = pad_ref[pl.ds(r0 + dy, TILE_H)].reshape(M, C)
        for dx in range(3):
            if dx == 1:
                tap = rows
            else:
                # dx=0 needs input col c-1 (roll +1); dx=2 needs c+1 (roll -1,
                # expressed mod M).  Zero the wrapped edge column via iota mask.
                rolled = pltpu.roll(rows, shift=(1 - dx) % M, axis=0)
                valid = (col >= 1) if dx == 0 else (col <= W - 2)
                tap = jnp.where(valid, rolled, 0.0)
            acc = acc + jnp.dot(tap.astype(w_ref.dtype), w_ref[dy * 3 + dx],
                                preferred_element_type=jnp.float32)

    y_ref[0] = acc
    s = jnp.sum(acc, axis=0, keepdims=True)
    sq = jnp.sum(acc * acc, axis=0, keepdims=True)
    stats_ref[...] = jnp.concatenate([s, sq], axis=0).reshape(1, 1, 2, C)


def _bn_add_relu_kernel(y_ref, id_ref, scale_ref, shift_ref, o_ref):
    """out = relu(bn2(conv2_out) + identity); bn2 folded into scale/shift."""
    # TODO(synk): when chaining BasicBlocks, fold this into the next block's
    #             pre_act conv fill to save one activation read+write.
    o_ref[0] = jnp.maximum(
        y_ref[0] * scale_ref[...] + shift_ref[...] + id_ref[0], 0.0)


def _bn_scale_shift(stats, gamma, beta, count):
    """Fold training-mode BN (batch stats, biased var) into per-channel FMA."""
    s = jnp.sum(stats.astype(jnp.float32), axis=(0, 1))        # (2, C)
    mean = s[0] / count
    var = jnp.maximum(s[1] / count - mean * mean, 0.0)
    scale = gamma * lax.rsqrt(var + EPS)
    shift = beta - mean * scale
    return scale.reshape(1, -1), shift.reshape(1, -1)


@jax.jit
def basic_block_forward(x_nchw, w1, g1, b1, w2, g2, b2):
    """BasicBlock forward.  x_nchw: (N, C, H, W) f32; conv weights in HWIO."""
    N, C, H, W = x_nchw.shape
    Cout = w1.shape[-1]
    if Cout != C:
        # Residual path requires inplanes == planes when downsample is None.
        raise ValueError("BasicBlock kernel requires inplanes == planes "
                         "(stride=1, downsample=None).")

    Cp = _round_up(max(C, LANE), LANE)          # lane-dense channel padding
    pad_c = Cp - C
    TILE_H = max(t for t in range(1, min(H, 8) + 1) if H % t == 0)
    if (TILE_H * W) % 8 != 0:                   # keep band blocks sublane-aligned
        TILE_H = H
    NB = H // TILE_H
    count = N * H * W

    # NCHW -> NHWC, pad channels, flatten spatial (free, row-major reshape).
    x = jnp.transpose(x_nchw, (0, 2, 3, 1))
    x = jnp.pad(x, ((0, 0), (0, 0), (0, 0), (0, pad_c)))
    x_flat = x.reshape(N, H * W, Cp)

    def prep_w(w):                              # (3,3,C,C) HWIO -> (9, Cp, Cp)
        wp = jnp.pad(w, ((0, 0), (0, 0), (0, pad_c), (0, pad_c)))
        return wp.reshape(9, Cp, Cp).astype(MXU_INPUT_DTYPE)

    w1f, w2f = prep_w(w1), prep_w(w2)
    g1p, b1p = jnp.pad(g1, (0, pad_c)), jnp.pad(b1, (0, pad_c))
    g2p, b2p = jnp.pad(g2, (0, pad_c)), jnp.pad(b2, (0, pad_c))

    Mband = TILE_H * W
    img_spec = pl.BlockSpec((1, H * W, Cp), lambda n, b: (n, 0, 0))
    band_spec = pl.BlockSpec((1, Mband, Cp), lambda n, b: (n, b, 0))
    stats_spec = pl.BlockSpec((1, 1, 2, Cp), lambda n, b: (n, b, 0, 0))
    vec_spec = pl.BlockSpec((1, Cp), lambda n, b: (0, 0))
    wgt_spec = pl.BlockSpec((9, Cp, Cp), lambda n, b: (0, 0, 0))

    conv_params = pltpu.CompilerParams(
        dimension_semantics=("parallel", "arbitrary"),
        vmem_limit_bytes=VMEM_LIMIT)
    ew_params = pltpu.CompilerParams(
        dimension_semantics=("parallel", "parallel"),
        vmem_limit_bytes=VMEM_LIMIT)

    conv_out = (jax.ShapeDtypeStruct((N, H * W, Cp), jnp.float32),
                jax.ShapeDtypeStruct((N, NB, 2, Cp), jnp.float32))
    conv_scratch = [pltpu.VMEM((H + 2, W, Cp), jnp.float32)]
    wbytes = 9 * Cp * Cp * np.dtype(MXU_INPUT_DTYPE).itemsize
    conv_cost = pl.CostEstimate(
        flops=2 * count * 9 * Cp * Cp, transcendentals=0,
        bytes_accessed=4 * 2 * N * H * W * Cp + wbytes + 4 * N * NB * 2 * Cp)

    # --- conv1 + BN1 partial statistics ----------------------------------
    y1, st1 = pl.pallas_call(
        functools.partial(_conv_bn_stats_kernel,
                          H=H, W=W, TILE_H=TILE_H, C=Cp, pre_act=False),
        out_shape=conv_out,
        grid_spec=pltpu.PrefetchScalarGridSpec(
            num_scalar_prefetch=0, grid=(N, NB),
            in_specs=[img_spec, wgt_spec],
            out_specs=[band_spec, stats_spec],
            scratch_shapes=conv_scratch),
        compiler_params=conv_params,
        cost_estimate=conv_cost,
    )(x_flat, w1f)

    scale1, shift1 = _bn_scale_shift(st1, g1p, b1p, count)      # tiny (Cp,) glue

    # --- bn1 + relu + conv2 + BN2 partial statistics (y2 aliases y1) ------
    y2, st2 = pl.pallas_call(
        functools.partial(_conv_bn_stats_kernel,
                          H=H, W=W, TILE_H=TILE_H, C=Cp, pre_act=True),
        out_shape=conv_out,
        grid_spec=pltpu.PrefetchScalarGridSpec(
            num_scalar_prefetch=0, grid=(N, NB),
            in_specs=[img_spec, wgt_spec, vec_spec, vec_spec],
            out_specs=[band_spec, stats_spec],
            scratch_shapes=conv_scratch),
        compiler_params=conv_params,
        cost_estimate=conv_cost,
        input_output_aliases={0: 0},
    )(y1, w2f, scale1, shift1)

    scale2, shift2 = _bn_scale_shift(st2, g2p, b2p, count)

    # --- bn2 + residual add + relu (output aliases y2) --------------------
    out_flat = pl.pallas_call(
        _bn_add_relu_kernel,
        out_shape=jax.ShapeDtypeStruct((N, H * W, Cp), jnp.float32),
        grid_spec=pltpu.PrefetchScalarGridSpec(
            num_scalar_prefetch=0, grid=(N, NB),
            in_specs=[band_spec, band_spec, vec_spec, vec_spec],
            out_specs=band_spec),
        compiler_params=ew_params,
        cost_estimate=pl.CostEstimate(
            flops=4 * count * Cp, transcendentals=0,
            bytes_accessed=4 * 3 * N * H * W * Cp),
        input_output_aliases={0: 0},
    )(y2, x_flat, scale2, shift2)

    out = out_flat.reshape(N, H, W, Cp)[..., :C]
    return jnp.transpose(out, (0, 3, 1, 2))                    # NHWC -> NCHW


def _reference_forward(x_nchw, w1, g1, b1, w2, g2, b2):
    """Pure-JAX f32 reference (training-mode BatchNorm, biased variance)."""
    x = jnp.transpose(x_nchw, (0, 2, 3, 1))

    def conv(y, w):
        return lax.conv_general_dilated(
            y, w, window_strides=(1, 1), padding=((1, 1), (1, 1)),
            dimension_numbers=("NHWC", "HWIO", "NHWC"))

    def bn(y, g, b):
        m = jnp.mean(y, axis=(0, 1, 2), keepdims=True)
        v = jnp.mean(jnp.square(y - m), axis=(0, 1, 2), keepdims=True)
        return (y - m) * lax.rsqrt(v + EPS) * g.reshape(1, 1, 1, -1) \
            + b.reshape(1, 1, 1, -1)

    y = jnp.maximum(bn(conv(x, w1), g1, b1), 0.0)
    y = bn(conv(y, w2), g2, b2) + x
    return jnp.transpose(jnp.maximum(y, 0.0), (0, 3, 1, 2))


if __name__ == "__main__":
    key = jax.random.PRNGKey(0)
    N, C, H, W = 2, 4, 16, 16            # inplanes = planes = 4, stride = 1
    k = jax.random.split(key, 7)

    x = jax.random.normal(k[0], (N, C, H, W), jnp.float32)
    # conv weights in HWIO layout: (3, 3, Cin, Cout), bias=False
    w1 = jax.random.normal(k[1], (3, 3, C, C), jnp.float32) * 0.1
    w2 = jax.random.normal(k[2], (3, 3, C, C), jnp.float32) * 0.1
    # BatchNorm affine params (non-trivial to exercise the math)
    g1 = 1.0 + 0.1 * jax.random.normal(k[3], (C,), jnp.float32)
    b1 = 0.1 * jax.random.normal(k[4], (C,), jnp.float32)
    g2 = 1.0 + 0.1 * jax.random.normal(k[5], (C,), jnp.float32)
    b2 = 0.1 * jax.random.normal(k[6], (C,), jnp.float32)

    out = jax.block_until_ready(basic_block_forward(x, w1, g1, b1, w2, g2, b2))
    ref = jax.block_until_ready(_reference_forward(x, w1, g1, b1, w2, g2, b2))

    assert out.shape == (N, C, H, W) and out.dtype == jnp.float32
    # bf16 MXU operands (f32 accumulation) need a looser tolerance than f32.
    tol = 1e-3 if MXU_INPUT_DTYPE is jnp.float32 else 5e-2
    np.testing.assert_allclose(np.asarray(out), np.asarray(ref),
                               rtol=tol, atol=tol)
    print("KERNEL_OK")
</pallas_src>

<mosaic_0001>
module attributes {stable_mosaic.version = 11 : i64} {
  func.func @_conv_bn_stats_kernel(%arg0: i32, %arg1: i32, %arg2: memref<1x256x128xf32, #tpu.memory_space<vmem>>, %arg3: memref<9x128x128xbf16, #tpu.memory_space<vmem>>, %arg4: memref<1x128x128xf32, #tpu.memory_space<vmem>>, %arg5: memref<1x1x2x128xf32, #tpu.memory_space<vmem>>, %arg6: memref<18x16x128xf32, #tpu.memory_space<vmem>>) attributes {dimension_semantics = [#tpu.dimension_semantics<parallel>, #tpu.dimension_semantics<arbitrary>], iteration_bounds = array<i64: 2, 2>, scalar_prefetch = 0 : i64, scratch_operands = 1 : i64, tpu.core_type = #tpu.core_type<tc>, window_params = [{transform_indices = @transform_0, window_bounds = array<i64: 1, 256, 128>}, {pipeline_mode = #tpu.pipeline_mode<synchronous>, transform_indices = @transform_1, window_bounds = array<i64: 9, 128, 128>}, {transform_indices = @transform_2, window_bounds = array<i64: 1, 128, 128>}, {transform_indices = @transform_3, window_bounds = array<i64: 1, 1, 2, 128>}]} {
    %c0_i32 = arith.constant 0 : i32
    %0 = arith.cmpi eq, %arg1, %c0_i32 : i32
    %1 = arith.extui %0 : i1 to i32
    %c0_i32_0 = arith.constant 0 : i32
    %2 = arith.cmpi ne, %1, %c0_i32_0 : i32
    scf.if %2 {
      %c0_65 = arith.constant 0 : index
      %c0_66 = arith.constant 0 : index
      %c0_67 = arith.constant 0 : index
      %133 = vector.load %arg2[%c0_65, %c0_66, %c0_67] : memref<1x256x128xf32, #tpu.memory_space<vmem>>, vector<1x256x128xf32>
      %134 = vector.shape_cast %133 : vector<1x256x128xf32> to vector<256x128xf32>
      %cst_68 = arith.constant 0.000000e+00 : f32
      %135 = vector.broadcast %cst_68 : f32 to vector<16x128xf32>
      %c0_69 = arith.constant 0 : index
      %c0_70 = arith.constant 0 : index
      %c0_71 = arith.constant 0 : index
      %136 = vector.load %arg6[%c0_69, %c0_70, %c0_71] : memref<18x16x128xf32, #tpu.memory_space<vmem>>, vector<1x16x128xf32>
      %137 = vector.shape_cast %136 : vector<1x16x128xf32> to vector<16x128xf32>
      %138 = vector.shape_cast %135 : vector<16x128xf32> to vector<1x16x128xf32>
      tpu.vector_store %arg6[%c0_69, %c0_70, %c0_71], %138 {strides = array<i32>} : memref<18x16x128xf32, #tpu.memory_space<vmem>>, vector<1x16x128xf32>,
      %cst_72 = arith.constant 0.000000e+00 : f32
      %139 = vector.broadcast %cst_72 : f32 to vector<16x128xf32>
      %c17 = arith.constant 17 : index
      %c0_73 = arith.constant 0 : index
      %c0_74 = arith.constant 0 : index
      %140 = vector.load %arg6[%c17, %c0_73, %c0_74] : memref<18x16x128xf32, #tpu.memory_space<vmem>>, vector<1x16x128xf32>
      %141 = vector.shape_cast %140 : vector<1x16x128xf32> to vector<16x128xf32>
      %142 = vector.shape_cast %139 : vector<16x128xf32> to vector<1x16x128xf32>
      tpu.vector_store %arg6[%c17, %c0_73, %c0_74], %142 {strides = array<i32>} : memref<18x16x128xf32, #tpu.memory_space<vmem>>, vector<1x16x128xf32>,
      %143 = vector.shape_cast %134 : vector<256x128xf32> to vector<16x16x128xf32>
      %c1_75 = arith.constant 1 : index
      %c0_76 = arith.constant 0 : index
      %c0_77 = arith.constant 0 : index
      %144 = vector.load %arg6[%c1_75, %c0_76, %c0_77] : memref<18x16x128xf32, #tpu.memory_space<vmem>>, vector<16x16x128xf32>
      tpu.vector_store %arg6[%c1_75, %c0_76, %c0_77], %143 {strides = array<i32>} : memref<18x16x128xf32, #tpu.memory_space<vmem>>, vector<16x16x128xf32>,
    } else {
    }
    %c8_i32 = arith.constant 8 : i32
    %3 = arith.muli %arg1, %c8_i32 : i32
    %4 = tpu.assume_multiple %3, 8 : i32
    %5 = tpu.iota {dimensions = array<i32: 0>} : vector<128x1xi32>
    %c16_i32 = arith.constant 16 : i32
    %c0_i32_1 = arith.constant 0 : i32
    %6 = arith.cmpi eq, %c16_i32, %c0_i32_1 : i32
    %c1_i32 = arith.constant 1 : i32
    %7 = arith.select %6, %c1_i32, %c16_i32 : i32
    %8 = vector.broadcast %7 : i32 to vector<128x1xi32>
    %9 = arith.remsi %5, %8 : vector<128x1xi32>
    %c0_i32_2 = arith.constant 0 : i32
    %10 = vector.broadcast %c0_i32_2 : i32 to vector<128x1xi32>
    %11 = arith.cmpi ne, %9, %10 : vector<128x1xi32>
    %c0_i32_3 = arith.constant 0 : i32
    %12 = vector.broadcast %c0_i32_3 : i32 to vector<128x1xi32>
    %13 = arith.cmpi slt, %9, %12 : vector<128x1xi32>
    %c0_i32_4 = arith.constant 0 : i32
    %14 = arith.cmpi slt, %7, %c0_i32_4 : i32
    %15 = vector.broadcast %14 : i1 to vector<128x1xi1>
    %16 = vector.broadcast %15 : vector<128x1xi1> to vector<128x1xi1>
    %17 = arith.xori %13, %16 : vector<128x1xi1>
    %18 = arith.andi %17, %11 : vector<128x1xi1>
    %19 = vector.broadcast %7 : i32 to vector<128x1xi32>
    %20 = arith.addi %9, %19 : vector<128x1xi32>
    %21 = arith.select %18, %20, %9 : vector<128x1xi1>, vector<128x1xi32>
    %cst = arith.constant 0.000000e+00 : f32
    %22 = vector.broadcast %cst : f32 to vector<128x128xf32>
    %c0_i32_5 = arith.constant 0 : i32
    %23 = arith.addi %4, %c0_i32_5 : i32
    %24 = arith.index_cast %23 : i32 to index
    %c0 = arith.constant 0 : index
    %c0_6 = arith.constant 0 : index
    %25 = vector.load %arg6[%24, %c0, %c0_6] : memref<18x16x128xf32, #tpu.memory_space<vmem>>, vector<8x16x128xf32>
    %26 = vector.shape_cast %25 : vector<8x16x128xf32> to vector<128x128xf32>
    %c1_i32_7 = arith.constant 1 : i32
    %27 = tpu.dynamic_rotate %26 by %c1_i32_7 dim 0 : vector<128x128xf32>, i32 -> vector<128x128xf32>
    %c1_i32_8 = arith.constant 1 : i32
    %28 = vector.broadcast %c1_i32_8 : i32 to vector<128x1xi32>
    %29 = arith.cmpi sge, %21, %28 : vector<128x1xi32>
    %cst_9 = arith.constant 0.000000e+00 : f32
    %30 = vector.shape_cast %29 : vector<128x1xi1> to vector<128x1xi1>
    %31 = vector.broadcast %30 : vector<128x1xi1> to vector<128x128xi1>
    %32 = vector.broadcast %cst_9 : f32 to vector<128x128xf32>
    %33 = arith.select %31, %27, %32 : vector<128x128xi1>, vector<128x128xf32>
    %34 = arith.truncf %33 : vector<128x128xf32> to vector<128x128xbf16>
    %c0_10 = arith.constant 0 : index
    %c0_11 = arith.constant 0 : index
    %c0_12 = arith.constant 0 : index
    %35 = vector.load %arg3[%c0_10, %c0_11, %c0_12] : memref<9x128x128xbf16, #tpu.memory_space<vmem>>, vector<1x128x128xbf16>
    %36 = vector.shape_cast %35 : vector<1x128x128xbf16> to vector<128x128xbf16>
    %cst_13 = arith.constant dense<0.000000e+00> : vector<128x128xf32>
    %37 = tpu.matmul %34, %36, %cst_13 {dimension_numbers = #tpu.dot_dimension_numbers<[1], [0], [0], [1], [0, 0, 1, 1], [], []>} : vector<128x128xbf16>, vector<128x128xbf16>, vector<128x128xf32> -> vector<128x128xf32>
    %38 = arith.addf %22, %37 : vector<128x128xf32>
    %39 = arith.truncf %26 : vector<128x128xf32> to vector<128x128xbf16>
    %c1 = arith.constant 1 : index
    %c0_14 = arith.constant 0 : index
    %c0_15 = arith.constant 0 : index
    %40 = vector.load %arg3[%c1, %c0_14, %c0_15] : memref<9x128x128xbf16, #tpu.memory_space<vmem>>, vector<1x128x128xbf16>
    %41 = vector.shape_cast %40 : vector<1x128x128xbf16> to vector<128x128xbf16>
    %cst_16 = arith.constant dense<0.000000e+00> : vector<128x128xf32>
    %42 = tpu.matmul %39, %41, %cst_16 {dimension_numbers = #tpu.dot_dimension_numbers<[1], [0], [0], [1], [0, 0, 1, 1], [], []>} : vector<128x128xbf16>, vector<128x128xbf16>, vector<128x128xf32> -> vector<128x128xf32>
    %43 = arith.addf %38, %42 : vector<128x128xf32>
    %c127_i32 = arith.constant 127 : i32
    %44 = tpu.dynamic_rotate %26 by %c127_i32 dim 0 : vector<128x128xf32>, i32 -> vector<128x128xf32>
    %c14_i32 = arith.constant 14 : i32
    %45 = vector.broadcast %c14_i32 : i32 to vector<128x1xi32>
    %46 = arith.cmpi sle, %21, %45 : vector<128x1xi32>
    %cst_17 = arith.constant 0.000000e+00 : f32
    %47 = vector.shape_cast %46 : vector<128x1xi1> to vector<128x1xi1>
    %48 = vector.broadcast %47 : vector<128x1xi1> to vector<128x128xi1>
    %49 = vector.broadcast %cst_17 : f32 to vector<128x128xf32>
    %50 = arith.select %48, %44, %49 : vector<128x128xi1>, vector<128x128xf32>
    %51 = arith.truncf %50 : vector<128x128xf32> to vector<128x128xbf16>
    %c2 = arith.constant 2 : index
    %c0_18 = arith.constant 0 : index
    %c0_19 = arith.constant 0 : index
    %52 = vector.load %arg3[%c2, %c0_18, %c0_19] : memref<9x128x128xbf16, #tpu.memory_space<vmem>>, vector<1x128x128xbf16>
    %53 = vector.shape_cast %52 : vector<1x128x128xbf16> to vector<128x128xbf16>
    %cst_20 = arith.constant dense<0.000000e+00> : vector<128x128xf32>
    %54 = tpu.matmul %51, %53, %cst_20 {dimension_numbers = #tpu.dot_dimension_numbers<[1], [0], [0], [1], [0, 0, 1, 1], [], []>} : vector<128x128xbf16>, vector<128x128xbf16>, vector<128x128xf32> -> vector<128x128xf32>
    %55 = arith.addf %43, %54 : vector<128x128xf32>
    %c1_i32_21 = arith.constant 1 : i32
    %56 = arith.addi %4, %c1_i32_21 : i32
    %57 = arith.index_cast %56 : i32 to index
    %c0_22 = arith.constant 0 : index
    %c0_23 = arith.constant 0 : index
    %58 = vector.load %arg6[%57, %c0_22, %c0_23] : memref<18x16x128xf32, #tpu.memory_space<vmem>>, vector<8x16x128xf32>
    %59 = vector.shape_cast %58 : vector<8x16x128xf32> to vector<128x128xf32>
    %c1_i32_24 = arith.constant 1 : i32
    %60 = tpu.dynamic_rotate %59 by %c1_i32_24 dim 0 : vector<128x128xf32>, i32 -> vector<128x128xf32>
    %c1_i32_25 = arith.constant 1 : i32
    %61 = vector.broadcast %c1_i32_25 : i32 to vector<128x1xi32>
    %62 = arith.cmpi sge, %21, %61 : vector<128x1xi32>
    %cst_26 = arith.constant 0.000000e+00 : f32
    %63 = vector.shape_cast %62 : vector<128x1xi1> to vector<128x1xi1>
    %64 = vector.broadcast %63 : vector<128x1xi1> to vector<128x128xi1>
    %65 = vector.broadcast %cst_26 : f32 to vector<128x128xf32>
    %66 = arith.select %64, %60, %65 : vector<128x128xi1>, vector<128x128xf32>
    %67 = arith.truncf %66 : vector<128x128xf32> to vector<128x128xbf16>
    %c3 = arith.constant 3 : index
    %c0_27 = arith.constant 0 : index
    %c0_28 = arith.constant 0 : index
    %68 = vector.load %arg3[%c3, %c0_27, %c0_28] : memref<9x128x128xbf16, #tpu.memory_space<vmem>>, vector<1x128x128xbf16>
    %69 = vector.shape_cast %68 : vector<1x128x128xbf16> to vector<128x128xbf16>
    %cst_29 = arith.constant dense<0.000000e+00> : vector<128x128xf32>
    %70 = tpu.matmul %67, %69, %cst_29 {dimension_numbers = #tpu.dot_dimension_numbers<[1], [0], [0], [1], [0, 0, 1, 1], [], []>} : vector<128x128xbf16>, vector<128x128xbf16>, vector<128x128xf32> -> vector<128x128xf32>
    %71 = arith.addf %55, %70 : vector<128x128xf32>
    %72 = arith.truncf %59 : vector<128x128xf32> to vector<128x128xbf16>
    %c4 = arith.constant 4 : index
    %c0_30 = arith.constant 0 : index
    %c0_31 = arith.constant 0 : index
    %73 = vector.load %arg3[%c4, %c0_30, %c0_31] : memref<9x128x128xbf16, #tpu.memory_space<vmem>>, vector<1x128x128xbf16>
    %74 = vector.shape_cast %73 : vector<1x128x128xbf16> to vector<128x128xbf16>
    %cst_32 = arith.constant dense<0.000000e+00> : vector<128x128xf32>
    %75 = tpu.matmul %72, %74, %cst_32 {dimension_numbers = #tpu.dot_dimension_numbers<[1], [0], [0], [1], [0, 0, 1, 1], [], []>} : vector<128x128xbf16>, vector<128x128xbf16>, vector<128x128xf32> -> vector<128x128xf32>
    %76 = arith.addf %71, %75 : vector<128x128xf32>
    %c127_i32_33 = arith.constant 127 : i32
    %77 = tpu.dynamic_rotate %59 by %c127_i32_33 dim 0 : vector<128x128xf32>, i32 -> vector<128x128xf32>
    %c14_i32_34 = arith.constant 14 : i32
    %78 = vector.broadcast %c14_i32_34 : i32 to vector<128x1xi32>
    %79 = arith.cmpi sle, %21, %78 : vector<128x1xi32>
    %cst_35 = arith.constant 0.000000e+00 : f32
    %80 = vector.shape_cast %79 : vector<128x1xi1> to vector<128x1xi1>
    %81 = vector.broadcast %80 : vector<128x1xi1> to vector<128x128xi1>
    %82 = vector.broadcast %cst_35 : f32 to vector<128x128xf32>
    %83 = arith.select %81, %77, %82 : vector<128x128xi1>, vector<128x128xf32>
    %84 = arith.truncf %83 : vector<128x128xf32> to vector<128x128xbf16>
    %c5 = arith.constant 5 : index
    %c0_36 = arith.constant 0 : index
    %c0_37 = arith.constant 0 : index
    %85 = vector.load %arg3[%c5, %c0_36, %c0_37] : memref<9x128x128xbf16, #tpu.memory_space<vmem>>, vector<1x128x128xbf16>
    %86 = vector.shape_cast %85 : vector<1x128x128xbf16> to vector<128x128xbf16>
    %cst_38 = arith.constant dense<0.000000e+00> : vector<128x128xf32>
    %87 = tpu.matmul %84, %86, %cst_38 {dimension_numbers = #tpu.dot_dimension_numbers<[1], [0], [0], [1], [0, 0, 1, 1], [], []>} : vector<128x128xbf16>, vector<128x128xbf16>, vector<128x128xf32> -> vector<128x128xf32>
    %88 = arith.addf %76, %87 : vector<128x128xf32>
    %c2_i32 = arith.constant 2 : i32
    %89 = arith.addi %4, %c2_i32 : i32
    %90 = arith.index_cast %89 : i32 to index
    %c0_39 = arith.constant 0 : index
    %c0_40 = arith.constant 0 : index
    %91 = vector.load %arg6[%90, %c0_39, %c0_40] : memref<18x16x128xf32, #tpu.memory_space<vmem>>, vector<8x16x128xf32>
    %92 = vector.shape_cast %91 : vector<8x16x128xf32> to vector<128x128xf32>
    %c1_i32_41 = arith.constant 1 : i32
    %93 = tpu.dynamic_rotate %92 by %c1_i32_41 dim 0 : vector<128x128xf32>, i32 -> vector<128x128xf32>
    %c1_i32_42 = arith.constant 1 : i32
    %94 = vector.broadcast %c1_i32_42 : i32 to vector<128x1xi32>
    %95 = arith.cmpi sge, %21, %94 : vector<128x1xi32>
    %cst_43 = arith.constant 0.000000e+00 : f32
    %96 = vector.shape_cast %95 : vector<128x1xi1> to vector<128x1xi1>
    %97 = vector.broadcast %96 : vector<128x1xi1> to vector<128x128xi1>
    %98 = vector.broadcast %cst_43 : f32 to vector<128x128xf32>
    %99 = arith.select %97, %93, %98 : vector<128x128xi1>, vector<128x128xf32>
    %100 = arith.truncf %99 : vector<128x128xf32> to vector<128x128xbf16>
    %c6 = arith.constant 6 : index
    %c0_44 = arith.constant 0 : index
    %c0_45 = arith.constant 0 : index
    %101 = vector.load %arg3[%c6, %c0_44, %c0_45] : memref<9x128x128xbf16, #tpu.memory_space<vmem>>, vector<1x128x128xbf16>
    %102 = vector.shape_cast %101 : vector<1x128x128xbf16> to vector<128x128xbf16>
    %cst_46 = arith.constant dense<0.000000e+00> : vector<128x128xf32>
    %103 = tpu.matmul %100, %102, %cst_46 {dimension_numbers = #tpu.dot_dimension_numbers<[1], [0], [0], [1], [0, 0, 1, 1], [], []>} : vector<128x128xbf16>, vector<128x128xbf16>, vector<128x128xf32> -> vector<128x128xf32>
    %104 = arith.addf %88, %103 : vector<128x128xf32>
    %105 = arith.truncf %92 : vector<128x128xf32> to vector<128x128xbf16>
    %c7 = arith.constant 7 : index
    %c0_47 = arith.constant 0 : index
    %c0_48 = arith.constant 0 : index
    %106 = vector.load %arg3[%c7, %c0_47, %c0_48] : memref<9x128x128xbf16, #tpu.memory_space<vmem>>, vector<1x128x128xbf16>
    %107 = vector.shape_cast %106 : vector<1x128x128xbf16> to vector<128x128xbf16>
    %cst_49 = arith.constant dense<0.000000e+00> : vector<128x128xf32>
    %108 = tpu.matmul %105, %107, %cst_49 {dimension_numbers = #tpu.dot_dimension_numbers<[1], [0], [0], [1], [0, 0, 1, 1], [], []>} : vector<128x128xbf16>, vector<128x128xbf16>, vector<128x128xf32> -> vector<128x128xf32>
    %109 = arith.addf %104, %108 : vector<128x128xf32>
    %c127_i32_50 = arith.constant 127 : i32
    %110 = tpu.dynamic_rotate %92 by %c127_i32_50 dim 0 : vector<128x128xf32>, i32 -> vector<128x128xf32>
    %c14_i32_51 = arith.constant 14 : i32
    %111 = vector.broadcast %c14_i32_51 : i32 to vector<128x1xi32>
    %112 = arith.cmpi sle, %21, %111 : vector<128x1xi32>
    %cst_52 = arith.constant 0.000000e+00 : f32
    %113 = vector.shape_cast %112 : vector<128x1xi1> to vector<128x1xi1>
    %114 = vector.broadcast %113 : vector<128x1xi1> to vector<128x128xi1>
    %115 = vector.broadcast %cst_52 : f32 to vector<128x128xf32>
    %116 = arith.select %114, %110, %115 : vector<128x128xi1>, vector<128x128xf32>
    %117 = arith.truncf %116 : vector<128x128xf32> to vector<128x128xbf16>
    %c8 = arith.constant 8 : index
    %c0_53 = arith.constant 0 : index
    %c0_54 = arith.constant 0 : index
    %118 = vector.load %arg3[%c8, %c0_53, %c0_54] : memref<9x128x128xbf16, #tpu.memory_space<vmem>>, vector<1x128x128xbf16>
    %119 = vector.shape_cast %118 : vector<1x128x128xbf16> to vector<128x128xbf16>
    %cst_55 = arith.constant dense<0.000000e+00> : vector<128x128xf32>
    %120 = tpu.matmul %117, %119, %cst_55 {dimension_numbers = #tpu.dot_dimension_numbers<[1], [0], [0], [1], [0, 0, 1, 1], [], []>} : vector<128x128xbf16>, vector<128x128xbf16>, vector<128x128xf32> -> vector<128x128xf32>
    %121 = arith.addf %109, %120 : vector<128x128xf32>
    %c0_56 = arith.constant 0 : index
    %c0_57 = arith.constant 0 : index
    %c0_58 = arith.constant 0 : index
    %122 = vector.load %arg4[%c0_56, %c0_57, %c0_58] : memref<1x128x128xf32, #tpu.memory_space<vmem>>, vector<1x128x128xf32>
    %123 = vector.shape_cast %122 : vector<1x128x128xf32> to vector<128x128xf32>
    %124 = vector.shape_cast %121 : vector<128x128xf32> to vector<1x128x128xf32>
    tpu.vector_store %arg4[%c0_56, %c0_57, %c0_58], %124 {strides = array<i32>} : memref<1x128x128xf32, #tpu.memory_space<vmem>>, vector<1x128x128xf32>,
    %cst_59 = arith.constant dense<0.000000e+00> : vector<128xf32>
    %125 = vector.multi_reduction <add>, %121, %cst_59 [0] : vector<128x128xf32> to vector<128xf32>
    %126 = vector.shape_cast %125 : vector<128xf32> to vector<1x128xf32>
    %127 = arith.mulf %121, %121 : vector<128x128xf32>
    %cst_60 = arith.constant dense<0.000000e+00> : vector<128xf32>
    %128 = vector.multi_reduction <add>, %127, %cst_60 [0] : vector<128x128xf32> to vector<128xf32>
    %129 = vector.shape_cast %128 : vector<128xf32> to vector<1x128xf32>
    %130 = tpu.concatenate %126, %129 in 0 : vector<1x128xf32>, vector<1x128xf32> -> vector<2x128xf32>
    %131 = vector.shape_cast %130 : vector<2x128xf32> to vector<1x1x2x128xf32>
    %c0_61 = arith.constant 0 : index
    %c0_62 = arith.constant 0 : index
    %c0_63 = arith.constant 0 : index
    %c0_64 = arith.constant 0 : index
    %132 = vector.load %arg5[%c0_61, %c0_62, %c0_63, %c0_64] : memref<1x1x2x128xf32, #tpu.memory_space<vmem>>, vector<1x1x2x128xf32>
    tpu.vector_store %arg5[%c0_61, %c0_62, %c0_63, %c0_64], %131 {strides = array<i32>} : memref<1x1x2x128xf32, #tpu.memory_space<vmem>>, vector<1x1x2x128xf32>,
    return
  }
  func.func @transform_0(%arg0: i32, %arg1: i32) -> (i32, i32, i32) {
    %c0_i32 = arith.constant 0 : i32
    %c0_i32_0 = arith.constant 0 : i32
    %c0_i32_1 = arith.constant 0 : i32
    return %arg0, %c0_i32, %c0_i32_0 : i32, i32, i32
  }
  func.func @transform_1(%arg0: i32, %arg1: i32) -> (i32, i32, i32) {
    %c0_i32 = arith.constant 0 : i32
    %c0_i32_0 = arith.constant 0 : i32
    %c0_i32_1 = arith.constant 0 : i32
    %c0_i32_2 = arith.constant 0 : i32
    return %c0_i32, %c0_i32_0, %c0_i32_1 : i32, i32, i32
  }
  func.func @transform_2(%arg0: i32, %arg1: i32) -> (i32, i32, i32) {
    %c0_i32 = arith.constant 0 : i32
    %c0_i32_0 = arith.constant 0 : i32
    return %arg0, %arg1, %c0_i32 : i32, i32, i32
  }
  func.func @transform_3(%arg0: i32, %arg1: i32) -> (i32, i32, i32, i32) {
    %c0_i32 = arith.constant 0 : i32
    %c0_i32_0 = arith.constant 0 : i32
    %c0_i32_1 = arith.constant 0 : i32
    return %arg0, %arg1, %c0_i32, %c0_i32_0 : i32, i32, i32, i32
  }
}

module attributes {stable_mosaic.version = 11 : i64} {
  func.func @_conv_bn_stats_kernel(%arg0: i32, %arg1: i32, %arg2: memref<1x256x128xf32, #tpu.memory_space<vmem>>, %arg3: memref<9x128x128xbf16, #tpu.memory_space<vmem>>, %arg4: memref<1x128xf32, #tpu.memory_space<vmem>>, %arg5: memref<1x128xf32, #tpu.memory_space<vmem>>, %arg6: memref<1x128x128xf32, #tpu.memory_space<vmem>>, %arg7: memref<1x1x2x128xf32, #tpu.memory_space<vmem>>, %arg8: memref<18x16x128xf32, #tpu.memory_space<vmem>>) attributes {dimension_semantics = [#tpu.dimension_semantics<parallel>, #tpu.dimension_semantics<arbitrary>], iteration_bounds = array<i64: 2, 2>, scalar_prefetch = 0 : i64, scratch_operands = 1 : i64, tpu.core_type = #tpu.core_type<tc>, window_params = [{transform_indices = @transform_0, window_bounds = array<i64: 1, 256, 128>}, {pipeline_mode = #tpu.pipeline_mode<synchronous>, transform_indices = @transform_1, window_bounds = array<i64: 9, 128, 128>}, {pipeline_mode = #tpu.pipeline_mode<synchronous>, transform_indices = @transform_2, window_bounds = array<i64: 1, 128>}, {pipeline_mode = #tpu.pipeline_mode<synchronous>, transform_indices = @transform_3, window_bounds = array<i64: 1, 128>}, {transform_indices = @transform_4, window_bounds = array<i64: 1, 128, 128>}, {transform_indices = @transform_5, window_bounds = array<i64: 1, 1, 2, 128>}]} {
    %c0_i32 = arith.constant 0 : i32
    %0 = arith.cmpi eq, %arg1, %c0_i32 : i32
    %1 = arith.extui %0 : i1 to i32
    %c0_i32_0 = arith.constant 0 : i32
    %2 = arith.cmpi ne, %1, %c0_i32_0 : i32
    scf.if %2 {
      %c0_65 = arith.constant 0 : index
      %c0_66 = arith.constant 0 : index
      %c0_67 = arith.constant 0 : index
      %133 = vector.load %arg2[%c0_65, %c0_66, %c0_67] : memref<1x256x128xf32, #tpu.memory_space<vmem>>, vector<1x256x128xf32>
      %134 = vector.shape_cast %133 : vector<1x256x128xf32> to vector<256x128xf32>
      %c0_68 = arith.constant 0 : index
      %c0_69 = arith.constant 0 : index
      %135 = vector.load %arg4[%c0_68, %c0_69] : memref<1x128xf32, #tpu.memory_space<vmem>>, vector<1x128xf32>
      %136 = vector.broadcast %135 : vector<1x128xf32> to vector<256x128xf32>
      %137 = arith.mulf %134, %136 : vector<256x128xf32>
      %c0_70 = arith.constant 0 : index
      %c0_71 = arith.constant 0 : index
      %138 = vector.load %arg5[%c0_70, %c0_71] : memref<1x128xf32, #tpu.memory_space<vmem>>, vector<1x128xf32>
      %139 = vector.broadcast %138 : vector<1x128xf32> to vector<256x128xf32>
      %140 = arith.addf %137, %139 : vector<256x128xf32>
      %cst_72 = arith.constant 0.000000e+00 : f32
      %141 = vector.broadcast %cst_72 : f32 to vector<256x128xf32>
      %142 = arith.maximumf %140, %141 : vector<256x128xf32>
      %cst_73 = arith.constant 0.000000e+00 : f32
      %143 = vector.broadcast %cst_73 : f32 to vector<16x128xf32>
      %c0_74 = arith.constant 0 : index
      %c0_75 = arith.constant 0 : index
      %c0_76 = arith.constant 0 : index
      %144 = vector.load %arg8[%c0_74, %c0_75, %c0_76] : memref<18x16x128xf32, #tpu.memory_space<vmem>>, vector<1x16x128xf32>
      %145 = vector.shape_cast %144 : vector<1x16x128xf32> to vector<16x128xf32>
      %146 = vector.shape_cast %143 : vector<16x128xf32> to vector<1x16x128xf32>
      tpu.vector_store %arg8[%c0_74, %c0_75, %c0_76], %146 {strides = array<i32>} : memref<18x16x128xf32, #tpu.memory_space<vmem>>, vector<1x16x128xf32>,
      %cst_77 = arith.constant 0.000000e+00 : f32
      %147 = vector.broadcast %cst_77 : f32 to vector<16x128xf32>
      %c17 = arith.constant 17 : index
      %c0_78 = arith.constant 0 : index
      %c0_79 = arith.constant 0 : index
      %148 = vector.load %arg8[%c17, %c0_78, %c0_79] : memref<18x16x128xf32, #tpu.memory_space<vmem>>, vector<1x16x128xf32>
      %149 = vector.shape_cast %148 : vector<1x16x128xf32> to vector<16x128xf32>
      %150 = vector.shape_cast %147 : vector<16x128xf32> to vector<1x16x128xf32>
      tpu.vector_store %arg8[%c17, %c0_78, %c0_79], %150 {strides = array<i32>} : memref<18x16x128xf32, #tpu.memory_space<vmem>>, vector<1x16x128xf32>,
      %151 = vector.shape_cast %142 : vector<256x128xf32> to vector<16x16x128xf32>
      %c1_80 = arith.constant 1 : index
      %c0_81 = arith.constant 0 : index
      %c0_82 = arith.constant 0 : index
      %152 = vector.load %arg8[%c1_80, %c0_81, %c0_82] : memref<18x16x128xf32, #tpu.memory_space<vmem>>, vector<16x16x128xf32>
      tpu.vector_store %arg8[%c1_80, %c0_81, %c0_82], %151 {strides = array<i32>} : memref<18x16x128xf32, #tpu.memory_space<vmem>>, vector<16x16x128xf32>,
    } else {
    }
    %c8_i32 = arith.constant 8 : i32
    %3 = arith.muli %arg1, %c8_i32 : i32
    %4 = tpu.assume_multiple %3, 8 : i32
    %5 = tpu.iota {dimensions = array<i32: 0>} : vector<128x1xi32>
    %c16_i32 = arith.constant 16 : i32
    %c0_i32_1 = arith.constant 0 : i32
    %6 = arith.cmpi eq, %c16_i32, %c0_i32_1 : i32
    %c1_i32 = arith.constant 1 : i32
    %7 = arith.select %6, %c1_i32, %c16_i32 : i32
    %8 = vector.broadcast %7 : i32 to vector<128x1xi32>
    %9 = arith.remsi %5, %8 : vector<128x1xi32>
    %c0_i32_2 = arith.constant 0 : i32
    %10 = vector.broadcast %c0_i32_2 : i32 to vector<128x1xi32>
    %11 = arith.cmpi ne, %9, %10 : vector<128x1xi32>
    %c0_i32_3 = arith.constant 0 : i32
    %12 = vector.broadcast %c0_i32_3 : i32 to vector<128x1xi32>
    %13 = arith.cmpi slt, %9, %12 : vector<128x1xi32>
    %c0_i32_4 = arith.constant 0 : i32
    %14 = arith.cmpi slt, %7, %c0_i32_4 : i32
    %15 = vector.broadcast %14 : i1 to vector<128x1xi1>
    %16 = vector.broadcast %15 : vector<128x1xi1> to vector<128x1xi1>
    %17 = arith.xori %13, %16 : vector<128x1xi1>
    %18 = arith.andi %17, %11 : vector<128x1xi1>
    %19 = vector.broadcast %7 : i32 to vector<128x1xi32>
    %20 = arith.addi %9, %19 : vector<128x1xi32>
    %21 = arith.select %18, %20, %9 : vector<128x1xi1>, vector<128x1xi32>
    %cst = arith.constant 0.000000e+00 : f32
    %22 = vector.broadcast %cst : f32 to vector<128x128xf32>
    %c0_i32_5 = arith.constant 0 : i32
    %23 = arith.addi %4, %c0_i32_5 : i32
    %24 = arith.index_cast %23 : i32 to index
    %c0 = arith.constant 0 : index
    %c0_6 = arith.constant 0 : index
    %25 = vector.load %arg8[%24, %c0, %c0_6] : memref<18x16x128xf32, #tpu.memory_space<vmem>>, vector<8x16x128xf32>
    %26 = vector.shape_cast %25 : vector<8x16x128xf32> to vector<128x128xf32>
    %c1_i32_7 = arith.constant 1 : i32
    %27 = tpu.dynamic_rotate %26 by %c1_i32_7 dim 0 : vector<128x128xf32>, i32 -> vector<128x128xf32>
    %c1_i32_8 = arith.constant 1 : i32
    %28 = vector.broadcast %c1_i32_8 : i32 to vector<128x1xi32>
    %29 = arith.cmpi sge, %21, %28 : vector<128x1xi32>
    %cst_9 = arith.constant 0.000000e+00 : f32
    %30 = vector.shape_cast %29 : vector<128x1xi1> to vector<128x1xi1>
    %31 = vector.broadcast %30 : vector<128x1xi1> to vector<128x128xi1>
    %32 = vector.broadcast %cst_9 : f32 to vector<128x128xf32>
    %33 = arith.select %31, %27, %32 : vector<128x128xi1>, vector<128x128xf32>
    %34 = arith.truncf %33 : vector<128x128xf32> to vector<128x128xbf16>
    %c0_10 = arith.constant 0 : index
    %c0_11 = arith.constant 0 : index
    %c0_12 = arith.constant 0 : index
    %35 = vector.load %arg3[%c0_10, %c0_11, %c0_12] : memref<9x128x128xbf16, #tpu.memory_space<vmem>>, vector<1x128x128xbf16>
    %36 = vector.shape_cast %35 : vector<1x128x128xbf16> to vector<128x128xbf16>
    %cst_13 = arith.constant dense<0.000000e+00> : vector<128x128xf32>
    %37 = tpu.matmul %34, %36, %cst_13 {dimension_numbers = #tpu.dot_dimension_numbers<[1], [0], [0], [1], [0, 0, 1, 1], [], []>} : vector<128x128xbf16>, vector<128x128xbf16>, vector<128x128xf32> -> vector<128x128xf32>
    %38 = arith.addf %22, %37 : vector<128x128xf32>
    %39 = arith.truncf %26 : vector<128x128xf32> to vector<128x128xbf16>
    %c1 = arith.constant 1 : index
    %c0_14 = arith.constant 0 : index
    %c0_15 = arith.constant 0 : index
    %40 = vector.load %arg3[%c1, %c0_14, %c0_15] : memref<9x128x128xbf16, #tpu.memory_space<vmem>>, vector<1x128x128xbf16>
    %41 = vector.shape_cast %40 : vector<1x128x128xbf16> to vector<128x128xbf16>
    %cst_16 = arith.constant dense<0.000000e+00> : vector<128x128xf32>
    %42 = tpu.matmul %39, %41, %cst_16 {dimension_numbers = #tpu.dot_dimension_numbers<[1], [0], [0], [1], [0, 0, 1, 1], [], []>} : vector<128x128xbf16>, vector<128x128xbf16>, vector<128x128xf32> -> vector<128x128xf32>
    %43 = arith.addf %38, %42 : vector<128x128xf32>
    %c127_i32 = arith.constant 127 : i32
    %44 = tpu.dynamic_rotate %26 by %c127_i32 dim 0 : vector<128x128xf32>, i32 -> vector<128x128xf32>
    %c14_i32 = arith.constant 14 : i32
    %45 = vector.broadcast %c14_i32 : i32 to vector<128x1xi32>
    %46 = arith.cmpi sle, %21, %45 : vector<128x1xi32>
    %cst_17 = arith.constant 0.000000e+00 : f32
    %47 = vector.shape_cast %46 : vector<128x1xi1> to vector<128x1xi1>
    %48 = vector.broadcast %47 : vector<128x1xi1> to vector<128x128xi1>
    %49 = vector.broadcast %cst_17 : f32 to vector<128x128xf32>
    %50 = arith.select %48, %44, %49 : vector<128x128xi1>, vector<128x128xf32>
    %51 = arith.truncf %50 : vector<128x128xf32> to vector<128x128xbf16>
    %c2 = arith.constant 2 : index
    %c0_18 = arith.constant 0 : index
    %c0_19 = arith.constant 0 : index
    %52 = vector.load %arg3[%c2, %c0_18, %c0_19] : memref<9x128x128xbf16, #tpu.memory_space<vmem>>, vector<1x128x128xbf16>
    %53 = vector.shape_cast %52 : vector<1x128x128xbf16> to vector<128x128xbf16>
    %cst_20 = arith.constant dense<0.000000e+00> : vector<128x128xf32>
    %54 = tpu.matmul %51, %53, %cst_20 {dimension_numbers = #tpu.dot_dimension_numbers<[1], [0], [0], [1], [0, 0, 1, 1], [], []>} : vector<128x128xbf16>, vector<128x128xbf16>, vector<128x128xf32> -> vector<128x128xf32>
    %55 = arith.addf %43, %54 : vector<128x128xf32>
    %c1_i32_21 = arith.constant 1 : i32
    %56 = arith.addi %4, %c1_i32_21 : i32
    %57 = arith.index_cast %56 : i32 to index
    %c0_22 = arith.constant 0 : index
    %c0_23 = arith.constant 0 : index
    %58 = vector.load %arg8[%57, %c0_22, %c0_23] : memref<18x16x128xf32, #tpu.memory_space<vmem>>, vector<8x16x128xf32>
    %59 = vector.shape_cast %58 : vector<8x16x128xf32> to vector<128x128xf32>
    %c1_i32_24 = arith.constant 1 : i32
    %60 = tpu.dynamic_rotate %59 by %c1_i32_24 dim 0 : vector<128x128xf32>, i32 -> vector<128x128xf32>
    %c1_i32_25 = arith.constant 1 : i32
    %61 = vector.broadcast %c1_i32_25 : i32 to vector<128x1xi32>
    %62 = arith.cmpi sge, %21, %61 : vector<128x1xi32>
    %cst_26 = arith.constant 0.000000e+00 : f32
    %63 = vector.shape_cast %62 : vector<128x1xi1> to vector<128x1xi1>
    %64 = vector.broadcast %63 : vector<128x1xi1> to vector<128x128xi1>
    %65 = vector.broadcast %cst_26 : f32 to vector<128x128xf32>
    %66 = arith.select %64, %60, %65 : vector<128x128xi1>, vector<128x128xf32>
    %67 = arith.truncf %66 : vector<128x128xf32> to vector<128x128xbf16>
    %c3 = arith.constant 3 : index
    %c0_27 = arith.constant 0 : index
    %c0_28 = arith.constant 0 : index
    %68 = vector.load %arg3[%c3, %c0_27, %c0_28] : memref<9x128x128xbf16, #tpu.memory_space<vmem>>, vector<1x128x128xbf16>
    %69 = vector.shape_cast %68 : vector<1x128x128xbf16> to vector<128x128xbf16>
    %cst_29 = arith.constant dense<0.000000e+00> : vector<128x128xf32>
    %70 = tpu.matmul %67, %69, %cst_29 {dimension_numbers = #tpu.dot_dimension_numbers<[1], [0], [0], [1], [0, 0, 1, 1], [], []>} : vector<128x128xbf16>, vector<128x128xbf16>, vector<128x128xf32> -> vector<128x128xf32>
    %71 = arith.addf %55, %70 : vector<128x128xf32>
    %72 = arith.truncf %59 : vector<128x128xf32> to vector<128x128xbf16>
    %c4 = arith.constant 4 : index
    %c0_30 = arith.constant 0 : index
    %c0_31 = arith.constant 0 : index
    %73 = vector.load %arg3[%c4, %c0_30, %c0_31] : memref<9x128x128xbf16, #tpu.memory_space<vmem>>, vector<1x128x128xbf16>
    %74 = vector.shape_cast %73 : vector<1x128x128xbf16> to vector<128x128xbf16>
    %cst_32 = arith.constant dense<0.000000e+00> : vector<128x128xf32>
    %75 = tpu.matmul %72, %74, %cst_32 {dimension_numbers = #tpu.dot_dimension_numbers<[1], [0], [0], [1], [0, 0, 1, 1], [], []>} : vector<128x128xbf16>, vector<128x128xbf16>, vector<128x128xf32> -> vector<128x128xf32>
    %76 = arith.addf %71, %75 : vector<128x128xf32>
    %c127_i32_33 = arith.constant 127 : i32
    %77 = tpu.dynamic_rotate %59 by %c127_i32_33 dim 0 : vector<128x128xf32>, i32 -> vector<128x128xf32>
    %c14_i32_34 = arith.constant 14 : i32
    %78 = vector.broadcast %c14_i32_34 : i32 to vector<128x1xi32>
    %79 = arith.cmpi sle, %21, %78 : vector<128x1xi32>
    %cst_35 = arith.constant 0.000000e+00 : f32
    %80 = vector.shape_cast %79 : vector<128x1xi1> to vector<128x1xi1>
    %81 = vector.broadcast %80 : vector<128x1xi1> to vector<128x128xi1>
    %82 = vector.broadcast %cst_35 : f32 to vector<128x128xf32>
    %83 = arith.select %81, %77, %82 : vector<128x128xi1>, vector<128x128xf32>
    %84 = arith.truncf %83 : vector<128x128xf32> to vector<128x128xbf16>
    %c5 = arith.constant 5 : index
    %c0_36 = arith.constant 0 : index
    %c0_37 = arith.constant 0 : index
    %85 = vector.load %arg3[%c5, %c0_36, %c0_37] : memref<9x128x128xbf16, #tpu.memory_space<vmem>>, vector<1x128x128xbf16>
    %86 = vector.shape_cast %85 : vector<1x128x128xbf16> to vector<128x128xbf16>
    %cst_38 = arith.constant dense<0.000000e+00> : vector<128x128xf32>
    %87 = tpu.matmul %84, %86, %cst_38 {dimension_numbers = #tpu.dot_dimension_numbers<[1], [0], [0], [1], [0, 0, 1, 1], [], []>} : vector<128x128xbf16>, vector<128x128xbf16>, vector<128x128xf32> -> vector<128x128xf32>
    %88 = arith.addf %76, %87 : vector<128x128xf32>
    %c2_i32 = arith.constant 2 : i32
    %89 = arith.addi %4, %c2_i32 : i32
    %90 = arith.index_cast %89 : i32 to index
    %c0_39 = arith.constant 0 : index
    %c0_40 = arith.constant 0 : index
    %91 = vector.load %arg8[%90, %c0_39, %c0_40] : memref<18x16x128xf32, #tpu.memory_space<vmem>>, vector<8x16x128xf32>
    %92 = vector.shape_cast %91 : vector<8x16x128xf32> to vector<128x128xf32>
    %c1_i32_41 = arith.constant 1 : i32
    %93 = tpu.dynamic_rotate %92 by %c1_i32_41 dim 0 : vector<128x128xf32>, i32 -> vector<128x128xf32>
    %c1_i32_42 = arith.constant 1 : i32
    %94 = vector.broadcast %c1_i32_42 : i32 to vector<128x1xi32>
    %95 = arith.cmpi sge, %21, %94 : vector<128x1xi32>
    %cst_43 = arith.constant 0.000000e+00 : f32
    %96 = vector.shape_cast %95 : vector<128x1xi1> to vector<128x1xi1>
    %97 = vector.broadcast %96 : vector<128x1xi1> to vector<128x128xi1>
    %98 = vector.broadcast %cst_43 : f32 to vector<128x128xf32>
    %99 = arith.select %97, %93, %98 : vector<128x128xi1>, vector<128x128xf32>
    %100 = arith.truncf %99 : vector<128x128xf32> to vector<128x128xbf16>
    %c6 = arith.constant 6 : index
    %c0_44 = arith.constant 0 : index
    %c0_45 = arith.constant 0 : index
    %101 = vector.load %arg3[%c6, %c0_44, %c0_45] : memref<9x128x128xbf16, #tpu.memory_space<vmem>>, vector<1x128x128xbf16>
    %102 = vector.shape_cast %101 : vector<1x128x128xbf16> to vector<128x128xbf16>
    %cst_46 = arith.constant dense<0.000000e+00> : vector<128x128xf32>
    %103 = tpu.matmul %100, %102, %cst_46 {dimension_numbers = #tpu.dot_dimension_numbers<[1], [0], [0], [1], [0, 0, 1, 1], [], []>} : vector<128x128xbf16>, vector<128x128xbf16>, vector<128x128xf32> -> vector<128x128xf32>
    %104 = arith.addf %88, %103 : vector<128x128xf32>
    %105 = arith.truncf %92 : vector<128x128xf32> to vector<128x128xbf16>
    %c7 = arith.constant 7 : index
    %c0_47 = arith.constant 0 : index
    %c0_48 = arith.constant 0 : index
    %106 = vector.load %arg3[%c7, %c0_47, %c0_48] : memref<9x128x128xbf16, #tpu.memory_space<vmem>>, vector<1x128x128xbf16>
    %107 = vector.shape_cast %106 : vector<1x128x128xbf16> to vector<128x128xbf16>
    %cst_49 = arith.constant dense<0.000000e+00> : vector<128x128xf32>
    %108 = tpu.matmul %105, %107, %cst_49 {dimension_numbers = #tpu.dot_dimension_numbers<[1], [0], [0], [1], [0, 0, 1, 1], [], []>} : vector<128x128xbf16>, vector<128x128xbf16>, vector<128x128xf32> -> vector<128x128xf32>
    %109 = arith.addf %104, %108 : vector<128x128xf32>
    %c127_i32_50 = arith.constant 127 : i32
    %110 = tpu.dynamic_rotate %92 by %c127_i32_50 dim 0 : vector<128x128xf32>, i32 -> vector<128x128xf32>
    %c14_i32_51 = arith.constant 14 : i32
    %111 = vector.broadcast %c14_i32_51 : i32 to vector<128x1xi32>
    %112 = arith.cmpi sle, %21, %111 : vector<128x1xi32>
    %cst_52 = arith.constant 0.000000e+00 : f32
    %113 = vector.shape_cast %112 : vector<128x1xi1> to vector<128x1xi1>
    %114 = vector.broadcast %113 : vector<128x1xi1> to vector<128x128xi1>
    %115 = vector.broadcast %cst_52 : f32 to vector<128x128xf32>
    %116 = arith.select %114, %110, %115 : vector<128x128xi1>, vector<128x128xf32>
    %117 = arith.truncf %116 : vector<128x128xf32> to vector<128x128xbf16>
    %c8 = arith.constant 8 : index
    %c0_53 = arith.constant 0 : index
    %c0_54 = arith.constant 0 : index
    %118 = vector.load %arg3[%c8, %c0_53, %c0_54] : memref<9x128x128xbf16, #tpu.memory_space<vmem>>, vector<1x128x128xbf16>
    %119 = vector.shape_cast %118 : vector<1x128x128xbf16> to vector<128x128xbf16>
    %cst_55 = arith.constant dense<0.000000e+00> : vector<128x128xf32>
    %120 = tpu.matmul %117, %119, %cst_55 {dimension_numbers = #tpu.dot_dimension_numbers<[1], [0], [0], [1], [0, 0, 1, 1], [], []>} : vector<128x128xbf16>, vector<128x128xbf16>, vector<128x128xf32> -> vector<128x128xf32>
    %121 = arith.addf %109, %120 : vector<128x128xf32>
    %c0_56 = arith.constant 0 : index
    %c0_57 = arith.constant 0 : index
    %c0_58 = arith.constant 0 : index
    %122 = vector.load %arg6[%c0_56, %c0_57, %c0_58] : memref<1x128x128xf32, #tpu.memory_space<vmem>>, vector<1x128x128xf32>
    %123 = vector.shape_cast %122 : vector<1x128x128xf32> to vector<128x128xf32>
    %124 = vector.shape_cast %121 : vector<128x128xf32> to vector<1x128x128xf32>
    tpu.vector_store %arg6[%c0_56, %c0_57, %c0_58], %124 {strides = array<i32>} : memref<1x128x128xf32, #tpu.memory_space<vmem>>, vector<1x128x128xf32>,
    %cst_59 = arith.constant dense<0.000000e+00> : vector<128xf32>
    %125 = vector.multi_reduction <add>, %121, %cst_59 [0] : vector<128x128xf32> to vector<128xf32>
    %126 = vector.shape_cast %125 : vector<128xf32> to vector<1x128xf32>
    %127 = arith.mulf %121, %121 : vector<128x128xf32>
    %cst_60 = arith.constant dense<0.000000e+00> : vector<128xf32>
    %128 = vector.multi_reduction <add>, %127, %cst_60 [0] : vector<128x128xf32> to vector<128xf32>
    %129 = vector.shape_cast %128 : vector<128xf32> to vector<1x128xf32>
    %130 = tpu.concatenate %126, %129 in 0 : vector<1x128xf32>, vector<1x128xf32> -> vector<2x128xf32>
    %131 = vector.shape_cast %130 : vector<2x128xf32> to vector<1x1x2x128xf32>
    %c0_61 = arith.constant 0 : index
    %c0_62 = arith.constant 0 : index
    %c0_63 = arith.constant 0 : index
    %c0_64 = arith.constant 0 : index
    %132 = vector.load %arg7[%c0_61, %c0_62, %c0_63, %c0_64] : memref<1x1x2x128xf32, #tpu.memory_space<vmem>>, vector<1x1x2x128xf32>
    tpu.vector_store %arg7[%c0_61, %c0_62, %c0_63, %c0_64], %131 {strides = array<i32>} : memref<1x1x2x128xf32, #tpu.memory_space<vmem>>, vector<1x1x2x128xf32>,
    return
  }
  func.func @transform_0(%arg0: i32, %arg1: i32) -> (i32, i32, i32) {
    %c0_i32 = arith.constant 0 : i32
    %c0_i32_0 = arith.constant 0 : i32
    %c0_i32_1 = arith.constant 0 : i32
    return %arg0, %c0_i32, %c0_i32_0 : i32, i32, i32
  }
  func.func @transform_1(%arg0: i32, %arg1: i32) -> (i32, i32, i32) {
    %c0_i32 = arith.constant 0 : i32
    %c0_i32_0 = arith.constant 0 : i32
    %c0_i32_1 = arith.constant 0 : i32
    %c0_i32_2 = arith.constant 0 : i32
    return %c0_i32, %c0_i32_0, %c0_i32_1 : i32, i32, i32
  }
  func.func @transform_2(%arg0: i32, %arg1: i32) -> (i32, i32) {
    %c0_i32 = arith.constant 0 : i32
    %c0_i32_0 = arith.constant 0 : i32
    %c0_i32_1 = arith.constant 0 : i32
    return %c0_i32, %c0_i32_0 : i32, i32
  }
  func.func @transform_3(%arg0: i32, %arg1: i32) -> (i32, i32) {
    %c0_i32 = arith.constant 0 : i32
    %c0_i32_0 = arith.constant 0 : i32
    %c0_i32_1 = arith.constant 0 : i32
    return %c0_i32, %c0_i32_0 : i32, i32
  }
  func.func @transform_4(%arg0: i32, %arg1: i32) -> (i32, i32, i32) {
    %c0_i32 = arith.constant 0 : i32
    %c0_i32_0 = arith.constant 0 : i32
    return %arg0, %arg1, %c0_i32 : i32, i32, i32
  }
  func.func @transform_5(%arg0: i32, %arg1: i32) -> (i32, i32, i32, i32) {
    %c0_i32 = arith.constant 0 : i32
    %c0_i32_0 = arith.constant 0 : i32
    %c0_i32_1 = arith.constant 0 : i32
    return %arg0, %arg1, %c0_i32, %c0_i32_0 : i32, i32, i32, i32
  }
}

module attributes {stable_mosaic.version = 11 : i64} {
  func.func @_bn_add_relu_kernel(%arg0: i32, %arg1: i32, %arg2: memref<1x128x128xf32, #tpu.memory_space<vmem>>, %arg3: memref<1x128x128xf32, #tpu.memory_space<vmem>>, %arg4: memref<1x128xf32, #tpu.memory_space<vmem>>, %arg5: memref<1x128xf32, #tpu.memory_space<vmem>>, %arg6: memref<1x128x128xf32, #tpu.memory_space<vmem>>) attributes {dimension_semantics = [#tpu.dimension_semantics<parallel>, #tpu.dimension_semantics<parallel>], iteration_bounds = array<i64: 2, 2>, scalar_prefetch = 0 : i64, scratch_operands = 0 : i64, tpu.core_type = #tpu.core_type<tc>, window_params = [{transform_indices = @transform_0, window_bounds = array<i64: 1, 128, 128>}, {transform_indices = @transform_1, window_bounds = array<i64: 1, 128, 128>}, {pipeline_mode = #tpu.pipeline_mode<synchronous>, transform_indices = @transform_2, window_bounds = array<i64: 1, 128>}, {pipeline_mode = #tpu.pipeline_mode<synchronous>, transform_indices = @transform_3, window_bounds = array<i64: 1, 128>}, {transform_indices = @transform_4, window_bounds = array<i64: 1, 128, 128>}]} {
    %c0 = arith.constant 0 : index
    %c0_0 = arith.constant 0 : index
    %c0_1 = arith.constant 0 : index
    %0 = vector.load %arg2[%c0, %c0_0, %c0_1] : memref<1x128x128xf32, #tpu.memory_space<vmem>>, vector<1x128x128xf32>
    %1 = vector.shape_cast %0 : vector<1x128x128xf32> to vector<128x128xf32>
    %c0_2 = arith.constant 0 : index
    %c0_3 = arith.constant 0 : index
    %2 = vector.load %arg4[%c0_2, %c0_3] : memref<1x128xf32, #tpu.memory_space<vmem>>, vector<1x128xf32>
    %3 = vector.broadcast %2 : vector<1x128xf32> to vector<128x128xf32>
    %4 = arith.mulf %1, %3 : vector<128x128xf32>
    %c0_4 = arith.constant 0 : index
    %c0_5 = arith.constant 0 : index
    %5 = vector.load %arg5[%c0_4, %c0_5] : memref<1x128xf32, #tpu.memory_space<vmem>>, vector<1x128xf32>
    %6 = vector.broadcast %5 : vector<1x128xf32> to vector<128x128xf32>
    %7 = arith.addf %4, %6 : vector<128x128xf32>
    %c0_6 = arith.constant 0 : index
    %c0_7 = arith.constant 0 : index
    %c0_8 = arith.constant 0 : index
    %8 = vector.load %arg3[%c0_6, %c0_7, %c0_8] : memref<1x128x128xf32, #tpu.memory_space<vmem>>, vector<1x128x128xf32>
    %9 = vector.shape_cast %8 : vector<1x128x128xf32> to vector<128x128xf32>
    %10 = arith.addf %7, %9 : vector<128x128xf32>
    %cst = arith.constant 0.000000e+00 : f32
    %11 = vector.broadcast %cst : f32 to vector<128x128xf32>
    %12 = arith.maximumf %10, %11 : vector<128x128xf32>
    %c0_9 = arith.constant 0 : index
    %c0_10 = arith.constant 0 : index
    %c0_11 = arith.constant 0 : index
    %13 = vector.load %arg6[%c0_9, %c0_10, %c0_11] : memref<1x128x128xf32, #tpu.memory_space<vmem>>, vector<1x128x128xf32>
    %14 = vector.shape_cast %13 : vector<1x128x128xf32> to vector<128x128xf32>
    %15 = vector.shape_cast %12 : vector<128x128xf32> to vector<1x128x128xf32>
    tpu.vector_store %arg6[%c0_9, %c0_10, %c0_11], %15 {strides = array<i32>} : memref<1x128x128xf32, #tpu.memory_space<vmem>>, vector<1x128x128xf32>,
    return
  }
  func.func @transform_0(%arg0: i32, %arg1: i32) -> (i32, i32, i32) {
    %c0_i32 = arith.constant 0 : i32
    %c0_i32_0 = arith.constant 0 : i32
    return %arg0, %arg1, %c0_i32 : i32, i32, i32
  }
  func.func @transform_1(%arg0: i32, %arg1: i32) -> (i32, i32, i32) {
    %c0_i32 = arith.constant 0 : i32
    %c0_i32_0 = arith.constant 0 : i32
    return %arg0, %arg1, %c0_i32 : i32, i32, i32
  }
  func.func @transform_2(%arg0: i32, %arg1: i32) -> (i32, i32) {
    %c0_i32 = arith.constant 0 : i32
    %c0_i32_0 = arith.constant 0 : i32
    %c0_i32_1 = arith.constant 0 : i32
    return %c0_i32, %c0_i32_0 : i32, i32
  }
  func.func @transform_3(%arg0: i32, %arg1: i32) -> (i32, i32) {
    %c0_i32 = arith.constant 0 : i32
    %c0_i32_0 = arith.constant 0 : i32
    %c0_i32_1 = arith.constant 0 : i32
    return %c0_i32, %c0_i32_0 : i32, i32
  }
  func.func @transform_4(%arg0: i32, %arg1: i32) -> (i32, i32, i32) {
    %c0_i32 = arith.constant 0 : i32
    %c0_i32_0 = arith.constant 0 : i32
    return %arg0, %arg1, %c0_i32 : i32, i32, i32
  }
}

</mosaic_0001>

<llo_original>
// kernel: basic_block_forward.5
$region0: #{basic_block_forward.5}
  #allocation0 [shape = 'u32[]', space=smem, size = 0x4, offset = 0x4, fixed_abs, tag = 'smem constant byte address 0x4 - core index']
  #allocation1 [shape = 'u32[144,128]{1,0:T(1,128)}', space=vmem, size = 0x12000, scoped, tag = 'internal scratch']
  %s0 = inlined_call_operand.vmem [shape: f32[2,256,128], index: 0, kind: input, shape index: {}, may-alias: {0,4}]
  %s1 = inlined_call_operand.vmem [shape: f32[2,256,128], index: 1, kind: input, shape index: {}]
  %s2 = inlined_call_operand.vmem [shape: f32[1,128], index: 2, kind: input, shape index: {}]
  %s3 = inlined_call_operand.vmem [shape: f32[1,128], index: 3, kind: input, shape index: {}]
  %s4 = inlined_call_operand.vmem [shape: f32[2,256,128], index: 4, kind: output, shape index: {}, may-alias: {0,4}]
  %s5 = sld [smem:[#allocation0]]
  $region49: #{basic_block_forward.5} parent=0
    _
  %s7 = ssub.s32 1, %s5
  %s8 = scalar_select 0, %s7, %s5
  loop: start=0, step=1, limit=6
  $region2: #{basic_block_forward.5} parent=0 // loop_pre_header
    _
  $region3: #{basic_block_forward.5} parent=0 // loop_header
    %s10 = sphi 0, %s14
    %p11 = scmp.ge.s32.totalorder %s10, 6
    %s17 = sphi 0, %s29
    %s18 = sphi 0, %s25
    %s19 = sphi 0, %s17
    %s20 = sphi 0, %s18
    %s21 = sphi 0, %s19
    %s22 = sphi 0, %s20
    %s34 = sphi 0, %s36
    %s37 = sphi 0, %s34
    %s38 = sphi 0, %s37
    %s54 = sphi 0, %s38
    %s62 = sphi 0, %s64
    %s65 = sphi 0, %s62
    %s66 = sphi 0, %s65
    %s82 = sphi 0, %s66
    %s86 = sphi 0, %s86
    %s88 = sphi 0, %s86
    %s89 = sphi 0, %s88
    %s103 = sphi 0, %s89
    %s107 = sphi 0, %s107
    %s109 = sphi 0, %s107
    %s110 = sphi 0, %s109
    %s124 = sphi 0, %s110
    %s132 = sphi 0, %s134
    %s135 = sphi 0, %s132
    %s136 = sphi 0, %s135
    %s152 = sphi 0, %s136
  $region4: #{basic_block_forward.5} parent=0 // loop_header_branch
    %13 = sbr.rel (%p11) target = $region8
  $region5: #{basic_block_forward.5} parent=0 // loop_body
    %s15 = ssub.s32 %s10, 1
    %s16 = ssub.s32 %s10, 2
    %s23 = sadd.s32 1, %s18
    %p24 = scmp.ge.s32.totalorder %s23, 2
    %s25 = scalar_select %p24, 0, %s23
    %s26 = sadd.s32 1, %s17
    %s27 = scalar_select %p24, %s26, %s17
    %p28 = scmp.ge.s32.totalorder %s27, 2
    %s29 = scalar_select %p28, 0, %s27
    %s30 = ssub.s32 %s17, %s29
    %s31 = ssub.s32 %s18, %s25
    %s32 = sor.u32 %s30, %s31
    %p33 = scmp.eq.s32.totalorder %s32, 0
    %s35 = sadd.s32 %s34, 1
    %s36 = scalar_select %p33, %s34, %s35
    %p39 = pneg %p33
    %p40 = scmp.eq.s32.totalorder %s10, 3
    %p41 = por %p39, %p40
    %p42 = scmp.ne.s32.totalorder %s34, %s37
    %p43 = scmp.eq.s32.totalorder %s10, 0
    %p44 = por %p42, %p43
    %p45 = scmp.ne.s32.totalorder %s34, %s37
    %p46 = scmp.eq.s32.totalorder %s15, 3
    %p47 = por %p45, %p46
    %p48 = scmp.ne.s32.totalorder %s37, %s38
    %p49 = scmp.eq.s32.totalorder %s15, 0
    %p50 = por %p48, %p49
    %p51 = scmp.ne.s32.totalorder %s37, %s38
    %p52 = scmp.eq.s32.totalorder %s16, 3
    %p53 = por %p51, %p52
    %p55 = scmp.ne.s32.totalorder %s38, %s54
    %p56 = scmp.eq.s32.totalorder %s16, 0
    %p57 = por %p55, %p56
    %s58 = ssub.s32 %s17, %s29
    %s59 = ssub.s32 %s18, %s25
    %s60 = sor.u32 %s58, %s59
    %p61 = scmp.eq.s32.totalorder %s60, 0
    %s63 = sadd.s32 %s62, 1
    %s64 = scalar_select %p61, %s62, %s63
    %p67 = pneg %p61
    %p68 = scmp.eq.s32.totalorder %s10, 3
    %p69 = por %p67, %p68
    %p70 = scmp.ne.s32.totalorder %s62, %s65
    %p71 = scmp.eq.s32.totalorder %s10, 0
    %p72 = por %p70, %p71
    %p73 = scmp.ne.s32.totalorder %s62, %s65
    %p74 = scmp.eq.s32.totalorder %s15, 3
    %p75 = por %p73, %p74
    %p76 = scmp.ne.s32.totalorder %s65, %s66
    %p77 = scmp.eq.s32.totalorder %s15, 0
    %p78 = por %p76, %p77
    %p79 = scmp.ne.s32.totalorder %s65, %s66
    %p80 = scmp.eq.s32.totalorder %s16, 3
    %p81 = por %p79, %p80
    %p83 = scmp.ne.s32.totalorder %s66, %s82
    %p84 = scmp.eq.s32.totalorder %s16, 0
    %p85 = por %p83, %p84
    %s87 = sadd.s32 %s86, 1
    %p90 = scmp.eq.s32.totalorder %s10, 3
    %p91 = scmp.ne.s32.totalorder %s86, %s88
    %p92 = scmp.eq.s32.totalorder %s10, 0
    %p93 = por %p91, %p92
    %p94 = scmp.ne.s32.totalorder %s86, %s88
    %p95 = scmp.eq.s32.totalorder %s15, 3
    %p96 = por %p94, %p95
    %p97 = scmp.ne.s32.totalorder %s88, %s89
    %p98 = scmp.eq.s32.totalorder %s15, 0
    %p99 = por %p97, %p98
    %p100 = scmp.ne.s32.totalorder %s88, %s89
    %p101 = scmp.eq.s32.totalorder %s16, 3
    %p102 = por %p100, %p101
    %p104 = scmp.ne.s32.totalorder %s89, %s103
    %p105 = scmp.eq.s32.totalorder %s16, 0
    %p106 = por %p104, %p105
    %s108 = sadd.s32 %s107, 1
    %p111 = scmp.eq.s32.totalorder %s10, 3
    %p112 = scmp.ne.s32.totalorder %s107, %s109
    %p113 = scmp.eq.s32.totalorder %s10, 0
    %p114 = por %p112, %p113
    %p115 = scmp.ne.s32.totalorder %s107, %s109
    %p116 = scmp.eq.s32.totalorder %s15, 3
    %p117 = por %p115, %p116
    %p118 = scmp.ne.s32.totalorder %s109, %s110
    %p119 = scmp.eq.s32.totalorder %s15, 0
    %p120 = por %p118, %p119
    %p121 = scmp.ne.s32.totalorder %s109, %s110
    %p122 = scmp.eq.s32.totalorder %s16, 3
    %p123 = por %p121, %p122
    %p125 = scmp.ne.s32.totalorder %s110, %s124
    %p126 = scmp.eq.s32.totalorder %s16, 0
    %p127 = por %p125, %p126
    %s128 = ssub.s32 %s17, %s29
    %s129 = ssub.s32 %s18, %s25
    %s130 = sor.u32 %s128, %s129
    %p131 = scmp.eq.s32.totalorder %s130, 0
    %s133 = sadd.s32 %s132, 1
    %s134 = scalar_select %p131, %s132, %s133
    %p137 = pneg %p131
    %p138 = scmp.eq.s32.totalorder %s10, 3
    %p139 = por %p137, %p138
    %p140 = scmp.ne.s32.totalorder %s132, %s135
    %p141 = scmp.eq.s32.totalorder %s10, 0
    %p142 = por %p140, %p141
    %p143 = scmp.ne.s32.totalorder %s132, %s135
    %p144 = scmp.eq.s32.totalorder %s15, 3
    %p145 = por %p143, %p144
    %p146 = scmp.ne.s32.totalorder %s135, %s136
    %p147 = scmp.eq.s32.totalorder %s15, 0
    %p148 = por %p146, %p147
    %p149 = scmp.ne.s32.totalorder %s135, %s136
    %p150 = scmp.eq.s32.totalorder %s16, 3
    %p151 = por %p149, %p150
    %p153 = scmp.ne.s32.totalorder %s136, %s152
    %p154 = scmp.eq.s32.totalorder %s16, 0
    %p155 = por %p153, %p154
    %p156 = scmp.le.s32.totalorder 1, %s10
    %p157 = scmp.lt.s32.totalorder %s10, 5
    %p158 = pnand %p156, %p157
    %p159 = pneg %p158
    // Predicated region
    $region9: #{basic_block_forward.5} parent=5 // pred_check
      _
    $region10: #{basic_block_forward.5} parent=5 // pred_check_branch
      %161 = sbr.rel (%p158) target = $region12
    $region11: #{basic_block_forward.5} parent=5 // pred_region
      %s162 = ssub.s32 %s10, 1
      // Predicated region
      $region13: #{basic_block_forward.5} parent=11 // pred_check
        %p163 = pneg %p99
      $region14: #{basic_block_forward.5} parent=11 // pred_check_branch
        %165 = sbr.rel (%p163) target = $region16
      $region15: #{basic_block_forward.5} parent=11 // pred_region
        _
      $region16: #{basic_block_forward.5} parent=11 // pred_fallthru
        _
      // Predicated region
      $region17: #{basic_block_forward.5} parent=11 // pred_check
        %p166 = pneg %p120
      $region18: #{basic_block_forward.5} parent=11 // pred_check_branch
        %168 = sbr.rel (%p166) target = $region20
      $region19: #{basic_block_forward.5} parent=11 // pred_region
        _
      $region20: #{basic_block_forward.5} parent=11 // pred_fallthru
        _
    $region12: #{basic_block_forward.5} parent=5 // pred_fallthru
      _
    %p169 = scmp.lt.s32.totalorder %s10, 4
    // Predicated region
    $region21: #{basic_block_forward.5} parent=5 // pred_check
      %p170 = pneg %p169
    $region22: #{basic_block_forward.5} parent=5 // pred_check_branch
      %172 = sbr.rel (%p170) target = $region24
    $region23: #{basic_block_forward.5} parent=5 // pred_region
      // Predicated region
      $region25: #{basic_block_forward.5} parent=23 // pred_check
        %p173 = pneg %p44
      $region26: #{basic_block_forward.5} parent=23 // pred_check_branch
        %175 = sbr.rel (%p173) target = $region28
      $region27: #{basic_block_forward.5} parent=23 // pred_region
        %s176 = smul.u32 16, %s18
        %p177 = scmp.lt.s32.totalorder %s17, 1
        %s178 = scalar_select %p177, %s17, 1
        %p179 = scmp.lt.s32.totalorder %s176, 31
        %s180 = scalar_select %p179, %s176, 31
        %s181 = smul.addr %s178, 32
        %s182 = sadd.s32 %s180, %s181
        %s183 = smul.addr %s182, 8
        %s184 = scalar_lea.vmem %s0, %s183
        %s185 = smul.u32 16, %s18
      $region28: #{basic_block_forward.5} parent=23 // pred_fallthru
        _
      // Predicated region
      $region29: #{basic_block_forward.5} parent=23 // pred_check
        %p186 = pneg %p72
      $region30: #{basic_block_forward.5} parent=23 // pred_check_branch
        %188 = sbr.rel (%p186) target = $region32
      $region31: #{basic_block_forward.5} parent=23 // pred_region
        %s189 = smul.u32 16, %s18
        %p190 = scmp.lt.s32.totalorder %s17, 1
        %s191 = scalar_select %p190, %s17, 1
        %p192 = scmp.lt.s32.totalorder %s189, 31
        %s193 = scalar_select %p192, %s189, 31
        %s194 = smul.addr %s191, 32
        %s195 = sadd.s32 %s193, %s194
        %s196 = smul.addr %s195, 8
        %s197 = scalar_lea.vmem %s1, %s196
        %s198 = smul.u32 16, %s18
      $region32: #{basic_block_forward.5} parent=23 // pred_fallthru
        _
    $region24: #{basic_block_forward.5} parent=5 // pred_fallthru
      _
    %p199 = scmp.le.s32.totalorder 1, %s10
    %p200 = scmp.lt.s32.totalorder %s10, 5
    %p201 = pnand %p199, %p200
    %p202 = pneg %p201
    // Predicated region
    $region33: #{basic_block_forward.5} parent=5 // pred_check
      _
    $region34: #{basic_block_forward.5} parent=5 // pred_check_branch
      %204 = sbr.rel (%p201) target = $region36
    $region35: #{basic_block_forward.5} parent=5 // pred_region
      %s205 = ssub.s32 %s10, 1
      %s206 = smul.u32 16, %s20
      %p207 = scmp.lt.s32.totalorder %s19, 1
      %s208 = scalar_select %p207, %s19, 1
      %p209 = scmp.lt.s32.totalorder %s206, 31
      %s210 = scalar_select %p209, %s206, 31
      %s211 = smul.addr %s208, 32
      %s212 = sadd.s32 %s210, %s211
      %s213 = smul.addr %s212, 8
      %s214 = scalar_lea.vmem %s0, %s213
      %p215 = pneg %p50
      %p216 = pneg %p47
      %s217 = smul.u32 16, %s20
      %p218 = scmp.lt.s32.totalorder %s19, 1
      %s219 = scalar_select %p218, %s19, 1
      %p220 = scmp.lt.s32.totalorder %s217, 31
      %s221 = scalar_select %p220, %s217, 31
      %s222 = smul.addr %s219, 32
      %s223 = sadd.s32 %s221, %s222
      %s224 = smul.addr %s223, 8
      %s225 = scalar_lea.vmem %s1, %s224
      %p226 = pneg %p78
      %p227 = pneg %p75
      %p228 = pneg %p99
      %p229 = pneg %p96
      %p230 = pneg %p120
      %p231 = pneg %p117
      %p232 = pneg %p148
      %p233 = pneg %p145
      %s234 = smul.u32 16, %s20
      %p235 = scmp.lt.s32.totalorder %s19, 1
      %s236 = scalar_select %p235, %s19, 1
      %p237 = scmp.lt.s32.totalorder %s234, 31
      %s238 = scalar_select %p237, %s234, 31
      %s239 = smul.addr %s236, 32
      %s240 = sadd.s32 %s238, %s239
      %s241 = smul.addr %s240, 8
      %s242 = scalar_lea.vmem %s4, %s241
      %s243 = smul.u32 16, %s20
      %p244 = scmp.lt.s32.totalorder %s19, 1
      %s245 = scalar_select %p244, %s19, 1
      %p246 = scmp.lt.s32.totalorder %s243, 31
      %s247 = scalar_select %p246, %s243, 31
      %s248 = smul.addr %s245, 32
      %s249 = sadd.s32 %s247, %s248
      %s250 = smul.addr %s249, 8
      %s251 = scalar_lea.vmem %s0, %s250
      %s252 = smul.u32 16, %s20
      %s253 = smul.u32 16, %s20
      %p254 = scmp.lt.s32.totalorder %s19, 1
      %s255 = scalar_select %p254, %s19, 1
      %p256 = scmp.lt.s32.totalorder %s253, 31
      %s257 = scalar_select %p256, %s253, 31
      %s258 = smul.addr %s255, 32
      %s259 = sadd.s32 %s257, %s258
      %s260 = smul.addr %s259, 8
      %s261 = scalar_lea.vmem %s1, %s260
      %s262 = smul.u32 16, %s20
      %s263 = smul.u32 16, %s20
      %p264 = scmp.lt.s32.totalorder %s19, 1
      %s265 = scalar_select %p264, %s19, 1
      %p266 = scmp.lt.s32.totalorder %s263, 31
      %s267 = scalar_select %p266, %s263, 31
      %s268 = smul.addr %s265, 32
      %s269 = sadd.s32 %s267, %s268
      %s270 = smul.addr %s269, 8
      %s271 = scalar_lea.vmem %s4, %s270
      %s272 = smul.u32 16, %s20
      %v273 = vld [vmem:[%s251] sm:$0xff]
      %v274 = vld [vmem:[%s251 + $0x8] sm:$0xff]
      %v275 = vld [vmem:[%s251 + $0x10] sm:$0xff]
      %v276 = vld [vmem:[%s251 + $0x18] sm:$0xff]
      %v277 = vld [vmem:[%s251 + $0x20] sm:$0xff]
      %v278 = vld [vmem:[%s251 + $0x28] sm:$0xff]
      %v279 = vld [vmem:[%s251 + $0x30] sm:$0xff]
      %v280 = vld [vmem:[%s251 + $0x38] sm:$0xff]
      %v281 = vld [vmem:[%s251 + $0x40] sm:$0xff]
      %v282 = vld [vmem:[%s251 + $0x48] sm:$0xff]
      %v283 = vld [vmem:[%s251 + $0x50] sm:$0xff]
      %v284 = vld [vmem:[%s251 + $0x58] sm:$0xff]
      %v285 = vld [vmem:[%s251 + $0x60] sm:$0xff]
      %v286 = vld [vmem:[%s251 + $0x68] sm:$0xff]
      %v287 = vld [vmem:[%s251 + $0x70] sm:$0xff]
      %v288 = vld [vmem:[%s251 + $0x78] sm:$0xff]
      %v289 = vld [vmem:[%s2] sm:$0x1]
      %v291 = vlaneseq
      %v292 = vshrl.u32 %v291, 7
      %v293 = vsub.s32 0, %v292
      %v294 = vrot.slane %v289, %v293
      %v296 = vmul.f32 %v273, %v294
      %v297 = vmul.f32 %v274, %v294
      %v298 = vmul.f32 %v275, %v294
      %v299 = vmul.f32 %v276, %v294
      %v300 = vmul.f32 %v277, %v294
      %v301 = vmul.f32 %v278, %v294
      %v302 = vmul.f32 %v279, %v294
      %v303 = vmul.f32 %v280, %v294
      %v304 = vmul.f32 %v281, %v294
      %v305 = vmul.f32 %v282, %v294
      %v306 = vmul.f32 %v283, %v294
      %v307 = vmul.f32 %v284, %v294
      %v308 = vmul.f32 %v285, %v294
      %v309 = vmul.f32 %v286, %v294
      %v310 = vmul.f32 %v287, %v294
      %v311 = vmul.f32 %v288, %v294
      %v312 = vld [vmem:[%s3] sm:$0x1]
      %v314 = vlaneseq
      %v315 = vshrl.u32 %v314, 7
      %v316 = vsub.s32 0, %v315
      %v317 = vrot.slane %v312, %v316
      %v319 = vadd.f32 %v296, %v317
      %v320 = vadd.f32 %v297, %v317
      %v321 = vadd.f32 %v298, %v317
      %v322 = vadd.f32 %v299, %v317
      %v323 = vadd.f32 %v300, %v317
      %v324 = vadd.f32 %v301, %v317
      %v325 = vadd.f32 %v302, %v317
      %v326 = vadd.f32 %v303, %v317
      %v327 = vadd.f32 %v304, %v317
      %v328 = vadd.f32 %v305, %v317
      %v329 = vadd.f32 %v306, %v317
      %v330 = vadd.f32 %v307, %v317
      %v331 = vadd.f32 %v308, %v317
      %v332 = vadd.f32 %v309, %v317
      %v333 = vadd.f32 %v310, %v317
      %v334 = vadd.f32 %v311, %v317
      %v335 = vld [vmem:[%s261] sm:$0xff]
      %v336 = vld [vmem:[%s261 + $0x8] sm:$0xff]
      %v337 = vld [vmem:[%s261 + $0x10] sm:$0xff]
      %v338 = vld [vmem:[%s261 + $0x18] sm:$0xff]
      %v339 = vld [vmem:[%s261 + $0x20] sm:$0xff]
      %v340 = vld [vmem:[%s261 + $0x28] sm:$0xff]
      %v341 = vld [vmem:[%s261 + $0x30] sm:$0xff]
      %v342 = vld [vmem:[%s261 + $0x38] sm:$0xff]
      %v343 = vld [vmem:[%s261 + $0x40] sm:$0xff]
      %v344 = vld [vmem:[%s261 + $0x48] sm:$0xff]
      %v345 = vld [vmem:[%s261 + $0x50] sm:$0xff]
      %v346 = vld [vmem:[%s261 + $0x58] sm:$0xff]
      %v347 = vld [vmem:[%s261 + $0x60] sm:$0xff]
      %v348 = vld [vmem:[%s261 + $0x68] sm:$0xff]
      %v349 = vld [vmem:[%s261 + $0x70] sm:$0xff]
      %v350 = vld [vmem:[%s261 + $0x78] sm:$0xff]
      %v351 = vadd.f32 %v319, %v335
      %v352 = vadd.f32 %v320, %v336
      %v353 = vadd.f32 %v321, %v337
      %v354 = vadd.f32 %v322, %v338
      %v355 = vadd.f32 %v323, %v339
      %v356 = vadd.f32 %v324, %v340
      %v357 = vadd.f32 %v325, %v341
      %v358 = vadd.f32 %v326, %v342
      %v359 = vadd.f32 %v327, %v343
      %v360 = vadd.f32 %v328, %v344
      %v361 = vadd.f32 %v329, %v345
      %v362 = vadd.f32 %v330, %v346
      %v363 = vadd.f32 %v331, %v347
      %v364 = vadd.f32 %v332, %v348
      %v365 = vadd.f32 %v333, %v349
      %v366 = vadd.f32 %v334, %v350
      %v367 = vmax.f32 %v351, 0.0
      %v368 = vmax.f32 %v352, 0.0
      %v369 = vmax.f32 %v353, 0.0
      %v370 = vmax.f32 %v354, 0.0
      %v371 = vmax.f32 %v355, 0.0
      %v372 = vmax.f32 %v356, 0.0
      %v373 = vmax.f32 %v357, 0.0
      %v374 = vmax.f32 %v358, 0.0
      %v375 = vmax.f32 %v359, 0.0
      %v376 = vmax.f32 %v360, 0.0
      %v377 = vmax.f32 %v361, 0.0
      %v378 = vmax.f32 %v362, 0.0
      %v379 = vmax.f32 %v363, 0.0
      %v380 = vmax.f32 %v364, 0.0
      %v381 = vmax.f32 %v365, 0.0
      %v382 = vmax.f32 %v366, 0.0
      %383 = vst [vmem:[%s271] sm:$0xff] %v367
      %384 = vst [vmem:[%s271 + $0x8] sm:$0xff] %v368
      %385 = vst [vmem:[%s271 + $0x10] sm:$0xff] %v369
      %386 = vst [vmem:[%s271 + $0x18] sm:$0xff] %v370
      %387 = vst [vmem:[%s271 + $0x20] sm:$0xff] %v371
      %388 = vst [vmem:[%s271 + $0x28] sm:$0xff] %v372
      %389 = vst [vmem:[%s271 + $0x30] sm:$0xff] %v373
      %390 = vst [vmem:[%s271 + $0x38] sm:$0xff] %v374
      %391 = vst [vmem:[%s271 + $0x40] sm:$0xff] %v375
      %392 = vst [vmem:[%s271 + $0x48] sm:$0xff] %v376
      %393 = vst [vmem:[%s271 + $0x50] sm:$0xff] %v377
      %394 = vst [vmem:[%s271 + $0x58] sm:$0xff] %v378
      %395 = vst [vmem:[%s271 + $0x60] sm:$0xff] %v379
      %396 = vst [vmem:[%s271 + $0x68] sm:$0xff] %v380
      %397 = vst [vmem:[%s271 + $0x70] sm:$0xff] %v381
      %398 = vst [vmem:[%s271 + $0x78] sm:$0xff] %v382
      %s399 = smul.u32 16, %s20
      %p400 = scmp.lt.s32.totalorder %s19, 1
      %s401 = scalar_select %p400, %s19, 1
      %p402 = scmp.lt.s32.totalorder %s399, 31
      %s403 = scalar_select %p402, %s399, 31
      %s404 = smul.addr %s401, 32
      %s405 = sadd.s32 %s403, %s404
      %s406 = smul.addr %s405, 8
      %s407 = scalar_lea.vmem %s4, %s406
      // Predicated region
      $region37: #{basic_block_forward.5} parent=35 // pred_check
        %p408 = pneg %p145
      $region38: #{basic_block_forward.5} parent=35 // pred_check_branch
        %410 = sbr.rel (%p408) target = $region40
      $region39: #{basic_block_forward.5} parent=35 // pred_region
        %s411 = smul.u32 16, %s20
      $region40: #{basic_block_forward.5} parent=35 // pred_fallthru
        _
    $region36: #{basic_block_forward.5} parent=5 // pred_fallthru
      _
    %p412 = scmp.le.s32.totalorder 2, %s10
    // Predicated region
    $region41: #{basic_block_forward.5} parent=5 // pred_check
      %p413 = pneg %p412
    $region42: #{basic_block_forward.5} parent=5 // pred_check_branch
      %415 = sbr.rel (%p413) target = $region44
    $region43: #{basic_block_forward.5} parent=5 // pred_region
      %s416 = ssub.s32 %s10, 2
      // Predicated region
      $region45: #{basic_block_forward.5} parent=43 // pred_check
        %p417 = pneg %p151
      $region46: #{basic_block_forward.5} parent=43 // pred_check_branch
        %419 = sbr.rel (%p417) target = $region48
      $region47: #{basic_block_forward.5} parent=43 // pred_region
        %s420 = smul.u32 16, %s22
        %p421 = scmp.lt.s32.totalorder %s21, 1
        %s422 = scalar_select %p421, %s21, 1
        %p423 = scmp.lt.s32.totalorder %s420, 31
        %s424 = scalar_select %p423, %s420, 31
        %s425 = smul.addr %s422, 32
        %s426 = sadd.s32 %s424, %s425
        %s427 = smul.addr %s426, 8
        %s428 = scalar_lea.vmem %s4, %s427
      $region48: #{basic_block_forward.5} parent=43 // pred_fallthru
        _
    $region44: #{basic_block_forward.5} parent=5 // pred_fallthru
      _
  $region6: #{basic_block_forward.5} parent=0 // loop_footer
    %s14 = sadd.s32 1, %s10
  $region7: #{basic_block_forward.5} parent=0 // loop_footer_branch
    %9 = sbr.rel target = $region3
  $region8: #{basic_block_forward.5} parent=0 // loop_exit
    _

// kernel: basic_block_forward.3
$region0: #{basic_block_forward.3}
  #allocation0 [shape = 'u32[]', space=smem, size = 0x4, offset = 0x4, fixed_abs, tag = 'smem constant byte address 0x4 - core index']
  #allocation1 [shape = 'u32[144,128]{1,0:T(1,128)}', space=vmem, size = 0x12000, scoped, tag = 'internal scratch']
  #allocation2 [shape = 'f32[18,16,128]{2,1,0:T(8,128)}', space=vmem, size = 0x24000, scoped, tag = 'scratch operand']
  %s0 = inlined_call_operand.vmem [shape: f32[2,256,128], index: 0, kind: input, shape index: {}]
  %s1 = inlined_call_operand.vmem [shape: bf16[9,128,128], index: 1, kind: input, shape index: {}]
  %s2 = inlined_call_operand.vmem [shape: f32[2,256,128], index: 2, kind: output, shape index: {0}]
  %s3 = inlined_call_operand.vmem [shape: f32[2,2,2,128], index: 3, kind: output, shape index: {1}]
  %4 = xla_tuple %s2, %s3
  %s5 = sld [smem:[#allocation0]]
  $region53: #{basic_block_forward.3} parent=0
    _
  %s7 = ssub.s32 1, %s5
  %s8 = scalar_select 0, %s7, %s5
  loop: start=0, step=1, limit=6
  $region2: #{basic_block_forward.3} parent=0 // loop_pre_header
    _
  $region3: #{basic_block_forward.3} parent=0 // loop_header
    %s10 = sphi 0, %s14
    %p11 = scmp.ge.s32.totalorder %s10, 6
    %s17 = sphi 0, %s29
    %s18 = sphi 0, %s25
    %s19 = sphi 0, %s17
    %s20 = sphi 0, %s18
    %s21 = sphi 0, %s19
    %s22 = sphi 0, %s20
    %s32 = sphi 0, %s34
    %s35 = sphi 0, %s32
    %s36 = sphi 0, %s35
    %s52 = sphi 0, %s36
    %s56 = sphi 0, %s56
    %s58 = sphi 0, %s56
    %s59 = sphi 0, %s58
    %s73 = sphi 0, %s59
    %s81 = sphi 0, %s83
    %s84 = sphi 0, %s81
    %s85 = sphi 0, %s84
    %s101 = sphi 0, %s85
    %s109 = sphi 0, %s111
    %s112 = sphi 0, %s109
    %s113 = sphi 0, %s112
    %s129 = sphi 0, %s113
  $region4: #{basic_block_forward.3} parent=0 // loop_header_branch
    %13 = sbr.rel (%p11) target = $region8
  $region5: #{basic_block_forward.3} parent=0 // loop_body
    %s15 = ssub.s32 %s10, 1
    %s16 = ssub.s32 %s10, 2
    %s23 = sadd.s32 1, %s18
    %p24 = scmp.ge.s32.totalorder %s23, 2
    %s25 = scalar_select %p24, 0, %s23
    %s26 = sadd.s32 1, %s17
    %s27 = scalar_select %p24, %s26, %s17
    %p28 = scmp.ge.s32.totalorder %s27, 2
    %s29 = scalar_select %p28, 0, %s27
    %s30 = ssub.s32 %s17, %s29
    %p31 = scmp.eq.s32.totalorder %s30, 0
    %s33 = sadd.s32 %s32, 1
    %s34 = scalar_select %p31, %s32, %s33
    %p37 = pneg %p31
    %p38 = scmp.eq.s32.totalorder %s10, 3
    %p39 = por %p37, %p38
    %p40 = scmp.ne.s32.totalorder %s32, %s35
    %p41 = scmp.eq.s32.totalorder %s10, 0
    %p42 = por %p40, %p41
    %p43 = scmp.ne.s32.totalorder %s32, %s35
    %p44 = scmp.eq.s32.totalorder %s15, 3
    %p45 = por %p43, %p44
    %p46 = scmp.ne.s32.totalorder %s35, %s36
    %p47 = scmp.eq.s32.totalorder %s15, 0
    %p48 = por %p46, %p47
    %p49 = scmp.ne.s32.totalorder %s35, %s36
    %p50 = scmp.eq.s32.totalorder %s16, 3
    %p51 = por %p49, %p50
    %p53 = scmp.ne.s32.totalorder %s36, %s52
    %p54 = scmp.eq.s32.totalorder %s16, 0
    %p55 = por %p53, %p54
    %s57 = sadd.s32 %s56, 1
    %p60 = scmp.eq.s32.totalorder %s10, 3
    %p61 = scmp.ne.s32.totalorder %s56, %s58
    %p62 = scmp.eq.s32.totalorder %s10, 0
    %p63 = por %p61, %p62
    %p64 = scmp.ne.s32.totalorder %s56, %s58
    %p65 = scmp.eq.s32.totalorder %s15, 3
    %p66 = por %p64, %p65
    %p67 = scmp.ne.s32.totalorder %s58, %s59
    %p68 = scmp.eq.s32.totalorder %s15, 0
    %p69 = por %p67, %p68
    %p70 = scmp.ne.s32.totalorder %s58, %s59
    %p71 = scmp.eq.s32.totalorder %s16, 3
    %p72 = por %p70, %p71
    %p74 = scmp.ne.s32.totalorder %s59, %s73
    %p75 = scmp.eq.s32.totalorder %s16, 0
    %p76 = por %p74, %p75
    %s77 = ssub.s32 %s17, %s29
    %s78 = ssub.s32 %s18, %s25
    %s79 = sor.u32 %s77, %s78
    %p80 = scmp.eq.s32.totalorder %s79, 0
    %s82 = sadd.s32 %s81, 1
    %s83 = scalar_select %p80, %s81, %s82
    %p86 = pneg %p80
    %p87 = scmp.eq.s32.totalorder %s10, 3
    %p88 = por %p86, %p87
    %p89 = scmp.ne.s32.totalorder %s81, %s84
    %p90 = scmp.eq.s32.totalorder %s10, 0
    %p91 = por %p89, %p90
    %p92 = scmp.ne.s32.totalorder %s81, %s84
    %p93 = scmp.eq.s32.totalorder %s15, 3
    %p94 = por %p92, %p93
    %p95 = scmp.ne.s32.totalorder %s84, %s85
    %p96 = scmp.eq.s32.totalorder %s15, 0
    %p97 = por %p95, %p96
    %p98 = scmp.ne.s32.totalorder %s84, %s85
    %p99 = scmp.eq.s32.totalorder %s16, 3
    %p100 = por %p98, %p99
    %p102 = scmp.ne.s32.totalorder %s85, %s101
    %p103 = scmp.eq.s32.totalorder %s16, 0
    %p104 = por %p102, %p103
    %s105 = ssub.s32 %s17, %s29
    %s106 = ssub.s32 %s18, %s25
    %s107 = sor.u32 %s105, %s106
    %p108 = scmp.eq.s32.totalorder %s107, 0
    %s110 = sadd.s32 %s109, 1
    %s111 = scalar_select %p108, %s109, %s110
    %p114 = pneg %p108
    %p115 = scmp.eq.s32.totalorder %s10, 3
    %p116 = por %p114, %p115
    %p117 = scmp.ne.s32.totalorder %s109, %s112
    %p118 = scmp.eq.s32.totalorder %s10, 0
    %p119 = por %p117, %p118
    %p120 = scmp.ne.s32.totalorder %s109, %s112
    %p121 = scmp.eq.s32.totalorder %s15, 3
    %p122 = por %p120, %p121
    %p123 = scmp.ne.s32.totalorder %s112, %s113
    %p124 = scmp.eq.s32.totalorder %s15, 0
    %p125 = por %p123, %p124
    %p126 = scmp.ne.s32.totalorder %s112, %s113
    %p127 = scmp.eq.s32.totalorder %s16, 3
    %p128 = por %p126, %p127
    %p130 = scmp.ne.s32.totalorder %s113, %s129
    %p131 = scmp.eq.s32.totalorder %s16, 0
    %p132 = por %p130, %p131
    %p133 = scmp.le.s32.totalorder 1, %s10
    %p134 = scmp.lt.s32.totalorder %s10, 5
    %p135 = pnand %p133, %p134
    %p136 = pneg %p135
    // Predicated region
    $region9: #{basic_block_forward.3} parent=5 // pred_check
      _
    $region10: #{basic_block_forward.3} parent=5 // pred_check_branch
      %138 = sbr.rel (%p135) target = $region12
    $region11: #{basic_block_forward.3} parent=5 // pred_region
      %s139 = ssub.s32 %s10, 1
      // Predicated region
      $region13: #{basic_block_forward.3} parent=11 // pred_check
        %p140 = pneg %p69
      $region14: #{basic_block_forward.3} parent=11 // pred_check_branch
        %142 = sbr.rel (%p140) target = $region16
      $region15: #{basic_block_forward.3} parent=11 // pred_region
        _
      $region16: #{basic_block_forward.3} parent=11 // pred_fallthru
        _
    $region12: #{basic_block_forward.3} parent=5 // pred_fallthru
      _
    %p143 = scmp.lt.s32.totalorder %s10, 4
    // Predicated region
    $region17: #{basic_block_forward.3} parent=5 // pred_check
      %p144 = pneg %p143
    $region18: #{basic_block_forward.3} parent=5 // pred_check_branch
      %146 = sbr.rel (%p144) target = $region20
    $region19: #{basic_block_forward.3} parent=5 // pred_region
      // Predicated region
      $region21: #{basic_block_forward.3} parent=19 // pred_check
        %p147 = pneg %p42
      $region22: #{basic_block_forward.3} parent=19 // pred_check_branch
        %149 = sbr.rel (%p147) target = $region24
      $region23: #{basic_block_forward.3} parent=19 // pred_region
        %p150 = scmp.lt.s32.totalorder %s17, 1
        %s151 = scalar_select %p150, %s17, 1
        %s152 = smul.addr %s151, 32
        %s153 = smul.addr %s152, 8
        %s154 = scalar_lea.vmem %s0, %s153
      $region24: #{basic_block_forward.3} parent=19 // pred_fallthru
        _
    $region20: #{basic_block_forward.3} parent=5 // pred_fallthru
      _
    %p155 = scmp.le.s32.totalorder 1, %s10
    %p156 = scmp.lt.s32.totalorder %s10, 5
    %p157 = pnand %p155, %p156
    %p158 = pneg %p157
    // Predicated region
    $region25: #{basic_block_forward.3} parent=5 // pred_check
      _
    $region26: #{basic_block_forward.3} parent=5 // pred_check_branch
      %160 = sbr.rel (%p157) target = $region28
    $region27: #{basic_block_forward.3} parent=5 // pred_region
      %s161 = ssub.s32 %s10, 1
      %p162 = scmp.lt.s32.totalorder %s19, 1
      %s163 = scalar_select %p162, %s19, 1
      %s164 = smul.addr %s163, 32
      %s165 = smul.addr %s164, 8
      %s166 = scalar_lea.vmem %s0, %s165
      %p167 = pneg %p48
      %p168 = pneg %p45
      %p169 = pneg %p69
      %p170 = pneg %p66
      %p171 = pneg %p97
      %p172 = pneg %p94
      %s173 = smul.u32 16, %s20
      %p174 = scmp.lt.s32.totalorder %s19, 1
      %s175 = scalar_select %p174, %s19, 1
      %p176 = scmp.lt.s32.totalorder %s173, 31
      %s177 = scalar_select %p176, %s173, 31
      %s178 = smul.addr %s175, 32
      %s179 = sadd.s32 %s177, %s178
      %s180 = smul.addr %s179, 8
      %s181 = scalar_lea.vmem %s2, %s180
      %p182 = pneg %p125
      %p183 = pneg %p122
      %p184 = scmp.lt.s32.totalorder %s19, 1
      %s185 = scalar_select %p184, %s19, 1
      %p186 = scmp.lt.s32.totalorder %s20, 1
      %s187 = scalar_select %p186, %s20, 1
      %s188 = smul.addr %s185, 2
      %s189 = sadd.s32 %s187, %s188
      %s190 = smul.addr %s189, 2
      %s191 = scalar_lea.vmem %s3, %s190
      %p192 = scmp.lt.s32.totalorder %s19, 1
      %s193 = scalar_select %p192, %s19, 1
      %s194 = smul.addr %s193, 32
      %s195 = smul.addr %s194, 8
      %s196 = scalar_lea.vmem %s0, %s195
      %s197 = smul.u32 16, %s20
      %p198 = scmp.lt.s32.totalorder %s19, 1
      %s199 = scalar_select %p198, %s19, 1
      %p200 = scmp.lt.s32.totalorder %s197, 31
      %s201 = scalar_select %p200, %s197, 31
      %s202 = smul.addr %s199, 32
      %s203 = sadd.s32 %s201, %s202
      %s204 = smul.addr %s203, 8
      %s205 = scalar_lea.vmem %s2, %s204
      %s206 = smul.u32 16, %s20
      %p207 = scmp.lt.s32.totalorder %s19, 1
      %s208 = scalar_select %p207, %s19, 1
      %p209 = scmp.lt.s32.totalorder %s20, 1
      %s210 = scalar_select %p209, %s20, 1
      %s211 = smul.addr %s208, 2
      %s212 = sadd.s32 %s210, %s211
      %s213 = smul.addr %s212, 2
      %s214 = scalar_lea.vmem %s3, %s213
      %p216 = scmp.eq.s32.totalorder %s20, 0
      // Predicated region
      $region29: #{basic_block_forward.3} parent=27 // pred_check
        %p217 = pneg %p216
      $region30: #{basic_block_forward.3} parent=27 // pred_check_branch
        %219 = sbr.rel (%p217) target = $region32
      $region31: #{basic_block_forward.3} parent=27 // pred_region
        %v220 = vld [vmem:[%s196] sm:$0xff]
        %v221 = vld [vmem:[%s196 + $0x8] sm:$0xff]
        %v222 = vld [vmem:[%s196 + $0x10] sm:$0xff]
        %v223 = vld [vmem:[%s196 + $0x18] sm:$0xff]
        %v224 = vld [vmem:[%s196 + $0x20] sm:$0xff]
        %v225 = vld [vmem:[%s196 + $0x28] sm:$0xff]
        %v226 = vld [vmem:[%s196 + $0x30] sm:$0xff]
        %v227 = vld [vmem:[%s196 + $0x38] sm:$0xff]
        %v228 = vld [vmem:[%s196 + $0x40] sm:$0xff]
        %v229 = vld [vmem:[%s196 + $0x48] sm:$0xff]
        %v230 = vld [vmem:[%s196 + $0x50] sm:$0xff]
        %v231 = vld [vmem:[%s196 + $0x58] sm:$0xff]
        %v232 = vld [vmem:[%s196 + $0x60] sm:$0xff]
        %v233 = vld [vmem:[%s196 + $0x68] sm:$0xff]
        %v234 = vld [vmem:[%s196 + $0x70] sm:$0xff]
        %v235 = vld [vmem:[%s196 + $0x78] sm:$0xff]
        %v236 = vld [vmem:[%s196 + $0x80] sm:$0xff]
        %v237 = vld [vmem:[%s196 + $0x88] sm:$0xff]
        %v238 = vld [vmem:[%s196 + $0x90] sm:$0xff]
        %v239 = vld [vmem:[%s196 + $0x98] sm:$0xff]
        %v240 = vld [vmem:[%s196 + $0xa0] sm:$0xff]
        %v241 = vld [vmem:[%s196 + $0xa8] sm:$0xff]
        %v242 = vld [vmem:[%s196 + $0xb0] sm:$0xff]
        %v243 = vld [vmem:[%s196 + $0xb8] sm:$0xff]
        %v244 = vld [vmem:[%s196 + $0xc0] sm:$0xff]
        %v245 = vld [vmem:[%s196 + $0xc8] sm:$0xff]
        %v246 = vld [vmem:[%s196 + $0xd0] sm:$0xff]
        %v247 = vld [vmem:[%s196 + $0xd8] sm:$0xff]
        %v248 = vld [vmem:[%s196 + $0xe0] sm:$0xff]
        %v249 = vld [vmem:[%s196 + $0xe8] sm:$0xff]
        %v250 = vld [vmem:[%s196 + $0xf0] sm:$0xff]
        %v251 = vld [vmem:[%s196 + $0xf8] sm:$0xff]
        %252 = vst [vmem:[#allocation2] sm:$0xff] 0.0
        %253 = vst [vmem:[#allocation2 + $0x8] sm:$0xff] 0.0
        %s254 = scalar_lea.vmem [#allocation2], 272
        %255 = vst [vmem:[%s254] sm:$0xff] 0.0
        %256 = vst [vmem:[%s254 + $0x8] sm:$0xff] 0.0
        %s257 = scalar_lea.vmem [#allocation2], 16
        %258 = vst [vmem:[%s257] sm:$0xff] %v220
        %259 = vst [vmem:[%s257 + $0x8] sm:$0xff] %v221
        %260 = vst [vmem:[%s257 + $0x10] sm:$0xff] %v222
        %261 = vst [vmem:[%s257 + $0x18] sm:$0xff] %v223
        %262 = vst [vmem:[%s257 + $0x20] sm:$0xff] %v224
        %263 = vst [vmem:[%s257 + $0x28] sm:$0xff] %v225
        %264 = vst [vmem:[%s257 + $0x30] sm:$0xff] %v226
        %265 = vst [vmem:[%s257 + $0x38] sm:$0xff] %v227
        %266 = vst [vmem:[%s257 + $0x40] sm:$0xff] %v228
        %267 = vst [vmem:[%s257 + $0x48] sm:$0xff] %v229
        %268 = vst [vmem:[%s257 + $0x50] sm:$0xff] %v230
        %269 = vst [vmem:[%s257 + $0x58] sm:$0xff] %v231
        %270 = vst [vmem:[%s257 + $0x60] sm:$0xff] %v232
        %271 = vst [vmem:[%s257 + $0x68] sm:$0xff] %v233
        %272 = vst [vmem:[%s257 + $0x70] sm:$0xff] %v234
        %273 = vst [vmem:[%s257 + $0x78] sm:$0xff] %v235
        %274 = vst [vmem:[%s257 + $0x80] sm:$0xff] %v236
        %275 = vst [vmem:[%s257 + $0x88] sm:$0xff] %v237
        %276 = vst [vmem:[%s257 + $0x90] sm:$0xff] %v238
        %277 = vst [vmem:[%s257 + $0x98] sm:$0xff] %v239
        %278 = vst [vmem:[%s257 + $0xa0] sm:$0xff] %v240
        %279 = vst [vmem:[%s257 + $0xa8] sm:$0xff] %v241
        %280 = vst [vmem:[%s257 + $0xb0] sm:$0xff] %v242
        %281 = vst [vmem:[%s257 + $0xb8] sm:$0xff] %v243
        %282 = vst [vmem:[%s257 + $0xc0] sm:$0xff] %v244
        %283 = vst [vmem:[%s257 + $0xc8] sm:$0xff] %v245
        %284 = vst [vmem:[%s257 + $0xd0] sm:$0xff] %v246
        %285 = vst [vmem:[%s257 + $0xd8] sm:$0xff] %v247
        %286 = vst [vmem:[%s257 + $0xe0] sm:$0xff] %v248
        %287 = vst [vmem:[%s257 + $0xe8] sm:$0xff] %v249
        %288 = vst [vmem:[%s257 + $0xf0] sm:$0xff] %v250
        %289 = vst [vmem:[%s257 + $0xf8] sm:$0xff] %v251
      $region32: #{basic_block_forward.3} parent=27 // pred_fallthru
        _
      %s290 = smul.u32 %s20, 8
      %v291 = vlaneseq
      %v292 = vshrl.u32 %v291, 7
      %v293 = vadd.s32 %v292, 8
      %v294 = vadd.s32 %v292, 16
      %v295 = vadd.s32 %v292, 24
      %v296 = vadd.s32 %v292, 32
      %v297 = vadd.s32 %v292, 40
      %v298 = vadd.s32 %v292, 48
      %v299 = vadd.s32 %v292, 56
      %v300 = vadd.s32 %v292, 64
      %v301 = vadd.s32 %v292, 72
      %v302 = vadd.s32 %v292, 80
      %v303 = vadd.s32 %v292, 88
      %v304 = vadd.s32 %v292, 96
      %v305 = vadd.s32 %v292, 104
      %v306 = vadd.s32 %v292, 112
      %v307 = vadd.s32 %v292, 120
      %vm308 = vcmp.lt.s32.totalorder %v292, 0
      %v309 = vsub.s32 0, %v292
      %v310 = vsel %vm308, %v309, %v292
      %v311 = vshrl.u32 %v310, 4
      %v312 = vand.u32 %v310, 15
      %v313 = vsub.s32 0, %v312
      %v314 = vsel %vm308, %v313, %v312
      %vm315 = vcmp.lt.s32.totalorder %v293, 0
      %v316 = vsub.s32 0, %v293
      %v317 = vsel %vm315, %v316, %v293
      %v318 = vshrl.u32 %v317, 4
      %v319 = vand.u32 %v317, 15
      %v320 = vsub.s32 0, %v319
      %v321 = vsel %vm315, %v320, %v319
      %vm322 = vcmp.lt.s32.totalorder %v294, 0
      %v323 = vsub.s32 0, %v294
      %v324 = vsel %vm322, %v323, %v294
      %v325 = vshrl.u32 %v324, 4
      %v326 = vand.u32 %v324, 15
      %v327 = vsub.s32 0, %v326
      %v328 = vsel %vm322, %v327, %v326
      %vm329 = vcmp.lt.s32.totalorder %v295, 0
      %v330 = vsub.s32 0, %v295
      %v331 = vsel %vm329, %v330, %v295
      %v332 = vshrl.u32 %v331, 4
      %v333 = vand.u32 %v331, 15
      %v334 = vsub.s32 0, %v333
      %v335 = vsel %vm329, %v334, %v333
      %vm336 = vcmp.lt.s32.totalorder %v296, 0
      %v337 = vsub.s32 0, %v296
      %v338 = vsel %vm336, %v337, %v296
      %v339 = vshrl.u32 %v338, 4
      %v340 = vand.u32 %v338, 15
      %v341 = vsub.s32 0, %v340
      %v342 = vsel %vm336, %v341, %v340
      %vm343 = vcmp.lt.s32.totalorder %v297, 0
      %v344 = vsub.s32 0, %v297
      %v345 = vsel %vm343, %v344, %v297
      %v346 = vshrl.u32 %v345, 4
      %v347 = vand.u32 %v345, 15
      %v348 = vsub.s32 0, %v347
      %v349 = vsel %vm343, %v348, %v347
      %vm350 = vcmp.lt.s32.totalorder %v298, 0
      %v351 = vsub.s32 0, %v298
      %v352 = vsel %vm350, %v351, %v298
      %v353 = vshrl.u32 %v352, 4
      %v354 = vand.u32 %v352, 15
      %v355 = vsub.s32 0, %v354
      %v356 = vsel %vm350, %v355, %v354
      %vm357 = vcmp.lt.s32.totalorder %v299, 0
      %v358 = vsub.s32 0, %v299
      %v359 = vsel %vm357, %v358, %v299
      %v360 = vshrl.u32 %v359, 4
      %v361 = vand.u32 %v359, 15
      %v362 = vsub.s32 0, %v361
      %v363 = vsel %vm357, %v362, %v361
      %vm364 = vcmp.lt.s32.totalorder %v300, 0
      %v365 = vsub.s32 0, %v300
      %v366 = vsel %vm364, %v365, %v300
      %v367 = vshrl.u32 %v366, 4
      %v368 = vand.u32 %v366, 15
      %v369 = vsub.s32 0, %v368
      %v370 = vsel %vm364, %v369, %v368
      %vm371 = vcmp.lt.s32.totalorder %v301, 0
      %v372 = vsub.s32 0, %v301
      %v373 = vsel %vm371, %v372, %v301
      %v374 = vshrl.u32 %v373, 4
      %v375 = vand.u32 %v373, 15
      %v376 = vsub.s32 0, %v375
      %v377 = vsel %vm371, %v376, %v375
      %vm378 = vcmp.lt.s32.totalorder %v302, 0
      %v379 = vsub.s32 0, %v302
      %v380 = vsel %vm378, %v379, %v302
      %v381 = vshrl.u32 %v380, 4
      %v382 = vand.u32 %v380, 15
      %v383 = vsub.s32 0, %v382
      %v384 = vsel %vm378, %v383, %v382
      %vm385 = vcmp.lt.s32.totalorder %v303, 0
      %v386 = vsub.s32 0, %v303
      %v387 = vsel %vm385, %v386, %v303
      %v388 = vshrl.u32 %v387, 4
      %v389 = vand.u32 %v387, 15
      %v390 = vsub.s32 0, %v389
      %v391 = vsel %vm385, %v390, %v389
      %vm392 = vcmp.lt.s32.totalorder %v304, 0
      %v393 = vsub.s32 0, %v304
      %v394 = vsel %vm392, %v393, %v304
      %v395 = vshrl.u32 %v394, 4
      %v396 = vand.u32 %v394, 15
      %v397 = vsub.s32 0, %v396
      %v398 = vsel %vm392, %v397, %v396
      %vm399 = vcmp.lt.s32.totalorder %v305, 0
      %v400 = vsub.s32 0, %v305
      %v401 = vsel %vm399, %v400, %v305
      %v402 = vshrl.u32 %v401, 4
      %v403 = vand.u32 %v401, 15
      %v404 = vsub.s32 0, %v403
      %v405 = vsel %vm399, %v404, %v403
      %vm406 = vcmp.lt.s32.totalorder %v306, 0
      %v407 = vsub.s32 0, %v306
      %v408 = vsel %vm406, %v407, %v306
      %v409 = vshrl.u32 %v408, 4
      %v410 = vand.u32 %v408, 15
      %v411 = vsub.s32 0, %v410
      %v412 = vsel %vm406, %v411, %v410
      %vm413 = vcmp.lt.s32.totalorder %v307, 0
      %v414 = vsub.s32 0, %v307
      %v415 = vsel %vm413, %v414, %v307
      %v416 = vshrl.u32 %v415, 4
      %v417 = vand.u32 %v415, 15
      %v418 = vsub.s32 0, %v417
      %v419 = vsel %vm413, %v418, %v417
      %vm420 = vcmp.ne.s32.totalorder %v314, 0
      %vm421 = vcmp.ne.s32.totalorder %v321, 0
      %vm422 = vcmp.ne.s32.totalorder %v328, 0
      %vm423 = vcmp.ne.s32.totalorder %v335, 0
      %vm424 = vcmp.ne.s32.totalorder %v342, 0
      %vm425 = vcmp.ne.s32.totalorder %v349, 0
      %vm426 = vcmp.ne.s32.totalorder %v356, 0
      %vm427 = vcmp.ne.s32.totalorder %v363, 0
      %vm428 = vcmp.ne.s32.totalorder %v370, 0
      %vm429 = vcmp.ne.s32.totalorder %v377, 0
      %vm430 = vcmp.ne.s32.totalorder %v384, 0
      %vm431 = vcmp.ne.s32.totalorder %v391, 0
      %vm432 = vcmp.ne.s32.totalorder %v398, 0
      %vm433 = vcmp.ne.s32.totalorder %v405, 0
      %vm434 = vcmp.ne.s32.totalorder %v412, 0
      %vm435 = vcmp.ne.s32.totalorder %v419, 0
      %vm436 = vcmp.lt.s32.totalorder %v314, 0
      %vm437 = vcmp.lt.s32.totalorder %v321, 0
      %vm438 = vcmp.lt.s32.totalorder %v328, 0
      %vm439 = vcmp.lt.s32.totalorder %v335, 0
      %vm440 = vcmp.lt.s32.totalorder %v342, 0
      %vm441 = vcmp.lt.s32.totalorder %v349, 0
      %vm442 = vcmp.lt.s32.totalorder %v356, 0
      %vm443 = vcmp.lt.s32.totalorder %v363, 0
      %vm444 = vcmp.lt.s32.totalorder %v370, 0
      %vm445 = vcmp.lt.s32.totalorder %v377, 0
      %vm446 = vcmp.lt.s32.totalorder %v384, 0
      %vm447 = vcmp.lt.s32.totalorder %v391, 0
      %vm448 = vcmp.lt.s32.totalorder %v398, 0
      %vm449 = vcmp.lt.s32.totalorder %v405, 0
      %vm450 = vcmp.lt.s32.totalorder %v412, 0
      %vm451 = vcmp.lt.s32.totalorder %v419, 0
      %vm452 = vmand %vm436, %vm420
      %vm453 = vmand %vm437, %vm421
      %vm454 = vmand %vm438, %vm422
      %vm455 = vmand %vm439, %vm423
      %vm456 = vmand %vm440, %vm424
      %vm457 = vmand %vm441, %vm425
      %vm458 = vmand %vm442, %vm426
      %vm459 = vmand %vm443, %vm427
      %vm460 = vmand %vm444, %vm428
      %vm461 = vmand %vm445, %vm429
      %vm462 = vmand %vm446, %vm430
      %vm463 = vmand %vm447, %vm431
      %vm464 = vmand %vm448, %vm432
      %vm465 = vmand %vm449, %vm433
      %vm466 = vmand %vm450, %vm434
      %vm467 = vmand %vm451, %vm435
      %v468 = vadd.s32 %v314, 16
      %v469 = vadd.s32 %v321, 16
      %v470 = vadd.s32 %v328, 16
      %v471 = vadd.s32 %v335, 16
      %v472 = vadd.s32 %v342, 16
      %v473 = vadd.s32 %v349, 16
      %v474 = vadd.s32 %v356, 16
      %v475 = vadd.s32 %v363, 16
      %v476 = vadd.s32 %v370, 16
      %v477 = vadd.s32 %v377, 16
      %v478 = vadd.s32 %v384, 16
      %v479 = vadd.s32 %v391, 16
      %v480 = vadd.s32 %v398, 16
      %v481 = vadd.s32 %v405, 16
      %v482 = vadd.s32 %v412, 16
      %v483 = vadd.s32 %v419, 16
      %v484 = vsel %vm452, %v468, %v314
      %v485 = vsel %vm453, %v469, %v321
      %v486 = vsel %vm454, %v470, %v328
      %v487 = vsel %vm455, %v471, %v335
      %v488 = vsel %vm456, %v472, %v342
      %v489 = vsel %vm457, %v473, %v349
      %v490 = vsel %vm458, %v474, %v356
      %v491 = vsel %vm459, %v475, %v363
      %v492 = vsel %vm460, %v476, %v370
      %v493 = vsel %vm461, %v477, %v377
      %v494 = vsel %vm462, %v478, %v384
      %v495 = vsel %vm463, %v479, %v391
      %v496 = vsel %vm464, %v480, %v398
      %v497 = vsel %vm465, %v481, %v405
      %v498 = vsel %vm466, %v482, %v412
      %v499 = vsel %vm467, %v483, %v419
      %s500 = smul.u32 %s290, 16
      %s501 = scalar_lea.vmem [#allocation2], %s500
      %v502 = vld [vmem:[%s501] sm:$0xff]
      %v503 = vld [vmem:[%s501 + $0x8] sm:$0xff]
      %v504 = vld [vmem:[%s501 + $0x10] sm:$0xff]
      %v505 = vld [vmem:[%s501 + $0x18] sm:$0xff]
      %v506 = vld [vmem:[%s501 + $0x20] sm:$0xff]
      %v507 = vld [vmem:[%s501 + $0x28] sm:$0xff]
      %v508 = vld [vmem:[%s501 + $0x30] sm:$0xff]
      %v509 = vld [vmem:[%s501 + $0x38] sm:$0xff]
      %v510 = vld [vmem:[%s501 + $0x40] sm:$0xff]
      %v511 = vld [vmem:[%s501 + $0x48] sm:$0xff]
      %v512 = vld [vmem:[%s501 + $0x50] sm:$0xff]
      %v513 = vld [vmem:[%s501 + $0x58] sm:$0xff]
      %v514 = vld [vmem:[%s501 + $0x60] sm:$0xff]
      %v515 = vld [vmem:[%s501 + $0x68] sm:$0xff]
      %v516 = vld [vmem:[%s501 + $0x70] sm:$0xff]
      %v517 = vld [vmem:[%s501 + $0x78] sm:$0xff]
      %v518 = vrot.slane %v502, 7
      %v519 = vrot.slane %v503, 7
      %v520 = vrot.slane %v504, 7
      %v521 = vrot.slane %v505, 7
      %v522 = vrot.slane %v506, 7
      %v523 = vrot.slane %v507, 7
      %v524 = vrot.slane %v508, 7
      %v525 = vrot.slane %v509, 7
      %v526 = vrot.slane %v510, 7
      %v527 = vrot.slane %v511, 7
      %v528 = vrot.slane %v512, 7
      %v529 = vrot.slane %v513, 7
      %v530 = vrot.slane %v514, 7
      %v531 = vrot.slane %v515, 7
      %v532 = vrot.slane %v516, 7
      %v533 = vrot.slane %v517, 7
      %vm534 = vcmp.lt.s32.totalorder %v292, 1
      %v535 = vsel %vm534, %v532, %v533
      %v536 = vsel %vm534, %v531, %v532
      %v537 = vsel %vm534, %v530, %v531
      %v538 = vsel %vm534, %v529, %v530
      %v539 = vsel %vm534, %v528, %v529
      %v540 = vsel %vm534, %v527, %v528
      %v541 = vsel %vm534, %v526, %v527
      %v542 = vsel %vm534, %v525, %v526
      %v543 = vsel %vm534, %v524, %v525
      %v544 = vsel %vm534, %v523, %v524
      %v545 = vsel %vm534, %v522, %v523
      %v546 = vsel %vm534, %v521, %v522
      %v547 = vsel %vm534, %v520, %v521
      %v548 = vsel %vm534, %v519, %v520
      %v549 = vsel %vm534, %v518, %v519
      %v550 = vsel %vm534, %v533, %v518
      %vm551 = vcmp.ge.s32.totalorder %v484, 1
      %vm552 = vcmp.ge.s32.totalorder %v485, 1
      %vm553 = vcmp.ge.s32.totalorder %v486, 1
      %vm554 = vcmp.ge.s32.totalorder %v487, 1
      %vm555 = vcmp.ge.s32.totalorder %v488, 1
      %vm556 = vcmp.ge.s32.totalorder %v489, 1
      %vm557 = vcmp.ge.s32.totalorder %v490, 1
      %vm558 = vcmp.ge.s32.totalorder %v491, 1
      %vm559 = vcmp.ge.s32.totalorder %v492, 1
      %vm560 = vcmp.ge.s32.totalorder %v493, 1
      %vm561 = vcmp.ge.s32.totalorder %v494, 1
      %vm562 = vcmp.ge.s32.totalorder %v495, 1
      %vm563 = vcmp.ge.s32.totalorder %v496, 1
      %vm564 = vcmp.ge.s32.totalorder %v497, 1
      %vm565 = vcmp.ge.s32.totalorder %v498, 1
      %vm566 = vcmp.ge.s32.totalorder %v499, 1
      %v567 = vsel %vm551, 1, 0
      %v568 = vsel %vm552, 1, 0
      %v569 = vsel %vm553, 1, 0
      %v570 = vsel %vm554, 1, 0
      %v571 = vsel %vm555, 1, 0
      %v572 = vsel %vm556, 1, 0
      %v573 = vsel %vm557, 1, 0
      %v574 = vsel %vm558, 1, 0
      %v575 = vsel %vm559, 1, 0
      %v576 = vsel %vm560, 1, 0
      %v577 = vsel %vm561, 1, 0
      %v578 = vsel %vm562, 1, 0
      %v579 = vsel %vm563, 1, 0
      %v580 = vsel %vm564, 1, 0
      %v581 = vsel %vm565, 1, 0
      %v582 = vsel %vm566, 1, 0
      %vm583 = vcmp.eq.s32.totalorder %v567, 1
      %vm584 = vcmp.eq.s32.totalorder %v568, 1
      %vm585 = vcmp.eq.s32.totalorder %v569, 1
      %vm586 = vcmp.eq.s32.totalorder %v570, 1
      %vm587 = vcmp.eq.s32.totalorder %v571, 1
      %vm588 = vcmp.eq.s32.totalorder %v572, 1
      %vm589 = vcmp.eq.s32.totalorder %v573, 1
      %vm590 = vcmp.eq.s32.totalorder %v574, 1
      %vm591 = vcmp.eq.s32.totalorder %v575, 1
      %vm592 = vcmp.eq.s32.totalorder %v576, 1
      %vm593 = vcmp.eq.s32.totalorder %v577, 1
      %vm594 = vcmp.eq.s32.totalorder %v578, 1
      %vm595 = vcmp.eq.s32.totalorder %v579, 1
      %vm596 = vcmp.eq.s32.totalorder %v580, 1
      %vm597 = vcmp.eq.s32.totalorder %v581, 1
      %vm598 = vcmp.eq.s32.totalorder %v582, 1
      %v599 = vsel %vm583, %v550, 0.0
      %v600 = vsel %vm584, %v549, 0.0
      %v601 = vsel %vm585, %v548, 0.0
      %v602 = vsel %vm586, %v547, 0.0
      %v603 = vsel %vm587, %v546, 0.0
      %v604 = vsel %vm588, %v545, 0.0
      %v605 = vsel %vm589, %v544, 0.0
      %v606 = vsel %vm590, %v543, 0.0
      %v607 = vsel %vm591, %v542, 0.0
      %v608 = vsel %vm592, %v541, 0.0
      %v609 = vsel %vm593, %v540, 0.0
      %v610 = vsel %vm594, %v539, 0.0
      %v611 = vsel %vm595, %v538, 0.0
      %v612 = vsel %vm596, %v537, 0.0
      %v613 = vsel %vm597, %v536, 0.0
      %v614 = vsel %vm598, %v535, 0.0
      %v615 = vpack.c.bf16 %v600, %v599
      %v616 = vpack.c.bf16 %v602, %v601
      %v617 = vpack.c.bf16 %v604, %v603
      %v618 = vpack.c.bf16 %v606, %v605
      %v619 = vpack.c.bf16 %v608, %v607
      %v620 = vpack.c.bf16 %v610, %v609
      %v621 = vpack.c.bf16 %v612, %v611
      %v622 = vpack.c.bf16 %v614, %v613
      %v623 = vld [vmem:[%s1] sm:$0xf]
      %v624 = vld [vmem:[%s1 + $0x4] sm:$0xf]
      %v625 = vld [vmem:[%s1 + $0x8] sm:$0xf]
      %v626 = vld [vmem:[%s1 + $0xc] sm:$0xf]
      %v627 = vld [vmem:[%s1 + $0x10] sm:$0xf]
      %v628 = vld [vmem:[%s1 + $0x14] sm:$0xf]
      %v629 = vld [vmem:[%s1 + $0x18] sm:$0xf]
      %v630 = vld [vmem:[%s1 + $0x1c] sm:$0xf]
      %v631 = vld [vmem:[%s1 + $0x20] sm:$0xf]
      %v632 = vld [vmem:[%s1 + $0x24] sm:$0xf]
      %v633 = vld [vmem:[%s1 + $0x28] sm:$0xf]
      %v634 = vld [vmem:[%s1 + $0x2c] sm:$0xf]
      %v635 = vld [vmem:[%s1 + $0x30] sm:$0xf]
      %v636 = vld [vmem:[%s1 + $0x34] sm:$0xf]
      %v637 = vld [vmem:[%s1 + $0x38] sm:$0xf]
      %v638 = vld [vmem:[%s1 + $0x3c] sm:$0xf]
      %v639 = vpack.c.bf16 %v503, %v502
      %v640 = vpack.c.bf16 %v505, %v504
      %v641 = vpack.c.bf16 %v507, %v506
      %v642 = vpack.c.bf16 %v509, %v508
      %v643 = vpack.c.bf16 %v511, %v510
      %v644 = vpack.c.bf16 %v513, %v512
      %v645 = vpack.c.bf16 %v515, %v514
      %v646 = vpack.c.bf16 %v517, %v516
      %s647 = scalar_lea.vmem %s1, 64
      %v648 = vld [vmem:[%s647] sm:$0xf]
      %v649 = vld [vmem:[%s647 + $0x4] sm:$0xf]
      %v650 = vld [vmem:[%s647 + $0x8] sm:$0xf]
      %v651 = vld [vmem:[%s647 + $0xc] sm:$0xf]
      %v652 = vld [vmem:[%s647 + $0x10] sm:$0xf]
      %v653 = vld [vmem:[%s647 + $0x14] sm:$0xf]
      %v654 = vld [vmem:[%s647 + $0x18] sm:$0xf]
      %v655 = vld [vmem:[%s647 + $0x1c] sm:$0xf]
      %v656 = vld [vmem:[%s647 + $0x20] sm:$0xf]
      %v657 = vld [vmem:[%s647 + $0x24] sm:$0xf]
      %v658 = vld [vmem:[%s647 + $0x28] sm:$0xf]
      %v659 = vld [vmem:[%s647 + $0x2c] sm:$0xf]
      %v660 = vld [vmem:[%s647 + $0x30] sm:$0xf]
      %v661 = vld [vmem:[%s647 + $0x34] sm:$0xf]
      %v662 = vld [vmem:[%s647 + $0x38] sm:$0xf]
      %v663 = vld [vmem:[%s647 + $0x3c] sm:$0xf]
      %v680 = vunpack.c.l.b16 %v648
      %v681 = vunpack.c.l.b16 %v649
      %v682 = vunpack.c.l.b16 %v650
      %v683 = vunpack.c.l.b16 %v651
      %v684 = vunpack.c.l.b16 %v652
      %v685 = vunpack.c.l.b16 %v653
      %v686 = vunpack.c.l.b16 %v654
      %v687 = vunpack.c.l.b16 %v655
      %v688 = vunpack.c.l.b16 %v656
      %v689 = vunpack.c.l.b16 %v657
      %v690 = vunpack.c.l.b16 %v658
      %v691 = vunpack.c.l.b16 %v659
      %v692 = vunpack.c.l.b16 %v660
      %v693 = vunpack.c.l.b16 %v661
      %v694 = vunpack.c.l.b16 %v662
      %v695 = vunpack.c.l.b16 %v663
      %v696 = vpack.c.b16 %v681, %v680
      %v697 = vpack.c.b16 %v683, %v682
      %v698 = vpack.c.b16 %v685, %v684
      %v699 = vpack.c.b16 %v687, %v686
      %v700 = vpack.c.b16 %v689, %v688
      %v701 = vpack.c.b16 %v691, %v690
      %v702 = vpack.c.b16 %v693, %v692
      %v703 = vpack.c.b16 %v695, %v694
      %712 = vmatprep.subr.bf16.mxu0 0
      %713 = vmatpush1.bf16.msra.mxu0 %v696
      %714 = vmatprep.subr.bf16.mxu0 0
      %715 = vmatpush1.bf16.msra.mxu0 %v697
      %716 = vmatprep.subr.bf16.mxu0 0
      %717 = vmatpush1.bf16.msra.mxu0 %v698
      %718 = vmatprep.subr.bf16.mxu0 0
      %719 = vmatpush1.bf16.msra.mxu0 %v699
      %720 = vmatprep.subr.bf16.mxu0 0
      %721 = vmatpush1.bf16.msra.mxu0 %v700
      %722 = vmatprep.subr.bf16.mxu0 0
      %723 = vmatpush1.bf16.msra.mxu0 %v701
      %724 = vmatprep.subr.bf16.mxu0 0
      %725 = vmatpush1.bf16.msra.mxu0 %v702
      %726 = vmatprep.subr.bf16.mxu0 0
      %727 = vmatpush1.bf16.msra.mxu0 %v703
      %728 = vmatprep.subr.bf16.mxu0 0
      %729 = vmatpush1.bf16.msra.mxu0 0
      %730 = vmatprep.subr.bf16.mxu0 0
      %731 = vmatpush1.bf16.msra.mxu0 0
      %732 = vmatprep.subr.bf16.mxu0 0
      %733 = vmatpush1.bf16.msra.mxu0 0
      %734 = vmatprep.subr.bf16.mxu0 0
      %735 = vmatpush1.bf16.msra.mxu0 0
      %736 = vmatprep.subr.bf16.mxu0 0
      %737 = vmatpush1.bf16.msra.mxu0 0
      %738 = vmatprep.subr.bf16.mxu0 0
      %739 = vmatpush1.bf16.msra.mxu0 0
      %740 = vmatprep.subr.bf16.mxu0 0
      %741 = vmatpush1.bf16.msra.mxu0 0
      %742 = vmatprep.subr.bf16.mxu0 0
      %743 = vmatpush1.bf16.msra.mxu0 0
      %744 = vmatprep.mubr.bf16.mxu0 0
      %745 = vmatmul.mubr.bf16.gmra.mrb[0].mxu0 %v639
      %v746 = vpop.f32.mrb[0].mxu0
      %v747 = vadd.f32 0.0, %v746
      %v748 = vpop.f32.mrb[0].mxu0
      %v749 = vpop.f32.mrb[0].mxu0
      %v750 = vadd.f32 0.0, %v749
      %v751 = vpop.f32.mrb[0].mxu0
      %752 = vmatprep.mubr.bf16.mxu0 0
      %753 = vmatmul.mubr.bf16.gmra.mrb[0].mxu0 %v640
      %v754 = vpop.f32.mrb[0].mxu0
      %v755 = vadd.f32 0.0, %v754
      %v756 = vpop.f32.mrb[0].mxu0
      %v757 = vpop.f32.mrb[0].mxu0
      %v758 = vadd.f32 0.0, %v757
      %v759 = vpop.f32.mrb[0].mxu0
      %760 = vmatprep.mubr.bf16.mxu0 0
      %761 = vmatmul.mubr.bf16.gmra.mrb[0].mxu0 %v641
      %v762 = vpop.f32.mrb[0].mxu0
      %v763 = vadd.f32 0.0, %v762
      %v764 = vpop.f32.mrb[0].mxu0
      %v765 = vpop.f32.mrb[0].mxu0
      %v766 = vadd.f32 0.0, %v765
      %v767 = vpop.f32.mrb[0].mxu0
      %768 = vmatprep.mubr.bf16.mxu0 0
      %769 = vmatmul.mubr.bf16.gmra.mrb[0].mxu0 %v642
      %v770 = vpop.f32.mrb[0].mxu0
      %v771 = vadd.f32 0.0, %v770
      %v772 = vpop.f32.mrb[0].mxu0
      %v773 = vpop.f32.mrb[0].mxu0
      %v774 = vadd.f32 0.0, %v773
      %v775 = vpop.f32.mrb[0].mxu0
      %776 = vmatprep.mubr.bf16.mxu0 0
      %777 = vmatmul.mubr.bf16.gmra.mrb[0].mxu0 %v643
      %v778 = vpop.f32.mrb[0].mxu0
      %v779 = vadd.f32 0.0, %v778
      %v780 = vpop.f32.mrb[0].mxu0
      %v781 = vpop.f32.mrb[0].mxu0
      %v782 = vadd.f32 0.0, %v781
      %v783 = vpop.f32.mrb[0].mxu0
      %784 = vmatprep.mubr.bf16.mxu0 0
      %785 = vmatmul.mubr.bf16.gmra.mrb[0].mxu0 %v644
      %v786 = vpop.f32.mrb[0].mxu0
      %v787 = vadd.f32 0.0, %v786
      %v788 = vpop.f32.mrb[0].mxu0
      %v789 = vpop.f32.mrb[0].mxu0
      %v790 = vadd.f32 0.0, %v789
      %v791 = vpop.f32.mrb[0].mxu0
      %792 = vmatprep.mubr.bf16.mxu0 0
      %793 = vmatmul.mubr.bf16.gmra.mrb[0].mxu0 %v645
      %v794 = vpop.f32.mrb[0].mxu0
      %v795 = vadd.f32 0.0, %v794
      %v796 = vpop.f32.mrb[0].mxu0
      %v797 = vpop.f32.mrb[0].mxu0
      %v798 = vadd.f32 0.0, %v797
      %v799 = vpop.f32.mrb[0].mxu0
      %800 = vmatprep.mubr.bf16.mxu0 0
      %801 = vmatmul.mubr.bf16.gmra.mrb[0].mxu0 %v646
      %v802 = vpop.f32.mrb[0].mxu0
      %v803 = vadd.f32 0.0, %v802
      %v804 = vpop.f32.mrb[0].mxu0
      %v805 = vpop.f32.mrb[0].mxu0
      %v806 = vadd.f32 0.0, %v805
      %v807 = vpop.f32.mrb[0].mxu0
      %808 = vdwg.mxu0
      %v825 = vunpack.c.l.b16 %v623
      %v826 = vunpack.c.l.b16 %v624
      %v827 = vunpack.c.l.b16 %v625
      %v828 = vunpack.c.l.b16 %v626
      %v829 = vunpack.c.l.b16 %v627
      %v830 = vunpack.c.l.b16 %v628
      %v831 = vunpack.c.l.b16 %v629
      %v832 = vunpack.c.l.b16 %v630
      %v833 = vunpack.c.l.b16 %v631
      %v834 = vunpack.c.l.b16 %v632
      %v835 = vunpack.c.l.b16 %v633
      %v836 = vunpack.c.l.b16 %v634
      %v837 = vunpack.c.l.b16 %v635
      %v838 = vunpack.c.l.b16 %v636
      %v839 = vunpack.c.l.b16 %v637
      %v840 = vunpack.c.l.b16 %v638
      %v841 = vpack.c.b16 %v826, %v825
      %v842 = vpack.c.b16 %v828, %v827
      %v843 = vpack.c.b16 %v830, %v829
      %v844 = vpack.c.b16 %v832, %v831
      %v845 = vpack.c.b16 %v834, %v833
      %v846 = vpack.c.b16 %v836, %v835
      %v847 = vpack.c.b16 %v838, %v837
      %v848 = vpack.c.b16 %v840, %v839
      %857 = vmatprep.subr.bf16.mxu0 0
      %858 = vmatpush1.bf16.msra.mxu0 %v841
      %859 = vmatprep.subr.bf16.mxu0 0
      %860 = vmatpush1.bf16.msra.mxu0 %v842
      %861 = vmatprep.subr.bf16.mxu0 0
      %862 = vmatpush1.bf16.msra.mxu0 %v843
      %863 = vmatprep.subr.bf16.mxu0 0
      %864 = vmatpush1.bf16.msra.mxu0 %v844
      %865 = vmatprep.subr.bf16.mxu0 0
      %866 = vmatpush1.bf16.msra.mxu0 %v845
      %867 = vmatprep.subr.bf16.mxu0 0
      %868 = vmatpush1.bf16.msra.mxu0 %v846
      %869 = vmatprep.subr.bf16.mxu0 0
      %870 = vmatpush1.bf16.msra.mxu0 %v847
      %871 = vmatprep.subr.bf16.mxu0 0
      %872 = vmatpush1.bf16.msra.mxu0 %v848
      %873 = vmatprep.subr.bf16.mxu0 0
      %874 = vmatpush1.bf16.msra.mxu0 0
      %875 = vmatprep.subr.bf16.mxu0 0
      %876 = vmatpush1.bf16.msra.mxu0 0
      %877 = vmatprep.subr.bf16.mxu0 0
      %878 = vmatpush1.bf16.msra.mxu0 0
      %879 = vmatprep.subr.bf16.mxu0 0
      %880 = vmatpush1.bf16.msra.mxu0 0
      %881 = vmatprep.subr.bf16.mxu0 0
      %882 = vmatpush1.bf16.msra.mxu0 0
      %883 = vmatprep.subr.bf16.mxu0 0
      %884 = vmatpush1.bf16.msra.mxu0 0
      %885 = vmatprep.subr.bf16.mxu0 0
      %886 = vmatpush1.bf16.msra.mxu0 0
      %887 = vmatprep.subr.bf16.mxu0 0
      %888 = vmatpush1.bf16.msra.mxu0 0
      %889 = vmatprep.mubr.bf16.mxu0 0
      %890 = vmatmul.mubr.bf16.gmra.mrb[0].mxu0 %v615
      %v891 = vpop.f32.mrb[0].mxu0
      %v892 = vadd.f32 %v747, %v891
      %v893 = vpop.f32.mrb[0].mxu0
      %v894 = vpop.f32.mrb[0].mxu0
      %v895 = vadd.f32 %v750, %v894
      %v896 = vpop.f32.mrb[0].mxu0
      %897 = vmatprep.mubr.bf16.mxu0 0
      %898 = vmatmul.mubr.bf16.gmra.mrb[0].mxu0 %v616
      %v899 = vpop.f32.mrb[0].mxu0
      %v900 = vadd.f32 %v755, %v899
      %v901 = vpop.f32.mrb[0].mxu0
      %v902 = vpop.f32.mrb[0].mxu0
      %v903 = vadd.f32 %v758, %v902
      %v904 = vpop.f32.mrb[0].mxu0
      %905 = vmatprep.mubr.bf16.mxu0 0
      %906 = vmatmul.mubr.bf16.gmra.mrb[0].mxu0 %v617
      %v907 = vpop.f32.mrb[0].mxu0
      %v908 = vadd.f32 %v763, %v907
      %v909 = vpop.f32.mrb[0].mxu0
      %v910 = vpop.f32.mrb[0].mxu0
      %v911 = vadd.f32 %v766, %v910
      %v912 = vpop.f32.mrb[0].mxu0
      %913 = vmatprep.mubr.bf16.mxu0 0
      %914 = vmatmul.mubr.bf16.gmra.mrb[0].mxu0 %v618
      %v915 = vpop.f32.mrb[0].mxu0
      %v916 = vadd.f32 %v771, %v915
      %v917 = vpop.f32.mrb[0].mxu0
      %v918 = vpop.f32.mrb[0].mxu0
      %v919 = vadd.f32 %v774, %v918
      %v920 = vpop.f32.mrb[0].mxu0
      %921 = vmatprep.mubr.bf16.mxu0 0
      %922 = vmatmul.mubr.bf16.gmra.mrb[0].mxu0 %v619
      %v923 = vpop.f32.mrb[0].mxu0
      %v924 = vadd.f32 %v779, %v923
      %v925 = vpop.f32.mrb[0].mxu0
      %v926 = vpop.f32.mrb[0].mxu0
      %v927 = vadd.f32 %v782, %v926
      %v928 = vpop.f32.mrb[0].mxu0
      %929 = vmatprep.mubr.bf16.mxu0 0
      %930 = vmatmul.mubr.bf16.gmra.mrb[0].mxu0 %v620
      %v931 = vpop.f32.mrb[0].mxu0
      %v932 = vadd.f32 %v787, %v931
      %v933 = vpop.f32.mrb[0].mxu0
      %v934 = vpop.f32.mrb[0].mxu0
      %v935 = vadd.f32 %v790, %v934
      %v936 = vpop.f32.mrb[0].mxu0
      %937 = vmatprep.mubr.bf16.mxu0 0
      %938 = vmatmul.mubr.bf16.gmra.mrb[0].mxu0 %v621
      %v939 = vpop.f32.mrb[0].mxu0
      %v940 = vadd.f32 %v795, %v939
      %v941 = vpop.f32.mrb[0].mxu0
      %v942 = vpop.f32.mrb[0].mxu0
      %v943 = vadd.f32 %v798, %v942
      %v944 = vpop.f32.mrb[0].mxu0
      %945 = vmatprep.mubr.bf16.mxu0 0
      %946 = vmatmul.mubr.bf16.gmra.mrb[0].mxu0 %v622
      %v947 = vpop.f32.mrb[0].mxu0
      %v948 = vadd.f32 %v803, %v947
      %v949 = vpop.f32.mrb[0].mxu0
      %v950 = vpop.f32.mrb[0].mxu0
      %v951 = vadd.f32 %v806, %v950
      %v952 = vpop.f32.mrb[0].mxu0
      %953 = vdwg.mxu0
      %v954 = vrot.slane %v502, 1
      %v955 = vrot.slane %v503, 1
      %v956 = vrot.slane %v504, 1
      %v957 = vrot.slane %v505, 1
      %v958 = vrot.slane %v506, 1
      %v959 = vrot.slane %v507, 1
      %v960 = vrot.slane %v508, 1
      %v961 = vrot.slane %v509, 1
      %v962 = vrot.slane %v510, 1
      %v963 = vrot.slane %v511, 1
      %v964 = vrot.slane %v512, 1
      %v965 = vrot.slane %v513, 1
      %v966 = vrot.slane %v514, 1
      %v967 = vrot.slane %v515, 1
      %v968 = vrot.slane %v516, 1
      %v969 = vrot.slane %v517, 1
      %vm970 = vcmp.lt.s32.totalorder %v292, 7
      %v971 = vsel %vm970, %v968, %v969
      %v972 = vsel %vm970, %v967, %v968
      %v973 = vsel %vm970, %v966, %v967
      %v974 = vsel %vm970, %v965, %v966
      %v975 = vsel %vm970, %v964, %v965
      %v976 = vsel %vm970, %v963, %v964
      %v977 = vsel %vm970, %v962, %v963
      %v978 = vsel %vm970, %v961, %v962
      %v979 = vsel %vm970, %v960, %v961
      %v980 = vsel %vm970, %v959, %v960
      %v981 = vsel %vm970, %v958, %v959
      %v982 = vsel %vm970, %v957, %v958
      %v983 = vsel %vm970, %v956, %v957
      %v984 = vsel %vm970, %v955, %v956
      %v985 = vsel %vm970, %v954, %v955
      %v986 = vsel %vm970, %v969, %v954
      %vm987 = vcmp.le.s32.totalorder %v484, 14
      %vm988 = vcmp.le.s32.totalorder %v485, 14
      %vm989 = vcmp.le.s32.totalorder %v486, 14
      %vm990 = vcmp.le.s32.totalorder %v487, 14
      %vm991 = vcmp.le.s32.totalorder %v488, 14
      %vm992 = vcmp.le.s32.totalorder %v489, 14
      %vm993 = vcmp.le.s32.totalorder %v490, 14
      %vm994 = vcmp.le.s32.totalorder %v491, 14
      %vm995 = vcmp.le.s32.totalorder %v492, 14
      %vm996 = vcmp.le.s32.totalorder %v493, 14
      %vm997 = vcmp.le.s32.totalorder %v494, 14
      %vm998 = vcmp.le.s32.totalorder %v495, 14
      %vm999 = vcmp.le.s32.totalorder %v496, 14
      %vm1000 = vcmp.le.s32.totalorder %v497, 14
      %vm1001 = vcmp.le.s32.totalorder %v498, 14
      %vm1002 = vcmp.le.s32.totalorder %v499, 14
      %v1003 = vsel %vm987, 1, 0
      %v1004 = vsel %vm988, 1, 0
      %v1005 = vsel %vm989, 1, 0
      %v1006 = vsel %vm990, 1, 0
      %v1007 = vsel %vm991, 1, 0
      %v1008 = vsel %vm992, 1, 0
      %v1009 = vsel %vm993, 1, 0
      %v1010 = vsel %vm994, 1, 0
      %v1011 = vsel %vm995, 1, 0
      %v1012 = vsel %vm996, 1, 0
      %v1013 = vsel %vm997, 1, 0
      %v1014 = vsel %vm998, 1, 0
      %v1015 = vsel %vm999, 1, 0
      %v1016 = vsel %vm1000, 1, 0
      %v1017 = vsel %vm1001, 1, 0
      %v1018 = vsel %vm1002, 1, 0
      %vm1019 = vcmp.eq.s32.totalorder %v1003, 1
      %vm1020 = vcmp.eq.s32.totalorder %v1004, 1
      %vm1021 = vcmp.eq.s32.totalorder %v1005, 1
      %vm1022 = vcmp.eq.s32.totalorder %v1006, 1
      %vm1023 = vcmp.eq.s32.totalorder %v1007, 1
      %vm1024 = vcmp.eq.s32.totalorder %v1008, 1
      %vm1025 = vcmp.eq.s32.totalorder %v1009, 1
      %vm1026 = vcmp.eq.s32.totalorder %v1010, 1
      %vm1027 = vcmp.eq.s32.totalorder %v1011, 1
      %vm1028 = vcmp.eq.s32.totalorder %v1012, 1
      %vm1029 = vcmp.eq.s32.totalorder %v1013, 1
      %vm1030 = vcmp.eq.s32.totalorder %v1014, 1
      %vm1031 = vcmp.eq.s32.totalorder %v1015, 1
      %vm1032 = vcmp.eq.s32.totalorder %v1016, 1
      %vm1033 = vcmp.eq.s32.totalorder %v1017, 1
      %vm1034 = vcmp.eq.s32.totalorder %v1018, 1
      %v1035 = vsel %vm1019, %v985, 0.0
      %v1036 = vsel %vm1020, %v984, 0.0
      %v1037 = vsel %vm1021, %v983, 0.0
      %v1038 = vsel %vm1022, %v982, 0.0
      %v1039 = vsel %vm1023, %v981, 0.0
      %v1040 = vsel %vm1024, %v980, 0.0
      %v1041 = vsel %vm1025, %v979, 0.0
      %v1042 = vsel %vm1026, %v978, 0.0
      %v1043 = vsel %vm1027, %v977, 0.0
      %v1044 = vsel %vm1028, %v976, 0.0
      %v1045 = vsel %vm1029, %v975, 0.0
      %v1046 = vsel %vm1030, %v974, 0.0
      %v1047 = vsel %vm1031, %v973, 0.0
      %v1048 = vsel %vm1032, %v972, 0.0
      %v1049 = vsel %vm1033, %v971, 0.0
      %v1050 = vsel %vm1034, %v986, 0.0
      %v1051 = vpack.c.bf16 %v1036, %v1035
      %v1052 = vpack.c.bf16 %v1038, %v1037
      %v1053 = vpack.c.bf16 %v1040, %v1039
      %v1054 = vpack.c.bf16 %v1042, %v1041
      %v1055 = vpack.c.bf16 %v1044, %v1043
      %v1056 = vpack.c.bf16 %v1046, %v1045
      %v1057 = vpack.c.bf16 %v1048, %v1047
      %v1058 = vpack.c.bf16 %v1050, %v1049
      %s1059 = scalar_lea.vmem %s1, 128
      %v1060 = vld [vmem:[%s1059] sm:$0xf]
      %v1061 = vld [vmem:[%s1059 + $0x4] sm:$0xf]
      %v1062 = vld [vmem:[%s1059 + $0x8] sm:$0xf]
      %v1063 = vld [vmem:[%s1059 + $0xc] sm:$0xf]
      %v1064 = vld [vmem:[%s1059 + $0x10] sm:$0xf]
      %v1065 = vld [vmem:[%s1059 + $0x14] sm:$0xf]
      %v1066 = vld [vmem:[%s1059 + $0x18] sm:$0xf]
      %v1067 = vld [vmem:[%s1059 + $0x1c] sm:$0xf]
      %v1068 = vld [vmem:[%s1059 + $0x20] sm:$0xf]
      %v1069 = vld [vmem:[%s1059 + $0x24] sm:$0xf]
      %v1070 = vld [vmem:[%s1059 + $0x28] sm:$0xf]
      %v1071 = vld [vmem:[%s1059 + $0x2c] sm:$0xf]
      %v1072 = vld [vmem:[%s1059 + $0x30] sm:$0xf]
      %v1073 = vld [vmem:[%s1059 + $0x34] sm:$0xf]
      %v1074 = vld [vmem:[%s1059 + $0x38] sm:$0xf]
      %v1075 = vld [vmem:[%s1059 + $0x3c] sm:$0xf]
      %v1092 = vunpack.c.l.b16 %v1060
      %v1093 = vunpack.c.l.b16 %v1061
      %v1094 = vunpack.c.l.b16 %v1062
      %v1095 = vunpack.c.l.b16 %v1063
      %v1096 = vunpack.c.l.b16 %v1064
      %v1097 = vunpack.c.l.b16 %v1065
      %v1098 = vunpack.c.l.b16 %v1066
      %v1099 = vunpack.c.l.b16 %v1067
      %v1100 = vunpack.c.l.b16 %v1068
      %v1101 = vunpack.c.l.b16 %v1069
      %v1102 = vunpack.c.l.b16 %v1070
      %v1103 = vunpack.c.l.b16 %v1071
      %v1104 = vunpack.c.l.b16 %v1072
      %v1105 = vunpack.c.l.b16 %v1073
      %v1106 = vunpack.c.l.b16 %v1074
      %v1107 = vunpack.c.l.b16 %v1075
      %v1108 = vpack.c.b16 %v1093, %v1092
      %v1109 = vpack.c.b16 %v1095, %v1094
      %v1110 = vpack.c.b16 %v1097, %v1096
      %v1111 = vpack.c.b16 %v1099, %v1098
      %v1112 = vpack.c.b16 %v1101, %v1100
      %v1113 = vpack.c.b16 %v1103, %v1102
      %v1114 = vpack.c.b16 %v1105, %v1104
      %v1115 = vpack.c.b16 %v1107, %v1106
      %1124 = vmatprep.subr.bf16.mxu0 0
      %1125 = vmatpush1.bf16.msra.mxu0 %v1108
      %1126 = vmatprep.subr.bf16.mxu0 0
      %1127 = vmatpush1.bf16.msra.mxu0 %v1109
      %1128 = vmatprep.subr.bf16.mxu0 0
      %1129 = vmatpush1.bf16.msra.mxu0 %v1110
      %1130 = vmatprep.subr.bf16.mxu0 0
      %1131 = vmatpush1.bf16.msra.mxu0 %v1111
      %1132 = vmatprep.subr.bf16.mxu0 0
      %1133 = vmatpush1.bf16.msra.mxu0 %v1112
      %1134 = vmatprep.subr.bf16.mxu0 0
      %1135 = vmatpush1.bf16.msra.mxu0 %v1113
      %1136 = vmatprep.subr.bf16.mxu0 0
      %1137 = vmatpush1.bf16.msra.mxu0 %v1114
      %1138 = vmatprep.subr.bf16.mxu0 0
      %1139 = vmatpush1.bf16.msra.mxu0 %v1115
      %1140 = vmatprep.subr.bf16.mxu0 0
      %1141 = vmatpush1.bf16.msra.mxu0 0
      %1142 = vmatprep.subr.bf16.mxu0 0
      %1143 = vmatpush1.bf16.msra.mxu0 0
      %1144 = vmatprep.subr.bf16.mxu0 0
      %1145 = vmatpush1.bf16.msra.mxu0 0
      %1146 = vmatprep.subr.bf16.mxu0 0
      %1147 = vmatpush1.bf16.msra.mxu0 0
      %1148 = vmatprep.subr.bf16.mxu0 0
      %1149 = vmatpush1.bf16.msra.mxu0 0
      %1150 = vmatprep.subr.bf16.mxu0 0
      %1151 = vmatpush1.bf16.msra.mxu0 0
      %1152 = vmatprep.subr.bf16.mxu0 0
      %1153 = vmatpush1.bf16.msra.mxu0 0
      %1154 = vmatprep.subr.bf16.mxu0 0
      %1155 = vmatpush1.bf16.msra.mxu0 0
      %1156 = vmatprep.mubr.bf16.mxu0 0
      %1157 = vmatmul.mubr.bf16.gmra.mrb[0].mxu0 %v1051
      %v1158 = vpop.f32.mrb[0].mxu0
      %v1159 = vadd.f32 0.0, %v1158
      %v1160 = vpop.f32.mrb[0].mxu0
      %v1161 = vpop.f32.mrb[0].mxu0
      %v1162 = vadd.f32 0.0, %v1161
      %v1163 = vpop.f32.mrb[0].mxu0
      %1164 = vmatprep.mubr.bf16.mxu0 0
      %1165 = vmatmul.mubr.bf16.gmra.mrb[0].mxu0 %v1052
      %v1166 = vpop.f32.mrb[0].mxu0
      %v1167 = vadd.f32 0.0, %v1166
      %v1168 = vpop.f32.mrb[0].mxu0
      %v1169 = vpop.f32.mrb[0].mxu0
      %v1170 = vadd.f32 0.0, %v1169
      %v1171 = vpop.f32.mrb[0].mxu0
      %1172 = vmatprep.mubr.bf16.mxu0 0
      %1173 = vmatmul.mubr.bf16.gmra.mrb[0].mxu0 %v1053
      %v1174 = vpop.f32.mrb[0].mxu0
      %v1175 = vadd.f32 0.0, %v1174
      %v1176 = vpop.f32.mrb[0].mxu0
      %v1177 = vpop.f32.mrb[0].mxu0
      %v1178 = vadd.f32 0.0, %v1177
      %v1179 = vpop.f32.mrb[0].mxu0
      %1180 = vmatprep.mubr.bf16.mxu0 0
      %1181 = vmatmul.mubr.bf16.gmra.mrb[0].mxu0 %v1054
      %v1182 = vpop.f32.mrb[0].mxu0
      %v1183 = vadd.f32 0.0, %v1182
      %v1184 = vpop.f32.mrb[0].mxu0
      %v1185 = vpop.f32.mrb[0].mxu0
      %v1186 = vadd.f32 0.0, %v1185
      %v1187 = vpop.f32.mrb[0].mxu0
      %1188 = vmatprep.mubr.bf16.mxu0 0
      %1189 = vmatmul.mubr.bf16.gmra.mrb[0].mxu0 %v1055
      %v1190 = vpop.f32.mrb[0].mxu0
      %v1191 = vadd.f32 0.0, %v1190
      %v1192 = vpop.f32.mrb[0].mxu0
      %v1193 = vpop.f32.mrb[0].mxu0
      %v1194 = vadd.f32 0.0, %v1193
      %v1195 = vpop.f32.mrb[0].mxu0
      %1196 = vmatprep.mubr.bf16.mxu0 0
      %1197 = vmatmul.mubr.bf16.gmra.mrb[0].mxu0 %v1056
      %v1198 = vpop.f32.mrb[0].mxu0
      %v1199 = vadd.f32 0.0, %v1198
      %v1200 = vpop.f32.mrb[0].mxu0
      %v1201 = vpop.f32.mrb[0].mxu0
      %v1202 = vadd.f32 0.0, %v1201
      %v1203 = vpop.f32.mrb[0].mxu0
      %1204 = vmatprep.mubr.bf16.mxu0 0
      %1205 = vmatmul.mubr.bf16.gmra.mrb[0].mxu0 %v1057
      %v1206 = vpop.f32.mrb[0].mxu0
      %v1207 = vadd.f32 0.0, %v1206
      %v1208 = vpop.f32.mrb[0].mxu0
      %v1209 = vpop.f32.mrb[0].mxu0
      %v1210 = vadd.f32 0.0, %v1209
      %v1211 = vpop.f32.mrb[0].mxu0
      %1212 = vmatprep.mubr.bf16.mxu0 0
      %1213 = vmatmul.mubr.bf16.gmra.mrb[0].mxu0 %v1058
      %v1214 = vpop.f32.mrb[0].mxu0
      %v1215 = vadd.f32 0.0, %v1214
      %v1216 = vpop.f32.mrb[0].mxu0
      %v1217 = vpop.f32.mrb[0].mxu0
      %v1218 = vadd.f32 0.0, %v1217
      %v1219 = vpop.f32.mrb[0].mxu0
      %1220 = vdwg.mxu0
      %v1221 = vadd.f32 %v892, %v1159
      %v1222 = vadd.f32 %v895, %v1162
      %v1223 = vadd.f32 %v900, %v1167
      %v1224 = vadd.f32 %v903, %v1170
      %v1225 = vadd.f32 %v908, %v1175
      %v1226 = vadd.f32 %v911, %v1178
      %v1227 = vadd.f32 %v916, %v1183
      %v1228 = vadd.f32 %v919, %v1186
      %v1229 = vadd.f32 %v924, %v1191
      %v1230 = vadd.f32 %v927, %v1194
      %v1231 = vadd.f32 %v932, %v1199
      %v1232 = vadd.f32 %v935, %v1202
      %v1233 = vadd.f32 %v940, %v1207
      %v1234 = vadd.f32 %v943, %v1210
      %v1235 = vadd.f32 %v948, %v1215
      %v1236 = vadd.f32 %v951, %v1218
      %s1237 = sadd.s32 %s290, 1
      %s1238 = smul.u32 %s1237, 16
      %s1239 = scalar_lea.vmem [#allocation2], %s1238
      %v1240 = vld [vmem:[%s1239] sm:$0xff]
      %v1241 = vld [vmem:[%s1239 + $0x8] sm:$0xff]
      %v1242 = vld [vmem:[%s1239 + $0x10] sm:$0xff]
      %v1243 = vld [vmem:[%s1239 + $0x18] sm:$0xff]
      %v1244 = vld [vmem:[%s1239 + $0x20] sm:$0xff]
      %v1245 = vld [vmem:[%s1239 + $0x28] sm:$0xff]
      %v1246 = vld [vmem:[%s1239 + $0x30] sm:$0xff]
      %v1247 = vld [vmem:[%s1239 + $0x38] sm:$0xff]
      %v1248 = vld [vmem:[%s1239 + $0x40] sm:$0xff]
      %v1249 = vld [vmem:[%s1239 + $0x48] sm:$0xff]
      %v1250 = vld [vmem:[%s1239 + $0x50] sm:$0xff]
      %v1251 = vld [vmem:[%s1239 + $0x58] sm:$0xff]
      %v1252 = vld [vmem:[%s1239 + $0x60] sm:$0xff]
      %v1253 = vld [vmem:[%s1239 + $0x68] sm:$0xff]
      %v1254 = vld [vmem:[%s1239 + $0x70] sm:$0xff]
      %v1255 = vld [vmem:[%s1239 + $0x78] sm:$0xff]
      %v1256 = vrot.slane %v1240, 7
      %v1257 = vrot.slane %v1241, 7
      %v1258 = vrot.slane %v1242, 7
      %v1259 = vrot.slane %v1243, 7
      %v1260 = vrot.slane %v1244, 7
      %v1261 = vrot.slane %v1245, 7
      %v1262 = vrot.slane %v1246, 7
      %v1263 = vrot.slane %v1247, 7
      %v1264 = vrot.slane %v1248, 7
      %v1265 = vrot.slane %v1249, 7
      %v1266 = vrot.slane %v1250, 7
      %v1267 = vrot.slane %v1251, 7
      %v1268 = vrot.slane %v1252, 7
      %v1269 = vrot.slane %v1253, 7
      %v1270 = vrot.slane %v1254, 7
      %v1271 = vrot.slane %v1255, 7
      %v1272 = vsel %vm534, %v1270, %v1271
      %v1273 = vsel %vm534, %v1269, %v1270
      %v1274 = vsel %vm534, %v1268, %v1269
      %v1275 = vsel %vm534, %v1267, %v1268
      %v1276 = vsel %vm534, %v1266, %v1267
      %v1277 = vsel %vm534, %v1265, %v1266
      %v1278 = vsel %vm534, %v1264, %v1265
      %v1279 = vsel %vm534, %v1263, %v1264
      %v1280 = vsel %vm534, %v1262, %v1263
      %v1281 = vsel %vm534, %v1261, %v1262
      %v1282 = vsel %vm534, %v1260, %v1261
      %v1283 = vsel %vm534, %v1259, %v1260
      %v1284 = vsel %vm534, %v1258, %v1259
      %v1285 = vsel %vm534, %v1257, %v1258
      %v1286 = vsel %vm534, %v1256, %v1257
      %v1287 = vsel %vm534, %v1271, %v1256
      %v1288 = vsel %vm583, %v1287, 0.0
      %v1289 = vsel %vm584, %v1286, 0.0
      %v1290 = vsel %vm585, %v1285, 0.0
      %v1291 = vsel %vm586, %v1284, 0.0
      %v1292 = vsel %vm587, %v1283, 0.0
      %v1293 = vsel %vm588, %v1282, 0.0
      %v1294 = vsel %vm589, %v1281, 0.0
      %v1295 = vsel %vm590, %v1280, 0.0
      %v1296 = vsel %vm591, %v1279, 0.0
      %v1297 = vsel %vm592, %v1278, 0.0
      %v1298 = vsel %vm593, %v1277, 0.0
      %v1299 = vsel %vm594, %v1276, 0.0
      %v1300 = vsel %vm595, %v1275, 0.0
      %v1301 = vsel %vm596, %v1274, 0.0
      %v1302 = vsel %vm597, %v1273, 0.0
      %v1303 = vsel %vm598, %v1272, 0.0
      %v1304 = vpack.c.bf16 %v1289, %v1288
      %v1305 = vpack.c.bf16 %v1291, %v1290
      %v1306 = vpack.c.bf16 %v1293, %v1292
      %v1307 = vpack.c.bf16 %v1295, %v1294
      %v1308 = vpack.c.bf16 %v1297, %v1296
      %v1309 = vpack.c.bf16 %v1299, %v1298
      %v1310 = vpack.c.bf16 %v1301, %v1300
      %v1311 = vpack.c.bf16 %v1303, %v1302
      %s1312 = scalar_lea.vmem %s1, 192
      %v1313 = vld [vmem:[%s1312] sm:$0xf]
      %v1314 = vld [vmem:[%s1312 + $0x4] sm:$0xf]
      %v1315 = vld [vmem:[%s1312 + $0x8] sm:$0xf]
      %v1316 = vld [vmem:[%s1312 + $0xc] sm:$0xf]
      %v1317 = vld [vmem:[%s1312 + $0x10] sm:$0xf]
      %v1318 = vld [vmem:[%s1312 + $0x14] sm:$0xf]
      %v1319 = vld [vmem:[%s1312 + $0x18] sm:$0xf]
      %v1320 = vld [vmem:[%s1312 + $0x1c] sm:$0xf]
      %v1321 = vld [vmem:[%s1312 + $0x20] sm:$0xf]
      %v1322 = vld [vmem:[%s1312 + $0x24] sm:$0xf]
      %v1323 = vld [vmem:[%s1312 + $0x28] sm:$0xf]
      %v1324 = vld [vmem:[%s1312 + $0x2c] sm:$0xf]
      %v1325 = vld [vmem:[%s1312 + $0x30] sm:$0xf]
      %v1326 = vld [vmem:[%s1312 + $0x34] sm:$0xf]
      %v1327 = vld [vmem:[%s1312 + $0x38] sm:$0xf]
      %v1328 = vld [vmem:[%s1312 + $0x3c] sm:$0xf]
      %v1345 = vunpack.c.l.b16 %v1313
      %v1346 = vunpack.c.l.b16 %v1314
      %v1347 = vunpack.c.l.b16 %v1315
      %v1348 = vunpack.c.l.b16 %v1316
      %v1349 = vunpack.c.l.b16 %v1317
      %v1350 = vunpack.c.l.b16 %v1318
      %v1351 = vunpack.c.l.b16 %v1319
      %v1352 = vunpack.c.l.b16 %v1320
      %v1353 = vunpack.c.l.b16 %v1321
      %v1354 = vunpack.c.l.b16 %v1322
      %v1355 = vunpack.c.l.b16 %v1323
      %v1356 = vunpack.c.l.b16 %v1324
      %v1357 = vunpack.c.l.b16 %v1325
      %v1358 = vunpack.c.l.b16 %v1326
      %v1359 = vunpack.c.l.b16 %v1327
      %v1360 = vunpack.c.l.b16 %v1328
      %v1361 = vpack.c.b16 %v1346, %v1345
      %v1362 = vpack.c.b16 %v1348, %v1347
      %v1363 = vpack.c.b16 %v1350, %v1349
      %v1364 = vpack.c.b16 %v1352, %v1351
      %v1365 = vpack.c.b16 %v1354, %v1353
      %v1366 = vpack.c.b16 %v1356, %v1355
      %v1367 = vpack.c.b16 %v1358, %v1357
      %v1368 = vpack.c.b16 %v1360, %v1359
      %1377 = vmatprep.subr.bf16.mxu0 0
      %1378 = vmatpush1.bf16.msra.mxu0 %v1361
      %1379 = vmatprep.subr.bf16.mxu0 0
      %1380 = vmatpush1.bf16.msra.mxu0 %v1362
      %1381 = vmatprep.subr.bf16.mxu0 0
      %1382 = vmatpush1.bf16.msra.mxu0 %v1363
      %1383 = vmatprep.subr.bf16.mxu0 0
      %1384 = vmatpush1.bf16.msra.mxu0 %v1364
      %1385 = vmatprep.subr.bf16.mxu0 0
      %1386 = vmatpush1.bf16.msra.mxu0 %v1365
      %1387 = vmatprep.subr.bf16.mxu0 0
      %1388 = vmatpush1.bf16.msra.mxu0 %v1366
      %1389 = vmatprep.subr.bf16.mxu0 0
      %1390 = vmatpush1.bf16.msra.mxu0 %v1367
      %1391 = vmatprep.subr.bf16.mxu0 0
      %1392 = vmatpush1.bf16.msra.mxu0 %v1368
      %1393 = vmatprep.subr.bf16.mxu0 0
      %1394 = vmatpush1.bf16.msra.mxu0 0
      %1395 = vmatprep.subr.bf16.mxu0 0
      %1396 = vmatpush1.bf16.msra.mxu0 0
      %1397 = vmatprep.subr.bf16.mxu0 0
      %1398 = vmatpush1.bf16.msra.mxu0 0
      %1399 = vmatprep.subr.bf16.mxu0 0
      %1400 = vmatpush1.bf16.msra.mxu0 0
      %1401 = vmatprep.subr.bf16.mxu0 0
      %1402 = vmatpush1.bf16.msra.mxu0 0
      %1403 = vmatprep.subr.bf16.mxu0 0
      %1404 = vmatpush1.bf16.msra.mxu0 0
      %1405 = vmatprep.subr.bf16.mxu0 0
      %1406 = vmatpush1.bf16.msra.mxu0 0
      %1407 = vmatprep.subr.bf16.mxu0 0
      %1408 = vmatpush1.bf16.msra.mxu0 0
      %1409 = vmatprep.mubr.bf16.mxu0 0
      %1410 = vmatmul.mubr.bf16.gmra.mrb[0].mxu0 %v1304
      %v1411 = vpop.f32.mrb[0].mxu0
      %v1412 = vadd.f32 0.0, %v1411
      %v1413 = vpop.f32.mrb[0].mxu0
      %v1414 = vpop.f32.mrb[0].mxu0
      %v1415 = vadd.f32 0.0, %v1414
      %v1416 = vpop.f32.mrb[0].mxu0
      %1417 = vmatprep.mubr.bf16.mxu0 0
      %1418 = vmatmul.mubr.bf16.gmra.mrb[0].mxu0 %v1305
      %v1419 = vpop.f32.mrb[0].mxu0
      %v1420 = vadd.f32 0.0, %v1419
      %v1421 = vpop.f32.mrb[0].mxu0
      %v1422 = vpop.f32.mrb[0].mxu0
      %v1423 = vadd.f32 0.0, %v1422
      %v1424 = vpop.f32.mrb[0].mxu0
      %1425 = vmatprep.mubr.bf16.mxu0 0
      %1426 = vmatmul.mubr.bf16.gmra.mrb[0].mxu0 %v1306
      %v1427 = vpop.f32.mrb[0].mxu0
      %v1428 = vadd.f32 0.0, %v1427
      %v1429 = vpop.f32.mrb[0].mxu0
      %v1430 = vpop.f32.mrb[0].mxu0
      %v1431 = vadd.f32 0.0, %v1430
      %v1432 = vpop.f32.mrb[0].mxu0
      %1433 = vmatprep.mubr.bf16.mxu0 0
      %1434 = vmatmul.mubr.bf16.gmra.mrb[0].mxu0 %v1307
      %v1435 = vpop.f32.mrb[0].mxu0
      %v1436 = vadd.f32 0.0, %v1435
      %v1437 = vpop.f32.mrb[0].mxu0
      %v1438 = vpop.f32.mrb[0].mxu0
      %v1439 = vadd.f32 0.0, %v1438
      %v1440 = vpop.f32.mrb[0].mxu0
      %1441 = vmatprep.mubr.bf16.mxu0 0
      %1442 = vmatmul.mubr.bf16.gmra.mrb[0].mxu0 %v1308
      %v1443 = vpop.f32.mrb[0].mxu0
      %v1444 = vadd.f32 0.0, %v1443
      %v1445 = vpop.f32.mrb[0].mxu0
      %v1446 = vpop.f32.mrb[0].mxu0
      %v1447 = vadd.f32 0.0, %v1446
      %v1448 = vpop.f32.mrb[0].mxu0
      %1449 = vmatprep.mubr.bf16.mxu0 0
      %1450 = vmatmul.mubr.bf16.gmra.mrb[0].mxu0 %v1309
      %v1451 = vpop.f32.mrb[0].mxu0
      %v1452 = vadd.f32 0.0, %v1451
      %v1453 = vpop.f32.mrb[0].mxu0
      %v1454 = vpop.f32.mrb[0].mxu0
      %v1455 = vadd.f32 0.0, %v1454
      %v1456 = vpop.f32.mrb[0].mxu0
      %1457 = vmatprep.mubr.bf16.mxu0 0
      %1458 = vmatmul.mubr.bf16.gmra.mrb[0].mxu0 %v1310
      %v1459 = vpop.f32.mrb[0].mxu0
      %v1460 = vadd.f32 0.0, %v1459
      %v1461 = vpop.f32.mrb[0].mxu0
      %v1462 = vpop.f32.mrb[0].mxu0
      %v1463 = vadd.f32 0.0, %v1462
      %v1464 = vpop.f32.mrb[0].mxu0
      %1465 = vmatprep.mubr.bf16.mxu0 0
      %1466 = vmatmul.mubr.bf16.gmra.mrb[0].mxu0 %v1311
      %v1467 = vpop.f32.mrb[0].mxu0
      %v1468 = vadd.f32 0.0, %v1467
      %v1469 = vpop.f32.mrb[0].mxu0
      %v1470 = vpop.f32.mrb[0].mxu0
      %v1471 = vadd.f32 0.0, %v1470
      %v1472 = vpop.f32.mrb[0].mxu0
      %1473 = vdwg.mxu0
      %v1474 = vadd.f32 %v1221, %v1412
      %v1475 = vadd.f32 %v1222, %v1415
      %v1476 = vadd.f32 %v1223, %v1420
      %v1477 = vadd.f32 %v1224, %v1423
      %v1478 = vadd.f32 %v1225, %v1428
      %v1479 = vadd.f32 %v1226, %v1431
      %v1480 = vadd.f32 %v1227, %v1436
      %v1481 = vadd.f32 %v1228, %v1439
      %v1482 = vadd.f32 %v1229, %v1444
      %v1483 = vadd.f32 %v1230, %v1447
      %v1484 = vadd.f32 %v1231, %v1452
      %v1485 = vadd.f32 %v1232, %v1455
      %v1486 = vadd.f32 %v1233, %v1460
      %v1487 = vadd.f32 %v1234, %v1463
      %v1488 = vadd.f32 %v1235, %v1468
      %v1489 = vadd.f32 %v1236, %v1471
      %v1490 = vpack.c.bf16 %v1241, %v1240
      %v1491 = vpack.c.bf16 %v1243, %v1242
      %v1492 = vpack.c.bf16 %v1245, %v1244
      %v1493 = vpack.c.bf16 %v1247, %v1246
      %v1494 = vpack.c.bf16 %v1249, %v1248
      %v1495 = vpack.c.bf16 %v1251, %v1250
      %v1496 = vpack.c.bf16 %v1253, %v1252
      %v1497 = vpack.c.bf16 %v1255, %v1254
      %s1498 = scalar_lea.vmem %s1, 256
      %v1499 = vld [vmem:[%s1498] sm:$0xf]
      %v1500 = vld [vmem:[%s1498 + $0x4] sm:$0xf]
      %v1501 = vld [vmem:[%s1498 + $0x8] sm:$0xf]
      %v1502 = vld [vmem:[%s1498 + $0xc] sm:$0xf]
      %v1503 = vld [vmem:[%s1498 + $0x10] sm:$0xf]
      %v1504 = vld [vmem:[%s1498 + $0x14] sm:$0xf]
      %v1505 = vld [vmem:[%s1498 + $0x18] sm:$0xf]
      %v1506 = vld [vmem:[%s1498 + $0x1c] sm:$0xf]
      %v1507 = vld [vmem:[%s1498 + $0x20] sm:$0xf]
      %v1508 = vld [vmem:[%s1498 + $0x24] sm:$0xf]
      %v1509 = vld [vmem:[%s1498 + $0x28] sm:$0xf]
      %v1510 = vld [vmem:[%s1498 + $0x2c] sm:$0xf]
      %v1511 = vld [vmem:[%s1498 + $0x30] sm:$0xf]
      %v1512 = vld [vmem:[%s1498 + $0x34] sm:$0xf]
      %v1513 = vld [vmem:[%s1498 + $0x38] sm:$0xf]
      %v1514 = vld [vmem:[%s1498 + $0x3c] sm:$0xf]
      %v1531 = vunpack.c.l.b16 %v1499
      %v1532 = vunpack.c.l.b16 %v1500
      %v1533 = vunpack.c.l.b16 %v1501
      %v1534 = vunpack.c.l.b16 %v1502
      %v1535 = vunpack.c.l.b16 %v1503
      %v1536 = vunpack.c.l.b16 %v1504
      %v1537 = vunpack.c.l.b16 %v1505
      %v1538 = vunpack.c.l.b16 %v1506
      %v1539 = vunpack.c.l.b16 %v1507
      %v1540 = vunpack.c.l.b16 %v1508
      %v1541 = vunpack.c.l.b16 %v1509
      %v1542 = vunpack.c.l.b16 %v1510
      %v1543 = vunpack.c.l.b16 %v1511
      %v1544 = vunpack.c.l.b16 %v1512
      %v1545 = vunpack.c.l.b16 %v1513
      %v1546 = vunpack.c.l.b16 %v1514
      %v1547 = vpack.c.b16 %v1532, %v1531
      %v1548 = vpack.c.b16 %v1534, %v1533
      %v1549 = vpack.c.b16 %v1536, %v1535
      %v1550 = vpack.c.b16 %v1538, %v1537
      %v1551 = vpack.c.b16 %v1540, %v1539
      %v1552 = vpack.c.b16 %v1542, %v1541
      %v1553 = vpack.c.b16 %v1544, %v1543
      %v1554 = vpack.c.b16 %v1546, %v1545
      %1563 = vmatprep.subr.bf16.mxu0 0
      %1564 = vmatpush1.bf16.msra.mxu0 %v1547
      %1565 = vmatprep.subr.bf16.mxu0 0
      %1566 = vmatpush1.bf16.msra.mxu0 %v1548
      %1567 = vmatprep.subr.bf16.mxu0 0
      %1568 = vmatpush1.bf16.msra.mxu0 %v1549
      %1569 = vmatprep.subr.bf16.mxu0 0
      %1570 = vmatpush1.bf16.msra.mxu0 %v1550
      %1571 = vmatprep.subr.bf16.mxu0 0
      %1572 = vmatpush1.bf16.msra.mxu0 %v1551
      %1573 = vmatprep.subr.bf16.mxu0 0
      %1574 = vmatpush1.bf16.msra.mxu0 %v1552
      %1575 = vmatprep.subr.bf16.mxu0 0
      %1576 = vmatpush1.bf16.msra.mxu0 %v1553
      %1577 = vmatprep.subr.bf16.mxu0 0
      %1578 = vmatpush1.bf16.msra.mxu0 %v1554
      %1579 = vmatprep.subr.bf16.mxu0 0
      %1580 = vmatpush1.bf16.msra.mxu0 0
      %1581 = vmatprep.subr.bf16.mxu0 0
      %1582 = vmatpush1.bf16.msra.mxu0 0
      %1583 = vmatprep.subr.bf16.mxu0 0
      %1584 = vmatpush1.bf16.msra.mxu0 0
      %1585 = vmatprep.subr.bf16.mxu0 0
      %1586 = vmatpush1.bf16.msra.mxu0 0
      %1587 = vmatprep.subr.bf16.mxu0 0
      %1588 = vmatpush1.bf16.msra.mxu0 0
      %1589 = vmatprep.subr.bf16.mxu0 0
      %1590 = vmatpush1.bf16.msra.mxu0 0
      %1591 = vmatprep.subr.bf16.mxu0 0
      %1592 = vmatpush1.bf16.msra.mxu0 0
      %1593 = vmatprep.subr.bf16.mxu0 0
      %1594 = vmatpush1.bf16.msra.mxu0 0
      %1595 = vmatprep.mubr.bf16.mxu0 0
      %1596 = vmatmul.mubr.bf16.gmra.mrb[0].mxu0 %v1490
      %v1597 = vpop.f32.mrb[0].mxu0
      %v1598 = vadd.f32 0.0, %v1597
      %v1599 = vpop.f32.mrb[0].mxu0
      %v1600 = vpop.f32.mrb[0].mxu0
      %v1601 = vadd.f32 0.0, %v1600
      %v1602 = vpop.f32.mrb[0].mxu0
      %1603 = vmatprep.mubr.bf16.mxu0 0
      %1604 = vmatmul.mubr.bf16.gmra.mrb[0].mxu0 %v1491
      %v1605 = vpop.f32.mrb[0].mxu0
      %v1606 = vadd.f32 0.0, %v1605
      %v1607 = vpop.f32.mrb[0].mxu0
      %v1608 = vpop.f32.mrb[0].mxu0
      %v1609 = vadd.f32 0.0, %v1608
      %v1610 = vpop.f32.mrb[0].mxu0
      %1611 = vmatprep.mubr.bf16.mxu0 0
      %1612 = vmatmul.mubr.bf16.gmra.mrb[0].mxu0 %v1492
      %v1613 = vpop.f32.mrb[0].mxu0
      %v1614 = vadd.f32 0.0, %v1613
      %v1615 = vpop.f32.mrb[0].mxu0
      %v1616 = vpop.f32.mrb[0].mxu0
      %v1617 = vadd.f32 0.0, %v1616
      %v1618 = vpop.f32.mrb[0].mxu0
      %1619 = vmatprep.mubr.bf16.mxu0 0
      %1620 = vmatmul.mubr.bf16.gmra.mrb[0].mxu0 %v1493
      %v1621 = vpop.f32.mrb[0].mxu0
      %v1622 = vadd.f32 0.0, %v1621
      %v1623 = vpop.f32.mrb[0].mxu0
      %v1624 = vpop.f32.mrb[0].mxu0
      %v1625 = vadd.f32 0.0, %v1624
      %v1626 = vpop.f32.mrb[0].mxu0
      %1627 = vmatprep.mubr.bf16.mxu0 0
      %1628 = vmatmul.mubr.bf16.gmra.mrb[0].mxu0 %v1494
      %v1629 = vpop.f32.mrb[0].mxu0
      %v1630 = vadd.f32 0.0, %v1629
      %v1631 = vpop.f32.mrb[0].mxu0
      %v1632 = vpop.f32.mrb[0].mxu0
      %v1633 = vadd.f32 0.0, %v1632
      %v1634 = vpop.f32.mrb[0].mxu0
      %1635 = vmatprep.mubr.bf16.mxu0 0
      %1636 = vmatmul.mubr.bf16.gmra.mrb[0].mxu0 %v1495
      %v1637 = vpop.f32.mrb[0].mxu0
      %v1638 = vadd.f32 0.0, %v1637
      %v1639 = vpop.f32.mrb[0].mxu0
      %v1640 = vpop.f32.mrb[0].mxu0
      %v1641 = vadd.f32 0.0, %v1640
      %v1642 = vpop.f32.mrb[0].mxu0
      %1643 = vmatprep.mubr.bf16.mxu0 0
      %1644 = vmatmul.mubr.bf16.gmra.mrb[0].mxu0 %v1496
      %v1645 = vpop.f32.mrb[0].mxu0
      %v1646 = vadd.f32 0.0, %v1645
      %v1647 = vpop.f32.mrb[0].mxu0
      %v1648 = vpop.f32.mrb[0].mxu0
      %v1649 = vadd.f32 0.0, %v1648
      %v1650 = vpop.f32.mrb[0].mxu0
      %1651 = vmatprep.mubr.bf16.mxu0 0
      %1652 = vmatmul.mubr.bf16.gmra.mrb[0].mxu0 %v1497
      %v1653 = vpop.f32.mrb[0].mxu0
      %v1654 = vadd.f32 0.0, %v1653
      %v1655 = vpop.f32.mrb[0].mxu0
      %v1656 = vpop.f32.mrb[0].mxu0
      %v1657 = vadd.f32 0.0, %v1656
      %v1658 = vpop.f32.mrb[0].mxu0
      %1659 = vdwg.mxu0
      %v1660 = vadd.f32 %v1474, %v1598
      %v1661 = vadd.f32 %v1475, %v1601
      %v1662 = vadd.f32 %v1476, %v1606
      %v1663 = vadd.f32 %v1477, %v1609
      %v1664 = vadd.f32 %v1478, %v1614
      %v1665 = vadd.f32 %v1479, %v1617
      %v1666 = vadd.f32 %v1480, %v1622
      %v1667 = vadd.f32 %v1481, %v1625
      %v1668 = vadd.f32 %v1482, %v1630
      %v1669 = vadd.f32 %v1483, %v1633
      %v1670 = vadd.f32 %v1484, %v1638
      %v1671 = vadd.f32 %v1485, %v1641
      %v1672 = vadd.f32 %v1486, %v1646
      %v1673 = vadd.f32 %v1487, %v1649
      %v1674 = vadd.f32 %v1488, %v1654
      %v1675 = vadd.f32 %v1489, %v1657
      %v1676 = vrot.slane %v1240, 1
      %v1677 = vrot.slane %v1241, 1
      %v1678 = vrot.slane %v1242, 1
      %v1679 = vrot.slane %v1243, 1
      %v1680 = vrot.slane %v1244, 1
      %v1681 = vrot.slane %v1245, 1
      %v1682 = vrot.slane %v1246, 1
      %v1683 = vrot.slane %v1247, 1
      %v1684 = vrot.slane %v1248, 1
      %v1685 = vrot.slane %v1249, 1
      %v1686 = vrot.slane %v1250, 1
      %v1687 = vrot.slane %v1251, 1
      %v1688 = vrot.slane %v1252, 1
      %v1689 = vrot.slane %v1253, 1
      %v1690 = vrot.slane %v1254, 1
      %v1691 = vrot.slane %v1255, 1
      %v1692 = vsel %vm970, %v1690, %v1691
      %v1693 = vsel %vm970, %v1689, %v1690
      %v1694 = vsel %vm970, %v1688, %v1689
      %v1695 = vsel %vm970, %v1687, %v1688
      %v1696 = vsel %vm970, %v1686, %v1687
      %v1697 = vsel %vm970, %v1685, %v1686
      %v1698 = vsel %vm970, %v1684, %v1685
      %v1699 = vsel %vm970, %v1683, %v1684
      %v1700 = vsel %vm970, %v1682, %v1683
      %v1701 = vsel %vm970, %v1681, %v1682
      %v1702 = vsel %vm970, %v1680, %v1681
      %v1703 = vsel %vm970, %v1679, %v1680
      %v1704 = vsel %vm970, %v1678, %v1679
      %v1705 = vsel %vm970, %v1677, %v1678
      %v1706 = vsel %vm970, %v1676, %v1677
      %v1707 = vsel %vm970, %v1691, %v1676
      %v1708 = vsel %vm1019, %v1706, 0.0
      %v1709 = vsel %vm1020, %v1705, 0.0
      %v1710 = vsel %vm1021, %v1704, 0.0
      %v1711 = vsel %vm1022, %v1703, 0.0
      %v1712 = vsel %vm1023, %v1702, 0.0
      %v1713 = vsel %vm1024, %v1701, 0.0
      %v1714 = vsel %vm1025, %v1700, 0.0
      %v1715 = vsel %vm1026, %v1699, 0.0
      %v1716 = vsel %vm1027, %v1698, 0.0
      %v1717 = vsel %vm1028, %v1697, 0.0
      %v1718 = vsel %vm1029, %v1696, 0.0
      %v1719 = vsel %vm1030, %v1695, 0.0
      %v1720 = vsel %vm1031, %v1694, 0.0
      %v1721 = vsel %vm1032, %v1693, 0.0
      %v1722 = vsel %vm1033, %v1692, 0.0
      %v1723 = vsel %vm1034, %v1707, 0.0
      %v1724 = vpack.c.bf16 %v1709, %v1708
      %v1725 = vpack.c.bf16 %v1711, %v1710
      %v1726 = vpack.c.bf16 %v1713, %v1712
      %v1727 = vpack.c.bf16 %v1715, %v1714
      %v1728 = vpack.c.bf16 %v1717, %v1716
      %v1729 = vpack.c.bf16 %v1719, %v1718
      %v1730 = vpack.c.bf16 %v1721, %v1720
      %v1731 = vpack.c.bf16 %v1723, %v1722
      %s1732 = scalar_lea.vmem %s1, 320
      %v1733 = vld [vmem:[%s1732] sm:$0xf]
      %v1734 = vld [vmem:[%s1732 + $0x4] sm:$0xf]
      %v1735 = vld [vmem:[%s1732 + $0x8] sm:$0xf]
      %v1736 = vld [vmem:[%s1732 + $0xc] sm:$0xf]
      %v1737 = vld [vmem:[%s1732 + $0x10] sm:$0xf]
      %v1738 = vld [vmem:[%s1732 + $0x14] sm:$0xf]
      %v1739 = vld [vmem:[%s1732 + $0x18] sm:$0xf]
      %v1740 = vld [vmem:[%s1732 + $0x1c] sm:$0xf]
      %v1741 = vld [vmem:[%s1732 + $0x20] sm:$0xf]
      %v1742 = vld [vmem:[%s1732 + $0x24] sm:$0xf]
      %v1743 = vld [vmem:[%s1732 + $0x28] sm:$0xf]
      %v1744 = vld [vmem:[%s1732 + $0x2c] sm:$0xf]
      %v1745 = vld [vmem:[%s1732 + $0x30] sm:$0xf]
      %v1746 = vld [vmem:[%s1732 + $0x34] sm:$0xf]
      %v1747 = vld [vmem:[%s1732 + $0x38] sm:$0xf]
      %v1748 = vld [vmem:[%s1732 + $0x3c] sm:$0xf]
      %v1765 = vunpack.c.l.b16 %v1733
      %v1766 = vunpack.c.l.b16 %v1734
      %v1767 = vunpack.c.l.b16 %v1735
      %v1768 = vunpack.c.l.b16 %v1736
      %v1769 = vunpack.c.l.b16 %v1737
      %v1770 = vunpack.c.l.b16 %v1738
      %v1771 = vunpack.c.l.b16 %v1739
      %v1772 = vunpack.c.l.b16 %v1740
      %v1773 = vunpack.c.l.b16 %v1741
      %v1774 = vunpack.c.l.b16 %v1742
      %v1775 = vunpack.c.l.b16 %v1743
      %v1776 = vunpack.c.l.b16 %v1744
      %v1777 = vunpack.c.l.b16 %v1745
      %v1778 = vunpack.c.l.b16 %v1746
      %v1779 = vunpack.c.l.b16 %v1747
      %v1780 = vunpack.c.l.b16 %v1748
      %v1781 = vpack.c.b16 %v1766, %v1765
      %v1782 = vpack.c.b16 %v1768, %v1767
      %v1783 = vpack.c.b16 %v1770, %v1769
      %v1784 = vpack.c.b16 %v1772, %v1771
      %v1785 = vpack.c.b16 %v1774, %v1773
      %v1786 = vpack.c.b16 %v1776, %v1775
      %v1787 = vpack.c.b16 %v1778, %v1777
      %v1788 = vpack.c.b16 %v1780, %v1779
      %1797 = vmatprep.subr.bf16.mxu0 0
      %1798 = vmatpush1.bf16.msra.mxu0 %v1781
      %1799 = vmatprep.subr.bf16.mxu0 0
      %1800 = vmatpush1.bf16.msra.mxu0 %v1782
      %1801 = vmatprep.subr.bf16.mxu0 0
      %1802 = vmatpush1.bf16.msra.mxu0 %v1783
      %1803 = vmatprep.subr.bf16.mxu0 0
      %1804 = vmatpush1.bf16.msra.mxu0 %v1784
      %1805 = vmatprep.subr.bf16.mxu0 0
      %1806 = vmatpush1.bf16.msra.mxu0 %v1785
      %1807 = vmatprep.subr.bf16.mxu0 0
      %1808 = vmatpush1.bf16.msra.mxu0 %v1786
      %1809 = vmatprep.subr.bf16.mxu0 0
      %1810 = vmatpush1.bf16.msra.mxu0 %v1787
      %1811 = vmatprep.subr.bf16.mxu0 0
      %1812 = vmatpush1.bf16.msra.mxu0 %v1788
      %1813 = vmatprep.subr.bf16.mxu0 0
      %1814 = vmatpush1.bf16.msra.mxu0 0
      %1815 = vmatprep.subr.bf16.mxu0 0
      %1816 = vmatpush1.bf16.msra.mxu0 0
      %1817 = vmatprep.subr.bf16.mxu0 0
      %1818 = vmatpush1.bf16.msra.mxu0 0
      %1819 = vmatprep.subr.bf16.mxu0 0
      %1820 = vmatpush1.bf16.msra.mxu0 0
      %1821 = vmatprep.subr.bf16.mxu0 0
      %1822 = vmatpush1.bf16.msra.mxu0 0
      %1823 = vmatprep.subr.bf16.mxu0 0
      %1824 = vmatpush1.bf16.msra.mxu0 0
      %1825 = vmatprep.subr.bf16.mxu0 0
      %1826 = vmatpush1.bf16.msra.mxu0 0
      %1827 = vmatprep.subr.bf16.mxu0 0
      %1828 = vmatpush1.bf16.msra.mxu0 0
      %1829 = vmatprep.mubr.bf16.mxu0 0
      %1830 = vmatmul.mubr.bf16.gmra.mrb[0].mxu0 %v1724
      %v1831 = vpop.f32.mrb[0].mxu0
      %v1832 = vadd.f32 0.0, %v1831
      %v1833 = vpop.f32.mrb[0].mxu0
      %v1834 = vpop.f32.mrb[0].mxu0
      %v1835 = vadd.f32 0.0, %v1834
      %v1836 = vpop.f32.mrb[0].mxu0
      %1837 = vmatprep.mubr.bf16.mxu0 0
      %1838 = vmatmul.mubr.bf16.gmra.mrb[0].mxu0 %v1725
      %v1839 = vpop.f32.mrb[0].mxu0
      %v1840 = vadd.f32 0.0, %v1839
      %v1841 = vpop.f32.mrb[0].mxu0
      %v1842 = vpop.f32.mrb[0].mxu0
      %v1843 = vadd.f32 0.0, %v1842
      %v1844 = vpop.f32.mrb[0].mxu0
      %1845 = vmatprep.mubr.bf16.mxu0 0
      %1846 = vmatmul.mubr.bf16.gmra.mrb[0].mxu0 %v1726
      %v1847 = vpop.f32.mrb[0].mxu0
      %v1848 = vadd.f32 0.0, %v1847
      %v1849 = vpop.f32.mrb[0].mxu0
      %v1850 = vpop.f32.mrb[0].mxu0
      %v1851 = vadd.f32 0.0, %v1850
      %v1852 = vpop.f32.mrb[0].mxu0
      %1853 = vmatprep.mubr.bf16.mxu0 0
      %1854 = vmatmul.mubr.bf16.gmra.mrb[0].mxu0 %v1727
      %v1855 = vpop.f32.mrb[0].mxu0
      %v1856 = vadd.f32 0.0, %v1855
      %v1857 = vpop.f32.mrb[0].mxu0
      %v1858 = vpop.f32.mrb[0].mxu0
      %v1859 = vadd.f32 0.0, %v1858
      %v1860 = vpop.f32.mrb[0].mxu0
      %1861 = vmatprep.mubr.bf16.mxu0 0
      %1862 = vmatmul.mubr.bf16.gmra.mrb[0].mxu0 %v1728
      %v1863 = vpop.f32.mrb[0].mxu0
      %v1864 = vadd.f32 0.0, %v1863
      %v1865 = vpop.f32.mrb[0].mxu0
      %v1866 = vpop.f32.mrb[0].mxu0
      %v1867 = vadd.f32 0.0, %v1866
      %v1868 = vpop.f32.mrb[0].mxu0
      %1869 = vmatprep.mubr.bf16.mxu0 0
      %1870 = vmatmul.mubr.bf16.gmra.mrb[0].mxu0 %v1729
      %v1871 = vpop.f32.mrb[0].mxu0
      %v1872 = vadd.f32 0.0, %v1871
      %v1873 = vpop.f32.mrb[0].mxu0
      %v1874 = vpop.f32.mrb[0].mxu0
      %v1875 = vadd.f32 0.0, %v1874
      %v1876 = vpop.f32.mrb[0].mxu0
      %1877 = vmatprep.mubr.bf16.mxu0 0
      %1878 = vmatmul.mubr.bf16.gmra.mrb[0].mxu0 %v1730
      %v1879 = vpop.f32.mrb[0].mxu0
      %v1880 = vadd.f32 0.0, %v1879
      %v1881 = vpop.f32.mrb[0].mxu0
      %v1882 = vpop.f32.mrb[0].mxu0
      %v1883 = vadd.f32 0.0, %v1882
      %v1884 = vpop.f32.mrb[0].mxu0
      %1885 = vmatprep.mubr.bf16.mxu0 0
      %1886 = vmatmul.mubr.bf16.gmra.mrb[0].mxu0 %v1731
      %v1887 = vpop.f32.mrb[0].mxu0
      %v1888 = vadd.f32 0.0, %v1887
      %v1889 = vpop.f32.mrb[0].mxu0
      %v1890 = vpop.f32.mrb[0].mxu0
      %v1891 = vadd.f32 0.0, %v1890
      %v1892 = vpop.f32.mrb[0].mxu0
      %1893 = vdwg.mxu0
      %v1894 = vadd.f32 %v1660, %v1832
      %v1895 = vadd.f32 %v1661, %v1835
      %v1896 = vadd.f32 %v1662, %v1840
      %v1897 = vadd.f32 %v1663, %v1843
      %v1898 = vadd.f32 %v1664, %v1848
      %v1899 = vadd.f32 %v1665, %v1851
      %v1900 = vadd.f32 %v1666, %v1856
      %v1901 = vadd.f32 %v1667, %v1859
      %v1902 = vadd.f32 %v1668, %v1864
      %v1903 = vadd.f32 %v1669, %v1867
      %v1904 = vadd.f32 %v1670, %v1872
      %v1905 = vadd.f32 %v1671, %v1875
      %v1906 = vadd.f32 %v1672, %v1880
      %v1907 = vadd.f32 %v1673, %v1883
      %v1908 = vadd.f32 %v1674, %v1888
      %v1909 = vadd.f32 %v1675, %v1891
      %s1910 = sadd.s32 %s290, 2
      %s1911 = smul.u32 %s1910, 16
      %s1912 = scalar_lea.vmem [#allocation2], %s1911
      %v1913 = vld [vmem:[%s1912] sm:$0xff]
      %v1914 = vld [vmem:[%s1912 + $0x8] sm:$0xff]
      %v1915 = vld [vmem:[%s1912 + $0x10] sm:$0xff]
      %v1916 = vld [vmem:[%s1912 + $0x18] sm:$0xff]
      %v1917 = vld [vmem:[%s1912 + $0x20] sm:$0xff]
      %v1918 = vld [vmem:[%s1912 + $0x28] sm:$0xff]
      %v1919 = vld [vmem:[%s1912 + $0x30] sm:$0xff]
      %v1920 = vld [vmem:[%s1912 + $0x38] sm:$0xff]
      %v1921 = vld [vmem:[%s1912 + $0x40] sm:$0xff]
      %v1922 = vld [vmem:[%s1912 + $0x48] sm:$0xff]
      %v1923 = vld [vmem:[%s1912 + $0x50] sm:$0xff]
      %v1924 = vld [vmem:[%s1912 + $0x58] sm:$0xff]
      %v1925 = vld [vmem:[%s1912 + $0x60] sm:$0xff]
      %v1926 = vld [vmem:[%s1912 + $0x68] sm:$0xff]
      %v1927 = vld [vmem:[%s1912 + $0x70] sm:$0xff]
      %v1928 = vld [vmem:[%s1912 + $0x78] sm:$0xff]
      %v1929 = vrot.slane %v1913, 7
      %v1930 = vrot.slane %v1914, 7
      %v1931 = vrot.slane %v1915, 7
      %v1932 = vrot.slane %v1916, 7
      %v1933 = vrot.slane %v1917, 7
      %v1934 = vrot.slane %v1918, 7
      %v1935 = vrot.slane %v1919, 7
      %v1936 = vrot.slane %v1920, 7
      %v1937 = vrot.slane %v1921, 7
      %v1938 = vrot.slane %v1922, 7
      %v1939 = vrot.slane %v1923, 7
      %v1940 = vrot.slane %v1924, 7
      %v1941 = vrot.slane %v1925, 7
      %v1942 = vrot.slane %v1926, 7
      %v1943 = vrot.slane %v1927, 7
      %v1944 = vrot.slane %v1928, 7
      %v1945 = vsel %vm534, %v1943, %v1944
      %v1946 = vsel %vm534, %v1942, %v1943
      %v1947 = vsel %vm534, %v1941, %v1942
      %v1948 = vsel %vm534, %v1940, %v1941
      %v1949 = vsel %vm534, %v1939, %v1940
      %v1950 = vsel %vm534, %v1938, %v1939
      %v1951 = vsel %vm534, %v1937, %v1938
      %v1952 = vsel %vm534, %v1936, %v1937
      %v1953 = vsel %vm534, %v1935, %v1936
      %v1954 = vsel %vm534, %v1934, %v1935
      %v1955 = vsel %vm534, %v1933, %v1934
      %v1956 = vsel %vm534, %v1932, %v1933
      %v1957 = vsel %vm534, %v1931, %v1932
      %v1958 = vsel %vm534, %v1930, %v1931
      %v1959 = vsel %vm534, %v1929, %v1930
      %v1960 = vsel %vm534, %v1944, %v1929
      %v1961 = vsel %vm583, %v1960, 0.0
      %v1962 = vsel %vm584, %v1959, 0.0
      %v1963 = vsel %vm585, %v1958, 0.0
      %v1964 = vsel %vm586, %v1957, 0.0
      %v1965 = vsel %vm587, %v1956, 0.0
      %v1966 = vsel %vm588, %v1955, 0.0
      %v1967 = vsel %vm589, %v1954, 0.0
      %v1968 = vsel %vm590, %v1953, 0.0
      %v1969 = vsel %vm591, %v1952, 0.0
      %v1970 = vsel %vm592, %v1951, 0.0
      %v1971 = vsel %vm593, %v1950, 0.0
      %v1972 = vsel %vm594, %v1949, 0.0
      %v1973 = vsel %vm595, %v1948, 0.0
      %v1974 = vsel %vm596, %v1947, 0.0
      %v1975 = vsel %vm597, %v1946, 0.0
      %v1976 = vsel %vm598, %v1945, 0.0
      %v1977 = vpack.c.bf16 %v1962, %v1961
      %v1978 = vpack.c.bf16 %v1964, %v1963
      %v1979 = vpack.c.bf16 %v1966, %v1965
      %v1980 = vpack.c.bf16 %v1968, %v1967
      %v1981 = vpack.c.bf16 %v1970, %v1969
      %v1982 = vpack.c.bf16 %v1972, %v1971
      %v1983 = vpack.c.bf16 %v1974, %v1973
      %v1984 = vpack.c.bf16 %v1976, %v1975
      %s1985 = scalar_lea.vmem %s1, 384
      %v1986 = vld [vmem:[%s1985] sm:$0xf]
      %v1987 = vld [vmem:[%s1985 + $0x4] sm:$0xf]
      %v1988 = vld [vmem:[%s1985 + $0x8] sm:$0xf]
      %v1989 = vld [vmem:[%s1985 + $0xc] sm:$0xf]
      %v1990 = vld [vmem:[%s1985 + $0x10] sm:$0xf]
      %v1991 = vld [vmem:[%s1985 + $0x14] sm:$0xf]
      %v1992 = vld [vmem:[%s1985 + $0x18] sm:$0xf]
      %v1993 = vld [vmem:[%s1985 + $0x1c] sm:$0xf]
      %v1994 = vld [vmem:[%s1985 + $0x20] sm:$0xf]
      %v1995 = vld [vmem:[%s1985 + $0x24] sm:$0xf]
      %v1996 = vld [vmem:[%s1985 + $0x28] sm:$0xf]
      %v1997 = vld [vmem:[%s1985 + $0x2c] sm:$0xf]
      %v1998 = vld [vmem:[%s1985 + $0x30] sm:$0xf]
      %v1999 = vld [vmem:[%s1985 + $0x34] sm:$0xf]
      %v2000 = vld [vmem:[%s1985 + $0x38] sm:$0xf]
      %v2001 = vld [vmem:[%s1985 + $0x3c] sm:$0xf]
      %v2018 = vunpack.c.l.b16 %v1986
      %v2019 = vunpack.c.l.b16 %v1987
      %v2020 = vunpack.c.l.b16 %v1988
      %v2021 = vunpack.c.l.b16 %v1989
      %v2022 = vunpack.c.l.b16 %v1990
      %v2023 = vunpack.c.l.b16 %v1991
      %v2024 = vunpack.c.l.b16 %v1992
      %v2025 = vunpack.c.l.b16 %v1993
      %v2026 = vunpack.c.l.b16 %v1994
      %v2027 = vunpack.c.l.b16 %v1995
      %v2028 = vunpack.c.l.b16 %v1996
      %v2029 = vunpack.c.l.b16 %v1997
      %v2030 = vunpack.c.l.b16 %v1998
      %v2031 = vunpack.c.l.b16 %v1999
      %v2032 = vunpack.c.l.b16 %v2000
      %v2033 = vunpack.c.l.b16 %v2001
      %v2034 = vpack.c.b16 %v2019, %v2018
      %v2035 = vpack.c.b16 %v2021, %v2020
      %v2036 = vpack.c.b16 %v2023, %v2022
      %v2037 = vpack.c.b16 %v2025, %v2024
      %v2038 = vpack.c.b16 %v2027, %v2026
      %v2039 = vpack.c.b16 %v2029, %v2028
      %v2040 = vpack.c.b16 %v2031, %v2030
      %v2041 = vpack.c.b16 %v2033, %v2032
      %2050 = vmatprep.subr.bf16.mxu0 0
      %2051 = vmatpush1.bf16.msra.mxu0 %v2034
      %2052 = vmatprep.subr.bf16.mxu0 0
      %2053 = vmatpush1.bf16.msra.mxu0 %v2035
      %2054 = vmatprep.subr.bf16.mxu0 0
      %2055 = vmatpush1.bf16.msra.mxu0 %v2036
      %2056 = vmatprep.subr.bf16.mxu0 0
      %2057 = vmatpush1.bf16.msra.mxu0 %v2037
      %2058 = vmatprep.subr.bf16.mxu0 0
      %2059 = vmatpush1.bf16.msra.mxu0 %v2038
      %2060 = vmatprep.subr.bf16.mxu0 0
      %2061 = vmatpush1.bf16.msra.mxu0 %v2039
      %2062 = vmatprep.subr.bf16.mxu0 0
      %2063 = vmatpush1.bf16.msra.mxu0 %v2040
      %2064 = vmatprep.subr.bf16.mxu0 0
      %2065 = vmatpush1.bf16.msra.mxu0 %v2041
      %2066 = vmatprep.subr.bf16.mxu0 0
      %2067 = vmatpush1.bf16.msra.mxu0 0
      %2068 = vmatprep.subr.bf16.mxu0 0
      %2069 = vmatpush1.bf16.msra.mxu0 0
      %2070 = vmatprep.subr.bf16.mxu0 0
      %2071 = vmatpush1.bf16.msra.mxu0 0
      %2072 = vmatprep.subr.bf16.mxu0 0
      %2073 = vmatpush1.bf16.msra.mxu0 0
      %2074 = vmatprep.subr.bf16.mxu0 0
      %2075 = vmatpush1.bf16.msra.mxu0 0
      %2076 = vmatprep.subr.bf16.mxu0 0
      %2077 = vmatpush1.bf16.msra.mxu0 0
      %2078 = vmatprep.subr.bf16.mxu0 0
      %2079 = vmatpush1.bf16.msra.mxu0 0
      %2080 = vmatprep.subr.bf16.mxu0 0
      %2081 = vmatpush1.bf16.msra.mxu0 0
      %2082 = vmatprep.mubr.bf16.mxu0 0
      %2083 = vmatmul.mubr.bf16.gmra.mrb[0].mxu0 %v1977
      %v2084 = vpop.f32.mrb[0].mxu0
      %v2085 = vadd.f32 0.0, %v2084
      %v2086 = vpop.f32.mrb[0].mxu0
      %v2087 = vpop.f32.mrb[0].mxu0
      %v2088 = vadd.f32 0.0, %v2087
      %v2089 = vpop.f32.mrb[0].mxu0
      %2090 = vmatprep.mubr.bf16.mxu0 0
      %2091 = vmatmul.mubr.bf16.gmra.mrb[0].mxu0 %v1978
      %v2092 = vpop.f32.mrb[0].mxu0
      %v2093 = vadd.f32 0.0, %v2092
      %v2094 = vpop.f32.mrb[0].mxu0
      %v2095 = vpop.f32.mrb[0].mxu0
      %v2096 = vadd.f32 0.0, %v2095
      %v2097 = vpop.f32.mrb[0].mxu0
      %2098 = vmatprep.mubr.bf16.mxu0 0
      %2099 = vmatmul.mubr.bf16.gmra.mrb[0].mxu0 %v1979
      %v2100 = vpop.f32.mrb[0].mxu0
      %v2101 = vadd.f32 0.0, %v2100
      %v2102 = vpop.f32.mrb[0].mxu0
      %v2103 = vpop.f32.mrb[0].mxu0
      %v2104 = vadd.f32 0.0, %v2103
      %v2105 = vpop.f32.mrb[0].mxu0
      %2106 = vmatprep.mubr.bf16.mxu0 0
      %2107 = vmatmul.mubr.bf16.gmra.mrb[0].mxu0 %v1980
      %v2108 = vpop.f32.mrb[0].mxu0
      %v2109 = vadd.f32 0.0, %v2108
      %v2110 = vpop.f32.mrb[0].mxu0
      %v2111 = vpop.f32.mrb[0].mxu0
      %v2112 = vadd.f32 0.0, %v2111
      %v2113 = vpop.f32.mrb[0].mxu0
      %2114 = vmatprep.mubr.bf16.mxu0 0
      %2115 = vmatmul.mubr.bf16.gmra.mrb[0].mxu0 %v1981
      %v2116 = vpop.f32.mrb[0].mxu0
      %v2117 = vadd.f32 0.0, %v2116
      %v2118 = vpop.f32.mrb[0].mxu0
      %v2119 = vpop.f32.mrb[0].mxu0
      %v2120 = vadd.f32 0.0, %v2119
      %v2121 = vpop.f32.mrb[0].mxu0
      %2122 = vmatprep.mubr.bf16.mxu0 0
      %2123 = vmatmul.mubr.bf16.gmra.mrb[0].mxu0 %v1982
      %v2124 = vpop.f32.mrb[0].mxu0
      %v2125 = vadd.f32 0.0, %v2124
      %v2126 = vpop.f32.mrb[0].mxu0
      %v2127 = vpop.f32.mrb[0].mxu0
      %v2128 = vadd.f32 0.0, %v2127
      %v2129 = vpop.f32.mrb[0].mxu0
      %2130 = vmatprep.mubr.bf16.mxu0 0
      %2131 = vmatmul.mubr.bf16.gmra.mrb[0].mxu0 %v1983
      %v2132 = vpop.f32.mrb[0].mxu0
      %v2133 = vadd.f32 0.0, %v2132
      %v2134 = vpop.f32.mrb[0].mxu0
      %v2135 = vpop.f32.mrb[0].mxu0
      %v2136 = vadd.f32 0.0, %v2135
      %v2137 = vpop.f32.mrb[0].mxu0
      %2138 = vmatprep.mubr.bf16.mxu0 0
      %2139 = vmatmul.mubr.bf16.gmra.mrb[0].mxu0 %v1984
      %v2140 = vpop.f32.mrb[0].mxu0
      %v2141 = vadd.f32 0.0, %v2140
      %v2142 = vpop.f32.mrb[0].mxu0
      %v2143 = vpop.f32.mrb[0].mxu0
      %v2144 = vadd.f32 0.0, %v2143
      %v2145 = vpop.f32.mrb[0].mxu0
      %2146 = vdwg.mxu0
      %v2147 = vadd.f32 %v1894, %v2085
      %v2148 = vadd.f32 %v1895, %v2088
      %v2149 = vadd.f32 %v1896, %v2093
      %v2150 = vadd.f32 %v1897, %v2096
      %v2151 = vadd.f32 %v1898, %v2101
      %v2152 = vadd.f32 %v1899, %v2104
      %v2153 = vadd.f32 %v1900, %v2109
      %v2154 = vadd.f32 %v1901, %v2112
      %v2155 = vadd.f32 %v1902, %v2117
      %v2156 = vadd.f32 %v1903, %v2120
      %v2157 = vadd.f32 %v1904, %v2125
      %v2158 = vadd.f32 %v1905, %v2128
      %v2159 = vadd.f32 %v1906, %v2133
      %v2160 = vadd.f32 %v1907, %v2136
      %v2161 = vadd.f32 %v1908, %v2141
      %v2162 = vadd.f32 %v1909, %v2144
      %v2163 = vpack.c.bf16 %v1914, %v1913
      %v2164 = vpack.c.bf16 %v1916, %v1915
      %v2165 = vpack.c.bf16 %v1918, %v1917
      %v2166 = vpack.c.bf16 %v1920, %v1919
      %v2167 = vpack.c.bf16 %v1922, %v1921
      %v2168 = vpack.c.bf16 %v1924, %v1923
      %v2169 = vpack.c.bf16 %v1926, %v1925
      %v2170 = vpack.c.bf16 %v1928, %v1927
      %s2171 = scalar_lea.vmem %s1, 448
      %v2172 = vld [vmem:[%s2171] sm:$0xf]
      %v2173 = vld [vmem:[%s2171 + $0x4] sm:$0xf]
      %v2174 = vld [vmem:[%s2171 + $0x8] sm:$0xf]
      %v2175 = vld [vmem:[%s2171 + $0xc] sm:$0xf]
      %v2176 = vld [vmem:[%s2171 + $0x10] sm:$0xf]
      %v2177 = vld [vmem:[%s2171 + $0x14] sm:$0xf]
      %v2178 = vld [vmem:[%s2171 + $0x18] sm:$0xf]
      %v2179 = vld [vmem:[%s2171 + $0x1c] sm:$0xf]
      %v2180 = vld [vmem:[%s2171 + $0x20] sm:$0xf]
      %v2181 = vld [vmem:[%s2171 + $0x24] sm:$0xf]
      %v2182 = vld [vmem:[%s2171 + $0x28] sm:$0xf]
      %v2183 = vld [vmem:[%s2171 + $0x2c] sm:$0xf]
      %v2184 = vld [vmem:[%s2171 + $0x30] sm:$0xf]
      %v2185 = vld [vmem:[%s2171 + $0x34] sm:$0xf]
      %v2186 = vld [vmem:[%s2171 + $0x38] sm:$0xf]
      %v2187 = vld [vmem:[%s2171 + $0x3c] sm:$0xf]
      %v2204 = vunpack.c.l.b16 %v2172
      %v2205 = vunpack.c.l.b16 %v2173
      %v2206 = vunpack.c.l.b16 %v2174
      %v2207 = vunpack.c.l.b16 %v2175
      %v2208 = vunpack.c.l.b16 %v2176
      %v2209 = vunpack.c.l.b16 %v2177
      %v2210 = vunpack.c.l.b16 %v2178
      %v2211 = vunpack.c.l.b16 %v2179
      %v2212 = vunpack.c.l.b16 %v2180
      %v2213 = vunpack.c.l.b16 %v2181
      %v2214 = vunpack.c.l.b16 %v2182
      %v2215 = vunpack.c.l.b16 %v2183
      %v2216 = vunpack.c.l.b16 %v2184
      %v2217 = vunpack.c.l.b16 %v2185
      %v2218 = vunpack.c.l.b16 %v2186
      %v2219 = vunpack.c.l.b16 %v2187
      %v2220 = vpack.c.b16 %v2205, %v2204
      %v2221 = vpack.c.b16 %v2207, %v2206
      %v2222 = vpack.c.b16 %v2209, %v2208
      %v2223 = vpack.c.b16 %v2211, %v2210
      %v2224 = vpack.c.b16 %v2213, %v2212
      %v2225 = vpack.c.b16 %v2215, %v2214
      %v2226 = vpack.c.b16 %v2217, %v2216
      %v2227 = vpack.c.b16 %v2219, %v2218
      %2236 = vmatprep.subr.bf16.mxu0 0
      %2237 = vmatpush1.bf16.msra.mxu0 %v2220
      %2238 = vmatprep.subr.bf16.mxu0 0
      %2239 = vmatpush1.bf16.msra.mxu0 %v2221
      %2240 = vmatprep.subr.bf16.mxu0 0
      %2241 = vmatpush1.bf16.msra.mxu0 %v2222
      %2242 = vmatprep.subr.bf16.mxu0 0
      %2243 = vmatpush1.bf16.msra.mxu0 %v2223
      %2244 = vmatprep.subr.bf16.mxu0 0
      %2245 = vmatpush1.bf16.msra.mxu0 %v2224
      %2246 = vmatprep.subr.bf16.mxu0 0
      %2247 = vmatpush1.bf16.msra.mxu0 %v2225
      %2248 = vmatprep.subr.bf16.mxu0 0
      %2249 = vmatpush1.bf16.msra.mxu0 %v2226
      %2250 = vmatprep.subr.bf16.mxu0 0
      %2251 = vmatpush1.bf16.msra.mxu0 %v2227
      %2252 = vmatprep.subr.bf16.mxu0 0
      %2253 = vmatpush1.bf16.msra.mxu0 0
      %2254 = vmatprep.subr.bf16.mxu0 0
      %2255 = vmatpush1.bf16.msra.mxu0 0
      %2256 = vmatprep.subr.bf16.mxu0 0
      %2257 = vmatpush1.bf16.msra.mxu0 0
      %2258 = vmatprep.subr.bf16.mxu0 0
      %2259 = vmatpush1.bf16.msra.mxu0 0
      %2260 = vmatprep.subr.bf16.mxu0 0
      %2261 = vmatpush1.bf16.msra.mxu0 0
      %2262 = vmatprep.subr.bf16.mxu0 0
      %2263 = vmatpush1.bf16.msra.mxu0 0
      %2264 = vmatprep.subr.bf16.mxu0 0
      %2265 = vmatpush1.bf16.msra.mxu0 0
      %2266 = vmatprep.subr.bf16.mxu0 0
      %2267 = vmatpush1.bf16.msra.mxu0 0
      %2268 = vmatprep.mubr.bf16.mxu0 0
      %2269 = vmatmul.mubr.bf16.gmra.mrb[0].mxu0 %v2163
      %v2270 = vpop.f32.mrb[0].mxu0
      %v2271 = vadd.f32 0.0, %v2270
      %v2272 = vpop.f32.mrb[0].mxu0
      %v2273 = vpop.f32.mrb[0].mxu0
      %v2274 = vadd.f32 0.0, %v2273
      %v2275 = vpop.f32.mrb[0].mxu0
      %2276 = vmatprep.mubr.bf16.mxu0 0
      %2277 = vmatmul.mubr.bf16.gmra.mrb[0].mxu0 %v2164
      %v2278 = vpop.f32.mrb[0].mxu0
      %v2279 = vadd.f32 0.0, %v2278
      %v2280 = vpop.f32.mrb[0].mxu0
      %v2281 = vpop.f32.mrb[0].mxu0
      %v2282 = vadd.f32 0.0, %v2281
      %v2283 = vpop.f32.mrb[0].mxu0
      %2284 = vmatprep.mubr.bf16.mxu0 0
      %2285 = vmatmul.mubr.bf16.gmra.mrb[0].mxu0 %v2165
      %v2286 = vpop.f32.mrb[0].mxu0
      %v2287 = vadd.f32 0.0, %v2286
      %v2288 = vpop.f32.mrb[0].mxu0
      %v2289 = vpop.f32.mrb[0].mxu0
      %v2290 = vadd.f32 0.0, %v2289
      %v2291 = vpop.f32.mrb[0].mxu0
      %2292 = vmatprep.mubr.bf16.mxu0 0
      %2293 = vmatmul.mubr.bf16.gmra.mrb[0].mxu0 %v2166
      %v2294 = vpop.f32.mrb[0].mxu0
      %v2295 = vadd.f32 0.0, %v2294
      %v2296 = vpop.f32.mrb[0].mxu0
      %v2297 = vpop.f32.mrb[0].mxu0
      %v2298 = vadd.f32 0.0, %v2297
      %v2299 = vpop.f32.mrb[0].mxu0
      %2300 = vmatprep.mubr.bf16.mxu0 0
      %2301 = vmatmul.mubr.bf16.gmra.mrb[0].mxu0 %v2167
      %v2302 = vpop.f32.mrb[0].mxu0
      %v2303 = vadd.f32 0.0, %v2302
      %v2304 = vpop.f32.mrb[0].mxu0
      %v2305 = vpop.f32.mrb[0].mxu0
      %v2306 = vadd.f32 0.0, %v2305
      %v2307 = vpop.f32.mrb[0].mxu0
      %2308 = vmatprep.mubr.bf16.mxu0 0
      %2309 = vmatmul.mubr.bf16.gmra.mrb[0].mxu0 %v2168
      %v2310 = vpop.f32.mrb[0].mxu0
      %v2311 = vadd.f32 0.0, %v2310
      %v2312 = vpop.f32.mrb[0].mxu0
      %v2313 = vpop.f32.mrb[0].mxu0
      %v2314 = vadd.f32 0.0, %v2313
      %v2315 = vpop.f32.mrb[0].mxu0
      %2316 = vmatprep.mubr.bf16.mxu0 0
      %2317 = vmatmul.mubr.bf16.gmra.mrb[0].mxu0 %v2169
      %v2318 = vpop.f32.mrb[0].mxu0
      %v2319 = vadd.f32 0.0, %v2318
      %v2320 = vpop.f32.mrb[0].mxu0
      %v2321 = vpop.f32.mrb[0].mxu0
      %v2322 = vadd.f32 0.0, %v2321
      %v2323 = vpop.f32.mrb[0].mxu0
      %2324 = vmatprep.mubr.bf16.mxu0 0
      %2325 = vmatmul.mubr.bf16.gmra.mrb[0].mxu0 %v2170
      %v2326 = vpop.f32.mrb[0].mxu0
      %v2327 = vadd.f32 0.0, %v2326
      %v2328 = vpop.f32.mrb[0].mxu0
      %v2329 = vpop.f32.mrb[0].mxu0
      %v2330 = vadd.f32 0.0, %v2329
      %v2331 = vpop.f32.mrb[0].mxu0
      %2332 = vdwg.mxu0
      %v2333 = vadd.f32 %v2147, %v2271
      %v2334 = vadd.f32 %v2148, %v2274
      %v2335 = vadd.f32 %v2149, %v2279
      %v2336 = vadd.f32 %v2150, %v2282
      %v2337 = vadd.f32 %v2151, %v2287
      %v2338 = vadd.f32 %v2152, %v2290
      %v2339 = vadd.f32 %v2153, %v2295
      %v2340 = vadd.f32 %v2154, %v2298
      %v2341 = vadd.f32 %v2155, %v2303
      %v2342 = vadd.f32 %v2156, %v2306
      %v2343 = vadd.f32 %v2157, %v2311
      %v2344 = vadd.f32 %v2158, %v2314
      %v2345 = vadd.f32 %v2159, %v2319
      %v2346 = vadd.f32 %v2160, %v2322
      %v2347 = vadd.f32 %v2161, %v2327
      %v2348 = vadd.f32 %v2162, %v2330
      %v2349 = vrot.slane %v1913, 1
      %v2350 = vrot.slane %v1914, 1
      %v2351 = vrot.slane %v1915, 1
      %v2352 = vrot.slane %v1916, 1
      %v2353 = vrot.slane %v1917, 1
      %v2354 = vrot.slane %v1918, 1
      %v2355 = vrot.slane %v1919, 1
      %v2356 = vrot.slane %v1920, 1
      %v2357 = vrot.slane %v1921, 1
      %v2358 = vrot.slane %v1922, 1
      %v2359 = vrot.slane %v1923, 1
      %v2360 = vrot.slane %v1924, 1
      %v2361 = vrot.slane %v1925, 1
      %v2362 = vrot.slane %v1926, 1
      %v2363 = vrot.slane %v1927, 1
      %v2364 = vrot.slane %v1928, 1
      %v2365 = vsel %vm970, %v2363, %v2364
      %v2366 = vsel %vm970, %v2362, %v2363
      %v2367 = vsel %vm970, %v2361, %v2362
      %v2368 = vsel %vm970, %v2360, %v2361
      %v2369 = vsel %vm970, %v2359, %v2360
      %v2370 = vsel %vm970, %v2358, %v2359
      %v2371 = vsel %vm970, %v2357, %v2358
      %v2372 = vsel %vm970, %v2356, %v2357
      %v2373 = vsel %vm970, %v2355, %v2356
      %v2374 = vsel %vm970, %v2354, %v2355
      %v2375 = vsel %vm970, %v2353, %v2354
      %v2376 = vsel %vm970, %v2352, %v2353
      %v2377 = vsel %vm970, %v2351, %v2352
      %v2378 = vsel %vm970, %v2350, %v2351
      %v2379 = vsel %vm970, %v2349, %v2350
      %v2380 = vsel %vm970, %v2364, %v2349
      %v2381 = vsel %vm1019, %v2379, 0.0
      %v2382 = vsel %vm1020, %v2378, 0.0
      %v2383 = vsel %vm1021, %v2377, 0.0
      %v2384 = vsel %vm1022, %v2376, 0.0
      %v2385 = vsel %vm1023, %v2375, 0.0
      %v2386 = vsel %vm1024, %v2374, 0.0
      %v2387 = vsel %vm1025, %v2373, 0.0
      %v2388 = vsel %vm1026, %v2372, 0.0
      %v2389 = vsel %vm1027, %v2371, 0.0
      %v2390 = vsel %vm1028, %v2370, 0.0
      %v2391 = vsel %vm1029, %v2369, 0.0
      %v2392 = vsel %vm1030, %v2368, 0.0
      %v2393 = vsel %vm1031, %v2367, 0.0
      %v2394 = vsel %vm1032, %v2366, 0.0
      %v2395 = vsel %vm1033, %v2365, 0.0
      %v2396 = vsel %vm1034, %v2380, 0.0
      %v2397 = vpack.c.bf16 %v2382, %v2381
      %v2398 = vpack.c.bf16 %v2384, %v2383
      %v2399 = vpack.c.bf16 %v2386, %v2385
      %v2400 = vpack.c.bf16 %v2388, %v2387
      %v2401 = vpack.c.bf16 %v2390, %v2389
      %v2402 = vpack.c.bf16 %v2392, %v2391
      %v2403 = vpack.c.bf16 %v2394, %v2393
      %v2404 = vpack.c.bf16 %v2396, %v2395
      %s2405 = scalar_lea.vmem %s1, 512
      %v2406 = vld [vmem:[%s2405] sm:$0xf]
      %v2407 = vld [vmem:[%s2405 + $0x4] sm:$0xf]
      %v2408 = vld [vmem:[%s2405 + $0x8] sm:$0xf]
      %v2409 = vld [vmem:[%s2405 + $0xc] sm:$0xf]
      %v2410 = vld [vmem:[%s2405 + $0x10] sm:$0xf]
      %v2411 = vld [vmem:[%s2405 + $0x14] sm:$0xf]
      %v2412 = vld [vmem:[%s2405 + $0x18] sm:$0xf]
      %v2413 = vld [vmem:[%s2405 + $0x1c] sm:$0xf]
      %v2414 = vld [vmem:[%s2405 + $0x20] sm:$0xf]
      %v2415 = vld [vmem:[%s2405 + $0x24] sm:$0xf]
      %v2416 = vld [vmem:[%s2405 + $0x28] sm:$0xf]
      %v2417 = vld [vmem:[%s2405 + $0x2c] sm:$0xf]
      %v2418 = vld [vmem:[%s2405 + $0x30] sm:$0xf]
      %v2419 = vld [vmem:[%s2405 + $0x34] sm:$0xf]
      %v2420 = vld [vmem:[%s2405 + $0x38] sm:$0xf]
      %v2421 = vld [vmem:[%s2405 + $0x3c] sm:$0xf]
      %v2438 = vunpack.c.l.b16 %v2406
      %v2439 = vunpack.c.l.b16 %v2407
      %v2440 = vunpack.c.l.b16 %v2408
      %v2441 = vunpack.c.l.b16 %v2409
      %v2442 = vunpack.c.l.b16 %v2410
      %v2443 = vunpack.c.l.b16 %v2411
      %v2444 = vunpack.c.l.b16 %v2412
      %v2445 = vunpack.c.l.b16 %v2413
      %v2446 = vunpack.c.l.b16 %v2414
      %v2447 = vunpack.c.l.b16 %v2415
      %v2448 = vunpack.c.l.b16 %v2416
      %v2449 = vunpack.c.l.b16 %v2417
      %v2450 = vunpack.c.l.b16 %v2418
      %v2451 = vunpack.c.l.b16 %v2419
      %v2452 = vunpack.c.l.b16 %v2420
      %v2453 = vunpack.c.l.b16 %v2421
      %v2454 = vpack.c.b16 %v2439, %v2438
      %v2455 = vpack.c.b16 %v2441, %v2440
      %v2456 = vpack.c.b16 %v2443, %v2442
      %v2457 = vpack.c.b16 %v2445, %v2444
      %v2458 = vpack.c.b16 %v2447, %v2446
      %v2459 = vpack.c.b16 %v2449, %v2448
      %v2460 = vpack.c.b16 %v2451, %v2450
      %v2461 = vpack.c.b16 %v2453, %v2452
      %2470 = vmatprep.subr.bf16.mxu0 0
      %2471 = vmatpush1.bf16.msra.mxu0 %v2454
      %2472 = vmatprep.subr.bf16.mxu0 0
      %2473 = vmatpush1.bf16.msra.mxu0 %v2455
      %2474 = vmatprep.subr.bf16.mxu0 0
      %2475 = vmatpush1.bf16.msra.mxu0 %v2456
      %2476 = vmatprep.subr.bf16.mxu0 0
      %2477 = vmatpush1.bf16.msra.mxu0 %v2457
      %2478 = vmatprep.subr.bf16.mxu0 0
      %2479 = vmatpush1.bf16.msra.mxu0 %v2458
      %2480 = vmatprep.subr.bf16.mxu0 0
      %2481 = vmatpush1.bf16.msra.mxu0 %v2459
      %2482 = vmatprep.subr.bf16.mxu0 0
      %2483 = vmatpush1.bf16.msra.mxu0 %v2460
      %2484 = vmatprep.subr.bf16.mxu0 0
      %2485 = vmatpush1.bf16.msra.mxu0 %v2461
      %2486 = vmatprep.subr.bf16.mxu0 0
      %2487 = vmatpush1.bf16.msra.mxu0 0
      %2488 = vmatprep.subr.bf16.mxu0 0
      %2489 = vmatpush1.bf16.msra.mxu0 0
      %2490 = vmatprep.subr.bf16.mxu0 0
      %2491 = vmatpush1.bf16.msra.mxu0 0
      %2492 = vmatprep.subr.bf16.mxu0 0
      %2493 = vmatpush1.bf16.msra.mxu0 0
      %2494 = vmatprep.subr.bf16.mxu0 0
      %2495 = vmatpush1.bf16.msra.mxu0 0
      %2496 = vmatprep.subr.bf16.mxu0 0
      %2497 = vmatpush1.bf16.msra.mxu0 0
      %2498 = vmatprep.subr.bf16.mxu0 0
      %2499 = vmatpush1.bf16.msra.mxu0 0
      %2500 = vmatprep.subr.bf16.mxu0 0
      %2501 = vmatpush1.bf16.msra.mxu0 0
      %2502 = vmatprep.mubr.bf16.mxu0 0
      %2503 = vmatmul.mubr.bf16.gmra.mrb[0].mxu0 %v2397
      %v2504 = vpop.f32.mrb[0].mxu0
      %v2505 = vadd.f32 0.0, %v2504
      %v2506 = vpop.f32.mrb[0].mxu0
      %v2507 = vpop.f32.mrb[0].mxu0
      %v2508 = vadd.f32 0.0, %v2507
      %v2509 = vpop.f32.mrb[0].mxu0
      %2510 = vmatprep.mubr.bf16.mxu0 0
      %2511 = vmatmul.mubr.bf16.gmra.mrb[0].mxu0 %v2398
      %v2512 = vpop.f32.mrb[0].mxu0
      %v2513 = vadd.f32 0.0, %v2512
      %v2514 = vpop.f32.mrb[0].mxu0
      %v2515 = vpop.f32.mrb[0].mxu0
      %v2516 = vadd.f32 0.0, %v2515
      %v2517 = vpop.f32.mrb[0].mxu0
      %2518 = vmatprep.mubr.bf16.mxu0 0
      %2519 = vmatmul.mubr.bf16.gmra.mrb[0].mxu0 %v2399
      %v2520 = vpop.f32.mrb[0].mxu0
      %v2521 = vadd.f32 0.0, %v2520
      %v2522 = vpop.f32.mrb[0].mxu0
      %v2523 = vpop.f32.mrb[0].mxu0
      %v2524 = vadd.f32 0.0, %v2523
      %v2525 = vpop.f32.mrb[0].mxu0
      %2526 = vmatprep.mubr.bf16.mxu0 0
      %2527 = vmatmul.mubr.bf16.gmra.mrb[0].mxu0 %v2400
      %v2528 = vpop.f32.mrb[0].mxu0
      %v2529 = vadd.f32 0.0, %v2528
      %v2530 = vpop.f32.mrb[0].mxu0
      %v2531 = vpop.f32.mrb[0].mxu0
      %v2532 = vadd.f32 0.0, %v2531
      %v2533 = vpop.f32.mrb[0].mxu0
      %2534 = vmatprep.mubr.bf16.mxu0 0
      %2535 = vmatmul.mubr.bf16.gmra.mrb[0].mxu0 %v2401
      %v2536 = vpop.f32.mrb[0].mxu0
      %v2537 = vadd.f32 0.0, %v2536
      %v2538 = vpop.f32.mrb[0].mxu0
      %v2539 = vpop.f32.mrb[0].mxu0
      %v2540 = vadd.f32 0.0, %v2539
      %v2541 = vpop.f32.mrb[0].mxu0
      %2542 = vmatprep.mubr.bf16.mxu0 0
      %2543 = vmatmul.mubr.bf16.gmra.mrb[0].mxu0 %v2402
      %v2544 = vpop.f32.mrb[0].mxu0
      %v2545 = vadd.f32 0.0, %v2544
      %v2546 = vpop.f32.mrb[0].mxu0
      %v2547 = vpop.f32.mrb[0].mxu0
      %v2548 = vadd.f32 0.0, %v2547
      %v2549 = vpop.f32.mrb[0].mxu0
      %2550 = vmatprep.mubr.bf16.mxu0 0
      %2551 = vmatmul.mubr.bf16.gmra.mrb[0].mxu0 %v2403
      %v2552 = vpop.f32.mrb[0].mxu0
      %v2553 = vadd.f32 0.0, %v2552
      %v2554 = vpop.f32.mrb[0].mxu0
      %v2555 = vpop.f32.mrb[0].mxu0
      %v2556 = vadd.f32 0.0, %v2555
      %v2557 = vpop.f32.mrb[0].mxu0
      %2558 = vmatprep.mubr.bf16.mxu0 0
      %2559 = vmatmul.mubr.bf16.gmra.mrb[0].mxu0 %v2404
      %v2560 = vpop.f32.mrb[0].mxu0
      %v2561 = vadd.f32 0.0, %v2560
      %v2562 = vpop.f32.mrb[0].mxu0
      %v2563 = vpop.f32.mrb[0].mxu0
      %v2564 = vadd.f32 0.0, %v2563
      %v2565 = vpop.f32.mrb[0].mxu0
      %2566 = vdwg.mxu0
      %v2567 = vadd.f32 %v2333, %v2505
      %v2568 = vadd.f32 %v2334, %v2508
      %v2569 = vadd.f32 %v2335, %v2513
      %v2570 = vadd.f32 %v2336, %v2516
      %v2571 = vadd.f32 %v2337, %v2521
      %v2572 = vadd.f32 %v2338, %v2524
      %v2573 = vadd.f32 %v2339, %v2529
      %v2574 = vadd.f32 %v2340, %v2532
      %v2575 = vadd.f32 %v2341, %v2537
      %v2576 = vadd.f32 %v2342, %v2540
      %v2577 = vadd.f32 %v2343, %v2545
      %v2578 = vadd.f32 %v2344, %v2548
      %v2579 = vadd.f32 %v2345, %v2553
      %v2580 = vadd.f32 %v2346, %v2556
      %v2581 = vadd.f32 %v2347, %v2561
      %v2582 = vadd.f32 %v2348, %v2564
      %2583 = vst [vmem:[%s205] sm:$0xff] %v2567
      %2584 = vst [vmem:[%s205 + $0x8] sm:$0xff] %v2568
      %2585 = vst [vmem:[%s205 + $0x10] sm:$0xff] %v2569
      %2586 = vst [vmem:[%s205 + $0x18] sm:$0xff] %v2570
      %2587 = vst [vmem:[%s205 + $0x20] sm:$0xff] %v2571
      %2588 = vst [vmem:[%s205 + $0x28] sm:$0xff] %v2572
      %2589 = vst [vmem:[%s205 + $0x30] sm:$0xff] %v2573
      %2590 = vst [vmem:[%s205 + $0x38] sm:$0xff] %v2574
      %2591 = vst [vmem:[%s205 + $0x40] sm:$0xff] %v2575
      %2592 = vst [vmem:[%s205 + $0x48] sm:$0xff] %v2576
      %2593 = vst [vmem:[%s205 + $0x50] sm:$0xff] %v2577
      %2594 = vst [vmem:[%s205 + $0x58] sm:$0xff] %v2578
      %2595 = vst [vmem:[%s205 + $0x60] sm:$0xff] %v2579
      %2596 = vst [vmem:[%s205 + $0x68] sm:$0xff] %v2580
      %2597 = vst [vmem:[%s205 + $0x70] sm:$0xff] %v2581
      %2598 = vst [vmem:[%s205 + $0x78] sm:$0xff] %v2582
      %v2599 = vadd.f32 %v2567, %v2568
      %v2600 = vadd.f32 %v2599, %v2569
      %v2601 = vadd.f32 %v2600, %v2570
      %v2602 = vadd.f32 %v2601, %v2571
      %v2603 = vadd.f32 %v2602, %v2572
      %v2604 = vadd.f32 %v2603, %v2573
      %v2605 = vadd.f32 %v2604, %v2574
      %v2606 = vadd.f32 %v2605, %v2575
      %v2607 = vadd.f32 %v2606, %v2576
      %v2608 = vadd.f32 %v2607, %v2577
      %v2609 = vadd.f32 %v2608, %v2578
      %v2610 = vadd.f32 %v2609, %v2579
      %v2611 = vadd.f32 %v2610, %v2580
      %v2612 = vadd.f32 %v2611, %v2581
      %v2613 = vadd.f32 %v2612, %v2582
      %v2614 = vrot.slane %v2613, 4
      %v2615 = vadd.f32 %v2613, %v2614
      %v2616 = vrot.slane %v2615, 2
      %v2617 = vadd.f32 %v2615, %v2616
      %v2618 = vrot.slane %v2617, 1
      %v2619 = vadd.f32 %v2617, %v2618
      %v2620 = vmul.f32 %v2567, %v2567
      %v2621 = vmul.f32 %v2568, %v2568
      %v2622 = vmul.f32 %v2569, %v2569
      %v2623 = vmul.f32 %v2570, %v2570
      %v2624 = vmul.f32 %v2571, %v2571
      %v2625 = vmul.f32 %v2572, %v2572
      %v2626 = vmul.f32 %v2573, %v2573
      %v2627 = vmul.f32 %v2574, %v2574
      %v2628 = vmul.f32 %v2575, %v2575
      %v2629 = vmul.f32 %v2576, %v2576
      %v2630 = vmul.f32 %v2577, %v2577
      %v2631 = vmul.f32 %v2578, %v2578
      %v2632 = vmul.f32 %v2579, %v2579
      %v2633 = vmul.f32 %v2580, %v2580
      %v2634 = vmul.f32 %v2581, %v2581
      %v2635 = vmul.f32 %v2582, %v2582
      %v2636 = vadd.f32 %v2620, %v2621
      %v2637 = vadd.f32 %v2636, %v2622
      %v2638 = vadd.f32 %v2637, %v2623
      %v2639 = vadd.f32 %v2638, %v2624
      %v2640 = vadd.f32 %v2639, %v2625
      %v2641 = vadd.f32 %v2640, %v2626
      %v2642 = vadd.f32 %v2641, %v2627
      %v2643 = vadd.f32 %v2642, %v2628
      %v2644 = vadd.f32 %v2643, %v2629
      %v2645 = vadd.f32 %v2644, %v2630
      %v2646 = vadd.f32 %v2645, %v2631
      %v2647 = vadd.f32 %v2646, %v2632
      %v2648 = vadd.f32 %v2647, %v2633
      %v2649 = vadd.f32 %v2648, %v2634
      %v2650 = vadd.f32 %v2649, %v2635
      %v2651 = vrot.slane %v2650, 4
      %v2652 = vadd.f32 %v2650, %v2651
      %v2653 = vrot.slane %v2652, 2
      %v2654 = vadd.f32 %v2652, %v2653
      %v2655 = vrot.slane %v2654, 1
      %v2656 = vadd.f32 %v2654, %v2655
      %vm2657 = vcmask 1040384
      %v2658 = vsel %vm2657, %v2619, %v2656
      %2659 = vst [vmem:[%s214] sm:$0x3] %v2658
      %s2660 = smul.u32 16, %s20
      %p2661 = scmp.lt.s32.totalorder %s19, 1
      %s2662 = scalar_select %p2661, %s19, 1
      %p2663 = scmp.lt.s32.totalorder %s2660, 31
      %s2664 = scalar_select %p2663, %s2660, 31
      %s2665 = smul.addr %s2662, 32
      %s2666 = sadd.s32 %s2664, %s2665
      %s2667 = smul.addr %s2666, 8
      %s2668 = scalar_lea.vmem %s2, %s2667
      %p2669 = scmp.lt.s32.totalorder %s19, 1
      %s2670 = scalar_select %p2669, %s19, 1
      %p2671 = scmp.lt.s32.totalorder %s20, 1
      %s2672 = scalar_select %p2671, %s20, 1
      %s2673 = smul.addr %s2670, 2
      %s2674 = sadd.s32 %s2672, %s2673
      %s2675 = smul.addr %s2674, 2
      %s2676 = scalar_lea.vmem %s3, %s2675
      // Predicated region
      $region33: #{basic_block_forward.3} parent=27 // pred_check
        %p2677 = pneg %p94
      $region34: #{basic_block_forward.3} parent=27 // pred_check_branch
        %2679 = sbr.rel (%p2677) target = $region36
      $region35: #{basic_block_forward.3} parent=27 // pred_region
        %s2680 = smul.u32 16, %s20
      $region36: #{basic_block_forward.3} parent=27 // pred_fallthru
        _
      // Predicated region
      $region37: #{basic_block_forward.3} parent=27 // pred_check
        %p2681 = pneg %p122
      $region38: #{basic_block_forward.3} parent=27 // pred_check_branch
        %2683 = sbr.rel (%p2681) target = $region40
      $region39: #{basic_block_forward.3} parent=27 // pred_region
        _
      $region40: #{basic_block_forward.3} parent=27 // pred_fallthru
        _
    $region28: #{basic_block_forward.3} parent=5 // pred_fallthru
      _
    %p2684 = scmp.le.s32.totalorder 2, %s10
    // Predicated region
    $region41: #{basic_block_forward.3} parent=5 // pred_check
      %p2685 = pneg %p2684
    $region42: #{basic_block_forward.3} parent=5 // pred_check_branch
      %2687 = sbr.rel (%p2685) target = $region44
    $region43: #{basic_block_forward.3} parent=5 // pred_region
      %s2688 = ssub.s32 %s10, 2
      // Predicated region
      $region45: #{basic_block_forward.3} parent=43 // pred_check
        %p2689 = pneg %p100
      $region46: #{basic_block_forward.3} parent=43 // pred_check_branch
        %2691 = sbr.rel (%p2689) target = $region48
      $region47: #{basic_block_forward.3} parent=43 // pred_region
        %s2692 = smul.u32 16, %s22
        %p2693 = scmp.lt.s32.totalorder %s21, 1
        %s2694 = scalar_select %p2693, %s21, 1
        %p2695 = scmp.lt.s32.totalorder %s2692, 31
        %s2696 = scalar_select %p2695, %s2692, 31
        %s2697 = smul.addr %s2694, 32
        %s2698 = sadd.s32 %s2696, %s2697
        %s2699 = smul.addr %s2698, 8
        %s2700 = scalar_lea.vmem %s2, %s2699
      $region48: #{basic_block_forward.3} parent=43 // pred_fallthru
        _
      // Predicated region
      $region49: #{basic_block_forward.3} parent=43 // pred_check
        %p2701 = pneg %p128
      $region50: #{basic_block_forward.3} parent=43 // pred_check_branch
        %2703 = sbr.rel (%p2701) target = $region52
      $region51: #{basic_block_forward.3} parent=43 // pred_region
        %p2704 = scmp.lt.s32.totalorder %s21, 1
        %s2705 = scalar_select %p2704, %s21, 1
        %p2706 = scmp.lt.s32.totalorder %s22, 1
        %s2707 = scalar_select %p2706, %s22, 1
        %s2708 = smul.addr %s2705, 2
        %s2709 = sadd.s32 %s2707, %s2708
        %s2710 = smul.addr %s2709, 2
        %s2711 = scalar_lea.vmem %s3, %s2710
      $region52: #{basic_block_forward.3} parent=43 // pred_fallthru
        _
    $region44: #{basic_block_forward.3} parent=5 // pred_fallthru
      _
  $region6: #{basic_block_forward.3} parent=0 // loop_footer
    %s14 = sadd.s32 1, %s10
  $region7: #{basic_block_forward.3} parent=0 // loop_footer_branch
    %9 = sbr.rel target = $region3
  $region8: #{basic_block_forward.3} parent=0 // loop_exit
    _

// kernel: basic_block_forward.4
$region0: #{basic_block_forward.4}
  #allocation0 [shape = 'u32[]', space=smem, size = 0x4, offset = 0x4, fixed_abs, tag = 'smem constant byte address 0x4 - core index']
  #allocation1 [shape = 'u32[144,128]{1,0:T(1,128)}', space=vmem, size = 0x12000, scoped, tag = 'internal scratch']
  #allocation2 [shape = 'f32[18,16,128]{2,1,0:T(8,128)}', space=vmem, size = 0x24000, scoped, tag = 'scratch operand']
  %s0 = inlined_call_operand.vmem [shape: f32[2,256,128], index: 0, kind: input, shape index: {}, may-alias: {0,4}]
  %s1 = inlined_call_operand.vmem [shape: bf16[9,128,128], index: 1, kind: input, shape index: {}]
  %s2 = inlined_call_operand.vmem [shape: f32[1,128], index: 2, kind: input, shape index: {}]
  %s3 = inlined_call_operand.vmem [shape: f32[1,128], index: 3, kind: input, shape index: {}]
  %s4 = inlined_call_operand.vmem [shape: f32[2,256,128], index: 4, kind: output, shape index: {0}, may-alias: {0,4}]
  %s5 = inlined_call_operand.vmem [shape: f32[2,2,2,128], index: 5, kind: output, shape index: {1}]
  %6 = xla_tuple %s4, %s5
  %s7 = sld [smem:[#allocation0]]
  $region61: #{basic_block_forward.4} parent=0
    _
  %s9 = ssub.s32 1, %s7
  %s10 = scalar_select 0, %s9, %s7
  loop: start=0, step=1, limit=6
  $region2: #{basic_block_forward.4} parent=0 // loop_pre_header
    _
  $region3: #{basic_block_forward.4} parent=0 // loop_header
    %s12 = sphi 0, %s16
    %p13 = scmp.ge.s32.totalorder %s12, 6
    %s19 = sphi 0, %s31
    %s20 = sphi 0, %s27
    %s21 = sphi 0, %s19
    %s22 = sphi 0, %s20
    %s23 = sphi 0, %s21
    %s24 = sphi 0, %s22
    %s34 = sphi 0, %s36
    %s37 = sphi 0, %s34
    %s38 = sphi 0, %s37
    %s54 = sphi 0, %s38
    %s58 = sphi 0, %s58
    %s60 = sphi 0, %s58
    %s61 = sphi 0, %s60
    %s75 = sphi 0, %s61
    %s79 = sphi 0, %s79
    %s81 = sphi 0, %s79
    %s82 = sphi 0, %s81
    %s96 = sphi 0, %s82
    %s100 = sphi 0, %s100
    %s102 = sphi 0, %s100
    %s103 = sphi 0, %s102
    %s117 = sphi 0, %s103
    %s125 = sphi 0, %s127
    %s128 = sphi 0, %s125
    %s129 = sphi 0, %s128
    %s145 = sphi 0, %s129
    %s153 = sphi 0, %s155
    %s156 = sphi 0, %s153
    %s157 = sphi 0, %s156
    %s173 = sphi 0, %s157
  $region4: #{basic_block_forward.4} parent=0 // loop_header_branch
    %15 = sbr.rel (%p13) target = $region8
  $region5: #{basic_block_forward.4} parent=0 // loop_body
    %s17 = ssub.s32 %s12, 1
    %s18 = ssub.s32 %s12, 2
    %s25 = sadd.s32 1, %s20
    %p26 = scmp.ge.s32.totalorder %s25, 2
    %s27 = scalar_select %p26, 0, %s25
    %s28 = sadd.s32 1, %s19
    %s29 = scalar_select %p26, %s28, %s19
    %p30 = scmp.ge.s32.totalorder %s29, 2
    %s31 = scalar_select %p30, 0, %s29
    %s32 = ssub.s32 %s19, %s31
    %p33 = scmp.eq.s32.totalorder %s32, 0
    %s35 = sadd.s32 %s34, 1
    %s36 = scalar_select %p33, %s34, %s35
    %p39 = pneg %p33
    %p40 = scmp.eq.s32.totalorder %s12, 3
    %p41 = por %p39, %p40
    %p42 = scmp.ne.s32.totalorder %s34, %s37
    %p43 = scmp.eq.s32.totalorder %s12, 0
    %p44 = por %p42, %p43
    %p45 = scmp.ne.s32.totalorder %s34, %s37
    %p46 = scmp.eq.s32.totalorder %s17, 3
    %p47 = por %p45, %p46
    %p48 = scmp.ne.s32.totalorder %s37, %s38
    %p49 = scmp.eq.s32.totalorder %s17, 0
    %p50 = por %p48, %p49
    %p51 = scmp.ne.s32.totalorder %s37, %s38
    %p52 = scmp.eq.s32.totalorder %s18, 3
    %p53 = por %p51, %p52
    %p55 = scmp.ne.s32.totalorder %s38, %s54
    %p56 = scmp.eq.s32.totalorder %s18, 0
    %p57 = por %p55, %p56
    %s59 = sadd.s32 %s58, 1
    %p62 = scmp.eq.s32.totalorder %s12, 3
    %p63 = scmp.ne.s32.totalorder %s58, %s60
    %p64 = scmp.eq.s32.totalorder %s12, 0
    %p65 = por %p63, %p64
    %p66 = scmp.ne.s32.totalorder %s58, %s60
    %p67 = scmp.eq.s32.totalorder %s17, 3
    %p68 = por %p66, %p67
    %p69 = scmp.ne.s32.totalorder %s60, %s61
    %p70 = scmp.eq.s32.totalorder %s17, 0
    %p71 = por %p69, %p70
    %p72 = scmp.ne.s32.totalorder %s60, %s61
    %p73 = scmp.eq.s32.totalorder %s18, 3
    %p74 = por %p72, %p73
    %p76 = scmp.ne.s32.totalorder %s61, %s75
    %p77 = scmp.eq.s32.totalorder %s18, 0
    %p78 = por %p76, %p77
    %s80 = sadd.s32 %s79, 1
    %p83 = scmp.eq.s32.totalorder %s12, 3
    %p84 = scmp.ne.s32.totalorder %s79, %s81
    %p85 = scmp.eq.s32.totalorder %s12, 0
    %p86 = por %p84, %p85
    %p87 = scmp.ne.s32.totalorder %s79, %s81
    %p88 = scmp.eq.s32.totalorder %s17, 3
    %p89 = por %p87, %p88
    %p90 = scmp.ne.s32.totalorder %s81, %s82
    %p91 = scmp.eq.s32.totalorder %s17, 0
    %p92 = por %p90, %p91
    %p93 = scmp.ne.s32.totalorder %s81, %s82
    %p94 = scmp.eq.s32.totalorder %s18, 3
    %p95 = por %p93, %p94
    %p97 = scmp.ne.s32.totalorder %s82, %s96
    %p98 = scmp.eq.s32.totalorder %s18, 0
    %p99 = por %p97, %p98
    %s101 = sadd.s32 %s100, 1
    %p104 = scmp.eq.s32.totalorder %s12, 3
    %p105 = scmp.ne.s32.totalorder %s100, %s102
    %p106 = scmp.eq.s32.totalorder %s12, 0
    %p107 = por %p105, %p106
    %p108 = scmp.ne.s32.totalorder %s100, %s102
    %p109 = scmp.eq.s32.totalorder %s17, 3
    %p110 = por %p108, %p109
    %p111 = scmp.ne.s32.totalorder %s102, %s103
    %p112 = scmp.eq.s32.totalorder %s17, 0
    %p113 = por %p111, %p112
    %p114 = scmp.ne.s32.totalorder %s102, %s103
    %p115 = scmp.eq.s32.totalorder %s18, 3
    %p116 = por %p114, %p115
    %p118 = scmp.ne.s32.totalorder %s103, %s117
    %p119 = scmp.eq.s32.totalorder %s18, 0
    %p120 = por %p118, %p119
    %s121 = ssub.s32 %s19, %s31
    %s122 = ssub.s32 %s20, %s27
    %s123 = sor.u32 %s121, %s122
    %p124 = scmp.eq.s32.totalorder %s123, 0
    %s126 = sadd.s32 %s125, 1
    %s127 = scalar_select %p124, %s125, %s126
    %p130 = pneg %p124
    %p131 = scmp.eq.s32.totalorder %s12, 3
    %p132 = por %p130, %p131
    %p133 = scmp.ne.s32.totalorder %s125, %s128
    %p134 = scmp.eq.s32.totalorder %s12, 0
    %p135 = por %p133, %p134
    %p136 = scmp.ne.s32.totalorder %s125, %s128
    %p137 = scmp.eq.s32.totalorder %s17, 3
    %p138 = por %p136, %p137
    %p139 = scmp.ne.s32.totalorder %s128, %s129
    %p140 = scmp.eq.s32.totalorder %s17, 0
    %p141 = por %p139, %p140
    %p142 = scmp.ne.s32.totalorder %s128, %s129
    %p143 = scmp.eq.s32.totalorder %s18, 3
    %p144 = por %p142, %p143
    %p146 = scmp.ne.s32.totalorder %s129, %s145
    %p147 = scmp.eq.s32.totalorder %s18, 0
    %p148 = por %p146, %p147
    %s149 = ssub.s32 %s19, %s31
    %s150 = ssub.s32 %s20, %s27
    %s151 = sor.u32 %s149, %s150
    %p152 = scmp.eq.s32.totalorder %s151, 0
    %s154 = sadd.s32 %s153, 1
    %s155 = scalar_select %p152, %s153, %s154
    %p158 = pneg %p152
    %p159 = scmp.eq.s32.totalorder %s12, 3
    %p160 = por %p158, %p159
    %p161 = scmp.ne.s32.totalorder %s153, %s156
    %p162 = scmp.eq.s32.totalorder %s12, 0
    %p163 = por %p161, %p162
    %p164 = scmp.ne.s32.totalorder %s153, %s156
    %p165 = scmp.eq.s32.totalorder %s17, 3
    %p166 = por %p164, %p165
    %p167 = scmp.ne.s32.totalorder %s156, %s157
    %p168 = scmp.eq.s32.totalorder %s17, 0
    %p169 = por %p167, %p168
    %p170 = scmp.ne.s32.totalorder %s156, %s157
    %p171 = scmp.eq.s32.totalorder %s18, 3
    %p172 = por %p170, %p171
    %p174 = scmp.ne.s32.totalorder %s157, %s173
    %p175 = scmp.eq.s32.totalorder %s18, 0
    %p176 = por %p174, %p175
    %p177 = scmp.le.s32.totalorder 1, %s12
    %p178 = scmp.lt.s32.totalorder %s12, 5
    %p179 = pnand %p177, %p178
    %p180 = pneg %p179
    // Predicated region
    $region9: #{basic_block_forward.4} parent=5 // pred_check
      _
    $region10: #{basic_block_forward.4} parent=5 // pred_check_branch
      %182 = sbr.rel (%p179) target = $region12
    $region11: #{basic_block_forward.4} parent=5 // pred_region
      %s183 = ssub.s32 %s12, 1
      // Predicated region
      $region13: #{basic_block_forward.4} parent=11 // pred_check
        %p184 = pneg %p71
      $region14: #{basic_block_forward.4} parent=11 // pred_check_branch
        %186 = sbr.rel (%p184) target = $region16
      $region15: #{basic_block_forward.4} parent=11 // pred_region
        _
      $region16: #{basic_block_forward.4} parent=11 // pred_fallthru
        _
      // Predicated region
      $region17: #{basic_block_forward.4} parent=11 // pred_check
        %p187 = pneg %p92
      $region18: #{basic_block_forward.4} parent=11 // pred_check_branch
        %189 = sbr.rel (%p187) target = $region20
      $region19: #{basic_block_forward.4} parent=11 // pred_region
        _
      $region20: #{basic_block_forward.4} parent=11 // pred_fallthru
        _
      // Predicated region
      $region21: #{basic_block_forward.4} parent=11 // pred_check
        %p190 = pneg %p113
      $region22: #{basic_block_forward.4} parent=11 // pred_check_branch
        %192 = sbr.rel (%p190) target = $region24
      $region23: #{basic_block_forward.4} parent=11 // pred_region
        _
      $region24: #{basic_block_forward.4} parent=11 // pred_fallthru
        _
    $region12: #{basic_block_forward.4} parent=5 // pred_fallthru
      _
    %p193 = scmp.lt.s32.totalorder %s12, 4
    // Predicated region
    $region25: #{basic_block_forward.4} parent=5 // pred_check
      %p194 = pneg %p193
    $region26: #{basic_block_forward.4} parent=5 // pred_check_branch
      %196 = sbr.rel (%p194) target = $region28
    $region27: #{basic_block_forward.4} parent=5 // pred_region
      // Predicated region
      $region29: #{basic_block_forward.4} parent=27 // pred_check
        %p197 = pneg %p44
      $region30: #{basic_block_forward.4} parent=27 // pred_check_branch
        %199 = sbr.rel (%p197) target = $region32
      $region31: #{basic_block_forward.4} parent=27 // pred_region
        %p200 = scmp.lt.s32.totalorder %s19, 1
        %s201 = scalar_select %p200, %s19, 1
        %s202 = smul.addr %s201, 32
        %s203 = smul.addr %s202, 8
        %s204 = scalar_lea.vmem %s0, %s203
      $region32: #{basic_block_forward.4} parent=27 // pred_fallthru
        _
    $region28: #{basic_block_forward.4} parent=5 // pred_fallthru
      _
    %p205 = scmp.le.s32.totalorder 1, %s12
    %p206 = scmp.lt.s32.totalorder %s12, 5
    %p207 = pnand %p205, %p206
    %p208 = pneg %p207
    // Predicated region
    $region33: #{basic_block_forward.4} parent=5 // pred_check
      _
    $region34: #{basic_block_forward.4} parent=5 // pred_check_branch
      %210 = sbr.rel (%p207) target = $region36
    $region35: #{basic_block_forward.4} parent=5 // pred_region
      %s211 = ssub.s32 %s12, 1
      %p212 = scmp.lt.s32.totalorder %s21, 1
      %s213 = scalar_select %p212, %s21, 1
      %s214 = smul.addr %s213, 32
      %s215 = smul.addr %s214, 8
      %s216 = scalar_lea.vmem %s0, %s215
      %p217 = pneg %p50
      %p218 = pneg %p47
      %p219 = pneg %p71
      %p220 = pneg %p68
      %p221 = pneg %p92
      %p222 = pneg %p89
      %p223 = pneg %p113
      %p224 = pneg %p110
      %p225 = pneg %p141
      %p226 = pneg %p138
      %s227 = smul.u32 16, %s22
      %p228 = scmp.lt.s32.totalorder %s21, 1
      %s229 = scalar_select %p228, %s21, 1
      %p230 = scmp.lt.s32.totalorder %s227, 31
      %s231 = scalar_select %p230, %s227, 31
      %s232 = smul.addr %s229, 32
      %s233 = sadd.s32 %s231, %s232
      %s234 = smul.addr %s233, 8
      %s235 = scalar_lea.vmem %s4, %s234
      %p236 = pneg %p169
      %p237 = pneg %p166
      %p238 = scmp.lt.s32.totalorder %s21, 1
      %s239 = scalar_select %p238, %s21, 1
      %p240 = scmp.lt.s32.totalorder %s22, 1
      %s241 = scalar_select %p240, %s22, 1
      %s242 = smul.addr %s239, 2
      %s243 = sadd.s32 %s241, %s242
      %s244 = smul.addr %s243, 2
      %s245 = scalar_lea.vmem %s5, %s244
      %p246 = scmp.lt.s32.totalorder %s21, 1
      %s247 = scalar_select %p246, %s21, 1
      %s248 = smul.addr %s247, 32
      %s249 = smul.addr %s248, 8
      %s250 = scalar_lea.vmem %s0, %s249
      %s251 = smul.u32 16, %s22
      %p252 = scmp.lt.s32.totalorder %s21, 1
      %s253 = scalar_select %p252, %s21, 1
      %p254 = scmp.lt.s32.totalorder %s251, 31
      %s255 = scalar_select %p254, %s251, 31
      %s256 = smul.addr %s253, 32
      %s257 = sadd.s32 %s255, %s256
      %s258 = smul.addr %s257, 8
      %s259 = scalar_lea.vmem %s4, %s258
      %s260 = smul.u32 16, %s22
      %p261 = scmp.lt.s32.totalorder %s21, 1
      %s262 = scalar_select %p261, %s21, 1
      %p263 = scmp.lt.s32.totalorder %s22, 1
      %s264 = scalar_select %p263, %s22, 1
      %s265 = smul.addr %s262, 2
      %s266 = sadd.s32 %s264, %s265
      %s267 = smul.addr %s266, 2
      %s268 = scalar_lea.vmem %s5, %s267
      %p270 = scmp.eq.s32.totalorder %s22, 0
      // Predicated region
      $region37: #{basic_block_forward.4} parent=35 // pred_check
        %p271 = pneg %p270
      $region38: #{basic_block_forward.4} parent=35 // pred_check_branch
        %273 = sbr.rel (%p271) target = $region40
      $region39: #{basic_block_forward.4} parent=35 // pred_region
        %v274 = vld [vmem:[%s250] sm:$0xff]
        %v275 = vld [vmem:[%s250 + $0x8] sm:$0xff]
        %v276 = vld [vmem:[%s250 + $0x10] sm:$0xff]
        %v277 = vld [vmem:[%s250 + $0x18] sm:$0xff]
        %v278 = vld [vmem:[%s250 + $0x20] sm:$0xff]
        %v279 = vld [vmem:[%s250 + $0x28] sm:$0xff]
        %v280 = vld [vmem:[%s250 + $0x30] sm:$0xff]
        %v281 = vld [vmem:[%s250 + $0x38] sm:$0xff]
        %v282 = vld [vmem:[%s250 + $0x40] sm:$0xff]
        %v283 = vld [vmem:[%s250 + $0x48] sm:$0xff]
        %v284 = vld [vmem:[%s250 + $0x50] sm:$0xff]
        %v285 = vld [vmem:[%s250 + $0x58] sm:$0xff]
        %v286 = vld [vmem:[%s250 + $0x60] sm:$0xff]
        %v287 = vld [vmem:[%s250 + $0x68] sm:$0xff]
        %v288 = vld [vmem:[%s250 + $0x70] sm:$0xff]
        %v289 = vld [vmem:[%s250 + $0x78] sm:$0xff]
        %v290 = vld [vmem:[%s250 + $0x80] sm:$0xff]
        %v291 = vld [vmem:[%s250 + $0x88] sm:$0xff]
        %v292 = vld [vmem:[%s250 + $0x90] sm:$0xff]
        %v293 = vld [vmem:[%s250 + $0x98] sm:$0xff]
        %v294 = vld [vmem:[%s250 + $0xa0] sm:$0xff]
        %v295 = vld [vmem:[%s250 + $0xa8] sm:$0xff]
        %v296 = vld [vmem:[%s250 + $0xb0] sm:$0xff]
        %v297 = vld [vmem:[%s250 + $0xb8] sm:$0xff]
        %v298 = vld [vmem:[%s250 + $0xc0] sm:$0xff]
        %v299 = vld [vmem:[%s250 + $0xc8] sm:$0xff]
        %v300 = vld [vmem:[%s250 + $0xd0] sm:$0xff]
        %v301 = vld [vmem:[%s250 + $0xd8] sm:$0xff]
        %v302 = vld [vmem:[%s250 + $0xe0] sm:$0xff]
        %v303 = vld [vmem:[%s250 + $0xe8] sm:$0xff]
        %v304 = vld [vmem:[%s250 + $0xf0] sm:$0xff]
        %v305 = vld [vmem:[%s250 + $0xf8] sm:$0xff]
        %v306 = vld [vmem:[%s2] sm:$0x1]
        %v308 = vlaneseq
        %v309 = vshrl.u32 %v308, 7
        %v310 = vsub.s32 0, %v309
        %v311 = vrot.slane %v306, %v310
        %v313 = vmul.f32 %v274, %v311
        %v314 = vmul.f32 %v275, %v311
        %v315 = vmul.f32 %v276, %v311
        %v316 = vmul.f32 %v277, %v311
        %v317 = vmul.f32 %v278, %v311
        %v318 = vmul.f32 %v279, %v311
        %v319 = vmul.f32 %v280, %v311
        %v320 = vmul.f32 %v281, %v311
        %v321 = vmul.f32 %v282, %v311
        %v322 = vmul.f32 %v283, %v311
        %v323 = vmul.f32 %v284, %v311
        %v324 = vmul.f32 %v285, %v311
        %v325 = vmul.f32 %v286, %v311
        %v326 = vmul.f32 %v287, %v311
        %v327 = vmul.f32 %v288, %v311
        %v328 = vmul.f32 %v289, %v311
        %v329 = vmul.f32 %v290, %v311
        %v330 = vmul.f32 %v291, %v311
        %v331 = vmul.f32 %v292, %v311
        %v332 = vmul.f32 %v293, %v311
        %v333 = vmul.f32 %v294, %v311
        %v334 = vmul.f32 %v295, %v311
        %v335 = vmul.f32 %v296, %v311
        %v336 = vmul.f32 %v297, %v311
        %v337 = vmul.f32 %v298, %v311
        %v338 = vmul.f32 %v299, %v311
        %v339 = vmul.f32 %v300, %v311
        %v340 = vmul.f32 %v301, %v311
        %v341 = vmul.f32 %v302, %v311
        %v342 = vmul.f32 %v303, %v311
        %v343 = vmul.f32 %v304, %v311
        %v344 = vmul.f32 %v305, %v311
        %v345 = vld [vmem:[%s3] sm:$0x1]
        %v347 = vlaneseq
        %v348 = vshrl.u32 %v347, 7
        %v349 = vsub.s32 0, %v348
        %v350 = vrot.slane %v345, %v349
        %v352 = vadd.f32 %v313, %v350
        %v353 = vadd.f32 %v314, %v350
        %v354 = vadd.f32 %v315, %v350
        %v355 = vadd.f32 %v316, %v350
        %v356 = vadd.f32 %v317, %v350
        %v357 = vadd.f32 %v318, %v350
        %v358 = vadd.f32 %v319, %v350
        %v359 = vadd.f32 %v320, %v350
        %v360 = vadd.f32 %v321, %v350
        %v361 = vadd.f32 %v322, %v350
        %v362 = vadd.f32 %v323, %v350
        %v363 = vadd.f32 %v324, %v350
        %v364 = vadd.f32 %v325, %v350
        %v365 = vadd.f32 %v326, %v350
        %v366 = vadd.f32 %v327, %v350
        %v367 = vadd.f32 %v328, %v350
        %v368 = vadd.f32 %v329, %v350
        %v369 = vadd.f32 %v330, %v350
        %v370 = vadd.f32 %v331, %v350
        %v371 = vadd.f32 %v332, %v350
        %v372 = vadd.f32 %v333, %v350
        %v373 = vadd.f32 %v334, %v350
        %v374 = vadd.f32 %v335, %v350
        %v375 = vadd.f32 %v336, %v350
        %v376 = vadd.f32 %v337, %v350
        %v377 = vadd.f32 %v338, %v350
        %v378 = vadd.f32 %v339, %v350
        %v379 = vadd.f32 %v340, %v350
        %v380 = vadd.f32 %v341, %v350
        %v381 = vadd.f32 %v342, %v350
        %v382 = vadd.f32 %v343, %v350
        %v383 = vadd.f32 %v344, %v350
        %v384 = vmax.f32 %v352, 0.0
        %v385 = vmax.f32 %v353, 0.0
        %v386 = vmax.f32 %v354, 0.0
        %v387 = vmax.f32 %v355, 0.0
        %v388 = vmax.f32 %v356, 0.0
        %v389 = vmax.f32 %v357, 0.0
        %v390 = vmax.f32 %v358, 0.0
        %v391 = vmax.f32 %v359, 0.0
        %v392 = vmax.f32 %v360, 0.0
        %v393 = vmax.f32 %v361, 0.0
        %v394 = vmax.f32 %v362, 0.0
        %v395 = vmax.f32 %v363, 0.0
        %v396 = vmax.f32 %v364, 0.0
        %v397 = vmax.f32 %v365, 0.0
        %v398 = vmax.f32 %v366, 0.0
        %v399 = vmax.f32 %v367, 0.0
        %v400 = vmax.f32 %v368, 0.0
        %v401 = vmax.f32 %v369, 0.0
        %v402 = vmax.f32 %v370, 0.0
        %v403 = vmax.f32 %v371, 0.0
        %v404 = vmax.f32 %v372, 0.0
        %v405 = vmax.f32 %v373, 0.0
        %v406 = vmax.f32 %v374, 0.0
        %v407 = vmax.f32 %v375, 0.0
        %v408 = vmax.f32 %v376, 0.0
        %v409 = vmax.f32 %v377, 0.0
        %v410 = vmax.f32 %v378, 0.0
        %v411 = vmax.f32 %v379, 0.0
        %v412 = vmax.f32 %v380, 0.0
        %v413 = vmax.f32 %v381, 0.0
        %v414 = vmax.f32 %v382, 0.0
        %v415 = vmax.f32 %v383, 0.0
        %416 = vst [vmem:[#allocation2] sm:$0xff] 0.0
        %417 = vst [vmem:[#allocation2 + $0x8] sm:$0xff] 0.0
        %s418 = scalar_lea.vmem [#allocation2], 272
        %419 = vst [vmem:[%s418] sm:$0xff] 0.0
        %420 = vst [vmem:[%s418 + $0x8] sm:$0xff] 0.0
        %s421 = scalar_lea.vmem [#allocation2], 16
        %422 = vst [vmem:[%s421] sm:$0xff] %v384
        %423 = vst [vmem:[%s421 + $0x8] sm:$0xff] %v385
        %424 = vst [vmem:[%s421 + $0x10] sm:$0xff] %v386
        %425 = vst [vmem:[%s421 + $0x18] sm:$0xff] %v387
        %426 = vst [vmem:[%s421 + $0x20] sm:$0xff] %v388
        %427 = vst [vmem:[%s421 + $0x28] sm:$0xff] %v389
        %428 = vst [vmem:[%s421 + $0x30] sm:$0xff] %v390
        %429 = vst [vmem:[%s421 + $0x38] sm:$0xff] %v391
        %430 = vst [vmem:[%s421 + $0x40] sm:$0xff] %v392
        %431 = vst [vmem:[%s421 + $0x48] sm:$0xff] %v393
        %432 = vst [vmem:[%s421 + $0x50] sm:$0xff] %v394
        %433 = vst [vmem:[%s421 + $0x58] sm:$0xff] %v395
        %434 = vst [vmem:[%s421 + $0x60] sm:$0xff] %v396
        %435 = vst [vmem:[%s421 + $0x68] sm:$0xff] %v397
        %436 = vst [vmem:[%s421 + $0x70] sm:$0xff] %v398
        %437 = vst [vmem:[%s421 + $0x78] sm:$0xff] %v399
        %438 = vst [vmem:[%s421 + $0x80] sm:$0xff] %v400
        %439 = vst [vmem:[%s421 + $0x88] sm:$0xff] %v401
        %440 = vst [vmem:[%s421 + $0x90] sm:$0xff] %v402
        %441 = vst [vmem:[%s421 + $0x98] sm:$0xff] %v403
        %442 = vst [vmem:[%s421 + $0xa0] sm:$0xff] %v404
        %443 = vst [vmem:[%s421 + $0xa8] sm:$0xff] %v405
        %444 = vst [vmem:[%s421 + $0xb0] sm:$0xff] %v406
        %445 = vst [vmem:[%s421 + $0xb8] sm:$0xff] %v407
        %446 = vst [vmem:[%s421 + $0xc0] sm:$0xff] %v408
        %447 = vst [vmem:[%s421 + $0xc8] sm:$0xff] %v409
        %448 = vst [vmem:[%s421 + $0xd0] sm:$0xff] %v410
        %449 = vst [vmem:[%s421 + $0xd8] sm:$0xff] %v411
        %450 = vst [vmem:[%s421 + $0xe0] sm:$0xff] %v412
        %451 = vst [vmem:[%s421 + $0xe8] sm:$0xff] %v413
        %452 = vst [vmem:[%s421 + $0xf0] sm:$0xff] %v414
        %453 = vst [vmem:[%s421 + $0xf8] sm:$0xff] %v415
      $region40: #{basic_block_forward.4} parent=35 // pred_fallthru
        _
      %s454 = smul.u32 %s22, 8
      %v455 = vlaneseq
      %v456 = vshrl.u32 %v455, 7
      %v457 = vadd.s32 %v456, 8
      %v458 = vadd.s32 %v456, 16
      %v459 = vadd.s32 %v456, 24
      %v460 = vadd.s32 %v456, 32
      %v461 = vadd.s32 %v456, 40
      %v462 = vadd.s32 %v456, 48
      %v463 = vadd.s32 %v456, 56
      %v464 = vadd.s32 %v456, 64
      %v465 = vadd.s32 %v456, 72
      %v466 = vadd.s32 %v456, 80
      %v467 = vadd.s32 %v456, 88
      %v468 = vadd.s32 %v456, 96
      %v469 = vadd.s32 %v456, 104
      %v470 = vadd.s32 %v456, 112
      %v471 = vadd.s32 %v456, 120
      %vm472 = vcmp.lt.s32.totalorder %v456, 0
      %v473 = vsub.s32 0, %v456
      %v474 = vsel %vm472, %v473, %v456
      %v475 = vshrl.u32 %v474, 4
      %v476 = vand.u32 %v474, 15
      %v477 = vsub.s32 0, %v476
      %v478 = vsel %vm472, %v477, %v476
      %vm479 = vcmp.lt.s32.totalorder %v457, 0
      %v480 = vsub.s32 0, %v457
      %v481 = vsel %vm479, %v480, %v457
      %v482 = vshrl.u32 %v481, 4
      %v483 = vand.u32 %v481, 15
      %v484 = vsub.s32 0, %v483
      %v485 = vsel %vm479, %v484, %v483
      %vm486 = vcmp.lt.s32.totalorder %v458, 0
      %v487 = vsub.s32 0, %v458
      %v488 = vsel %vm486, %v487, %v458
      %v489 = vshrl.u32 %v488, 4
      %v490 = vand.u32 %v488, 15
      %v491 = vsub.s32 0, %v490
      %v492 = vsel %vm486, %v491, %v490
      %vm493 = vcmp.lt.s32.totalorder %v459, 0
      %v494 = vsub.s32 0, %v459
      %v495 = vsel %vm493, %v494, %v459
      %v496 = vshrl.u32 %v495, 4
      %v497 = vand.u32 %v495, 15
      %v498 = vsub.s32 0, %v497
      %v499 = vsel %vm493, %v498, %v497
      %vm500 = vcmp.lt.s32.totalorder %v460, 0
      %v501 = vsub.s32 0, %v460
      %v502 = vsel %vm500, %v501, %v460
      %v503 = vshrl.u32 %v502, 4
      %v504 = vand.u32 %v502, 15
      %v505 = vsub.s32 0, %v504
      %v506 = vsel %vm500, %v505, %v504
      %vm507 = vcmp.lt.s32.totalorder %v461, 0
      %v508 = vsub.s32 0, %v461
      %v509 = vsel %vm507, %v508, %v461
      %v510 = vshrl.u32 %v509, 4
      %v511 = vand.u32 %v509, 15
      %v512 = vsub.s32 0, %v511
      %v513 = vsel %vm507, %v512, %v511
      %vm514 = vcmp.lt.s32.totalorder %v462, 0
      %v515 = vsub.s32 0, %v462
      %v516 = vsel %vm514, %v515, %v462
      %v517 = vshrl.u32 %v516, 4
      %v518 = vand.u32 %v516, 15
      %v519 = vsub.s32 0, %v518
      %v520 = vsel %vm514, %v519, %v518
      %vm521 = vcmp.lt.s32.totalorder %v463, 0
      %v522 = vsub.s32 0, %v463
      %v523 = vsel %vm521, %v522, %v463
      %v524 = vshrl.u32 %v523, 4
      %v525 = vand.u32 %v523, 15
      %v526 = vsub.s32 0, %v525
      %v527 = vsel %vm521, %v526, %v525
      %vm528 = vcmp.lt.s32.totalorder %v464, 0
      %v529 = vsub.s32 0, %v464
      %v530 = vsel %vm528, %v529, %v464
      %v531 = vshrl.u32 %v530, 4
      %v532 = vand.u32 %v530, 15
      %v533 = vsub.s32 0, %v532
      %v534 = vsel %vm528, %v533, %v532
      %vm535 = vcmp.lt.s32.totalorder %v465, 0
      %v536 = vsub.s32 0, %v465
      %v537 = vsel %vm535, %v536, %v465
      %v538 = vshrl.u32 %v537, 4
      %v539 = vand.u32 %v537, 15
      %v540 = vsub.s32 0, %v539
      %v541 = vsel %vm535, %v540, %v539
      %vm542 = vcmp.lt.s32.totalorder %v466, 0
      %v543 = vsub.s32 0, %v466
      %v544 = vsel %vm542, %v543, %v466
      %v545 = vshrl.u32 %v544, 4
      %v546 = vand.u32 %v544, 15
      %v547 = vsub.s32 0, %v546
      %v548 = vsel %vm542, %v547, %v546
      %vm549 = vcmp.lt.s32.totalorder %v467, 0
      %v550 = vsub.s32 0, %v467
      %v551 = vsel %vm549, %v550, %v467
      %v552 = vshrl.u32 %v551, 4
      %v553 = vand.u32 %v551, 15
      %v554 = vsub.s32 0, %v553
      %v555 = vsel %vm549, %v554, %v553
      %vm556 = vcmp.lt.s32.totalorder %v468, 0
      %v557 = vsub.s32 0, %v468
      %v558 = vsel %vm556, %v557, %v468
      %v559 = vshrl.u32 %v558, 4
      %v560 = vand.u32 %v558, 15
      %v561 = vsub.s32 0, %v560
      %v562 = vsel %vm556, %v561, %v560
      %vm563 = vcmp.lt.s32.totalorder %v469, 0
      %v564 = vsub.s32 0, %v469
      %v565 = vsel %vm563, %v564, %v469
      %v566 = vshrl.u32 %v565, 4
      %v567 = vand.u32 %v565, 15
      %v568 = vsub.s32 0, %v567
      %v569 = vsel %vm563, %v568, %v567
      %vm570 = vcmp.lt.s32.totalorder %v470, 0
      %v571 = vsub.s32 0, %v470
      %v572 = vsel %vm570, %v571, %v470
      %v573 = vshrl.u32 %v572, 4
      %v574 = vand.u32 %v572, 15
      %v575 = vsub.s32 0, %v574
      %v576 = vsel %vm570, %v575, %v574
      %vm577 = vcmp.lt.s32.totalorder %v471, 0
      %v578 = vsub.s32 0, %v471
      %v579 = vsel %vm577, %v578, %v471
      %v580 = vshrl.u32 %v579, 4
      %v581 = vand.u32 %v579, 15
      %v582 = vsub.s32 0, %v581
      %v583 = vsel %vm577, %v582, %v581
      %vm584 = vcmp.ne.s32.totalorder %v478, 0
      %vm585 = vcmp.ne.s32.totalorder %v485, 0
      %vm586 = vcmp.ne.s32.totalorder %v492, 0
      %vm587 = vcmp.ne.s32.totalorder %v499, 0
      %vm588 = vcmp.ne.s32.totalorder %v506, 0
      %vm589 = vcmp.ne.s32.totalorder %v513, 0
      %vm590 = vcmp.ne.s32.totalorder %v520, 0
      %vm591 = vcmp.ne.s32.totalorder %v527, 0
      %vm592 = vcmp.ne.s32.totalorder %v534, 0
      %vm593 = vcmp.ne.s32.totalorder %v541, 0
      %vm594 = vcmp.ne.s32.totalorder %v548, 0
      %vm595 = vcmp.ne.s32.totalorder %v555, 0
      %vm596 = vcmp.ne.s32.totalorder %v562, 0
      %vm597 = vcmp.ne.s32.totalorder %v569, 0
      %vm598 = vcmp.ne.s32.totalorder %v576, 0
      %vm599 = vcmp.ne.s32.totalorder %v583, 0
      %vm600 = vcmp.lt.s32.totalorder %v478, 0
      %vm601 = vcmp.lt.s32.totalorder %v485, 0
      %vm602 = vcmp.lt.s32.totalorder %v492, 0
      %vm603 = vcmp.lt.s32.totalorder %v499, 0
      %vm604 = vcmp.lt.s32.totalorder %v506, 0
      %vm605 = vcmp.lt.s32.totalorder %v513, 0
      %vm606 = vcmp.lt.s32.totalorder %v520, 0
      %vm607 = vcmp.lt.s32.totalorder %v527, 0
      %vm608 = vcmp.lt.s32.totalorder %v534, 0
      %vm609 = vcmp.lt.s32.totalorder %v541, 0
      %vm610 = vcmp.lt.s32.totalorder %v548, 0
      %vm611 = vcmp.lt.s32.totalorder %v555, 0
      %vm612 = vcmp.lt.s32.totalorder %v562, 0
      %vm613 = vcmp.lt.s32.totalorder %v569, 0
      %vm614 = vcmp.lt.s32.totalorder %v576, 0
      %vm615 = vcmp.lt.s32.totalorder %v583, 0
      %vm616 = vmand %vm600, %vm584
      %vm617 = vmand %vm601, %vm585
      %vm618 = vmand %vm602, %vm586
      %vm619 = vmand %vm603, %vm587
      %vm620 = vmand %vm604, %vm588
      %vm621 = vmand %vm605, %vm589
      %vm622 = vmand %vm606, %vm590
      %vm623 = vmand %vm607, %vm591
      %vm624 = vmand %vm608, %vm592
      %vm625 = vmand %vm609, %vm593
      %vm626 = vmand %vm610, %vm594
      %vm627 = vmand %vm611, %vm595
      %vm628 = vmand %vm612, %vm596
      %vm629 = vmand %vm613, %vm597
      %vm630 = vmand %vm614, %vm598
      %vm631 = vmand %vm615, %vm599
      %v632 = vadd.s32 %v478, 16
      %v633 = vadd.s32 %v485, 16
      %v634 = vadd.s32 %v492, 16
      %v635 = vadd.s32 %v499, 16
      %v636 = vadd.s32 %v506, 16
      %v637 = vadd.s32 %v513, 16
      %v638 = vadd.s32 %v520, 16
      %v639 = vadd.s32 %v527, 16
      %v640 = vadd.s32 %v534, 16
      %v641 = vadd.s32 %v541, 16
      %v642 = vadd.s32 %v548, 16
      %v643 = vadd.s32 %v555, 16
      %v644 = vadd.s32 %v562, 16
      %v645 = vadd.s32 %v569, 16
      %v646 = vadd.s32 %v576, 16
      %v647 = vadd.s32 %v583, 16
      %v648 = vsel %vm616, %v632, %v478
      %v649 = vsel %vm617, %v633, %v485
      %v650 = vsel %vm618, %v634, %v492
      %v651 = vsel %vm619, %v635, %v499
      %v652 = vsel %vm620, %v636, %v506
      %v653 = vsel %vm621, %v637, %v513
      %v654 = vsel %vm622, %v638, %v520
      %v655 = vsel %vm623, %v639, %v527
      %v656 = vsel %vm624, %v640, %v534
      %v657 = vsel %vm625, %v641, %v541
      %v658 = vsel %vm626, %v642, %v548
      %v659 = vsel %vm627, %v643, %v555
      %v660 = vsel %vm628, %v644, %v562
      %v661 = vsel %vm629, %v645, %v569
      %v662 = vsel %vm630, %v646, %v576
      %v663 = vsel %vm631, %v647, %v583
      %s664 = smul.u32 %s454, 16
      %s665 = scalar_lea.vmem [#allocation2], %s664
      %v666 = vld [vmem:[%s665] sm:$0xff]
      %v667 = vld [vmem:[%s665 + $0x8] sm:$0xff]
      %v668 = vld [vmem:[%s665 + $0x10] sm:$0xff]
      %v669 = vld [vmem:[%s665 + $0x18] sm:$0xff]
      %v670 = vld [vmem:[%s665 + $0x20] sm:$0xff]
      %v671 = vld [vmem:[%s665 + $0x28] sm:$0xff]
      %v672 = vld [vmem:[%s665 + $0x30] sm:$0xff]
      %v673 = vld [vmem:[%s665 + $0x38] sm:$0xff]
      %v674 = vld [vmem:[%s665 + $0x40] sm:$0xff]
      %v675 = vld [vmem:[%s665 + $0x48] sm:$0xff]
      %v676 = vld [vmem:[%s665 + $0x50] sm:$0xff]
      %v677 = vld [vmem:[%s665 + $0x58] sm:$0xff]
      %v678 = vld [vmem:[%s665 + $0x60] sm:$0xff]
      %v679 = vld [vmem:[%s665 + $0x68] sm:$0xff]
      %v680 = vld [vmem:[%s665 + $0x70] sm:$0xff]
      %v681 = vld [vmem:[%s665 + $0x78] sm:$0xff]
      %v682 = vrot.slane %v666, 7
      %v683 = vrot.slane %v667, 7
      %v684 = vrot.slane %v668, 7
      %v685 = vrot.slane %v669, 7
      %v686 = vrot.slane %v670, 7
      %v687 = vrot.slane %v671, 7
      %v688 = vrot.slane %v672, 7
      %v689 = vrot.slane %v673, 7
      %v690 = vrot.slane %v674, 7
      %v691 = vrot.slane %v675, 7
      %v692 = vrot.slane %v676, 7
      %v693 = vrot.slane %v677, 7
      %v694 = vrot.slane %v678, 7
      %v695 = vrot.slane %v679, 7
      %v696 = vrot.slane %v680, 7
      %v697 = vrot.slane %v681, 7
      %vm698 = vcmp.lt.s32.totalorder %v456, 1
      %v699 = vsel %vm698, %v696, %v697
      %v700 = vsel %vm698, %v695, %v696
      %v701 = vsel %vm698, %v694, %v695
      %v702 = vsel %vm698, %v693, %v694
      %v703 = vsel %vm698, %v692, %v693
      %v704 = vsel %vm698, %v691, %v692
      %v705 = vsel %vm698, %v690, %v691
      %v706 = vsel %vm698, %v689, %v690
      %v707 = vsel %vm698, %v688, %v689
      %v708 = vsel %vm698, %v687, %v688
      %v709 = vsel %vm698, %v686, %v687
      %v710 = vsel %vm698, %v685, %v686
      %v711 = vsel %vm698, %v684, %v685
      %v712 = vsel %vm698, %v683, %v684
      %v713 = vsel %vm698, %v682, %v683
      %v714 = vsel %vm698, %v697, %v682
      %vm715 = vcmp.ge.s32.totalorder %v648, 1
      %vm716 = vcmp.ge.s32.totalorder %v649, 1
      %vm717 = vcmp.ge.s32.totalorder %v650, 1
      %vm718 = vcmp.ge.s32.totalorder %v651, 1
      %vm719 = vcmp.ge.s32.totalorder %v652, 1
      %vm720 = vcmp.ge.s32.totalorder %v653, 1
      %vm721 = vcmp.ge.s32.totalorder %v654, 1
      %vm722 = vcmp.ge.s32.totalorder %v655, 1
      %vm723 = vcmp.ge.s32.totalorder %v656, 1
      %vm724 = vcmp.ge.s32.totalorder %v657, 1
      %vm725 = vcmp.ge.s32.totalorder %v658, 1
      %vm726 = vcmp.ge.s32.totalorder %v659, 1
      %vm727 = vcmp.ge.s32.totalorder %v660, 1
      %vm728 = vcmp.ge.s32.totalorder %v661, 1
      %vm729 = vcmp.ge.s32.totalorder %v662, 1
      %vm730 = vcmp.ge.s32.totalorder %v663, 1
      %v731 = vsel %vm715, 1, 0
      %v732 = vsel %vm716, 1, 0
      %v733 = vsel %vm717, 1, 0
      %v734 = vsel %vm718, 1, 0
      %v735 = vsel %vm719, 1, 0
      %v736 = vsel %vm720, 1, 0
      %v737 = vsel %vm721, 1, 0
      %v738 = vsel %vm722, 1, 0
      %v739 = vsel %vm723, 1, 0
      %v740 = vsel %vm724, 1, 0
      %v741 = vsel %vm725, 1, 0
      %v742 = vsel %vm726, 1, 0
      %v743 = vsel %vm727, 1, 0
      %v744 = vsel %vm728, 1, 0
      %v745 = vsel %vm729, 1, 0
      %v746 = vsel %vm730, 1, 0
      %vm747 = vcmp.eq.s32.totalorder %v731, 1
      %vm748 = vcmp.eq.s32.totalorder %v732, 1
      %vm749 = vcmp.eq.s32.totalorder %v733, 1
      %vm750 = vcmp.eq.s32.totalorder %v734, 1
      %vm751 = vcmp.eq.s32.totalorder %v735, 1
      %vm752 = vcmp.eq.s32.totalorder %v736, 1
      %vm753 = vcmp.eq.s32.totalorder %v737, 1
      %vm754 = vcmp.eq.s32.totalorder %v738, 1
      %vm755 = vcmp.eq.s32.totalorder %v739, 1
      %vm756 = vcmp.eq.s32.totalorder %v740, 1
      %vm757 = vcmp.eq.s32.totalorder %v741, 1
      %vm758 = vcmp.eq.s32.totalorder %v742, 1
      %vm759 = vcmp.eq.s32.totalorder %v743, 1
      %vm760 = vcmp.eq.s32.totalorder %v744, 1
      %vm761 = vcmp.eq.s32.totalorder %v745, 1
      %vm762 = vcmp.eq.s32.totalorder %v746, 1
      %v763 = vsel %vm747, %v714, 0.0
      %v764 = vsel %vm748, %v713, 0.0
      %v765 = vsel %vm749, %v712, 0.0
      %v766 = vsel %vm750, %v711, 0.0
      %v767 = vsel %vm751, %v710, 0.0
      %v768 = vsel %vm752, %v709, 0.0
      %v769 = vsel %vm753, %v708, 0.0
      %v770 = vsel %vm754, %v707, 0.0
      %v771 = vsel %vm755, %v706, 0.0
      %v772 = vsel %vm756, %v705, 0.0
      %v773 = vsel %vm757, %v704, 0.0
      %v774 = vsel %vm758, %v703, 0.0
      %v775 = vsel %vm759, %v702, 0.0
      %v776 = vsel %vm760, %v701, 0.0
      %v777 = vsel %vm761, %v700, 0.0
      %v778 = vsel %vm762, %v699, 0.0
      %v779 = vpack.c.bf16 %v764, %v763
      %v780 = vpack.c.bf16 %v766, %v765
      %v781 = vpack.c.bf16 %v768, %v767
      %v782 = vpack.c.bf16 %v770, %v769
      %v783 = vpack.c.bf16 %v772, %v771
      %v784 = vpack.c.bf16 %v774, %v773
      %v785 = vpack.c.bf16 %v776, %v775
      %v786 = vpack.c.bf16 %v778, %v777
      %v787 = vld [vmem:[%s1] sm:$0xf]
      %v788 = vld [vmem:[%s1 + $0x4] sm:$0xf]
      %v789 = vld [vmem:[%s1 + $0x8] sm:$0xf]
      %v790 = vld [vmem:[%s1 + $0xc] sm:$0xf]
      %v791 = vld [vmem:[%s1 + $0x10] sm:$0xf]
      %v792 = vld [vmem:[%s1 + $0x14] sm:$0xf]
      %v793 = vld [vmem:[%s1 + $0x18] sm:$0xf]
      %v794 = vld [vmem:[%s1 + $0x1c] sm:$0xf]
      %v795 = vld [vmem:[%s1 + $0x20] sm:$0xf]
      %v796 = vld [vmem:[%s1 + $0x24] sm:$0xf]
      %v797 = vld [vmem:[%s1 + $0x28] sm:$0xf]
      %v798 = vld [vmem:[%s1 + $0x2c] sm:$0xf]
      %v799 = vld [vmem:[%s1 + $0x30] sm:$0xf]
      %v800 = vld [vmem:[%s1 + $0x34] sm:$0xf]
      %v801 = vld [vmem:[%s1 + $0x38] sm:$0xf]
      %v802 = vld [vmem:[%s1 + $0x3c] sm:$0xf]
      %v803 = vpack.c.bf16 %v667, %v666
      %v804 = vpack.c.bf16 %v669, %v668
      %v805 = vpack.c.bf16 %v671, %v670
      %v806 = vpack.c.bf16 %v673, %v672
      %v807 = vpack.c.bf16 %v675, %v674
      %v808 = vpack.c.bf16 %v677, %v676
      %v809 = vpack.c.bf16 %v679, %v678
      %v810 = vpack.c.bf16 %v681, %v680
      %s811 = scalar_lea.vmem %s1, 64
      %v812 = vld [vmem:[%s811] sm:$0xf]
      %v813 = vld [vmem:[%s811 + $0x4] sm:$0xf]
      %v814 = vld [vmem:[%s811 + $0x8] sm:$0xf]
      %v815 = vld [vmem:[%s811 + $0xc] sm:$0xf]
      %v816 = vld [vmem:[%s811 + $0x10] sm:$0xf]
      %v817 = vld [vmem:[%s811 + $0x14] sm:$0xf]
      %v818 = vld [vmem:[%s811 + $0x18] sm:$0xf]
      %v819 = vld [vmem:[%s811 + $0x1c] sm:$0xf]
      %v820 = vld [vmem:[%s811 + $0x20] sm:$0xf]
      %v821 = vld [vmem:[%s811 + $0x24] sm:$0xf]
      %v822 = vld [vmem:[%s811 + $0x28] sm:$0xf]
      %v823 = vld [vmem:[%s811 + $0x2c] sm:$0xf]
      %v824 = vld [vmem:[%s811 + $0x30] sm:$0xf]
      %v825 = vld [vmem:[%s811 + $0x34] sm:$0xf]
      %v826 = vld [vmem:[%s811 + $0x38] sm:$0xf]
      %v827 = vld [vmem:[%s811 + $0x3c] sm:$0xf]
      %v844 = vunpack.c.l.b16 %v812
      %v845 = vunpack.c.l.b16 %v813
      %v846 = vunpack.c.l.b16 %v814
      %v847 = vunpack.c.l.b16 %v815
      %v848 = vunpack.c.l.b16 %v816
      %v849 = vunpack.c.l.b16 %v817
      %v850 = vunpack.c.l.b16 %v818
      %v851 = vunpack.c.l.b16 %v819
      %v852 = vunpack.c.l.b16 %v820
      %v853 = vunpack.c.l.b16 %v821
      %v854 = vunpack.c.l.b16 %v822
      %v855 = vunpack.c.l.b16 %v823
      %v856 = vunpack.c.l.b16 %v824
      %v857 = vunpack.c.l.b16 %v825
      %v858 = vunpack.c.l.b16 %v826
      %v859 = vunpack.c.l.b16 %v827
      %v860 = vpack.c.b16 %v845, %v844
      %v861 = vpack.c.b16 %v847, %v846
      %v862 = vpack.c.b16 %v849, %v848
      %v863 = vpack.c.b16 %v851, %v850
      %v864 = vpack.c.b16 %v853, %v852
      %v865 = vpack.c.b16 %v855, %v854
      %v866 = vpack.c.b16 %v857, %v856
      %v867 = vpack.c.b16 %v859, %v858
      %876 = vmatprep.subr.bf16.mxu0 0
      %877 = vmatpush1.bf16.msra.mxu0 %v860
      %878 = vmatprep.subr.bf16.mxu0 0
      %879 = vmatpush1.bf16.msra.mxu0 %v861
      %880 = vmatprep.subr.bf16.mxu0 0
      %881 = vmatpush1.bf16.msra.mxu0 %v862
      %882 = vmatprep.subr.bf16.mxu0 0
      %883 = vmatpush1.bf16.msra.mxu0 %v863
      %884 = vmatprep.subr.bf16.mxu0 0
      %885 = vmatpush1.bf16.msra.mxu0 %v864
      %886 = vmatprep.subr.bf16.mxu0 0
      %887 = vmatpush1.bf16.msra.mxu0 %v865
      %888 = vmatprep.subr.bf16.mxu0 0
      %889 = vmatpush1.bf16.msra.mxu0 %v866
      %890 = vmatprep.subr.bf16.mxu0 0
      %891 = vmatpush1.bf16.msra.mxu0 %v867
      %892 = vmatprep.subr.bf16.mxu0 0
      %893 = vmatpush1.bf16.msra.mxu0 0
      %894 = vmatprep.subr.bf16.mxu0 0
      %895 = vmatpush1.bf16.msra.mxu0 0
      %896 = vmatprep.subr.bf16.mxu0 0
      %897 = vmatpush1.bf16.msra.mxu0 0
      %898 = vmatprep.subr.bf16.mxu0 0
      %899 = vmatpush1.bf16.msra.mxu0 0
      %900 = vmatprep.subr.bf16.mxu0 0
      %901 = vmatpush1.bf16.msra.mxu0 0
      %902 = vmatprep.subr.bf16.mxu0 0
      %903 = vmatpush1.bf16.msra.mxu0 0
      %904 = vmatprep.subr.bf16.mxu0 0
      %905 = vmatpush1.bf16.msra.mxu0 0
      %906 = vmatprep.subr.bf16.mxu0 0
      %907 = vmatpush1.bf16.msra.mxu0 0
      %908 = vmatprep.mubr.bf16.mxu0 0
      %909 = vmatmul.mubr.bf16.gmra.mrb[0].mxu0 %v803
      %v910 = vpop.f32.mrb[0].mxu0
      %v911 = vadd.f32 0.0, %v910
      %v912 = vpop.f32.mrb[0].mxu0
      %v913 = vpop.f32.mrb[0].mxu0
      %v914 = vadd.f32 0.0, %v913
      %v915 = vpop.f32.mrb[0].mxu0
      %916 = vmatprep.mubr.bf16.mxu0 0
      %917 = vmatmul.mubr.bf16.gmra.mrb[0].mxu0 %v804
      %v918 = vpop.f32.mrb[0].mxu0
      %v919 = vadd.f32 0.0, %v918
      %v920 = vpop.f32.mrb[0].mxu0
      %v921 = vpop.f32.mrb[0].mxu0
      %v922 = vadd.f32 0.0, %v921
      %v923 = vpop.f32.mrb[0].mxu0
      %924 = vmatprep.mubr.bf16.mxu0 0
      %925 = vmatmul.mubr.bf16.gmra.mrb[0].mxu0 %v805
      %v926 = vpop.f32.mrb[0].mxu0
      %v927 = vadd.f32 0.0, %v926
      %v928 = vpop.f32.mrb[0].mxu0
      %v929 = vpop.f32.mrb[0].mxu0
      %v930 = vadd.f32 0.0, %v929
      %v931 = vpop.f32.mrb[0].mxu0
      %932 = vmatprep.mubr.bf16.mxu0 0
      %933 = vmatmul.mubr.bf16.gmra.mrb[0].mxu0 %v806
      %v934 = vpop.f32.mrb[0].mxu0
      %v935 = vadd.f32 0.0, %v934
      %v936 = vpop.f32.mrb[0].mxu0
      %v937 = vpop.f32.mrb[0].mxu0
      %v938 = vadd.f32 0.0, %v937
      %v939 = vpop.f32.mrb[0].mxu0
      %940 = vmatprep.mubr.bf16.mxu0 0
      %941 = vmatmul.mubr.bf16.gmra.mrb[0].mxu0 %v807
      %v942 = vpop.f32.mrb[0].mxu0
      %v943 = vadd.f32 0.0, %v942
      %v944 = vpop.f32.mrb[0].mxu0
      %v945 = vpop.f32.mrb[0].mxu0
      %v946 = vadd.f32 0.0, %v945
      %v947 = vpop.f32.mrb[0].mxu0
      %948 = vmatprep.mubr.bf16.mxu0 0
      %949 = vmatmul.mubr.bf16.gmra.mrb[0].mxu0 %v808
      %v950 = vpop.f32.mrb[0].mxu0
      %v951 = vadd.f32 0.0, %v950
      %v952 = vpop.f32.mrb[0].mxu0
      %v953 = vpop.f32.mrb[0].mxu0
      %v954 = vadd.f32 0.0, %v953
      %v955 = vpop.f32.mrb[0].mxu0
      %956 = vmatprep.mubr.bf16.mxu0 0
      %957 = vmatmul.mubr.bf16.gmra.mrb[0].mxu0 %v809
      %v958 = vpop.f32.mrb[0].mxu0
      %v959 = vadd.f32 0.0, %v958
      %v960 = vpop.f32.mrb[0].mxu0
      %v961 = vpop.f32.mrb[0].mxu0
      %v962 = vadd.f32 0.0, %v961
      %v963 = vpop.f32.mrb[0].mxu0
      %964 = vmatprep.mubr.bf16.mxu0 0
      %965 = vmatmul.mubr.bf16.gmra.mrb[0].mxu0 %v810
      %v966 = vpop.f32.mrb[0].mxu0
      %v967 = vadd.f32 0.0, %v966
      %v968 = vpop.f32.mrb[0].mxu0
      %v969 = vpop.f32.mrb[0].mxu0
      %v970 = vadd.f32 0.0, %v969
      %v971 = vpop.f32.mrb[0].mxu0
      %972 = vdwg.mxu0
      %v989 = vunpack.c.l.b16 %v787
      %v990 = vunpack.c.l.b16 %v788
      %v991 = vunpack.c.l.b16 %v789
      %v992 = vunpack.c.l.b16 %v790
      %v993 = vunpack.c.l.b16 %v791
      %v994 = vunpack.c.l.b16 %v792
      %v995 = vunpack.c.l.b16 %v793
      %v996 = vunpack.c.l.b16 %v794
      %v997 = vunpack.c.l.b16 %v795
      %v998 = vunpack.c.l.b16 %v796
      %v999 = vunpack.c.l.b16 %v797
      %v1000 = vunpack.c.l.b16 %v798
      %v1001 = vunpack.c.l.b16 %v799
      %v1002 = vunpack.c.l.b16 %v800
      %v1003 = vunpack.c.l.b16 %v801
      %v1004 = vunpack.c.l.b16 %v802
      %v1005 = vpack.c.b16 %v990, %v989
      %v1006 = vpack.c.b16 %v992, %v991
      %v1007 = vpack.c.b16 %v994, %v993
      %v1008 = vpack.c.b16 %v996, %v995
      %v1009 = vpack.c.b16 %v998, %v997
      %v1010 = vpack.c.b16 %v1000, %v999
      %v1011 = vpack.c.b16 %v1002, %v1001
      %v1012 = vpack.c.b16 %v1004, %v1003
      %1021 = vmatprep.subr.bf16.mxu0 0
      %1022 = vmatpush1.bf16.msra.mxu0 %v1005
      %1023 = vmatprep.subr.bf16.mxu0 0
      %1024 = vmatpush1.bf16.msra.mxu0 %v1006
      %1025 = vmatprep.subr.bf16.mxu0 0
      %1026 = vmatpush1.bf16.msra.mxu0 %v1007
      %1027 = vmatprep.subr.bf16.mxu0 0
      %1028 = vmatpush1.bf16.msra.mxu0 %v1008
      %1029 = vmatprep.subr.bf16.mxu0 0
      %1030 = vmatpush1.bf16.msra.mxu0 %v1009
      %1031 = vmatprep.subr.bf16.mxu0 0
      %1032 = vmatpush1.bf16.msra.mxu0 %v1010
      %1033 = vmatprep.subr.bf16.mxu0 0
      %1034 = vmatpush1.bf16.msra.mxu0 %v1011
      %1035 = vmatprep.subr.bf16.mxu0 0
      %1036 = vmatpush1.bf16.msra.mxu0 %v1012
      %1037 = vmatprep.subr.bf16.mxu0 0
      %1038 = vmatpush1.bf16.msra.mxu0 0
      %1039 = vmatprep.subr.bf16.mxu0 0
      %1040 = vmatpush1.bf16.msra.mxu0 0
      %1041 = vmatprep.subr.bf16.mxu0 0
      %1042 = vmatpush1.bf16.msra.mxu0 0
      %1043 = vmatprep.subr.bf16.mxu0 0
      %1044 = vmatpush1.bf16.msra.mxu0 0
      %1045 = vmatprep.subr.bf16.mxu0 0
      %1046 = vmatpush1.bf16.msra.mxu0 0
      %1047 = vmatprep.subr.bf16.mxu0 0
      %1048 = vmatpush1.bf16.msra.mxu0 0
      %1049 = vmatprep.subr.bf16.mxu0 0
      %1050 = vmatpush1.bf16.msra.mxu0 0
      %1051 = vmatprep.subr.bf16.mxu0 0
      %1052 = vmatpush1.bf16.msra.mxu0 0
      %1053 = vmatprep.mubr.bf16.mxu0 0
      %1054 = vmatmul.mubr.bf16.gmra.mrb[0].mxu0 %v779
      %v1055 = vpop.f32.mrb[0].mxu0
      %v1056 = vadd.f32 %v911, %v1055
      %v1057 = vpop.f32.mrb[0].mxu0
      %v1058 = vpop.f32.mrb[0].mxu0
      %v1059 = vadd.f32 %v914, %v1058
      %v1060 = vpop.f32.mrb[0].mxu0
      %1061 = vmatprep.mubr.bf16.mxu0 0
      %1062 = vmatmul.mubr.bf16.gmra.mrb[0].mxu0 %v780
      %v1063 = vpop.f32.mrb[0].mxu0
      %v1064 = vadd.f32 %v919, %v1063
      %v1065 = vpop.f32.mrb[0].mxu0
      %v1066 = vpop.f32.mrb[0].mxu0
      %v1067 = vadd.f32 %v922, %v1066
      %v1068 = vpop.f32.mrb[0].mxu0
      %1069 = vmatprep.mubr.bf16.mxu0 0
      %1070 = vmatmul.mubr.bf16.gmra.mrb[0].mxu0 %v781
      %v1071 = vpop.f32.mrb[0].mxu0
      %v1072 = vadd.f32 %v927, %v1071
      %v1073 = vpop.f32.mrb[0].mxu0
      %v1074 = vpop.f32.mrb[0].mxu0
      %v1075 = vadd.f32 %v930, %v1074
      %v1076 = vpop.f32.mrb[0].mxu0
      %1077 = vmatprep.mubr.bf16.mxu0 0
      %1078 = vmatmul.mubr.bf16.gmra.mrb[0].mxu0 %v782
      %v1079 = vpop.f32.mrb[0].mxu0
      %v1080 = vadd.f32 %v935, %v1079
      %v1081 = vpop.f32.mrb[0].mxu0
      %v1082 = vpop.f32.mrb[0].mxu0
      %v1083 = vadd.f32 %v938, %v1082
      %v1084 = vpop.f32.mrb[0].mxu0
      %1085 = vmatprep.mubr.bf16.mxu0 0
      %1086 = vmatmul.mubr.bf16.gmra.mrb[0].mxu0 %v783
      %v1087 = vpop.f32.mrb[0].mxu0
      %v1088 = vadd.f32 %v943, %v1087
      %v1089 = vpop.f32.mrb[0].mxu0
      %v1090 = vpop.f32.mrb[0].mxu0
      %v1091 = vadd.f32 %v946, %v1090
      %v1092 = vpop.f32.mrb[0].mxu0
      %1093 = vmatprep.mubr.bf16.mxu0 0
      %1094 = vmatmul.mubr.bf16.gmra.mrb[0].mxu0 %v784
      %v1095 = vpop.f32.mrb[0].mxu0
      %v1096 = vadd.f32 %v951, %v1095
      %v1097 = vpop.f32.mrb[0].mxu0
      %v1098 = vpop.f32.mrb[0].mxu0
      %v1099 = vadd.f32 %v954, %v1098
      %v1100 = vpop.f32.mrb[0].mxu0
      %1101 = vmatprep.mubr.bf16.mxu0 0
      %1102 = vmatmul.mubr.bf16.gmra.mrb[0].mxu0 %v785
      %v1103 = vpop.f32.mrb[0].mxu0
      %v1104 = vadd.f32 %v959, %v1103
      %v1105 = vpop.f32.mrb[0].mxu0
      %v1106 = vpop.f32.mrb[0].mxu0
      %v1107 = vadd.f32 %v962, %v1106
      %v1108 = vpop.f32.mrb[0].mxu0
      %1109 = vmatprep.mubr.bf16.mxu0 0
      %1110 = vmatmul.mubr.bf16.gmra.mrb[0].mxu0 %v786
      %v1111 = vpop.f32.mrb[0].mxu0
      %v1112 = vadd.f32 %v967, %v1111
      %v1113 = vpop.f32.mrb[0].mxu0
      %v1114 = vpop.f32.mrb[0].mxu0
      %v1115 = vadd.f32 %v970, %v1114
      %v1116 = vpop.f32.mrb[0].mxu0
      %1117 = vdwg.mxu0
      %v1118 = vrot.slane %v666, 1
      %v1119 = vrot.slane %v667, 1
      %v1120 = vrot.slane %v668, 1
      %v1121 = vrot.slane %v669, 1
      %v1122 = vrot.slane %v670, 1
      %v1123 = vrot.slane %v671, 1
      %v1124 = vrot.slane %v672, 1
      %v1125 = vrot.slane %v673, 1
      %v1126 = vrot.slane %v674, 1
      %v1127 = vrot.slane %v675, 1
      %v1128 = vrot.slane %v676, 1
      %v1129 = vrot.slane %v677, 1
      %v1130 = vrot.slane %v678, 1
      %v1131 = vrot.slane %v679, 1
      %v1132 = vrot.slane %v680, 1
      %v1133 = vrot.slane %v681, 1
      %vm1134 = vcmp.lt.s32.totalorder %v456, 7
      %v1135 = vsel %vm1134, %v1132, %v1133
      %v1136 = vsel %vm1134, %v1131, %v1132
      %v1137 = vsel %vm1134, %v1130, %v1131
      %v1138 = vsel %vm1134, %v1129, %v1130
      %v1139 = vsel %vm1134, %v1128, %v1129
      %v1140 = vsel %vm1134, %v1127, %v1128
      %v1141 = vsel %vm1134, %v1126, %v1127
      %v1142 = vsel %vm1134, %v1125, %v1126
      %v1143 = vsel %vm1134, %v1124, %v1125
      %v1144 = vsel %vm1134, %v1123, %v1124
      %v1145 = vsel %vm1134, %v1122, %v1123
      %v1146 = vsel %vm1134, %v1121, %v1122
      %v1147 = vsel %vm1134, %v1120, %v1121
      %v1148 = vsel %vm1134, %v1119, %v1120
      %v1149 = vsel %vm1134, %v1118, %v1119
      %v1150 = vsel %vm1134, %v1133, %v1118
      %vm1151 = vcmp.le.s32.totalorder %v648, 14
      %vm1152 = vcmp.le.s32.totalorder %v649, 14
      %vm1153 = vcmp.le.s32.totalorder %v650, 14
      %vm1154 = vcmp.le.s32.totalorder %v651, 14
      %vm1155 = vcmp.le.s32.totalorder %v652, 14
      %vm1156 = vcmp.le.s32.totalorder %v653, 14
      %vm1157 = vcmp.le.s32.totalorder %v654, 14
      %vm1158 = vcmp.le.s32.totalorder %v655, 14
      %vm1159 = vcmp.le.s32.totalorder %v656, 14
      %vm1160 = vcmp.le.s32.totalorder %v657, 14
      %vm1161 = vcmp.le.s32.totalorder %v658, 14
      %vm1162 = vcmp.le.s32.totalorder %v659, 14
      %vm1163 = vcmp.le.s32.totalorder %v660, 14
      %vm1164 = vcmp.le.s32.totalorder %v661, 14
      %vm1165 = vcmp.le.s32.totalorder %v662, 14
      %vm1166 = vcmp.le.s32.totalorder %v663, 14
      %v1167 = vsel %vm1151, 1, 0
      %v1168 = vsel %vm1152, 1, 0
      %v1169 = vsel %vm1153, 1, 0
      %v1170 = vsel %vm1154, 1, 0
      %v1171 = vsel %vm1155, 1, 0
      %v1172 = vsel %vm1156, 1, 0
      %v1173 = vsel %vm1157, 1, 0
      %v1174 = vsel %vm1158, 1, 0
      %v1175 = vsel %vm1159, 1, 0
      %v1176 = vsel %vm1160, 1, 0
      %v1177 = vsel %vm1161, 1, 0
      %v1178 = vsel %vm1162, 1, 0
      %v1179 = vsel %vm1163, 1, 0
      %v1180 = vsel %vm1164, 1, 0
      %v1181 = vsel %vm1165, 1, 0
      %v1182 = vsel %vm1166, 1, 0
      %vm1183 = vcmp.eq.s32.totalorder %v1167, 1
      %vm1184 = vcmp.eq.s32.totalorder %v1168, 1
      %vm1185 = vcmp.eq.s32.totalorder %v1169, 1
      %vm1186 = vcmp.eq.s32.totalorder %v1170, 1
      %vm1187 = vcmp.eq.s32.totalorder %v1171, 1
      %vm1188 = vcmp.eq.s32.totalorder %v1172, 1
      %vm1189 = vcmp.eq.s32.totalorder %v1173, 1
      %vm1190 = vcmp.eq.s32.totalorder %v1174, 1
      %vm1191 = vcmp.eq.s32.totalorder %v1175, 1
      %vm1192 = vcmp.eq.s32.totalorder %v1176, 1
      %vm1193 = vcmp.eq.s32.totalorder %v1177, 1
      %vm1194 = vcmp.eq.s32.totalorder %v1178, 1
      %vm1195 = vcmp.eq.s32.totalorder %v1179, 1
      %vm1196 = vcmp.eq.s32.totalorder %v1180, 1
      %vm1197 = vcmp.eq.s32.totalorder %v1181, 1
      %vm1198 = vcmp.eq.s32.totalorder %v1182, 1
      %v1199 = vsel %vm1183, %v1149, 0.0
      %v1200 = vsel %vm1184, %v1148, 0.0
      %v1201 = vsel %vm1185, %v1147, 0.0
      %v1202 = vsel %vm1186, %v1146, 0.0
      %v1203 = vsel %vm1187, %v1145, 0.0
      %v1204 = vsel %vm1188, %v1144, 0.0
      %v1205 = vsel %vm1189, %v1143, 0.0
      %v1206 = vsel %vm1190, %v1142, 0.0
      %v1207 = vsel %vm1191, %v1141, 0.0
      %v1208 = vsel %vm1192, %v1140, 0.0
      %v1209 = vsel %vm1193, %v1139, 0.0
      %v1210 = vsel %vm1194, %v1138, 0.0
      %v1211 = vsel %vm1195, %v1137, 0.0
      %v1212 = vsel %vm1196, %v1136, 0.0
      %v1213 = vsel %vm1197, %v1135, 0.0
      %v1214 = vsel %vm1198, %v1150, 0.0
      %v1215 = vpack.c.bf16 %v1200, %v1199
      %v1216 = vpack.c.bf16 %v1202, %v1201
      %v1217 = vpack.c.bf16 %v1204, %v1203
      %v1218 = vpack.c.bf16 %v1206, %v1205
      %v1219 = vpack.c.bf16 %v1208, %v1207
      %v1220 = vpack.c.bf16 %v1210, %v1209
      %v1221 = vpack.c.bf16 %v1212, %v1211
      %v1222 = vpack.c.bf16 %v1214, %v1213
      %s1223 = scalar_lea.vmem %s1, 128
      %v1224 = vld [vmem:[%s1223] sm:$0xf]
      %v1225 = vld [vmem:[%s1223 + $0x4] sm:$0xf]
      %v1226 = vld [vmem:[%s1223 + $0x8] sm:$0xf]
      %v1227 = vld [vmem:[%s1223 + $0xc] sm:$0xf]
      %v1228 = vld [vmem:[%s1223 + $0x10] sm:$0xf]
      %v1229 = vld [vmem:[%s1223 + $0x14] sm:$0xf]
      %v1230 = vld [vmem:[%s1223 + $0x18] sm:$0xf]
      %v1231 = vld [vmem:[%s1223 + $0x1c] sm:$0xf]
      %v1232 = vld [vmem:[%s1223 + $0x20] sm:$0xf]
      %v1233 = vld [vmem:[%s1223 + $0x24] sm:$0xf]
      %v1234 = vld [vmem:[%s1223 + $0x28] sm:$0xf]
      %v1235 = vld [vmem:[%s1223 + $0x2c] sm:$0xf]
      %v1236 = vld [vmem:[%s1223 + $0x30] sm:$0xf]
      %v1237 = vld [vmem:[%s1223 + $0x34] sm:$0xf]
      %v1238 = vld [vmem:[%s1223 + $0x38] sm:$0xf]
      %v1239 = vld [vmem:[%s1223 + $0x3c] sm:$0xf]
      %v1256 = vunpack.c.l.b16 %v1224
      %v1257 = vunpack.c.l.b16 %v1225
      %v1258 = vunpack.c.l.b16 %v1226
      %v1259 = vunpack.c.l.b16 %v1227
      %v1260 = vunpack.c.l.b16 %v1228
      %v1261 = vunpack.c.l.b16 %v1229
      %v1262 = vunpack.c.l.b16 %v1230
      %v1263 = vunpack.c.l.b16 %v1231
      %v1264 = vunpack.c.l.b16 %v1232
      %v1265 = vunpack.c.l.b16 %v1233
      %v1266 = vunpack.c.l.b16 %v1234
      %v1267 = vunpack.c.l.b16 %v1235
      %v1268 = vunpack.c.l.b16 %v1236
      %v1269 = vunpack.c.l.b16 %v1237
      %v1270 = vunpack.c.l.b16 %v1238
      %v1271 = vunpack.c.l.b16 %v1239
      %v1272 = vpack.c.b16 %v1257, %v1256
      %v1273 = vpack.c.b16 %v1259, %v1258
      %v1274 = vpack.c.b16 %v1261, %v1260
      %v1275 = vpack.c.b16 %v1263, %v1262
      %v1276 = vpack.c.b16 %v1265, %v1264
      %v1277 = vpack.c.b16 %v1267, %v1266
      %v1278 = vpack.c.b16 %v1269, %v1268
      %v1279 = vpack.c.b16 %v1271, %v1270
      %1288 = vmatprep.subr.bf16.mxu0 0
      %1289 = vmatpush1.bf16.msra.mxu0 %v1272
      %1290 = vmatprep.subr.bf16.mxu0 0
      %1291 = vmatpush1.bf16.msra.mxu0 %v1273
      %1292 = vmatprep.subr.bf16.mxu0 0
      %1293 = vmatpush1.bf16.msra.mxu0 %v1274
      %1294 = vmatprep.subr.bf16.mxu0 0
      %1295 = vmatpush1.bf16.msra.mxu0 %v1275
      %1296 = vmatprep.subr.bf16.mxu0 0
      %1297 = vmatpush1.bf16.msra.mxu0 %v1276
      %1298 = vmatprep.subr.bf16.mxu0 0
      %1299 = vmatpush1.bf16.msra.mxu0 %v1277
      %1300 = vmatprep.subr.bf16.mxu0 0
      %1301 = vmatpush1.bf16.msra.mxu0 %v1278
      %1302 = vmatprep.subr.bf16.mxu0 0
      %1303 = vmatpush1.bf16.msra.mxu0 %v1279
      %1304 = vmatprep.subr.bf16.mxu0 0
      %1305 = vmatpush1.bf16.msra.mxu0 0
      %1306 = vmatprep.subr.bf16.mxu0 0
      %1307 = vmatpush1.bf16.msra.mxu0 0
      %1308 = vmatprep.subr.bf16.mxu0 0
      %1309 = vmatpush1.bf16.msra.mxu0 0
      %1310 = vmatprep.subr.bf16.mxu0 0
      %1311 = vmatpush1.bf16.msra.mxu0 0
      %1312 = vmatprep.subr.bf16.mxu0 0
      %1313 = vmatpush1.bf16.msra.mxu0 0
      %1314 = vmatprep.subr.bf16.mxu0 0
      %1315 = vmatpush1.bf16.msra.mxu0 0
      %1316 = vmatprep.subr.bf16.mxu0 0
      %1317 = vmatpush1.bf16.msra.mxu0 0
      %1318 = vmatprep.subr.bf16.mxu0 0
      %1319 = vmatpush1.bf16.msra.mxu0 0
      %1320 = vmatprep.mubr.bf16.mxu0 0
      %1321 = vmatmul.mubr.bf16.gmra.mrb[0].mxu0 %v1215
      %v1322 = vpop.f32.mrb[0].mxu0
      %v1323 = vadd.f32 0.0, %v1322
      %v1324 = vpop.f32.mrb[0].mxu0
      %v1325 = vpop.f32.mrb[0].mxu0
      %v1326 = vadd.f32 0.0, %v1325
      %v1327 = vpop.f32.mrb[0].mxu0
      %1328 = vmatprep.mubr.bf16.mxu0 0
      %1329 = vmatmul.mubr.bf16.gmra.mrb[0].mxu0 %v1216
      %v1330 = vpop.f32.mrb[0].mxu0
      %v1331 = vadd.f32 0.0, %v1330
      %v1332 = vpop.f32.mrb[0].mxu0
      %v1333 = vpop.f32.mrb[0].mxu0
      %v1334 = vadd.f32 0.0, %v1333
      %v1335 = vpop.f32.mrb[0].mxu0
      %1336 = vmatprep.mubr.bf16.mxu0 0
      %1337 = vmatmul.mubr.bf16.gmra.mrb[0].mxu0 %v1217
      %v1338 = vpop.f32.mrb[0].mxu0
      %v1339 = vadd.f32 0.0, %v1338
      %v1340 = vpop.f32.mrb[0].mxu0
      %v1341 = vpop.f32.mrb[0].mxu0
      %v1342 = vadd.f32 0.0, %v1341
      %v1343 = vpop.f32.mrb[0].mxu0
      %1344 = vmatprep.mubr.bf16.mxu0 0
      %1345 = vmatmul.mubr.bf16.gmra.mrb[0].mxu0 %v1218
      %v1346 = vpop.f32.mrb[0].mxu0
      %v1347 = vadd.f32 0.0, %v1346
      %v1348 = vpop.f32.mrb[0].mxu0
      %v1349 = vpop.f32.mrb[0].mxu0
      %v1350 = vadd.f32 0.0, %v1349
      %v1351 = vpop.f32.mrb[0].mxu0
      %1352 = vmatprep.mubr.bf16.mxu0 0
      %1353 = vmatmul.mubr.bf16.gmra.mrb[0].mxu0 %v1219
      %v1354 = vpop.f32.mrb[0].mxu0
      %v1355 = vadd.f32 0.0, %v1354
      %v1356 = vpop.f32.mrb[0].mxu0
      %v1357 = vpop.f32.mrb[0].mxu0
      %v1358 = vadd.f32 0.0, %v1357
      %v1359 = vpop.f32.mrb[0].mxu0
      %1360 = vmatprep.mubr.bf16.mxu0 0
      %1361 = vmatmul.mubr.bf16.gmra.mrb[0].mxu0 %v1220
      %v1362 = vpop.f32.mrb[0].mxu0
      %v1363 = vadd.f32 0.0, %v1362
      %v1364 = vpop.f32.mrb[0].mxu0
      %v1365 = vpop.f32.mrb[0].mxu0
      %v1366 = vadd.f32 0.0, %v1365
      %v1367 = vpop.f32.mrb[0].mxu0
      %1368 = vmatprep.mubr.bf16.mxu0 0
      %1369 = vmatmul.mubr.bf16.gmra.mrb[0].mxu0 %v1221
      %v1370 = vpop.f32.mrb[0].mxu0
      %v1371 = vadd.f32 0.0, %v1370
      %v1372 = vpop.f32.mrb[0].mxu0
      %v1373 = vpop.f32.mrb[0].mxu0
      %v1374 = vadd.f32 0.0, %v1373
      %v1375 = vpop.f32.mrb[0].mxu0
      %1376 = vmatprep.mubr.bf16.mxu0 0
      %1377 = vmatmul.mubr.bf16.gmra.mrb[0].mxu0 %v1222
      %v1378 = vpop.f32.mrb[0].mxu0
      %v1379 = vadd.f32 0.0, %v1378
      %v1380 = vpop.f32.mrb[0].mxu0
      %v1381 = vpop.f32.mrb[0].mxu0
      %v1382 = vadd.f32 0.0, %v1381
      %v1383 = vpop.f32.mrb[0].mxu0
      %1384 = vdwg.mxu0
      %v1385 = vadd.f32 %v1056, %v1323
      %v1386 = vadd.f32 %v1059, %v1326
      %v1387 = vadd.f32 %v1064, %v1331
      %v1388 = vadd.f32 %v1067, %v1334
      %v1389 = vadd.f32 %v1072, %v1339
      %v1390 = vadd.f32 %v1075, %v1342
      %v1391 = vadd.f32 %v1080, %v1347
      %v1392 = vadd.f32 %v1083, %v1350
      %v1393 = vadd.f32 %v1088, %v1355
      %v1394 = vadd.f32 %v1091, %v1358
      %v1395 = vadd.f32 %v1096, %v1363
      %v1396 = vadd.f32 %v1099, %v1366
      %v1397 = vadd.f32 %v1104, %v1371
      %v1398 = vadd.f32 %v1107, %v1374
      %v1399 = vadd.f32 %v1112, %v1379
      %v1400 = vadd.f32 %v1115, %v1382
      %s1401 = sadd.s32 %s454, 1
      %s1402 = smul.u32 %s1401, 16
      %s1403 = scalar_lea.vmem [#allocation2], %s1402
      %v1404 = vld [vmem:[%s1403] sm:$0xff]
      %v1405 = vld [vmem:[%s1403 + $0x8] sm:$0xff]
      %v1406 = vld [vmem:[%s1403 + $0x10] sm:$0xff]
      %v1407 = vld [vmem:[%s1403 + $0x18] sm:$0xff]
      %v1408 = vld [vmem:[%s1403 + $0x20] sm:$0xff]
      %v1409 = vld [vmem:[%s1403 + $0x28] sm:$0xff]
      %v1410 = vld [vmem:[%s1403 + $0x30] sm:$0xff]
      %v1411 = vld [vmem:[%s1403 + $0x38] sm:$0xff]
      %v1412 = vld [vmem:[%s1403 + $0x40] sm:$0xff]
      %v1413 = vld [vmem:[%s1403 + $0x48] sm:$0xff]
      %v1414 = vld [vmem:[%s1403 + $0x50] sm:$0xff]
      %v1415 = vld [vmem:[%s1403 + $0x58] sm:$0xff]
      %v1416 = vld [vmem:[%s1403 + $0x60] sm:$0xff]
      %v1417 = vld [vmem:[%s1403 + $0x68] sm:$0xff]
      %v1418 = vld [vmem:[%s1403 + $0x70] sm:$0xff]
      %v1419 = vld [vmem:[%s1403 + $0x78] sm:$0xff]
      %v1420 = vrot.slane %v1404, 7
      %v1421 = vrot.slane %v1405, 7
      %v1422 = vrot.slane %v1406, 7
      %v1423 = vrot.slane %v1407, 7
      %v1424 = vrot.slane %v1408, 7
      %v1425 = vrot.slane %v1409, 7
      %v1426 = vrot.slane %v1410, 7
      %v1427 = vrot.slane %v1411, 7
      %v1428 = vrot.slane %v1412, 7
      %v1429 = vrot.slane %v1413, 7
      %v1430 = vrot.slane %v1414, 7
      %v1431 = vrot.slane %v1415, 7
      %v1432 = vrot.slane %v1416, 7
      %v1433 = vrot.slane %v1417, 7
      %v1434 = vrot.slane %v1418, 7
      %v1435 = vrot.slane %v1419, 7
      %v1436 = vsel %vm698, %v1434, %v1435
      %v1437 = vsel %vm698, %v1433, %v1434
      %v1438 = vsel %vm698, %v1432, %v1433
      %v1439 = vsel %vm698, %v1431, %v1432
      %v1440 = vsel %vm698, %v1430, %v1431
      %v1441 = vsel %vm698, %v1429, %v1430
      %v1442 = vsel %vm698, %v1428, %v1429
      %v1443 = vsel %vm698, %v1427, %v1428
      %v1444 = vsel %vm698, %v1426, %v1427
      %v1445 = vsel %vm698, %v1425, %v1426
      %v1446 = vsel %vm698, %v1424, %v1425
      %v1447 = vsel %vm698, %v1423, %v1424
      %v1448 = vsel %vm698, %v1422, %v1423
      %v1449 = vsel %vm698, %v1421, %v1422
      %v1450 = vsel %vm698, %v1420, %v1421
      %v1451 = vsel %vm698, %v1435, %v1420
      %v1452 = vsel %vm747, %v1451, 0.0
      %v1453 = vsel %vm748, %v1450, 0.0
      %v1454 = vsel %vm749, %v1449, 0.0
      %v1455 = vsel %vm750, %v1448, 0.0
      %v1456 = vsel %vm751, %v1447, 0.0
      %v1457 = vsel %vm752, %v1446, 0.0
      %v1458 = vsel %vm753, %v1445, 0.0
      %v1459 = vsel %vm754, %v1444, 0.0
      %v1460 = vsel %vm755, %v1443, 0.0
      %v1461 = vsel %vm756, %v1442, 0.0
      %v1462 = vsel %vm757, %v1441, 0.0
      %v1463 = vsel %vm758, %v1440, 0.0
      %v1464 = vsel %vm759, %v1439, 0.0
      %v1465 = vsel %vm760, %v1438, 0.0
      %v1466 = vsel %vm761, %v1437, 0.0
      %v1467 = vsel %vm762, %v1436, 0.0
      %v1468 = vpack.c.bf16 %v1453, %v1452
      %v1469 = vpack.c.bf16 %v1455, %v1454
      %v1470 = vpack.c.bf16 %v1457, %v1456
      %v1471 = vpack.c.bf16 %v1459, %v1458
      %v1472 = vpack.c.bf16 %v1461, %v1460
      %v1473 = vpack.c.bf16 %v1463, %v1462
      %v1474 = vpack.c.bf16 %v1465, %v1464
      %v1475 = vpack.c.bf16 %v1467, %v1466
      %s1476 = scalar_lea.vmem %s1, 192
      %v1477 = vld [vmem:[%s1476] sm:$0xf]
      %v1478 = vld [vmem:[%s1476 + $0x4] sm:$0xf]
      %v1479 = vld [vmem:[%s1476 + $0x8] sm:$0xf]
      %v1480 = vld [vmem:[%s1476 + $0xc] sm:$0xf]
      %v1481 = vld [vmem:[%s1476 + $0x10] sm:$0xf]
      %v1482 = vld [vmem:[%s1476 + $0x14] sm:$0xf]
      %v1483 = vld [vmem:[%s1476 + $0x18] sm:$0xf]
      %v1484 = vld [vmem:[%s1476 + $0x1c] sm:$0xf]
      %v1485 = vld [vmem:[%s1476 + $0x20] sm:$0xf]
      %v1486 = vld [vmem:[%s1476 + $0x24] sm:$0xf]
      %v1487 = vld [vmem:[%s1476 + $0x28] sm:$0xf]
      %v1488 = vld [vmem:[%s1476 + $0x2c] sm:$0xf]
      %v1489 = vld [vmem:[%s1476 + $0x30] sm:$0xf]
      %v1490 = vld [vmem:[%s1476 + $0x34] sm:$0xf]
      %v1491 = vld [vmem:[%s1476 + $0x38] sm:$0xf]
      %v1492 = vld [vmem:[%s1476 + $0x3c] sm:$0xf]
      %v1509 = vunpack.c.l.b16 %v1477
      %v1510 = vunpack.c.l.b16 %v1478
      %v1511 = vunpack.c.l.b16 %v1479
      %v1512 = vunpack.c.l.b16 %v1480
      %v1513 = vunpack.c.l.b16 %v1481
      %v1514 = vunpack.c.l.b16 %v1482
      %v1515 = vunpack.c.l.b16 %v1483
      %v1516 = vunpack.c.l.b16 %v1484
      %v1517 = vunpack.c.l.b16 %v1485
      %v1518 = vunpack.c.l.b16 %v1486
      %v1519 = vunpack.c.l.b16 %v1487
      %v1520 = vunpack.c.l.b16 %v1488
      %v1521 = vunpack.c.l.b16 %v1489
      %v1522 = vunpack.c.l.b16 %v1490
      %v1523 = vunpack.c.l.b16 %v1491
      %v1524 = vunpack.c.l.b16 %v1492
      %v1525 = vpack.c.b16 %v1510, %v1509
      %v1526 = vpack.c.b16 %v1512, %v1511
      %v1527 = vpack.c.b16 %v1514, %v1513
      %v1528 = vpack.c.b16 %v1516, %v1515
      %v1529 = vpack.c.b16 %v1518, %v1517
      %v1530 = vpack.c.b16 %v1520, %v1519
      %v1531 = vpack.c.b16 %v1522, %v1521
      %v1532 = vpack.c.b16 %v1524, %v1523
      %1541 = vmatprep.subr.bf16.mxu0 0
      %1542 = vmatpush1.bf16.msra.mxu0 %v1525
      %1543 = vmatprep.subr.bf16.mxu0 0
      %1544 = vmatpush1.bf16.msra.mxu0 %v1526
      %1545 = vmatprep.subr.bf16.mxu0 0
      %1546 = vmatpush1.bf16.msra.mxu0 %v1527
      %1547 = vmatprep.subr.bf16.mxu0 0
      %1548 = vmatpush1.bf16.msra.mxu0 %v1528
      %1549 = vmatprep.subr.bf16.mxu0 0
      %1550 = vmatpush1.bf16.msra.mxu0 %v1529
      %1551 = vmatprep.subr.bf16.mxu0 0
      %1552 = vmatpush1.bf16.msra.mxu0 %v1530
      %1553 = vmatprep.subr.bf16.mxu0 0
      %1554 = vmatpush1.bf16.msra.mxu0 %v1531
      %1555 = vmatprep.subr.bf16.mxu0 0
      %1556 = vmatpush1.bf16.msra.mxu0 %v1532
      %1557 = vmatprep.subr.bf16.mxu0 0
      %1558 = vmatpush1.bf16.msra.mxu0 0
      %1559 = vmatprep.subr.bf16.mxu0 0
      %1560 = vmatpush1.bf16.msra.mxu0 0
      %1561 = vmatprep.subr.bf16.mxu0 0
      %1562 = vmatpush1.bf16.msra.mxu0 0
      %1563 = vmatprep.subr.bf16.mxu0 0
      %1564 = vmatpush1.bf16.msra.mxu0 0
      %1565 = vmatprep.subr.bf16.mxu0 0
      %1566 = vmatpush1.bf16.msra.mxu0 0
      %1567 = vmatprep.subr.bf16.mxu0 0
      %1568 = vmatpush1.bf16.msra.mxu0 0
      %1569 = vmatprep.subr.bf16.mxu0 0
      %1570 = vmatpush1.bf16.msra.mxu0 0
      %1571 = vmatprep.subr.bf16.mxu0 0
      %1572 = vmatpush1.bf16.msra.mxu0 0
      %1573 = vmatprep.mubr.bf16.mxu0 0
      %1574 = vmatmul.mubr.bf16.gmra.mrb[0].mxu0 %v1468
      %v1575 = vpop.f32.mrb[0].mxu0
      %v1576 = vadd.f32 0.0, %v1575
      %v1577 = vpop.f32.mrb[0].mxu0
      %v1578 = vpop.f32.mrb[0].mxu0
      %v1579 = vadd.f32 0.0, %v1578
      %v1580 = vpop.f32.mrb[0].mxu0
      %1581 = vmatprep.mubr.bf16.mxu0 0
      %1582 = vmatmul.mubr.bf16.gmra.mrb[0].mxu0 %v1469
      %v1583 = vpop.f32.mrb[0].mxu0
      %v1584 = vadd.f32 0.0, %v1583
      %v1585 = vpop.f32.mrb[0].mxu0
      %v1586 = vpop.f32.mrb[0].mxu0
      %v1587 = vadd.f32 0.0, %v1586
      %v1588 = vpop.f32.mrb[0].mxu0
      %1589 = vmatprep.mubr.bf16.mxu0 0
      %1590 = vmatmul.mubr.bf16.gmra.mrb[0].mxu0 %v1470
      %v1591 = vpop.f32.mrb[0].mxu0
      %v1592 = vadd.f32 0.0, %v1591
      %v1593 = vpop.f32.mrb[0].mxu0
      %v1594 = vpop.f32.mrb[0].mxu0
      %v1595 = vadd.f32 0.0, %v1594
      %v1596 = vpop.f32.mrb[0].mxu0
      %1597 = vmatprep.mubr.bf16.mxu0 0
      %1598 = vmatmul.mubr.bf16.gmra.mrb[0].mxu0 %v1471
      %v1599 = vpop.f32.mrb[0].mxu0
      %v1600 = vadd.f32 0.0, %v1599
      %v1601 = vpop.f32.mrb[0].mxu0
      %v1602 = vpop.f32.mrb[0].mxu0
      %v1603 = vadd.f32 0.0, %v1602
      %v1604 = vpop.f32.mrb[0].mxu0
      %1605 = vmatprep.mubr.bf16.mxu0 0
      %1606 = vmatmul.mubr.bf16.gmra.mrb[0].mxu0 %v1472
      %v1607 = vpop.f32.mrb[0].mxu0
      %v1608 = vadd.f32 0.0, %v1607
      %v1609 = vpop.f32.mrb[0].mxu0
      %v1610 = vpop.f32.mrb[0].mxu0
      %v1611 = vadd.f32 0.0, %v1610
      %v1612 = vpop.f32.mrb[0].mxu0
      %1613 = vmatprep.mubr.bf16.mxu0 0
      %1614 = vmatmul.mubr.bf16.gmra.mrb[0].mxu0 %v1473
      %v1615 = vpop.f32.mrb[0].mxu0
      %v1616 = vadd.f32 0.0, %v1615
      %v1617 = vpop.f32.mrb[0].mxu0
      %v1618 = vpop.f32.mrb[0].mxu0
      %v1619 = vadd.f32 0.0, %v1618
      %v1620 = vpop.f32.mrb[0].mxu0
      %1621 = vmatprep.mubr.bf16.mxu0 0
      %1622 = vmatmul.mubr.bf16.gmra.mrb[0].mxu0 %v1474
      %v1623 = vpop.f32.mrb[0].mxu0
      %v1624 = vadd.f32 0.0, %v1623
      %v1625 = vpop.f32.mrb[0].mxu0
      %v1626 = vpop.f32.mrb[0].mxu0
      %v1627 = vadd.f32 0.0, %v1626
      %v1628 = vpop.f32.mrb[0].mxu0
      %1629 = vmatprep.mubr.bf16.mxu0 0
      %1630 = vmatmul.mubr.bf16.gmra.mrb[0].mxu0 %v1475
      %v1631 = vpop.f32.mrb[0].mxu0
      %v1632 = vadd.f32 0.0, %v1631
      %v1633 = vpop.f32.mrb[0].mxu0
      %v1634 = vpop.f32.mrb[0].mxu0
      %v1635 = vadd.f32 0.0, %v1634
      %v1636 = vpop.f32.mrb[0].mxu0
      %1637 = vdwg.mxu0
      %v1638 = vadd.f32 %v1385, %v1576
      %v1639 = vadd.f32 %v1386, %v1579
      %v1640 = vadd.f32 %v1387, %v1584
      %v1641 = vadd.f32 %v1388, %v1587
      %v1642 = vadd.f32 %v1389, %v1592
      %v1643 = vadd.f32 %v1390, %v1595
      %v1644 = vadd.f32 %v1391, %v1600
      %v1645 = vadd.f32 %v1392, %v1603
      %v1646 = vadd.f32 %v1393, %v1608
      %v1647 = vadd.f32 %v1394, %v1611
      %v1648 = vadd.f32 %v1395, %v1616
      %v1649 = vadd.f32 %v1396, %v1619
      %v1650 = vadd.f32 %v1397, %v1624
      %v1651 = vadd.f32 %v1398, %v1627
      %v1652 = vadd.f32 %v1399, %v1632
      %v1653 = vadd.f32 %v1400, %v1635
      %v1654 = vpack.c.bf16 %v1405, %v1404
      %v1655 = vpack.c.bf16 %v1407, %v1406
      %v1656 = vpack.c.bf16 %v1409, %v1408
      %v1657 = vpack.c.bf16 %v1411, %v1410
      %v1658 = vpack.c.bf16 %v1413, %v1412
      %v1659 = vpack.c.bf16 %v1415, %v1414
      %v1660 = vpack.c.bf16 %v1417, %v1416
      %v1661 = vpack.c.bf16 %v1419, %v1418
      %s1662 = scalar_lea.vmem %s1, 256
      %v1663 = vld [vmem:[%s1662] sm:$0xf]
      %v1664 = vld [vmem:[%s1662 + $0x4] sm:$0xf]
      %v1665 = vld [vmem:[%s1662 + $0x8] sm:$0xf]
      %v1666 = vld [vmem:[%s1662 + $0xc] sm:$0xf]
      %v1667 = vld [vmem:[%s1662 + $0x10] sm:$0xf]
      %v1668 = vld [vmem:[%s1662 + $0x14] sm:$0xf]
      %v1669 = vld [vmem:[%s1662 + $0x18] sm:$0xf]
      %v1670 = vld [vmem:[%s1662 + $0x1c] sm:$0xf]
      %v1671 = vld [vmem:[%s1662 + $0x20] sm:$0xf]
      %v1672 = vld [vmem:[%s1662 + $0x24] sm:$0xf]
      %v1673 = vld [vmem:[%s1662 + $0x28] sm:$0xf]
      %v1674 = vld [vmem:[%s1662 + $0x2c] sm:$0xf]
      %v1675 = vld [vmem:[%s1662 + $0x30] sm:$0xf]
      %v1676 = vld [vmem:[%s1662 + $0x34] sm:$0xf]
      %v1677 = vld [vmem:[%s1662 + $0x38] sm:$0xf]
      %v1678 = vld [vmem:[%s1662 + $0x3c] sm:$0xf]
      %v1695 = vunpack.c.l.b16 %v1663
      %v1696 = vunpack.c.l.b16 %v1664
      %v1697 = vunpack.c.l.b16 %v1665
      %v1698 = vunpack.c.l.b16 %v1666
      %v1699 = vunpack.c.l.b16 %v1667
      %v1700 = vunpack.c.l.b16 %v1668
      %v1701 = vunpack.c.l.b16 %v1669
      %v1702 = vunpack.c.l.b16 %v1670
      %v1703 = vunpack.c.l.b16 %v1671
      %v1704 = vunpack.c.l.b16 %v1672
      %v1705 = vunpack.c.l.b16 %v1673
      %v1706 = vunpack.c.l.b16 %v1674
      %v1707 = vunpack.c.l.b16 %v1675
      %v1708 = vunpack.c.l.b16 %v1676
      %v1709 = vunpack.c.l.b16 %v1677
      %v1710 = vunpack.c.l.b16 %v1678
      %v1711 = vpack.c.b16 %v1696, %v1695
      %v1712 = vpack.c.b16 %v1698, %v1697
      %v1713 = vpack.c.b16 %v1700, %v1699
      %v1714 = vpack.c.b16 %v1702, %v1701
      %v1715 = vpack.c.b16 %v1704, %v1703
      %v1716 = vpack.c.b16 %v1706, %v1705
      %v1717 = vpack.c.b16 %v1708, %v1707
      %v1718 = vpack.c.b16 %v1710, %v1709
      %1727 = vmatprep.subr.bf16.mxu0 0
      %1728 = vmatpush1.bf16.msra.mxu0 %v1711
      %1729 = vmatprep.subr.bf16.mxu0 0
      %1730 = vmatpush1.bf16.msra.mxu0 %v1712
      %1731 = vmatprep.subr.bf16.mxu0 0
      %1732 = vmatpush1.bf16.msra.mxu0 %v1713
      %1733 = vmatprep.subr.bf16.mxu0 0
      %1734 = vmatpush1.bf16.msra.mxu0 %v1714
      %1735 = vmatprep.subr.bf16.mxu0 0
      %1736 = vmatpush1.bf16.msra.mxu0 %v1715
      %1737 = vmatprep.subr.bf16.mxu0 0
      %1738 = vmatpush1.bf16.msra.mxu0 %v1716
      %1739 = vmatprep.subr.bf16.mxu0 0
      %1740 = vmatpush1.bf16.msra.mxu0 %v1717
      %1741 = vmatprep.subr.bf16.mxu0 0
      %1742 = vmatpush1.bf16.msra.mxu0 %v1718
      %1743 = vmatprep.subr.bf16.mxu0 0
      %1744 = vmatpush1.bf16.msra.mxu0 0
      %1745 = vmatprep.subr.bf16.mxu0 0
      %1746 = vmatpush1.bf16.msra.mxu0 0
      %1747 = vmatprep.subr.bf16.mxu0 0
      %1748 = vmatpush1.bf16.msra.mxu0 0
      %1749 = vmatprep.subr.bf16.mxu0 0
      %1750 = vmatpush1.bf16.msra.mxu0 0
      %1751 = vmatprep.subr.bf16.mxu0 0
      %1752 = vmatpush1.bf16.msra.mxu0 0
      %1753 = vmatprep.subr.bf16.mxu0 0
      %1754 = vmatpush1.bf16.msra.mxu0 0
      %1755 = vmatprep.subr.bf16.mxu0 0
      %1756 = vmatpush1.bf16.msra.mxu0 0
      %1757 = vmatprep.subr.bf16.mxu0 0
      %1758 = vmatpush1.bf16.msra.mxu0 0
      %1759 = vmatprep.mubr.bf16.mxu0 0
      %1760 = vmatmul.mubr.bf16.gmra.mrb[0].mxu0 %v1654
      %v1761 = vpop.f32.mrb[0].mxu0
      %v1762 = vadd.f32 0.0, %v1761
      %v1763 = vpop.f32.mrb[0].mxu0
      %v1764 = vpop.f32.mrb[0].mxu0
      %v1765 = vadd.f32 0.0, %v1764
      %v1766 = vpop.f32.mrb[0].mxu0
      %1767 = vmatprep.mubr.bf16.mxu0 0
      %1768 = vmatmul.mubr.bf16.gmra.mrb[0].mxu0 %v1655
      %v1769 = vpop.f32.mrb[0].mxu0
      %v1770 = vadd.f32 0.0, %v1769
      %v1771 = vpop.f32.mrb[0].mxu0
      %v1772 = vpop.f32.mrb[0].mxu0
      %v1773 = vadd.f32 0.0, %v1772
      %v1774 = vpop.f32.mrb[0].mxu0
      %1775 = vmatprep.mubr.bf16.mxu0 0
      %1776 = vmatmul.mubr.bf16.gmra.mrb[0].mxu0 %v1656
      %v1777 = vpop.f32.mrb[0].mxu0
      %v1778 = vadd.f32 0.0, %v1777
      %v1779 = vpop.f32.mrb[0].mxu0
      %v1780 = vpop.f32.mrb[0].mxu0
      %v1781 = vadd.f32 0.0, %v1780
      %v1782 = vpop.f32.mrb[0].mxu0
      %1783 = vmatprep.mubr.bf16.mxu0 0
      %1784 = vmatmul.mubr.bf16.gmra.mrb[0].mxu0 %v1657
      %v1785 = vpop.f32.mrb[0].mxu0
      %v1786 = vadd.f32 0.0, %v1785
      %v1787 = vpop.f32.mrb[0].mxu0
      %v1788 = vpop.f32.mrb[0].mxu0
      %v1789 = vadd.f32 0.0, %v1788
      %v1790 = vpop.f32.mrb[0].mxu0
      %1791 = vmatprep.mubr.bf16.mxu0 0
      %1792 = vmatmul.mubr.bf16.gmra.mrb[0].mxu0 %v1658
      %v1793 = vpop.f32.mrb[0].mxu0
      %v1794 = vadd.f32 0.0, %v1793
      %v1795 = vpop.f32.mrb[0].mxu0
      %v1796 = vpop.f32.mrb[0].mxu0
      %v1797 = vadd.f32 0.0, %v1796
      %v1798 = vpop.f32.mrb[0].mxu0
      %1799 = vmatprep.mubr.bf16.mxu0 0
      %1800 = vmatmul.mubr.bf16.gmra.mrb[0].mxu0 %v1659
      %v1801 = vpop.f32.mrb[0].mxu0
      %v1802 = vadd.f32 0.0, %v1801
      %v1803 = vpop.f32.mrb[0].mxu0
      %v1804 = vpop.f32.mrb[0].mxu0
      %v1805 = vadd.f32 0.0, %v1804
      %v1806 = vpop.f32.mrb[0].mxu0
      %1807 = vmatprep.mubr.bf16.mxu0 0
      %1808 = vmatmul.mubr.bf16.gmra.mrb[0].mxu0 %v1660
      %v1809 = vpop.f32.mrb[0].mxu0
      %v1810 = vadd.f32 0.0, %v1809
      %v1811 = vpop.f32.mrb[0].mxu0
      %v1812 = vpop.f32.mrb[0].mxu0
      %v1813 = vadd.f32 0.0, %v1812
      %v1814 = vpop.f32.mrb[0].mxu0
      %1815 = vmatprep.mubr.bf16.mxu0 0
      %1816 = vmatmul.mubr.bf16.gmra.mrb[0].mxu0 %v1661
      %v1817 = vpop.f32.mrb[0].mxu0
      %v1818 = vadd.f32 0.0, %v1817
      %v1819 = vpop.f32.mrb[0].mxu0
      %v1820 = vpop.f32.mrb[0].mxu0
      %v1821 = vadd.f32 0.0, %v1820
      %v1822 = vpop.f32.mrb[0].mxu0
      %1823 = vdwg.mxu0
      %v1824 = vadd.f32 %v1638, %v1762
      %v1825 = vadd.f32 %v1639, %v1765
      %v1826 = vadd.f32 %v1640, %v1770
      %v1827 = vadd.f32 %v1641, %v1773
      %v1828 = vadd.f32 %v1642, %v1778
      %v1829 = vadd.f32 %v1643, %v1781
      %v1830 = vadd.f32 %v1644, %v1786
      %v1831 = vadd.f32 %v1645, %v1789
      %v1832 = vadd.f32 %v1646, %v1794
      %v1833 = vadd.f32 %v1647, %v1797
      %v1834 = vadd.f32 %v1648, %v1802
      %v1835 = vadd.f32 %v1649, %v1805
      %v1836 = vadd.f32 %v1650, %v1810
      %v1837 = vadd.f32 %v1651, %v1813
      %v1838 = vadd.f32 %v1652, %v1818
      %v1839 = vadd.f32 %v1653, %v1821
      %v1840 = vrot.slane %v1404, 1
      %v1841 = vrot.slane %v1405, 1
      %v1842 = vrot.slane %v1406, 1
      %v1843 = vrot.slane %v1407, 1
      %v1844 = vrot.slane %v1408, 1
      %v1845 = vrot.slane %v1409, 1
      %v1846 = vrot.slane %v1410, 1
      %v1847 = vrot.slane %v1411, 1
      %v1848 = vrot.slane %v1412, 1
      %v1849 = vrot.slane %v1413, 1
      %v1850 = vrot.slane %v1414, 1
      %v1851 = vrot.slane %v1415, 1
      %v1852 = vrot.slane %v1416, 1
      %v1853 = vrot.slane %v1417, 1
      %v1854 = vrot.slane %v1418, 1
      %v1855 = vrot.slane %v1419, 1
      %v1856 = vsel %vm1134, %v1854, %v1855
      %v1857 = vsel %vm1134, %v1853, %v1854
      %v1858 = vsel %vm1134, %v1852, %v1853
      %v1859 = vsel %vm1134, %v1851, %v1852
      %v1860 = vsel %vm1134, %v1850, %v1851
      %v1861 = vsel %vm1134, %v1849, %v1850
      %v1862 = vsel %vm1134, %v1848, %v1849
      %v1863 = vsel %vm1134, %v1847, %v1848
      %v1864 = vsel %vm1134, %v1846, %v1847
      %v1865 = vsel %vm1134, %v1845, %v1846
      %v1866 = vsel %vm1134, %v1844, %v1845
      %v1867 = vsel %vm1134, %v1843, %v1844
      %v1868 = vsel %vm1134, %v1842, %v1843
      %v1869 = vsel %vm1134, %v1841, %v1842
      %v1870 = vsel %vm1134, %v1840, %v1841
      %v1871 = vsel %vm1134, %v1855, %v1840
      %v1872 = vsel %vm1183, %v1870, 0.0
      %v1873 = vsel %vm1184, %v1869, 0.0
      %v1874 = vsel %vm1185, %v1868, 0.0
      %v1875 = vsel %vm1186, %v1867, 0.0
      %v1876 = vsel %vm1187, %v1866, 0.0
      %v1877 = vsel %vm1188, %v1865, 0.0
      %v1878 = vsel %vm1189, %v1864, 0.0
      %v1879 = vsel %vm1190, %v1863, 0.0
      %v1880 = vsel %vm1191, %v1862, 0.0
      %v1881 = vsel %vm1192, %v1861, 0.0
      %v1882 = vsel %vm1193, %v1860, 0.0
      %v1883 = vsel %vm1194, %v1859, 0.0
      %v1884 = vsel %vm1195, %v1858, 0.0
      %v1885 = vsel %vm1196, %v1857, 0.0
      %v1886 = vsel %vm1197, %v1856, 0.0
      %v1887 = vsel %vm1198, %v1871, 0.0
      %v1888 = vpack.c.bf16 %v1873, %v1872
      %v1889 = vpack.c.bf16 %v1875, %v1874
      %v1890 = vpack.c.bf16 %v1877, %v1876
      %v1891 = vpack.c.bf16 %v1879, %v1878
      %v1892 = vpack.c.bf16 %v1881, %v1880
      %v1893 = vpack.c.bf16 %v1883, %v1882
      %v1894 = vpack.c.bf16 %v1885, %v1884
      %v1895 = vpack.c.bf16 %v1887, %v1886
      %s1896 = scalar_lea.vmem %s1, 320
      %v1897 = vld [vmem:[%s1896] sm:$0xf]
      %v1898 = vld [vmem:[%s1896 + $0x4] sm:$0xf]
      %v1899 = vld [vmem:[%s1896 + $0x8] sm:$0xf]
      %v1900 = vld [vmem:[%s1896 + $0xc] sm:$0xf]
      %v1901 = vld [vmem:[%s1896 + $0x10] sm:$0xf]
      %v1902 = vld [vmem:[%s1896 + $0x14] sm:$0xf]
      %v1903 = vld [vmem:[%s1896 + $0x18] sm:$0xf]
      %v1904 = vld [vmem:[%s1896 + $0x1c] sm:$0xf]
      %v1905 = vld [vmem:[%s1896 + $0x20] sm:$0xf]
      %v1906 = vld [vmem:[%s1896 + $0x24] sm:$0xf]
      %v1907 = vld [vmem:[%s1896 + $0x28] sm:$0xf]
      %v1908 = vld [vmem:[%s1896 + $0x2c] sm:$0xf]
      %v1909 = vld [vmem:[%s1896 + $0x30] sm:$0xf]
      %v1910 = vld [vmem:[%s1896 + $0x34] sm:$0xf]
      %v1911 = vld [vmem:[%s1896 + $0x38] sm:$0xf]
      %v1912 = vld [vmem:[%s1896 + $0x3c] sm:$0xf]
      %v1929 = vunpack.c.l.b16 %v1897
      %v1930 = vunpack.c.l.b16 %v1898
      %v1931 = vunpack.c.l.b16 %v1899
      %v1932 = vunpack.c.l.b16 %v1900
      %v1933 = vunpack.c.l.b16 %v1901
      %v1934 = vunpack.c.l.b16 %v1902
      %v1935 = vunpack.c.l.b16 %v1903
      %v1936 = vunpack.c.l.b16 %v1904
      %v1937 = vunpack.c.l.b16 %v1905
      %v1938 = vunpack.c.l.b16 %v1906
      %v1939 = vunpack.c.l.b16 %v1907
      %v1940 = vunpack.c.l.b16 %v1908
      %v1941 = vunpack.c.l.b16 %v1909
      %v1942 = vunpack.c.l.b16 %v1910
      %v1943 = vunpack.c.l.b16 %v1911
      %v1944 = vunpack.c.l.b16 %v1912
      %v1945 = vpack.c.b16 %v1930, %v1929
      %v1946 = vpack.c.b16 %v1932, %v1931
      %v1947 = vpack.c.b16 %v1934, %v1933
      %v1948 = vpack.c.b16 %v1936, %v1935
      %v1949 = vpack.c.b16 %v1938, %v1937
      %v1950 = vpack.c.b16 %v1940, %v1939
      %v1951 = vpack.c.b16 %v1942, %v1941
      %v1952 = vpack.c.b16 %v1944, %v1943
      %1961 = vmatprep.subr.bf16.mxu0 0
      %1962 = vmatpush1.bf16.msra.mxu0 %v1945
      %1963 = vmatprep.subr.bf16.mxu0 0
      %1964 = vmatpush1.bf16.msra.mxu0 %v1946
      %1965 = vmatprep.subr.bf16.mxu0 0
      %1966 = vmatpush1.bf16.msra.mxu0 %v1947
      %1967 = vmatprep.subr.bf16.mxu0 0
      %1968 = vmatpush1.bf16.msra.mxu0 %v1948
      %1969 = vmatprep.subr.bf16.mxu0 0
      %1970 = vmatpush1.bf16.msra.mxu0 %v1949
      %1971 = vmatprep.subr.bf16.mxu0 0
      %1972 = vmatpush1.bf16.msra.mxu0 %v1950
      %1973 = vmatprep.subr.bf16.mxu0 0
      %1974 = vmatpush1.bf16.msra.mxu0 %v1951
      %1975 = vmatprep.subr.bf16.mxu0 0
      %1976 = vmatpush1.bf16.msra.mxu0 %v1952
      %1977 = vmatprep.subr.bf16.mxu0 0
      %1978 = vmatpush1.bf16.msra.mxu0 0
      %1979 = vmatprep.subr.bf16.mxu0 0
      %1980 = vmatpush1.bf16.msra.mxu0 0
      %1981 = vmatprep.subr.bf16.mxu0 0
      %1982 = vmatpush1.bf16.msra.mxu0 0
      %1983 = vmatprep.subr.bf16.mxu0 0
      %1984 = vmatpush1.bf16.msra.mxu0 0
      %1985 = vmatprep.subr.bf16.mxu0 0
      %1986 = vmatpush1.bf16.msra.mxu0 0
      %1987 = vmatprep.subr.bf16.mxu0 0
      %1988 = vmatpush1.bf16.msra.mxu0 0
      %1989 = vmatprep.subr.bf16.mxu0 0
      %1990 = vmatpush1.bf16.msra.mxu0 0
      %1991 = vmatprep.subr.bf16.mxu0 0
      %1992 = vmatpush1.bf16.msra.mxu0 0
      %1993 = vmatprep.mubr.bf16.mxu0 0
      %1994 = vmatmul.mubr.bf16.gmra.mrb[0].mxu0 %v1888
      %v1995 = vpop.f32.mrb[0].mxu0
      %v1996 = vadd.f32 0.0, %v1995
      %v1997 = vpop.f32.mrb[0].mxu0
      %v1998 = vpop.f32.mrb[0].mxu0
      %v1999 = vadd.f32 0.0, %v1998
      %v2000 = vpop.f32.mrb[0].mxu0
      %2001 = vmatprep.mubr.bf16.mxu0 0
      %2002 = vmatmul.mubr.bf16.gmra.mrb[0].mxu0 %v1889
      %v2003 = vpop.f32.mrb[0].mxu0
      %v2004 = vadd.f32 0.0, %v2003
      %v2005 = vpop.f32.mrb[0].mxu0
      %v2006 = vpop.f32.mrb[0].mxu0
      %v2007 = vadd.f32 0.0, %v2006
      %v2008 = vpop.f32.mrb[0].mxu0
      %2009 = vmatprep.mubr.bf16.mxu0 0
      %2010 = vmatmul.mubr.bf16.gmra.mrb[0].mxu0 %v1890
      %v2011 = vpop.f32.mrb[0].mxu0
      %v2012 = vadd.f32 0.0, %v2011
      %v2013 = vpop.f32.mrb[0].mxu0
      %v2014 = vpop.f32.mrb[0].mxu0
      %v2015 = vadd.f32 0.0, %v2014
      %v2016 = vpop.f32.mrb[0].mxu0
      %2017 = vmatprep.mubr.bf16.mxu0 0
      %2018 = vmatmul.mubr.bf16.gmra.mrb[0].mxu0 %v1891
      %v2019 = vpop.f32.mrb[0].mxu0
      %v2020 = vadd.f32 0.0, %v2019
      %v2021 = vpop.f32.mrb[0].mxu0
      %v2022 = vpop.f32.mrb[0].mxu0
      %v2023 = vadd.f32 0.0, %v2022
      %v2024 = vpop.f32.mrb[0].mxu0
      %2025 = vmatprep.mubr.bf16.mxu0 0
      %2026 = vmatmul.mubr.bf16.gmra.mrb[0].mxu0 %v1892
      %v2027 = vpop.f32.mrb[0].mxu0
      %v2028 = vadd.f32 0.0, %v2027
      %v2029 = vpop.f32.mrb[0].mxu0
      %v2030 = vpop.f32.mrb[0].mxu0
      %v2031 = vadd.f32 0.0, %v2030
      %v2032 = vpop.f32.mrb[0].mxu0
      %2033 = vmatprep.mubr.bf16.mxu0 0
      %2034 = vmatmul.mubr.bf16.gmra.mrb[0].mxu0 %v1893
      %v2035 = vpop.f32.mrb[0].mxu0
      %v2036 = vadd.f32 0.0, %v2035
      %v2037 = vpop.f32.mrb[0].mxu0
      %v2038 = vpop.f32.mrb[0].mxu0
      %v2039 = vadd.f32 0.0, %v2038
      %v2040 = vpop.f32.mrb[0].mxu0
      %2041 = vmatprep.mubr.bf16.mxu0 0
      %2042 = vmatmul.mubr.bf16.gmra.mrb[0].mxu0 %v1894
      %v2043 = vpop.f32.mrb[0].mxu0
      %v2044 = vadd.f32 0.0, %v2043
      %v2045 = vpop.f32.mrb[0].mxu0
      %v2046 = vpop.f32.mrb[0].mxu0
      %v2047 = vadd.f32 0.0, %v2046
      %v2048 = vpop.f32.mrb[0].mxu0
      %2049 = vmatprep.mubr.bf16.mxu0 0
      %2050 = vmatmul.mubr.bf16.gmra.mrb[0].mxu0 %v1895
      %v2051 = vpop.f32.mrb[0].mxu0
      %v2052 = vadd.f32 0.0, %v2051
      %v2053 = vpop.f32.mrb[0].mxu0
      %v2054 = vpop.f32.mrb[0].mxu0
      %v2055 = vadd.f32 0.0, %v2054
      %v2056 = vpop.f32.mrb[0].mxu0
      %2057 = vdwg.mxu0
      %v2058 = vadd.f32 %v1824, %v1996
      %v2059 = vadd.f32 %v1825, %v1999
      %v2060 = vadd.f32 %v1826, %v2004
      %v2061 = vadd.f32 %v1827, %v2007
      %v2062 = vadd.f32 %v1828, %v2012
      %v2063 = vadd.f32 %v1829, %v2015
      %v2064 = vadd.f32 %v1830, %v2020
      %v2065 = vadd.f32 %v1831, %v2023
      %v2066 = vadd.f32 %v1832, %v2028
      %v2067 = vadd.f32 %v1833, %v2031
      %v2068 = vadd.f32 %v1834, %v2036
      %v2069 = vadd.f32 %v1835, %v2039
      %v2070 = vadd.f32 %v1836, %v2044
      %v2071 = vadd.f32 %v1837, %v2047
      %v2072 = vadd.f32 %v1838, %v2052
      %v2073 = vadd.f32 %v1839, %v2055
      %s2074 = sadd.s32 %s454, 2
      %s2075 = smul.u32 %s2074, 16
      %s2076 = scalar_lea.vmem [#allocation2], %s2075
      %v2077 = vld [vmem:[%s2076] sm:$0xff]
      %v2078 = vld [vmem:[%s2076 + $0x8] sm:$0xff]
      %v2079 = vld [vmem:[%s2076 + $0x10] sm:$0xff]
      %v2080 = vld [vmem:[%s2076 + $0x18] sm:$0xff]
      %v2081 = vld [vmem:[%s2076 + $0x20] sm:$0xff]
      %v2082 = vld [vmem:[%s2076 + $0x28] sm:$0xff]
      %v2083 = vld [vmem:[%s2076 + $0x30] sm:$0xff]
      %v2084 = vld [vmem:[%s2076 + $0x38] sm:$0xff]
      %v2085 = vld [vmem:[%s2076 + $0x40] sm:$0xff]
      %v2086 = vld [vmem:[%s2076 + $0x48] sm:$0xff]
      %v2087 = vld [vmem:[%s2076 + $0x50] sm:$0xff]
      %v2088 = vld [vmem:[%s2076 + $0x58] sm:$0xff]
      %v2089 = vld [vmem:[%s2076 + $0x60] sm:$0xff]
      %v2090 = vld [vmem:[%s2076 + $0x68] sm:$0xff]
      %v2091 = vld [vmem:[%s2076 + $0x70] sm:$0xff]
      %v2092 = vld [vmem:[%s2076 + $0x78] sm:$0xff]
      %v2093 = vrot.slane %v2077, 7
      %v2094 = vrot.slane %v2078, 7
      %v2095 = vrot.slane %v2079, 7
      %v2096 = vrot.slane %v2080, 7
      %v2097 = vrot.slane %v2081, 7
      %v2098 = vrot.slane %v2082, 7
      %v2099 = vrot.slane %v2083, 7
      %v2100 = vrot.slane %v2084, 7
      %v2101 = vrot.slane %v2085, 7
      %v2102 = vrot.slane %v2086, 7
      %v2103 = vrot.slane %v2087, 7
      %v2104 = vrot.slane %v2088, 7
      %v2105 = vrot.slane %v2089, 7
      %v2106 = vrot.slane %v2090, 7
      %v2107 = vrot.slane %v2091, 7
      %v2108 = vrot.slane %v2092, 7
      %v2109 = vsel %vm698, %v2107, %v2108
      %v2110 = vsel %vm698, %v2106, %v2107
      %v2111 = vsel %vm698, %v2105, %v2106
      %v2112 = vsel %vm698, %v2104, %v2105
      %v2113 = vsel %vm698, %v2103, %v2104
      %v2114 = vsel %vm698, %v2102, %v2103
      %v2115 = vsel %vm698, %v2101, %v2102
      %v2116 = vsel %vm698, %v2100, %v2101
      %v2117 = vsel %vm698, %v2099, %v2100
      %v2118 = vsel %vm698, %v2098, %v2099
      %v2119 = vsel %vm698, %v2097, %v2098
      %v2120 = vsel %vm698, %v2096, %v2097
      %v2121 = vsel %vm698, %v2095, %v2096
      %v2122 = vsel %vm698, %v2094, %v2095
      %v2123 = vsel %vm698, %v2093, %v2094
      %v2124 = vsel %vm698, %v2108, %v2093
      %v2125 = vsel %vm747, %v2124, 0.0
      %v2126 = vsel %vm748, %v2123, 0.0
      %v2127 = vsel %vm749, %v2122, 0.0
      %v2128 = vsel %vm750, %v2121, 0.0
      %v2129 = vsel %vm751, %v2120, 0.0
      %v2130 = vsel %vm752, %v2119, 0.0
      %v2131 = vsel %vm753, %v2118, 0.0
      %v2132 = vsel %vm754, %v2117, 0.0
      %v2133 = vsel %vm755, %v2116, 0.0
      %v2134 = vsel %vm756, %v2115, 0.0
      %v2135 = vsel %vm757, %v2114, 0.0
      %v2136 = vsel %vm758, %v2113, 0.0
      %v2137 = vsel %vm759, %v2112, 0.0
      %v2138 = vsel %vm760, %v2111, 0.0
      %v2139 = vsel %vm761, %v2110, 0.0
      %v2140 = vsel %vm762, %v2109, 0.0
      %v2141 = vpack.c.bf16 %v2126, %v2125
      %v2142 = vpack.c.bf16 %v2128, %v2127
      %v2143 = vpack.c.bf16 %v2130, %v2129
      %v2144 = vpack.c.bf16 %v2132, %v2131
      %v2145 = vpack.c.bf16 %v2134, %v2133
      %v2146 = vpack.c.bf16 %v2136, %v2135
      %v2147 = vpack.c.bf16 %v2138, %v2137
      %v2148 = vpack.c.bf16 %v2140, %v2139
      %s2149 = scalar_lea.vmem %s1, 384
      %v2150 = vld [vmem:[%s2149] sm:$0xf]
      %v2151 = vld [vmem:[%s2149 + $0x4] sm:$0xf]
      %v2152 = vld [vmem:[%s2149 + $0x8] sm:$0xf]
      %v2153 = vld [vmem:[%s2149 + $0xc] sm:$0xf]
      %v2154 = vld [vmem:[%s2149 + $0x10] sm:$0xf]
      %v2155 = vld [vmem:[%s2149 + $0x14] sm:$0xf]
      %v2156 = vld [vmem:[%s2149 + $0x18] sm:$0xf]
      %v2157 = vld [vmem:[%s2149 + $0x1c] sm:$0xf]
      %v2158 = vld [vmem:[%s2149 + $0x20] sm:$0xf]
      %v2159 = vld [vmem:[%s2149 + $0x24] sm:$0xf]
      %v2160 = vld [vmem:[%s2149 + $0x28] sm:$0xf]
      %v2161 = vld [vmem:[%s2149 + $0x2c] sm:$0xf]
      %v2162 = vld [vmem:[%s2149 + $0x30] sm:$0xf]
      %v2163 = vld [vmem:[%s2149 + $0x34] sm:$0xf]
      %v2164 = vld [vmem:[%s2149 + $0x38] sm:$0xf]
      %v2165 = vld [vmem:[%s2149 + $0x3c] sm:$0xf]
      %v2182 = vunpack.c.l.b16 %v2150
      %v2183 = vunpack.c.l.b16 %v2151
      %v2184 = vunpack.c.l.b16 %v2152
      %v2185 = vunpack.c.l.b16 %v2153
      %v2186 = vunpack.c.l.b16 %v2154
      %v2187 = vunpack.c.l.b16 %v2155
      %v2188 = vunpack.c.l.b16 %v2156
      %v2189 = vunpack.c.l.b16 %v2157
      %v2190 = vunpack.c.l.b16 %v2158
      %v2191 = vunpack.c.l.b16 %v2159
      %v2192 = vunpack.c.l.b16 %v2160
      %v2193 = vunpack.c.l.b16 %v2161
      %v2194 = vunpack.c.l.b16 %v2162
      %v2195 = vunpack.c.l.b16 %v2163
      %v2196 = vunpack.c.l.b16 %v2164
      %v2197 = vunpack.c.l.b16 %v2165
      %v2198 = vpack.c.b16 %v2183, %v2182
      %v2199 = vpack.c.b16 %v2185, %v2184
      %v2200 = vpack.c.b16 %v2187, %v2186
      %v2201 = vpack.c.b16 %v2189, %v2188
      %v2202 = vpack.c.b16 %v2191, %v2190
      %v2203 = vpack.c.b16 %v2193, %v2192
      %v2204 = vpack.c.b16 %v2195, %v2194
      %v2205 = vpack.c.b16 %v2197, %v2196
      %2214 = vmatprep.subr.bf16.mxu0 0
      %2215 = vmatpush1.bf16.msra.mxu0 %v2198
      %2216 = vmatprep.subr.bf16.mxu0 0
      %2217 = vmatpush1.bf16.msra.mxu0 %v2199
      %2218 = vmatprep.subr.bf16.mxu0 0
      %2219 = vmatpush1.bf16.msra.mxu0 %v2200
      %2220 = vmatprep.subr.bf16.mxu0 0
      %2221 = vmatpush1.bf16.msra.mxu0 %v2201
      %2222 = vmatprep.subr.bf16.mxu0 0
      %2223 = vmatpush1.bf16.msra.mxu0 %v2202
      %2224 = vmatprep.subr.bf16.mxu0 0
      %2225 = vmatpush1.bf16.msra.mxu0 %v2203
      %2226 = vmatprep.subr.bf16.mxu0 0
      %2227 = vmatpush1.bf16.msra.mxu0 %v2204
      %2228 = vmatprep.subr.bf16.mxu0 0
      %2229 = vmatpush1.bf16.msra.mxu0 %v2205
      %2230 = vmatprep.subr.bf16.mxu0 0
      %2231 = vmatpush1.bf16.msra.mxu0 0
      %2232 = vmatprep.subr.bf16.mxu0 0
      %2233 = vmatpush1.bf16.msra.mxu0 0
      %2234 = vmatprep.subr.bf16.mxu0 0
      %2235 = vmatpush1.bf16.msra.mxu0 0
      %2236 = vmatprep.subr.bf16.mxu0 0
      %2237 = vmatpush1.bf16.msra.mxu0 0
      %2238 = vmatprep.subr.bf16.mxu0 0
      %2239 = vmatpush1.bf16.msra.mxu0 0
      %2240 = vmatprep.subr.bf16.mxu0 0
      %2241 = vmatpush1.bf16.msra.mxu0 0
      %2242 = vmatprep.subr.bf16.mxu0 0
      %2243 = vmatpush1.bf16.msra.mxu0 0
      %2244 = vmatprep.subr.bf16.mxu0 0
      %2245 = vmatpush1.bf16.msra.mxu0 0
      %2246 = vmatprep.mubr.bf16.mxu0 0
      %2247 = vmatmul.mubr.bf16.gmra.mrb[0].mxu0 %v2141
      %v2248 = vpop.f32.mrb[0].mxu0
      %v2249 = vadd.f32 0.0, %v2248
      %v2250 = vpop.f32.mrb[0].mxu0
      %v2251 = vpop.f32.mrb[0].mxu0
      %v2252 = vadd.f32 0.0, %v2251
      %v2253 = vpop.f32.mrb[0].mxu0
      %2254 = vmatprep.mubr.bf16.mxu0 0
      %2255 = vmatmul.mubr.bf16.gmra.mrb[0].mxu0 %v2142
      %v2256 = vpop.f32.mrb[0].mxu0
      %v2257 = vadd.f32 0.0, %v2256
      %v2258 = vpop.f32.mrb[0].mxu0
      %v2259 = vpop.f32.mrb[0].mxu0
      %v2260 = vadd.f32 0.0, %v2259
      %v2261 = vpop.f32.mrb[0].mxu0
      %2262 = vmatprep.mubr.bf16.mxu0 0
      %2263 = vmatmul.mubr.bf16.gmra.mrb[0].mxu0 %v2143
      %v2264 = vpop.f32.mrb[0].mxu0
      %v2265 = vadd.f32 0.0, %v2264
      %v2266 = vpop.f32.mrb[0].mxu0
      %v2267 = vpop.f32.mrb[0].mxu0
      %v2268 = vadd.f32 0.0, %v2267
      %v2269 = vpop.f32.mrb[0].mxu0
      %2270 = vmatprep.mubr.bf16.mxu0 0
      %2271 = vmatmul.mubr.bf16.gmra.mrb[0].mxu0 %v2144
      %v2272 = vpop.f32.mrb[0].mxu0
      %v2273 = vadd.f32 0.0, %v2272
      %v2274 = vpop.f32.mrb[0].mxu0
      %v2275 = vpop.f32.mrb[0].mxu0
      %v2276 = vadd.f32 0.0, %v2275
      %v2277 = vpop.f32.mrb[0].mxu0
      %2278 = vmatprep.mubr.bf16.mxu0 0
      %2279 = vmatmul.mubr.bf16.gmra.mrb[0].mxu0 %v2145
      %v2280 = vpop.f32.mrb[0].mxu0
      %v2281 = vadd.f32 0.0, %v2280
      %v2282 = vpop.f32.mrb[0].mxu0
      %v2283 = vpop.f32.mrb[0].mxu0
      %v2284 = vadd.f32 0.0, %v2283
      %v2285 = vpop.f32.mrb[0].mxu0
      %2286 = vmatprep.mubr.bf16.mxu0 0
      %2287 = vmatmul.mubr.bf16.gmra.mrb[0].mxu0 %v2146
      %v2288 = vpop.f32.mrb[0].mxu0
      %v2289 = vadd.f32 0.0, %v2288
      %v2290 = vpop.f32.mrb[0].mxu0
      %v2291 = vpop.f32.mrb[0].mxu0
      %v2292 = vadd.f32 0.0, %v2291
      %v2293 = vpop.f32.mrb[0].mxu0
      %2294 = vmatprep.mubr.bf16.mxu0 0
      %2295 = vmatmul.mubr.bf16.gmra.mrb[0].mxu0 %v2147
      %v2296 = vpop.f32.mrb[0].mxu0
      %v2297 = vadd.f32 0.0, %v2296
      %v2298 = vpop.f32.mrb[0].mxu0
      %v2299 = vpop.f32.mrb[0].mxu0
      %v2300 = vadd.f32 0.0, %v2299
      %v2301 = vpop.f32.mrb[0].mxu0
      %2302 = vmatprep.mubr.bf16.mxu0 0
      %2303 = vmatmul.mubr.bf16.gmra.mrb[0].mxu0 %v2148
      %v2304 = vpop.f32.mrb[0].mxu0
      %v2305 = vadd.f32 0.0, %v2304
      %v2306 = vpop.f32.mrb[0].mxu0
      %v2307 = vpop.f32.mrb[0].mxu0
      %v2308 = vadd.f32 0.0, %v2307
      %v2309 = vpop.f32.mrb[0].mxu0
      %2310 = vdwg.mxu0
      %v2311 = vadd.f32 %v2058, %v2249
      %v2312 = vadd.f32 %v2059, %v2252
      %v2313 = vadd.f32 %v2060, %v2257
      %v2314 = vadd.f32 %v2061, %v2260
      %v2315 = vadd.f32 %v2062, %v2265
      %v2316 = vadd.f32 %v2063, %v2268
      %v2317 = vadd.f32 %v2064, %v2273
      %v2318 = vadd.f32 %v2065, %v2276
      %v2319 = vadd.f32 %v2066, %v2281
      %v2320 = vadd.f32 %v2067, %v2284
      %v2321 = vadd.f32 %v2068, %v2289
      %v2322 = vadd.f32 %v2069, %v2292
      %v2323 = vadd.f32 %v2070, %v2297
      %v2324 = vadd.f32 %v2071, %v2300
      %v2325 = vadd.f32 %v2072, %v2305
      %v2326 = vadd.f32 %v2073, %v2308
      %v2327 = vpack.c.bf16 %v2078, %v2077
      %v2328 = vpack.c.bf16 %v2080, %v2079
      %v2329 = vpack.c.bf16 %v2082, %v2081
      %v2330 = vpack.c.bf16 %v2084, %v2083
      %v2331 = vpack.c.bf16 %v2086, %v2085
      %v2332 = vpack.c.bf16 %v2088, %v2087
      %v2333 = vpack.c.bf16 %v2090, %v2089
      %v2334 = vpack.c.bf16 %v2092, %v2091
      %s2335 = scalar_lea.vmem %s1, 448
      %v2336 = vld [vmem:[%s2335] sm:$0xf]
      %v2337 = vld [vmem:[%s2335 + $0x4] sm:$0xf]
      %v2338 = vld [vmem:[%s2335 + $0x8] sm:$0xf]
      %v2339 = vld [vmem:[%s2335 + $0xc] sm:$0xf]
      %v2340 = vld [vmem:[%s2335 + $0x10] sm:$0xf]
      %v2341 = vld [vmem:[%s2335 + $0x14] sm:$0xf]
      %v2342 = vld [vmem:[%s2335 + $0x18] sm:$0xf]
      %v2343 = vld [vmem:[%s2335 + $0x1c] sm:$0xf]
      %v2344 = vld [vmem:[%s2335 + $0x20] sm:$0xf]
      %v2345 = vld [vmem:[%s2335 + $0x24] sm:$0xf]
      %v2346 = vld [vmem:[%s2335 + $0x28] sm:$0xf]
      %v2347 = vld [vmem:[%s2335 + $0x2c] sm:$0xf]
      %v2348 = vld [vmem:[%s2335 + $0x30] sm:$0xf]
      %v2349 = vld [vmem:[%s2335 + $0x34] sm:$0xf]
      %v2350 = vld [vmem:[%s2335 + $0x38] sm:$0xf]
      %v2351 = vld [vmem:[%s2335 + $0x3c] sm:$0xf]
      %v2368 = vunpack.c.l.b16 %v2336
      %v2369 = vunpack.c.l.b16 %v2337
      %v2370 = vunpack.c.l.b16 %v2338
      %v2371 = vunpack.c.l.b16 %v2339
      %v2372 = vunpack.c.l.b16 %v2340
      %v2373 = vunpack.c.l.b16 %v2341
      %v2374 = vunpack.c.l.b16 %v2342
      %v2375 = vunpack.c.l.b16 %v2343
      %v2376 = vunpack.c.l.b16 %v2344
      %v2377 = vunpack.c.l.b16 %v2345
      %v2378 = vunpack.c.l.b16 %v2346
      %v2379 = vunpack.c.l.b16 %v2347
      %v2380 = vunpack.c.l.b16 %v2348
      %v2381 = vunpack.c.l.b16 %v2349
      %v2382 = vunpack.c.l.b16 %v2350
      %v2383 = vunpack.c.l.b16 %v2351
      %v2384 = vpack.c.b16 %v2369, %v2368
      %v2385 = vpack.c.b16 %v2371, %v2370
      %v2386 = vpack.c.b16 %v2373, %v2372
      %v2387 = vpack.c.b16 %v2375, %v2374
      %v2388 = vpack.c.b16 %v2377, %v2376
      %v2389 = vpack.c.b16 %v2379, %v2378
      %v2390 = vpack.c.b16 %v2381, %v2380
      %v2391 = vpack.c.b16 %v2383, %v2382
      %2400 = vmatprep.subr.bf16.mxu0 0
      %2401 = vmatpush1.bf16.msra.mxu0 %v2384
      %2402 = vmatprep.subr.bf16.mxu0 0
      %2403 = vmatpush1.bf16.msra.mxu0 %v2385
      %2404 = vmatprep.subr.bf16.mxu0 0
      %2405 = vmatpush1.bf16.msra.mxu0 %v2386
      %2406 = vmatprep.subr.bf16.mxu0 0
      %2407 = vmatpush1.bf16.msra.mxu0 %v2387
      %2408 = vmatprep.subr.bf16.mxu0 0
      %2409 = vmatpush1.bf16.msra.mxu0 %v2388
      %2410 = vmatprep.subr.bf16.mxu0 0
      %2411 = vmatpush1.bf16.msra.mxu0 %v2389
      %2412 = vmatprep.subr.bf16.mxu0 0
      %2413 = vmatpush1.bf16.msra.mxu0 %v2390
      %2414 = vmatprep.subr.bf16.mxu0 0
      %2415 = vmatpush1.bf16.msra.mxu0 %v2391
      %2416 = vmatprep.subr.bf16.mxu0 0
      %2417 = vmatpush1.bf16.msra.mxu0 0
      %2418 = vmatprep.subr.bf16.mxu0 0
      %2419 = vmatpush1.bf16.msra.mxu0 0
      %2420 = vmatprep.subr.bf16.mxu0 0
      %2421 = vmatpush1.bf16.msra.mxu0 0
      %2422 = vmatprep.subr.bf16.mxu0 0
      %2423 = vmatpush1.bf16.msra.mxu0 0
      %2424 = vmatprep.subr.bf16.mxu0 0
      %2425 = vmatpush1.bf16.msra.mxu0 0
      %2426 = vmatprep.subr.bf16.mxu0 0
      %2427 = vmatpush1.bf16.msra.mxu0 0
      %2428 = vmatprep.subr.bf16.mxu0 0
      %2429 = vmatpush1.bf16.msra.mxu0 0
      %2430 = vmatprep.subr.bf16.mxu0 0
      %2431 = vmatpush1.bf16.msra.mxu0 0
      %2432 = vmatprep.mubr.bf16.mxu0 0
      %2433 = vmatmul.mubr.bf16.gmra.mrb[0].mxu0 %v2327
      %v2434 = vpop.f32.mrb[0].mxu0
      %v2435 = vadd.f32 0.0, %v2434
      %v2436 = vpop.f32.mrb[0].mxu0
      %v2437 = vpop.f32.mrb[0].mxu0
      %v2438 = vadd.f32 0.0, %v2437
      %v2439 = vpop.f32.mrb[0].mxu0
      %2440 = vmatprep.mubr.bf16.mxu0 0
      %2441 = vmatmul.mubr.bf16.gmra.mrb[0].mxu0 %v2328
      %v2442 = vpop.f32.mrb[0].mxu0
      %v2443 = vadd.f32 0.0, %v2442
      %v2444 = vpop.f32.mrb[0].mxu0
      %v2445 = vpop.f32.mrb[0].mxu0
      %v2446 = vadd.f32 0.0, %v2445
      %v2447 = vpop.f32.mrb[0].mxu0
      %2448 = vmatprep.mubr.bf16.mxu0 0
      %2449 = vmatmul.mubr.bf16.gmra.mrb[0].mxu0 %v2329
      %v2450 = vpop.f32.mrb[0].mxu0
      %v2451 = vadd.f32 0.0, %v2450
      %v2452 = vpop.f32.mrb[0].mxu0
      %v2453 = vpop.f32.mrb[0].mxu0
      %v2454 = vadd.f32 0.0, %v2453
      %v2455 = vpop.f32.mrb[0].mxu0
      %2456 = vmatprep.mubr.bf16.mxu0 0
      %2457 = vmatmul.mubr.bf16.gmra.mrb[0].mxu0 %v2330
      %v2458 = vpop.f32.mrb[0].mxu0
      %v2459 = vadd.f32 0.0, %v2458
      %v2460 = vpop.f32.mrb[0].mxu0
      %v2461 = vpop.f32.mrb[0].mxu0
      %v2462 = vadd.f32 0.0, %v2461
      %v2463 = vpop.f32.mrb[0].mxu0
      %2464 = vmatprep.mubr.bf16.mxu0 0
      %2465 = vmatmul.mubr.bf16.gmra.mrb[0].mxu0 %v2331
      %v2466 = vpop.f32.mrb[0].mxu0
      %v2467 = vadd.f32 0.0, %v2466
      %v2468 = vpop.f32.mrb[0].mxu0
      %v2469 = vpop.f32.mrb[0].mxu0
      %v2470 = vadd.f32 0.0, %v2469
      %v2471 = vpop.f32.mrb[0].mxu0
      %2472 = vmatprep.mubr.bf16.mxu0 0
      %2473 = vmatmul.mubr.bf16.gmra.mrb[0].mxu0 %v2332
      %v2474 = vpop.f32.mrb[0].mxu0
      %v2475 = vadd.f32 0.0, %v2474
      %v2476 = vpop.f32.mrb[0].mxu0
      %v2477 = vpop.f32.mrb[0].mxu0
      %v2478 = vadd.f32 0.0, %v2477
      %v2479 = vpop.f32.mrb[0].mxu0
      %2480 = vmatprep.mubr.bf16.mxu0 0
      %2481 = vmatmul.mubr.bf16.gmra.mrb[0].mxu0 %v2333
      %v2482 = vpop.f32.mrb[0].mxu0
      %v2483 = vadd.f32 0.0, %v2482
      %v2484 = vpop.f32.mrb[0].mxu0
      %v2485 = vpop.f32.mrb[0].mxu0
      %v2486 = vadd.f32 0.0, %v2485
      %v2487 = vpop.f32.mrb[0].mxu0
      %2488 = vmatprep.mubr.bf16.mxu0 0
      %2489 = vmatmul.mubr.bf16.gmra.mrb[0].mxu0 %v2334
      %v2490 = vpop.f32.mrb[0].mxu0
      %v2491 = vadd.f32 0.0, %v2490
      %v2492 = vpop.f32.mrb[0].mxu0
      %v2493 = vpop.f32.mrb[0].mxu0
      %v2494 = vadd.f32 0.0, %v2493
      %v2495 = vpop.f32.mrb[0].mxu0
      %2496 = vdwg.mxu0
      %v2497 = vadd.f32 %v2311, %v2435
      %v2498 = vadd.f32 %v2312, %v2438
      %v2499 = vadd.f32 %v2313, %v2443
      %v2500 = vadd.f32 %v2314, %v2446
      %v2501 = vadd.f32 %v2315, %v2451
      %v2502 = vadd.f32 %v2316, %v2454
      %v2503 = vadd.f32 %v2317, %v2459
      %v2504 = vadd.f32 %v2318, %v2462
      %v2505 = vadd.f32 %v2319, %v2467
      %v2506 = vadd.f32 %v2320, %v2470
      %v2507 = vadd.f32 %v2321, %v2475
      %v2508 = vadd.f32 %v2322, %v2478
      %v2509 = vadd.f32 %v2323, %v2483
      %v2510 = vadd.f32 %v2324, %v2486
      %v2511 = vadd.f32 %v2325, %v2491
      %v2512 = vadd.f32 %v2326, %v2494
      %v2513 = vrot.slane %v2077, 1
      %v2514 = vrot.slane %v2078, 1
      %v2515 = vrot.slane %v2079, 1
      %v2516 = vrot.slane %v2080, 1
      %v2517 = vrot.slane %v2081, 1
      %v2518 = vrot.slane %v2082, 1
      %v2519 = vrot.slane %v2083, 1
      %v2520 = vrot.slane %v2084, 1
      %v2521 = vrot.slane %v2085, 1
      %v2522 = vrot.slane %v2086, 1
      %v2523 = vrot.slane %v2087, 1
      %v2524 = vrot.slane %v2088, 1
      %v2525 = vrot.slane %v2089, 1
      %v2526 = vrot.slane %v2090, 1
      %v2527 = vrot.slane %v2091, 1
      %v2528 = vrot.slane %v2092, 1
      %v2529 = vsel %vm1134, %v2527, %v2528
      %v2530 = vsel %vm1134, %v2526, %v2527
      %v2531 = vsel %vm1134, %v2525, %v2526
      %v2532 = vsel %vm1134, %v2524, %v2525
      %v2533 = vsel %vm1134, %v2523, %v2524
      %v2534 = vsel %vm1134, %v2522, %v2523
      %v2535 = vsel %vm1134, %v2521, %v2522
      %v2536 = vsel %vm1134, %v2520, %v2521
      %v2537 = vsel %vm1134, %v2519, %v2520
      %v2538 = vsel %vm1134, %v2518, %v2519
      %v2539 = vsel %vm1134, %v2517, %v2518
      %v2540 = vsel %vm1134, %v2516, %v2517
      %v2541 = vsel %vm1134, %v2515, %v2516
      %v2542 = vsel %vm1134, %v2514, %v2515
      %v2543 = vsel %vm1134, %v2513, %v2514
      %v2544 = vsel %vm1134, %v2528, %v2513
      %v2545 = vsel %vm1183, %v2543, 0.0
      %v2546 = vsel %vm1184, %v2542, 0.0
      %v2547 = vsel %vm1185, %v2541, 0.0
      %v2548 = vsel %vm1186, %v2540, 0.0
      %v2549 = vsel %vm1187, %v2539, 0.0
      %v2550 = vsel %vm1188, %v2538, 0.0
      %v2551 = vsel %vm1189, %v2537, 0.0
      %v2552 = vsel %vm1190, %v2536, 0.0
      %v2553 = vsel %vm1191, %v2535, 0.0
      %v2554 = vsel %vm1192, %v2534, 0.0
      %v2555 = vsel %vm1193, %v2533, 0.0
      %v2556 = vsel %vm1194, %v2532, 0.0
      %v2557 = vsel %vm1195, %v2531, 0.0
      %v2558 = vsel %vm1196, %v2530, 0.0
      %v2559 = vsel %vm1197, %v2529, 0.0
      %v2560 = vsel %vm1198, %v2544, 0.0
      %v2561 = vpack.c.bf16 %v2546, %v2545
      %v2562 = vpack.c.bf16 %v2548, %v2547
      %v2563 = vpack.c.bf16 %v2550, %v2549
      %v2564 = vpack.c.bf16 %v2552, %v2551
      %v2565 = vpack.c.bf16 %v2554, %v2553
      %v2566 = vpack.c.bf16 %v2556, %v2555
      %v2567 = vpack.c.bf16 %v2558, %v2557
      %v2568 = vpack.c.bf16 %v2560, %v2559
      %s2569 = scalar_lea.vmem %s1, 512
      %v2570 = vld [vmem:[%s2569] sm:$0xf]
      %v2571 = vld [vmem:[%s2569 + $0x4] sm:$0xf]
      %v2572 = vld [vmem:[%s2569 + $0x8] sm:$0xf]
      %v2573 = vld [vmem:[%s2569 + $0xc] sm:$0xf]
      %v2574 = vld [vmem:[%s2569 + $0x10] sm:$0xf]
      %v2575 = vld [vmem:[%s2569 + $0x14] sm:$0xf]
      %v2576 = vld [vmem:[%s2569 + $0x18] sm:$0xf]
      %v2577 = vld [vmem:[%s2569 + $0x1c] sm:$0xf]
      %v2578 = vld [vmem:[%s2569 + $0x20] sm:$0xf]
      %v2579 = vld [vmem:[%s2569 + $0x24] sm:$0xf]
      %v2580 = vld [vmem:[%s2569 + $0x28] sm:$0xf]
      %v2581 = vld [vmem:[%s2569 + $0x2c] sm:$0xf]
      %v2582 = vld [vmem:[%s2569 + $0x30] sm:$0xf]
      %v2583 = vld [vmem:[%s2569 + $0x34] sm:$0xf]
      %v2584 = vld [vmem:[%s2569 + $0x38] sm:$0xf]
      %v2585 = vld [vmem:[%s2569 + $0x3c] sm:$0xf]
      %v2602 = vunpack.c.l.b16 %v2570
      %v2603 = vunpack.c.l.b16 %v2571
      %v2604 = vunpack.c.l.b16 %v2572
      %v2605 = vunpack.c.l.b16 %v2573
      %v2606 = vunpack.c.l.b16 %v2574
      %v2607 = vunpack.c.l.b16 %v2575
      %v2608 = vunpack.c.l.b16 %v2576
      %v2609 = vunpack.c.l.b16 %v2577
      %v2610 = vunpack.c.l.b16 %v2578
      %v2611 = vunpack.c.l.b16 %v2579
      %v2612 = vunpack.c.l.b16 %v2580
      %v2613 = vunpack.c.l.b16 %v2581
      %v2614 = vunpack.c.l.b16 %v2582
      %v2615 = vunpack.c.l.b16 %v2583
      %v2616 = vunpack.c.l.b16 %v2584
      %v2617 = vunpack.c.l.b16 %v2585
      %v2618 = vpack.c.b16 %v2603, %v2602
      %v2619 = vpack.c.b16 %v2605, %v2604
      %v2620 = vpack.c.b16 %v2607, %v2606
      %v2621 = vpack.c.b16 %v2609, %v2608
      %v2622 = vpack.c.b16 %v2611, %v2610
      %v2623 = vpack.c.b16 %v2613, %v2612
      %v2624 = vpack.c.b16 %v2615, %v2614
      %v2625 = vpack.c.b16 %v2617, %v2616
      %2634 = vmatprep.subr.bf16.mxu0 0
      %2635 = vmatpush1.bf16.msra.mxu0 %v2618
      %2636 = vmatprep.subr.bf16.mxu0 0
      %2637 = vmatpush1.bf16.msra.mxu0 %v2619
      %2638 = vmatprep.subr.bf16.mxu0 0
      %2639 = vmatpush1.bf16.msra.mxu0 %v2620
      %2640 = vmatprep.subr.bf16.mxu0 0
      %2641 = vmatpush1.bf16.msra.mxu0 %v2621
      %2642 = vmatprep.subr.bf16.mxu0 0
      %2643 = vmatpush1.bf16.msra.mxu0 %v2622
      %2644 = vmatprep.subr.bf16.mxu0 0
      %2645 = vmatpush1.bf16.msra.mxu0 %v2623
      %2646 = vmatprep.subr.bf16.mxu0 0
      %2647 = vmatpush1.bf16.msra.mxu0 %v2624
      %2648 = vmatprep.subr.bf16.mxu0 0
      %2649 = vmatpush1.bf16.msra.mxu0 %v2625
      %2650 = vmatprep.subr.bf16.mxu0 0
      %2651 = vmatpush1.bf16.msra.mxu0 0
      %2652 = vmatprep.subr.bf16.mxu0 0
      %2653 = vmatpush1.bf16.msra.mxu0 0
      %2654 = vmatprep.subr.bf16.mxu0 0
      %2655 = vmatpush1.bf16.msra.mxu0 0
      %2656 = vmatprep.subr.bf16.mxu0 0
      %2657 = vmatpush1.bf16.msra.mxu0 0
      %2658 = vmatprep.subr.bf16.mxu0 0
      %2659 = vmatpush1.bf16.msra.mxu0 0
      %2660 = vmatprep.subr.bf16.mxu0 0
      %2661 = vmatpush1.bf16.msra.mxu0 0
      %2662 = vmatprep.subr.bf16.mxu0 0
      %2663 = vmatpush1.bf16.msra.mxu0 0
      %2664 = vmatprep.subr.bf16.mxu0 0
      %2665 = vmatpush1.bf16.msra.mxu0 0
      %2666 = vmatprep.mubr.bf16.mxu0 0
      %2667 = vmatmul.mubr.bf16.gmra.mrb[0].mxu0 %v2561
      %v2668 = vpop.f32.mrb[0].mxu0
      %v2669 = vadd.f32 0.0, %v2668
      %v2670 = vpop.f32.mrb[0].mxu0
      %v2671 = vpop.f32.mrb[0].mxu0
      %v2672 = vadd.f32 0.0, %v2671
      %v2673 = vpop.f32.mrb[0].mxu0
      %2674 = vmatprep.mubr.bf16.mxu0 0
      %2675 = vmatmul.mubr.bf16.gmra.mrb[0].mxu0 %v2562
      %v2676 = vpop.f32.mrb[0].mxu0
      %v2677 = vadd.f32 0.0, %v2676
      %v2678 = vpop.f32.mrb[0].mxu0
      %v2679 = vpop.f32.mrb[0].mxu0
      %v2680 = vadd.f32 0.0, %v2679
      %v2681 = vpop.f32.mrb[0].mxu0
      %2682 = vmatprep.mubr.bf16.mxu0 0
      %2683 = vmatmul.mubr.bf16.gmra.mrb[0].mxu0 %v2563
      %v2684 = vpop.f32.mrb[0].mxu0
      %v2685 = vadd.f32 0.0, %v2684
      %v2686 = vpop.f32.mrb[0].mxu0
      %v2687 = vpop.f32.mrb[0].mxu0
      %v2688 = vadd.f32 0.0, %v2687
      %v2689 = vpop.f32.mrb[0].mxu0
      %2690 = vmatprep.mubr.bf16.mxu0 0
      %2691 = vmatmul.mubr.bf16.gmra.mrb[0].mxu0 %v2564
      %v2692 = vpop.f32.mrb[0].mxu0
      %v2693 = vadd.f32 0.0, %v2692
      %v2694 = vpop.f32.mrb[0].mxu0
      %v2695 = vpop.f32.mrb[0].mxu0
      %v2696 = vadd.f32 0.0, %v2695
      %v2697 = vpop.f32.mrb[0].mxu0
      %2698 = vmatprep.mubr.bf16.mxu0 0
      %2699 = vmatmul.mubr.bf16.gmra.mrb[0].mxu0 %v2565
      %v2700 = vpop.f32.mrb[0].mxu0
      %v2701 = vadd.f32 0.0, %v2700
      %v2702 = vpop.f32.mrb[0].mxu0
      %v2703 = vpop.f32.mrb[0].mxu0
      %v2704 = vadd.f32 0.0, %v2703
      %v2705 = vpop.f32.mrb[0].mxu0
      %2706 = vmatprep.mubr.bf16.mxu0 0
      %2707 = vmatmul.mubr.bf16.gmra.mrb[0].mxu0 %v2566
      %v2708 = vpop.f32.mrb[0].mxu0
      %v2709 = vadd.f32 0.0, %v2708
      %v2710 = vpop.f32.mrb[0].mxu0
      %v2711 = vpop.f32.mrb[0].mxu0
      %v2712 = vadd.f32 0.0, %v2711
      %v2713 = vpop.f32.mrb[0].mxu0
      %2714 = vmatprep.mubr.bf16.mxu0 0
      %2715 = vmatmul.mubr.bf16.gmra.mrb[0].mxu0 %v2567
      %v2716 = vpop.f32.mrb[0].mxu0
      %v2717 = vadd.f32 0.0, %v2716
      %v2718 = vpop.f32.mrb[0].mxu0
      %v2719 = vpop.f32.mrb[0].mxu0
      %v2720 = vadd.f32 0.0, %v2719
      %v2721 = vpop.f32.mrb[0].mxu0
      %2722 = vmatprep.mubr.bf16.mxu0 0
      %2723 = vmatmul.mubr.bf16.gmra.mrb[0].mxu0 %v2568
      %v2724 = vpop.f32.mrb[0].mxu0
      %v2725 = vadd.f32 0.0, %v2724
      %v2726 = vpop.f32.mrb[0].mxu0
      %v2727 = vpop.f32.mrb[0].mxu0
      %v2728 = vadd.f32 0.0, %v2727
      %v2729 = vpop.f32.mrb[0].mxu0
      %2730 = vdwg.mxu0
      %v2731 = vadd.f32 %v2497, %v2669
      %v2732 = vadd.f32 %v2498, %v2672
      %v2733 = vadd.f32 %v2499, %v2677
      %v2734 = vadd.f32 %v2500, %v2680
      %v2735 = vadd.f32 %v2501, %v2685
      %v2736 = vadd.f32 %v2502, %v2688
      %v2737 = vadd.f32 %v2503, %v2693
      %v2738 = vadd.f32 %v2504, %v2696
      %v2739 = vadd.f32 %v2505, %v2701
      %v2740 = vadd.f32 %v2506, %v2704
      %v2741 = vadd.f32 %v2507, %v2709
      %v2742 = vadd.f32 %v2508, %v2712
      %v2743 = vadd.f32 %v2509, %v2717
      %v2744 = vadd.f32 %v2510, %v2720
      %v2745 = vadd.f32 %v2511, %v2725
      %v2746 = vadd.f32 %v2512, %v2728
      %2747 = vst [vmem:[%s259] sm:$0xff] %v2731
      %2748 = vst [vmem:[%s259 + $0x8] sm:$0xff] %v2732
      %2749 = vst [vmem:[%s259 + $0x10] sm:$0xff] %v2733
      %2750 = vst [vmem:[%s259 + $0x18] sm:$0xff] %v2734
      %2751 = vst [vmem:[%s259 + $0x20] sm:$0xff] %v2735
      %2752 = vst [vmem:[%s259 + $0x28] sm:$0xff] %v2736
      %2753 = vst [vmem:[%s259 + $0x30] sm:$0xff] %v2737
      %2754 = vst [vmem:[%s259 + $0x38] sm:$0xff] %v2738
      %2755 = vst [vmem:[%s259 + $0x40] sm:$0xff] %v2739
      %2756 = vst [vmem:[%s259 + $0x48] sm:$0xff] %v2740
      %2757 = vst [vmem:[%s259 + $0x50] sm:$0xff] %v2741
      %2758 = vst [vmem:[%s259 + $0x58] sm:$0xff] %v2742
      %2759 = vst [vmem:[%s259 + $0x60] sm:$0xff] %v2743
      %2760 = vst [vmem:[%s259 + $0x68] sm:$0xff] %v2744
      %2761 = vst [vmem:[%s259 + $0x70] sm:$0xff] %v2745
      %2762 = vst [vmem:[%s259 + $0x78] sm:$0xff] %v2746
      %v2763 = vadd.f32 %v2731, %v2732
      %v2764 = vadd.f32 %v2763, %v2733
      %v2765 = vadd.f32 %v2764, %v2734
      %v2766 = vadd.f32 %v2765, %v2735
      %v2767 = vadd.f32 %v2766, %v2736
      %v2768 = vadd.f32 %v2767, %v2737
      %v2769 = vadd.f32 %v2768, %v2738
      %v2770 = vadd.f32 %v2769, %v2739
      %v2771 = vadd.f32 %v2770, %v2740
      %v2772 = vadd.f32 %v2771, %v2741
      %v2773 = vadd.f32 %v2772, %v2742
      %v2774 = vadd.f32 %v2773, %v2743
      %v2775 = vadd.f32 %v2774, %v2744
      %v2776 = vadd.f32 %v2775, %v2745
      %v2777 = vadd.f32 %v2776, %v2746
      %v2778 = vrot.slane %v2777, 4
      %v2779 = vadd.f32 %v2777, %v2778
      %v2780 = vrot.slane %v2779, 2
      %v2781 = vadd.f32 %v2779, %v2780
      %v2782 = vrot.slane %v2781, 1
      %v2783 = vadd.f32 %v2781, %v2782
      %v2784 = vmul.f32 %v2731, %v2731
      %v2785 = vmul.f32 %v2732, %v2732
      %v2786 = vmul.f32 %v2733, %v2733
      %v2787 = vmul.f32 %v2734, %v2734
      %v2788 = vmul.f32 %v2735, %v2735
      %v2789 = vmul.f32 %v2736, %v2736
      %v2790 = vmul.f32 %v2737, %v2737
      %v2791 = vmul.f32 %v2738, %v2738
      %v2792 = vmul.f32 %v2739, %v2739
      %v2793 = vmul.f32 %v2740, %v2740
      %v2794 = vmul.f32 %v2741, %v2741
      %v2795 = vmul.f32 %v2742, %v2742
      %v2796 = vmul.f32 %v2743, %v2743
      %v2797 = vmul.f32 %v2744, %v2744
      %v2798 = vmul.f32 %v2745, %v2745
      %v2799 = vmul.f32 %v2746, %v2746
      %v2800 = vadd.f32 %v2784, %v2785
      %v2801 = vadd.f32 %v2800, %v2786
      %v2802 = vadd.f32 %v2801, %v2787
      %v2803 = vadd.f32 %v2802, %v2788
      %v2804 = vadd.f32 %v2803, %v2789
      %v2805 = vadd.f32 %v2804, %v2790
      %v2806 = vadd.f32 %v2805, %v2791
      %v2807 = vadd.f32 %v2806, %v2792
      %v2808 = vadd.f32 %v2807, %v2793
      %v2809 = vadd.f32 %v2808, %v2794
      %v2810 = vadd.f32 %v2809, %v2795
      %v2811 = vadd.f32 %v2810, %v2796
      %v2812 = vadd.f32 %v2811, %v2797
      %v2813 = vadd.f32 %v2812, %v2798
      %v2814 = vadd.f32 %v2813, %v2799
      %v2815 = vrot.slane %v2814, 4
      %v2816 = vadd.f32 %v2814, %v2815
      %v2817 = vrot.slane %v2816, 2
      %v2818 = vadd.f32 %v2816, %v2817
      %v2819 = vrot.slane %v2818, 1
      %v2820 = vadd.f32 %v2818, %v2819
      %vm2821 = vcmask 1040384
      %v2822 = vsel %vm2821, %v2783, %v2820
      %2823 = vst [vmem:[%s268] sm:$0x3] %v2822
      %s2824 = smul.u32 16, %s22
      %p2825 = scmp.lt.s32.totalorder %s21, 1
      %s2826 = scalar_select %p2825, %s21, 1
      %p2827 = scmp.lt.s32.totalorder %s2824, 31
      %s2828 = scalar_select %p2827, %s2824, 31
      %s2829 = smul.addr %s2826, 32
      %s2830 = sadd.s32 %s2828, %s2829
      %s2831 = smul.addr %s2830, 8
      %s2832 = scalar_lea.vmem %s4, %s2831
      %p2833 = scmp.lt.s32.totalorder %s21, 1
      %s2834 = scalar_select %p2833, %s21, 1
      %p2835 = scmp.lt.s32.totalorder %s22, 1
      %s2836 = scalar_select %p2835, %s22, 1
      %s2837 = smul.addr %s2834, 2
      %s2838 = sadd.s32 %s2836, %s2837
      %s2839 = smul.addr %s2838, 2
      %s2840 = scalar_lea.vmem %s5, %s2839
      // Predicated region
      $region41: #{basic_block_forward.4} parent=35 // pred_check
        %p2841 = pneg %p138
      $region42: #{basic_block_forward.4} parent=35 // pred_check_branch
        %2843 = sbr.rel (%p2841) target = $region44
      $region43: #{basic_block_forward.4} parent=35 // pred_region
        %s2844 = smul.u32 16, %s22
      $region44: #{basic_block_forward.4} parent=35 // pred_fallthru
        _
      // Predicated region
      $region45: #{basic_block_forward.4} parent=35 // pred_check
        %p2845 = pneg %p166
      $region46: #{basic_block_forward.4} parent=35 // pred_check_branch
        %2847 = sbr.rel (%p2845) target = $region48
      $region47: #{basic_block_forward.4} parent=35 // pred_region
        _
      $region48: #{basic_block_forward.4} parent=35 // pred_fallthru
        _
    $region36: #{basic_block_forward.4} parent=5 // pred_fallthru
      _
    %p2848 = scmp.le.s32.totalorder 2, %s12
    // Predicated region
    $region49: #{basic_block_forward.4} parent=5 // pred_check
      %p2849 = pneg %p2848
    $region50: #{basic_block_forward.4} parent=5 // pred_check_branch
      %2851 = sbr.rel (%p2849) target = $region52
    $region51: #{basic_block_forward.4} parent=5 // pred_region
      %s2852 = ssub.s32 %s12, 2
      // Predicated region
      $region53: #{basic_block_forward.4} parent=51 // pred_check
        %p2853 = pneg %p144
      $region54: #{basic_block_forward.4} parent=51 // pred_check_branch
        %2855 = sbr.rel (%p2853) target = $region56
      $region55: #{basic_block_forward.4} parent=51 // pred_region
        %s2856 = smul.u32 16, %s24
        %p2857 = scmp.lt.s32.totalorder %s23, 1
        %s2858 = scalar_select %p2857, %s23, 1
        %p2859 = scmp.lt.s32.totalorder %s2856, 31
        %s2860 = scalar_select %p2859, %s2856, 31
        %s2861 = smul.addr %s2858, 32
        %s2862 = sadd.s32 %s2860, %s2861
        %s2863 = smul.addr %s2862, 8
        %s2864 = scalar_lea.vmem %s4, %s2863
      $region56: #{basic_block_forward.4} parent=51 // pred_fallthru
        _
      // Predicated region
      $region57: #{basic_block_forward.4} parent=51 // pred_check
        %p2865 = pneg %p172
      $region58: #{basic_block_forward.4} parent=51 // pred_check_branch
        %2867 = sbr.rel (%p2865) target = $region60
      $region59: #{basic_block_forward.4} parent=51 // pred_region
        %p2868 = scmp.lt.s32.totalorder %s23, 1
        %s2869 = scalar_select %p2868, %s23, 1
        %p2870 = scmp.lt.s32.totalorder %s24, 1
        %s2871 = scalar_select %p2870, %s24, 1
        %s2872 = smul.addr %s2869, 2
        %s2873 = sadd.s32 %s2871, %s2872
        %s2874 = smul.addr %s2873, 2
        %s2875 = scalar_lea.vmem %s5, %s2874
      $region60: #{basic_block_forward.4} parent=51 // pred_fallthru
        _
    $region52: #{basic_block_forward.4} parent=5 // pred_fallthru
      _
  $region6: #{basic_block_forward.4} parent=0 // loop_footer
    %s16 = sadd.s32 1, %s12
  $region7: #{basic_block_forward.4} parent=0 // loop_footer_branch
    %11 = sbr.rel target = $region3
  $region8: #{basic_block_forward.4} parent=0 // loop_exit
    _

</llo_original>
